<compile_context>
chip_gen: v7x
topology: tpu7x:2x2x1
jax: 0.10.0
libtpu: 0.0.40
codegen_flags: <defaults>
</compile_context>

<pallas_src>
import jax
import jax.numpy as jnp
from jax.experimental import pallas as pl
from jax.experimental.pallas import tpu as pltpu

TM = 256   # M tile for the fused 1x1 matmuls (full-N resident weights)


# ----------------------------------------------------------------------------
# Fused triple 1x1x1 conv: three matmuls + bias + ReLU sharing one x read.
# ----------------------------------------------------------------------------
def _fused_1x1_kernel(x_ref, w0_ref, w1_ref, w2_ref, b0_ref, b1_ref, b2_ref,
                      o0_ref, o1_ref, o2_ref):
    x = x_ref[...]
    a0 = jnp.dot(x, w0_ref[...], preferred_element_type=jnp.float32)
    o0_ref[...] = jnp.maximum(a0 + b0_ref[...], 0.0).astype(o0_ref.dtype)
    a1 = jnp.dot(x, w1_ref[...], preferred_element_type=jnp.float32)
    o1_ref[...] = jnp.maximum(a1 + b1_ref[...], 0.0).astype(o1_ref.dtype)
    a2 = jnp.dot(x, w2_ref[...], preferred_element_type=jnp.float32)
    o2_ref[...] = jnp.maximum(a2 + b2_ref[...], 0.0).astype(o2_ref.dtype)


def fused_1x1_convs(x2d, w0, b0, w1, b1, w2, b2, tm=TM):
    """x2d: [M, K] bf16; wi: [K, Ni] bf16; bi: [1, Ni] f32.
    Returns (o0 f32 [M,N0], o1 bf16 [M,N1], o2 bf16 [M,N2])."""
    M, K = x2d.shape
    N0, N1, N2 = w0.shape[1], w1.shape[1], w2.shape[1]
    padm = (-M) % tm
    xp = jnp.pad(x2d, ((0, padm), (0, 0))) if padm else x2d
    Mp = xp.shape[0]

    flops = 2 * Mp * K * (N0 + N1 + N2)
    bytes_accessed = (Mp * K * 2 + K * (N0 + N1 + N2) * 2
                      + Mp * (N0 * 4 + (N1 + N2) * 2))

    o0, o1, o2 = pl.pallas_call(
        _fused_1x1_kernel,
        out_shape=(jax.ShapeDtypeStruct((Mp, N0), jnp.float32),
                   jax.ShapeDtypeStruct((Mp, N1), jnp.bfloat16),
                   jax.ShapeDtypeStruct((Mp, N2), jnp.bfloat16)),
        grid_spec=pltpu.PrefetchScalarGridSpec(
            num_scalar_prefetch=0,
            grid=(Mp // tm,),
            in_specs=[
                pl.BlockSpec((tm, K), lambda i: (i, 0)),
                pl.BlockSpec((K, N0), lambda i: (0, 0)),   # resident weights
                pl.BlockSpec((K, N1), lambda i: (0, 0)),
                pl.BlockSpec((K, N2), lambda i: (0, 0)),
                pl.BlockSpec((1, N0), lambda i: (0, 0)),
                pl.BlockSpec((1, N1), lambda i: (0, 0)),
                pl.BlockSpec((1, N2), lambda i: (0, 0)),
            ],
            out_specs=(
                pl.BlockSpec((tm, N0), lambda i: (i, 0)),
                pl.BlockSpec((tm, N1), lambda i: (i, 0)),
                pl.BlockSpec((tm, N2), lambda i: (i, 0)),
            ),
        ),
        compiler_params=pltpu.CompilerParams(
            dimension_semantics=("parallel",)),
        cost_estimate=pl.CostEstimate(flops=flops, transcendentals=0,
                                      bytes_accessed=bytes_accessed),
    )(xp, w0, w1, w2, b0, b1, b2)
    if padm:
        o0, o1, o2 = o0[:M], o1[:M], o2[:M]
    return o0, o1, o2


# ----------------------------------------------------------------------------
# 3x3x3 conv (pad=1, stride=1): per-(n, d) slab, kd reduction axis, im2col
# built in VMEM, resident weight, f32 accumulator scratch.
# ----------------------------------------------------------------------------
def _conv3x3_kernel(x_ref, w_ref, b_ref, o_ref, acc_ref):
    kd = pl.program_id(2)

    @pl.when(kd == 0)
    def _():
        acc_ref[...] = jnp.zeros_like(acc_ref)

    H, W, cout = o_ref.shape
    x = x_ref[...]                                   # (H+2, W+2, Cp) bf16
    taps = [x[kh:kh + H, kw:kw + W, :]
            for kh in range(3) for kw in range(3)]
    patches = jnp.concatenate(taps, axis=-1).reshape(H * W, -1)   # (H*W, 9*Cp)
    acc_ref[...] += jnp.dot(patches, w_ref[kd],
                            preferred_element_type=jnp.float32)

    @pl.when(kd == pl.num_programs(2) - 1)
    def _():
        y = jnp.maximum(acc_ref[...] + b_ref[...], 0.0)
        o_ref[...] = y.reshape(H, W, cout).astype(o_ref.dtype)


def basic_conv3d_3x3(x, conv):
    """x: [N, D, H, W, Cp] bf16 (channels zero-padded to Cp).
    conv['w']: [Cout, Cin, 3, 3, 3] (Cin <= Cp)."""
    N, D, H, W, Cp = x.shape
    w = conv["w"] * conv["scale"][:, None, None, None, None]   # fold BN scale
    cout, cin = w.shape[0], w.shape[1]
    wt = jnp.transpose(w, (2, 3, 4, 1, 0))                     # [3,3,3,Cin,Cout]
    if cin < Cp:
        wt = jnp.pad(wt, ((0, 0), (0, 0), (0, 0), (0, Cp - cin), (0, 0)))
    wk = wt.reshape(3, 9 * Cp, cout).astype(jnp.bfloat16)
    bias = conv["bias"].astype(jnp.float32).reshape(1, cout)
    xp = jnp.pad(x, ((0, 0), (1, 1), (1, 1), (1, 1), (0, 0)))  # zero pad D/H/W

    flops = 2 * N * D * H * W * 27 * Cp * cout
    bytes_accessed = (3 * N * D * (H + 2) * (W + 2) * Cp * 2
                      + 27 * Cp * cout * 2 + N * D * H * W * cout * 4)

    return pl.pallas_call(
        _conv3x3_kernel,
        out_shape=jax.ShapeDtypeStruct((N, D, H, W, cout), jnp.float32),
        grid_spec=pltpu.PrefetchScalarGridSpec(
            num_scalar_prefetch=0,
            grid=(N, D, 3),
            in_specs=[
                pl.BlockSpec((None, None, H + 2, W + 2, Cp),
                             lambda n, d, kd: (n, d + kd, 0, 0, 0)),
                pl.BlockSpec((3, 9 * Cp, cout),          # fully resident weight
                             lambda n, d, kd: (0, 0, 0)),
                pl.BlockSpec((1, cout), lambda n, d, kd: (0, 0)),
            ],
            out_specs=pl.BlockSpec((None, None, H, W, cout),
                                   lambda n, d, kd: (n, d, 0, 0, 0)),
            scratch_shapes=[pltpu.VMEM((H * W, cout), jnp.float32)],
        ),
        compiler_params=pltpu.CompilerParams(
            dimension_semantics=("parallel", "parallel", "arbitrary")),
        cost_estimate=pl.CostEstimate(flops=flops, transcendentals=0,
                                      bytes_accessed=bytes_accessed),
    )(xp, wk, bias)


# ----------------------------------------------------------------------------
# Fused MaxPool3d(3, stride=1, pad=1) + 1x1 conv + BN + ReLU (branch3).
# ----------------------------------------------------------------------------
def _pool_conv1x1_kernel(x_ref, w_ref, b_ref, o_ref, dmax_ref):
    kd = pl.program_id(2)
    x = x_ref[...]                                   # (H, W, C) bf16

    @pl.when(kd == 0)
    def _():
        dmax_ref[...] = x

    @pl.when(kd > 0)
    def _():
        dmax_ref[...] = jnp.maximum(dmax_ref[...], x)

    @pl.when(kd == pl.num_programs(2) - 1)
    def _():
        m = dmax_ref[...]
        H, W, C = m.shape
        # 3-tap max along W then H with clamped (replicated) borders; for max
        # pooling replicate-pad is equivalent to -inf pad.
        ml = jnp.concatenate([m[:, :1, :], m[:, :W - 1, :]], axis=1)
        mr = jnp.concatenate([m[:, 1:, :], m[:, W - 1:, :]], axis=1)
        mw = jnp.maximum(jnp.maximum(ml, m), mr)
        mu = jnp.concatenate([mw[:1], mw[:H - 1]], axis=0)
        md = jnp.concatenate([mw[1:], mw[H - 1:]], axis=0)
        mm = jnp.maximum(jnp.maximum(mu, mw), md)
        acc = jnp.dot(mm.reshape(H * W, C), w_ref[...],
                      preferred_element_type=jnp.float32)
        y = jnp.maximum(acc + b_ref[...], 0.0)
        o_ref[...] = y.reshape(o_ref.shape).astype(o_ref.dtype)


def maxpool_conv1x1(x, w2d, bias):
    """x: [N, D, H, W, C] bf16; w2d: [C, Cout] bf16; bias: [1, Cout] f32."""
    N, D, H, W, C = x.shape
    cout = w2d.shape[1]

    def x_map(n, d, kd):
        dz = jnp.minimum(jnp.maximum(d + kd - 1, 0), D - 1)   # clamped window
        return (n, dz, 0, 0, 0)

    flops = 2 * N * D * H * W * C * cout
    bytes_accessed = (3 * N * D * H * W * C * 2 + C * cout * 2
                      + N * D * H * W * cout * 4)

    return pl.pallas_call(
        _pool_conv1x1_kernel,
        out_shape=jax.ShapeDtypeStruct((N, D, H, W, cout), jnp.float32),
        grid_spec=pltpu.PrefetchScalarGridSpec(
            num_scalar_prefetch=0,
            grid=(N, D, 3),
            in_specs=[
                pl.BlockSpec((None, None, H, W, C), x_map),
                pl.BlockSpec((C, cout), lambda n, d, kd: (0, 0)),  # resident
                pl.BlockSpec((1, cout), lambda n, d, kd: (0, 0)),
            ],
            out_specs=pl.BlockSpec((None, None, H, W, cout),
                                   lambda n, d, kd: (n, d, 0, 0, 0)),
            scratch_shapes=[pltpu.VMEM((H, W, C), jnp.bfloat16)],
        ),
        compiler_params=pltpu.CompilerParams(
            dimension_semantics=("parallel", "parallel", "arbitrary")),
        cost_estimate=pl.CostEstimate(flops=flops, transcendentals=0,
                                      bytes_accessed=bytes_accessed),
    )(x, w2d, bias)


# ----------------------------------------------------------------------------
# BN folding (inference mode) and parameter init
# ----------------------------------------------------------------------------
def _fold_1x1(conv, pad_to=None):
    # conv["w"]: [Cout, Cin, 1, 1, 1] -> [Cin, Cout] bf16 with BN scale folded.
    w = (conv["w"][:, :, 0, 0, 0] * conv["scale"][:, None]).T
    b = conv["bias"]
    if pad_to is not None and w.shape[1] < pad_to:
        extra = pad_to - w.shape[1]
        w = jnp.pad(w, ((0, 0), (0, extra)))
        b = jnp.pad(b, ((0, extra),))
    return w.astype(jnp.bfloat16), b.astype(jnp.float32).reshape(1, -1)


def init_basic_conv3d(key, cin, cout, ksize):
    kw, kg, kb, km, kv = jax.random.split(key, 5)
    kshape = (cout, cin, ksize, ksize, ksize)
    w = jax.random.normal(kw, kshape, jnp.float32) * (0.05 if ksize == 1 else 0.02)
    gamma = 1.0 + 0.1 * jax.random.normal(kg, (cout,), jnp.float32)
    beta = 0.1 * jax.random.normal(kb, (cout,), jnp.float32)
    run_mean = 0.1 * jax.random.normal(km, (cout,), jnp.float32)
    run_var = 0.5 + jax.random.uniform(kv, (cout,), jnp.float32)
    eps = 1e-3
    scale = gamma / jnp.sqrt(run_var + eps)
    bias = beta - run_mean * scale
    return {"w": w, "scale": scale, "bias": bias}


def mixed_4c_init(key):
    ks = jax.random.split(key, 6)
    return {
        "b0_0": init_basic_conv3d(ks[0], 512, 160, 1),
        "b1_0": init_basic_conv3d(ks[1], 512, 112, 1),
        "b1_1": init_basic_conv3d(ks[2], 112, 224, 3),
        "b2_0": init_basic_conv3d(ks[3], 512, 24, 1),
        "b2_1": init_basic_conv3d(ks[4], 24, 64, 3),
        "b3_1": init_basic_conv3d(ks[5], 512, 64, 1),
    }


# ----------------------------------------------------------------------------
# Mixed_4c forward
# ----------------------------------------------------------------------------
@jax.jit
def mixed_4c_forward(params, x_ncdhw):
    p = params
    # One-pass NCDHW -> NDHWC transpose + bf16 cast; both the fused 1x1 matmul
    # and the pool branch consume this same copy.
    x = jnp.transpose(x_ncdhw, (0, 2, 3, 4, 1)).astype(jnp.bfloat16)
    N, D, H, W, C = x.shape
    M = N * D * H * W

    w0, b0 = _fold_1x1(p["b0_0"])                 # 512 -> 160
    w1, b1 = _fold_1x1(p["b1_0"], pad_to=128)     # 512 -> 112 (pad to 128)
    w2, b2 = _fold_1x1(p["b2_0"], pad_to=128)     # 512 -> 24  (pad to 128)
    w3, b3 = _fold_1x1(p["b3_1"])                 # 512 -> 64

    # Branch0 / branch1[0] / branch2[0]: one fused pallas_call.
    y0, y1, y2 = fused_1x1_convs(x.reshape(M, C), w0, b0, w1, b1, w2, b2)
    x0 = y0.reshape(N, D, H, W, 160)                                   # f32
    x1 = basic_conv3d_3x3(y1.reshape(N, D, H, W, 128), p["b1_1"])      # -> 224
    x2 = basic_conv3d_3x3(y2.reshape(N, D, H, W, 128), p["b2_1"])      # -> 64
    x3 = maxpool_conv1x1(x, w3, b3)                                    # -> 64

    out = jnp.concatenate([x0, x1, x2, x3], axis=-1)   # 160+224+64+64 = 512
    return jnp.transpose(out, (0, 4, 1, 2, 3))          # back to NCDHW, f32


if __name__ == "__main__":
    key = jax.random.PRNGKey(0)
    kp, kx = jax.random.split(key)
    params = mixed_4c_init(kp)
    # Channel count (512) is fixed by the module; keep batch/spatial small.
    x = jax.random.normal(kx, (2, 512, 4, 8, 8), jnp.float32)
    out = mixed_4c_forward(params, x)
    out = jax.block_until_ready(out)
    assert out.shape == (2, 512, 4, 8, 8), out.shape
    assert bool(jnp.all(jnp.isfinite(out)))
    print("KERNEL_OK")
</pallas_src>

<mosaic_0001>
module attributes {stable_mosaic.version = 11 : i64} {
  func.func @_fused_1x1_kernel(%arg0: i32, %arg1: memref<256x512xbf16, #tpu.memory_space<vmem>>, %arg2: memref<512x160xbf16, #tpu.memory_space<vmem>>, %arg3: memref<512x128xbf16, #tpu.memory_space<vmem>>, %arg4: memref<512x128xbf16, #tpu.memory_space<vmem>>, %arg5: memref<1x160xf32, #tpu.memory_space<vmem>>, %arg6: memref<1x128xf32, #tpu.memory_space<vmem>>, %arg7: memref<1x128xf32, #tpu.memory_space<vmem>>, %arg8: memref<256x160xf32, #tpu.memory_space<vmem>>, %arg9: memref<256x128xbf16, #tpu.memory_space<vmem>>, %arg10: memref<256x128xbf16, #tpu.memory_space<vmem>>) attributes {dimension_semantics = [#tpu.dimension_semantics<parallel>], iteration_bounds = array<i64: 2>, scalar_prefetch = 0 : i64, scratch_operands = 0 : i64, tpu.core_type = #tpu.core_type<tc>, window_params = [{transform_indices = @transform_0, window_bounds = array<i64: 256, 512>}, {pipeline_mode = #tpu.pipeline_mode<synchronous>, transform_indices = @transform_1, window_bounds = array<i64: 512, 160>}, {pipeline_mode = #tpu.pipeline_mode<synchronous>, transform_indices = @transform_2, window_bounds = array<i64: 512, 128>}, {pipeline_mode = #tpu.pipeline_mode<synchronous>, transform_indices = @transform_3, window_bounds = array<i64: 512, 128>}, {pipeline_mode = #tpu.pipeline_mode<synchronous>, transform_indices = @transform_4, window_bounds = array<i64: 1, 160>}, {pipeline_mode = #tpu.pipeline_mode<synchronous>, transform_indices = @transform_5, window_bounds = array<i64: 1, 128>}, {pipeline_mode = #tpu.pipeline_mode<synchronous>, transform_indices = @transform_6, window_bounds = array<i64: 1, 128>}, {transform_indices = @transform_7, window_bounds = array<i64: 256, 160>}, {transform_indices = @transform_8, window_bounds = array<i64: 256, 128>}, {transform_indices = @transform_9, window_bounds = array<i64: 256, 128>}]} {
    %c0 = arith.constant 0 : index
    %c0_0 = arith.constant 0 : index
    %0 = vector.load %arg1[%c0, %c0_0] : memref<256x512xbf16, #tpu.memory_space<vmem>>, vector<256x512xbf16>
    %c0_1 = arith.constant 0 : index
    %c0_2 = arith.constant 0 : index
    %1 = vector.load %arg2[%c0_1, %c0_2] : memref<512x160xbf16, #tpu.memory_space<vmem>>, vector<512x160xbf16>
    %cst = arith.constant dense<0.000000e+00> : vector<256x160xf32>
    %2 = tpu.matmul %0, %1, %cst {dimension_numbers = #tpu.dot_dimension_numbers<[1], [0], [0], [1], [0, 0, 1, 1], [], []>} : vector<256x512xbf16>, vector<512x160xbf16>, vector<256x160xf32> -> vector<256x160xf32>
    %c0_3 = arith.constant 0 : index
    %c0_4 = arith.constant 0 : index
    %3 = vector.load %arg5[%c0_3, %c0_4] : memref<1x160xf32, #tpu.memory_space<vmem>>, vector<1x160xf32>
    %4 = vector.broadcast %3 : vector<1x160xf32> to vector<256x160xf32>
    %5 = arith.addf %2, %4 : vector<256x160xf32>
    %cst_5 = arith.constant 0.000000e+00 : f32
    %6 = vector.broadcast %cst_5 : f32 to vector<256x160xf32>
    %7 = arith.maximumf %5, %6 : vector<256x160xf32>
    %c0_6 = arith.constant 0 : index
    %c0_7 = arith.constant 0 : index
    %8 = vector.load %arg8[%c0_6, %c0_7] : memref<256x160xf32, #tpu.memory_space<vmem>>, vector<256x160xf32>
    tpu.vector_store %arg8[%c0_6, %c0_7], %7 {strides = array<i32>} : memref<256x160xf32, #tpu.memory_space<vmem>>, vector<256x160xf32>,
    %c0_8 = arith.constant 0 : index
    %c0_9 = arith.constant 0 : index
    %9 = vector.load %arg3[%c0_8, %c0_9] : memref<512x128xbf16, #tpu.memory_space<vmem>>, vector<512x128xbf16>
    %cst_10 = arith.constant dense<0.000000e+00> : vector<256x128xf32>
    %10 = tpu.matmul %0, %9, %cst_10 {dimension_numbers = #tpu.dot_dimension_numbers<[1], [0], [0], [1], [0, 0, 1, 1], [], []>} : vector<256x512xbf16>, vector<512x128xbf16>, vector<256x128xf32> -> vector<256x128xf32>
    %c0_11 = arith.constant 0 : index
    %c0_12 = arith.constant 0 : index
    %11 = vector.load %arg6[%c0_11, %c0_12] : memref<1x128xf32, #tpu.memory_space<vmem>>, vector<1x128xf32>
    %12 = vector.broadcast %11 : vector<1x128xf32> to vector<256x128xf32>
    %13 = arith.addf %10, %12 : vector<256x128xf32>
    %cst_13 = arith.constant 0.000000e+00 : f32
    %14 = vector.broadcast %cst_13 : f32 to vector<256x128xf32>
    %15 = arith.maximumf %13, %14 : vector<256x128xf32>
    %16 = arith.truncf %15 : vector<256x128xf32> to vector<256x128xbf16>
    %c0_14 = arith.constant 0 : index
    %c0_15 = arith.constant 0 : index
    %17 = vector.load %arg9[%c0_14, %c0_15] : memref<256x128xbf16, #tpu.memory_space<vmem>>, vector<256x128xbf16>
    tpu.vector_store %arg9[%c0_14, %c0_15], %16 {strides = array<i32>} : memref<256x128xbf16, #tpu.memory_space<vmem>>, vector<256x128xbf16>,
    %c0_16 = arith.constant 0 : index
    %c0_17 = arith.constant 0 : index
    %18 = vector.load %arg4[%c0_16, %c0_17] : memref<512x128xbf16, #tpu.memory_space<vmem>>, vector<512x128xbf16>
    %cst_18 = arith.constant dense<0.000000e+00> : vector<256x128xf32>
    %19 = tpu.matmul %0, %18, %cst_18 {dimension_numbers = #tpu.dot_dimension_numbers<[1], [0], [0], [1], [0, 0, 1, 1], [], []>} : vector<256x512xbf16>, vector<512x128xbf16>, vector<256x128xf32> -> vector<256x128xf32>
    %c0_19 = arith.constant 0 : index
    %c0_20 = arith.constant 0 : index
    %20 = vector.load %arg7[%c0_19, %c0_20] : memref<1x128xf32, #tpu.memory_space<vmem>>, vector<1x128xf32>
    %21 = vector.broadcast %20 : vector<1x128xf32> to vector<256x128xf32>
    %22 = arith.addf %19, %21 : vector<256x128xf32>
    %cst_21 = arith.constant 0.000000e+00 : f32
    %23 = vector.broadcast %cst_21 : f32 to vector<256x128xf32>
    %24 = arith.maximumf %22, %23 : vector<256x128xf32>
    %25 = arith.truncf %24 : vector<256x128xf32> to vector<256x128xbf16>
    %c0_22 = arith.constant 0 : index
    %c0_23 = arith.constant 0 : index
    %26 = vector.load %arg10[%c0_22, %c0_23] : memref<256x128xbf16, #tpu.memory_space<vmem>>, vector<256x128xbf16>
    tpu.vector_store %arg10[%c0_22, %c0_23], %25 {strides = array<i32>} : memref<256x128xbf16, #tpu.memory_space<vmem>>, vector<256x128xbf16>,
    return
  }
  func.func @transform_0(%arg0: i32) -> (i32, i32) {
    %c0_i32 = arith.constant 0 : i32
    %c0_i32_0 = arith.constant 0 : i32
    return %arg0, %c0_i32 : i32, i32
  }
  func.func @transform_1(%arg0: i32) -> (i32, i32) {
    %c0_i32 = arith.constant 0 : i32
    %c0_i32_0 = arith.constant 0 : i32
    %c0_i32_1 = arith.constant 0 : i32
    return %c0_i32, %c0_i32_0 : i32, i32
  }
  func.func @transform_2(%arg0: i32) -> (i32, i32) {
    %c0_i32 = arith.constant 0 : i32
    %c0_i32_0 = arith.constant 0 : i32
    %c0_i32_1 = arith.constant 0 : i32
    return %c0_i32, %c0_i32_0 : i32, i32
  }
  func.func @transform_3(%arg0: i32) -> (i32, i32) {
    %c0_i32 = arith.constant 0 : i32
    %c0_i32_0 = arith.constant 0 : i32
    %c0_i32_1 = arith.constant 0 : i32
    return %c0_i32, %c0_i32_0 : i32, i32
  }
  func.func @transform_4(%arg0: i32) -> (i32, i32) {
    %c0_i32 = arith.constant 0 : i32
    %c0_i32_0 = arith.constant 0 : i32
    %c0_i32_1 = arith.constant 0 : i32
    return %c0_i32, %c0_i32_0 : i32, i32
  }
  func.func @transform_5(%arg0: i32) -> (i32, i32) {
    %c0_i32 = arith.constant 0 : i32
    %c0_i32_0 = arith.constant 0 : i32
    %c0_i32_1 = arith.constant 0 : i32
    return %c0_i32, %c0_i32_0 : i32, i32
  }
  func.func @transform_6(%arg0: i32) -> (i32, i32) {
    %c0_i32 = arith.constant 0 : i32
    %c0_i32_0 = arith.constant 0 : i32
    %c0_i32_1 = arith.constant 0 : i32
    return %c0_i32, %c0_i32_0 : i32, i32
  }
  func.func @transform_7(%arg0: i32) -> (i32, i32) {
    %c0_i32 = arith.constant 0 : i32
    %c0_i32_0 = arith.constant 0 : i32
    return %arg0, %c0_i32 : i32, i32
  }
  func.func @transform_8(%arg0: i32) -> (i32, i32) {
    %c0_i32 = arith.constant 0 : i32
    %c0_i32_0 = arith.constant 0 : i32
    return %arg0, %c0_i32 : i32, i32
  }
  func.func @transform_9(%arg0: i32) -> (i32, i32) {
    %c0_i32 = arith.constant 0 : i32
    %c0_i32_0 = arith.constant 0 : i32
    return %arg0, %c0_i32 : i32, i32
  }
}

module attributes {stable_mosaic.version = 11 : i64} {
  func.func @_conv3x3_kernel(%arg0: i32, %arg1: i32, %arg2: i32, %arg3: memref<1x1x10x10x128xbf16, #tpu.memory_space<vmem>>, %arg4: memref<3x1152x224xbf16, #tpu.memory_space<vmem>>, %arg5: memref<1x224xf32, #tpu.memory_space<vmem>>, %arg6: memref<1x1x8x8x224xf32, #tpu.memory_space<vmem>>, %arg7: memref<64x224xf32, #tpu.memory_space<vmem>>) attributes {dimension_semantics = [#tpu.dimension_semantics<parallel>, #tpu.dimension_semantics<parallel>, #tpu.dimension_semantics<arbitrary>], iteration_bounds = array<i64: 2, 4, 3>, scalar_prefetch = 0 : i64, scratch_operands = 1 : i64, tpu.core_type = #tpu.core_type<tc>, window_params = [{transform_indices = @transform_0, window_bounds = array<i64: 1, 1, 10, 10, 128>}, {pipeline_mode = #tpu.pipeline_mode<synchronous>, transform_indices = @transform_1, window_bounds = array<i64: 3, 1152, 224>}, {pipeline_mode = #tpu.pipeline_mode<synchronous>, transform_indices = @transform_2, window_bounds = array<i64: 1, 224>}, {transform_indices = @transform_3, window_bounds = array<i64: 1, 1, 8, 8, 224>}]} {
    %c0_i32 = arith.constant 0 : i32
    %0 = arith.cmpi eq, %arg2, %c0_i32 : i32
    %1 = arith.extui %0 : i1 to i32
    %c0_i32_0 = arith.constant 0 : i32
    %2 = arith.cmpi ne, %1, %c0_i32_0 : i32
    scf.if %2 {
      %cst_12 = arith.constant 0.000000e+00 : f32
      %26 = vector.broadcast %cst_12 : f32 to vector<64x224xf32>
      %c0_13 = arith.constant 0 : index
      %c0_14 = arith.constant 0 : index
      %27 = vector.load %arg7[%c0_13, %c0_14] : memref<64x224xf32, #tpu.memory_space<vmem>>, vector<64x224xf32>
      tpu.vector_store %arg7[%c0_13, %c0_14], %26 {strides = array<i32>} : memref<64x224xf32, #tpu.memory_space<vmem>>, vector<64x224xf32>,
    } else {
    }
    %c0 = arith.constant 0 : index
    %c0_1 = arith.constant 0 : index
    %c0_2 = arith.constant 0 : index
    %c0_3 = arith.constant 0 : index
    %c0_4 = arith.constant 0 : index
    %3 = vector.load %arg3[%c0, %c0_1, %c0_2, %c0_3, %c0_4] : memref<1x1x10x10x128xbf16, #tpu.memory_space<vmem>>, vector<1x1x10x10x128xbf16>
    %4 = vector.shape_cast %3 : vector<1x1x10x10x128xbf16> to vector<10x10x128xbf16>
    %5 = vector.extract_strided_slice %4 {offsets = [0, 0, 0], sizes = [8, 8, 128], strides = [1, 1, 1]} : vector<10x10x128xbf16> to vector<8x8x128xbf16>
    %6 = vector.extract_strided_slice %4 {offsets = [0, 1, 0], sizes = [8, 8, 128], strides = [1, 1, 1]} : vector<10x10x128xbf16> to vector<8x8x128xbf16>
    %7 = vector.extract_strided_slice %4 {offsets = [0, 2, 0], sizes = [8, 8, 128], strides = [1, 1, 1]} : vector<10x10x128xbf16> to vector<8x8x128xbf16>
    %8 = vector.extract_strided_slice %4 {offsets = [1, 0, 0], sizes = [8, 8, 128], strides = [1, 1, 1]} : vector<10x10x128xbf16> to vector<8x8x128xbf16>
    %9 = vector.extract_strided_slice %4 {offsets = [1, 1, 0], sizes = [8, 8, 128], strides = [1, 1, 1]} : vector<10x10x128xbf16> to vector<8x8x128xbf16>
    %10 = vector.extract_strided_slice %4 {offsets = [1, 2, 0], sizes = [8, 8, 128], strides = [1, 1, 1]} : vector<10x10x128xbf16> to vector<8x8x128xbf16>
    %11 = vector.extract_strided_slice %4 {offsets = [2, 0, 0], sizes = [8, 8, 128], strides = [1, 1, 1]} : vector<10x10x128xbf16> to vector<8x8x128xbf16>
    %12 = vector.extract_strided_slice %4 {offsets = [2, 1, 0], sizes = [8, 8, 128], strides = [1, 1, 1]} : vector<10x10x128xbf16> to vector<8x8x128xbf16>
    %13 = vector.extract_strided_slice %4 {offsets = [2, 2, 0], sizes = [8, 8, 128], strides = [1, 1, 1]} : vector<10x10x128xbf16> to vector<8x8x128xbf16>
    %14 = tpu.concatenate %5, %6, %7, %8, %9, %10, %11, %12, %13 in 2 : vector<8x8x128xbf16>, vector<8x8x128xbf16>, vector<8x8x128xbf16>, vector<8x8x128xbf16>, vector<8x8x128xbf16>, vector<8x8x128xbf16>, vector<8x8x128xbf16>, vector<8x8x128xbf16>, vector<8x8x128xbf16> -> vector<8x8x1152xbf16>
    %15 = vector.shape_cast %14 : vector<8x8x1152xbf16> to vector<64x1152xbf16>
    %c0_5 = arith.constant 0 : index
    %c0_6 = arith.constant 0 : index
    %16 = vector.load %arg7[%c0_5, %c0_6] : memref<64x224xf32, #tpu.memory_space<vmem>>, vector<64x224xf32>
    %17 = arith.index_cast %arg2 : i32 to index
    %c0_7 = arith.constant 0 : index
    %c0_8 = arith.constant 0 : index
    %18 = vector.load %arg4[%17, %c0_7, %c0_8] : memref<3x1152x224xbf16, #tpu.memory_space<vmem>>, vector<1x1152x224xbf16>
    %19 = vector.shape_cast %18 : vector<1x1152x224xbf16> to vector<1152x224xbf16>
    %cst = arith.constant dense<0.000000e+00> : vector<64x224xf32>
    %20 = tpu.matmul %15, %19, %cst {dimension_numbers = #tpu.dot_dimension_numbers<[1], [0], [0], [1], [0, 0, 1, 1], [], []>} : vector<64x1152xbf16>, vector<1152x224xbf16>, vector<64x224xf32> -> vector<64x224xf32>
    %21 = arith.addf %16, %20 : vector<64x224xf32>
    %c0_9 = arith.constant 0 : index
    %c0_10 = arith.constant 0 : index
    %22 = vector.load %arg7[%c0_9, %c0_10] : memref<64x224xf32, #tpu.memory_space<vmem>>, vector<64x224xf32>
    tpu.vector_store %arg7[%c0_9, %c0_10], %21 {strides = array<i32>} : memref<64x224xf32, #tpu.memory_space<vmem>>, vector<64x224xf32>,
    %c2_i32 = arith.constant 2 : i32
    %23 = arith.cmpi eq, %arg2, %c2_i32 : i32
    %24 = arith.extui %23 : i1 to i32
    %c0_i32_11 = arith.constant 0 : i32
    %25 = arith.cmpi ne, %24, %c0_i32_11 : i32
    scf.if %25 {
      %c0_12 = arith.constant 0 : index
      %c0_13 = arith.constant 0 : index
      %26 = vector.load %arg7[%c0_12, %c0_13] : memref<64x224xf32, #tpu.memory_space<vmem>>, vector<64x224xf32>
      %c0_14 = arith.constant 0 : index
      %c0_15 = arith.constant 0 : index
      %27 = vector.load %arg5[%c0_14, %c0_15] : memref<1x224xf32, #tpu.memory_space<vmem>>, vector<1x224xf32>
      %28 = vector.broadcast %27 : vector<1x224xf32> to vector<64x224xf32>
      %29 = arith.addf %26, %28 : vector<64x224xf32>
      %cst_16 = arith.constant 0.000000e+00 : f32
      %30 = vector.broadcast %cst_16 : f32 to vector<64x224xf32>
      %31 = arith.maximumf %29, %30 : vector<64x224xf32>
      %32 = vector.shape_cast %31 : vector<64x224xf32> to vector<8x8x224xf32>
      %c0_17 = arith.constant 0 : index
      %c0_18 = arith.constant 0 : index
      %c0_19 = arith.constant 0 : index
      %c0_20 = arith.constant 0 : index
      %c0_21 = arith.constant 0 : index
      %33 = vector.load %arg6[%c0_17, %c0_18, %c0_19, %c0_20, %c0_21] : memref<1x1x8x8x224xf32, #tpu.memory_space<vmem>>, vector<1x1x8x8x224xf32>
      %34 = vector.shape_cast %33 : vector<1x1x8x8x224xf32> to vector<8x8x224xf32>
      %35 = vector.shape_cast %32 : vector<8x8x224xf32> to vector<1x1x8x8x224xf32>
      tpu.vector_store %arg6[%c0_17, %c0_18, %c0_19, %c0_20, %c0_21], %35 {strides = array<i32>} : memref<1x1x8x8x224xf32, #tpu.memory_space<vmem>>, vector<1x1x8x8x224xf32>,
    } else {
    }
    return
  }
  func.func @transform_0(%arg0: i32, %arg1: i32, %arg2: i32) -> (i32, i32, i32, i32, i32) {
    %0 = arith.addi %arg1, %arg2 : i32
    %c0_i32 = arith.constant 0 : i32
    %c0_i32_0 = arith.constant 0 : i32
    %c0_i32_1 = arith.constant 0 : i32
    %c0_i32_2 = arith.constant 0 : i32
    return %arg0, %0, %c0_i32, %c0_i32_0, %c0_i32_1 : i32, i32, i32, i32, i32
  }
  func.func @transform_1(%arg0: i32, %arg1: i32, %arg2: i32) -> (i32, i32, i32) {
    %c0_i32 = arith.constant 0 : i32
    %c0_i32_0 = arith.constant 0 : i32
    %c0_i32_1 = arith.constant 0 : i32
    %c0_i32_2 = arith.constant 0 : i32
    return %c0_i32, %c0_i32_0, %c0_i32_1 : i32, i32, i32
  }
  func.func @transform_2(%arg0: i32, %arg1: i32, %arg2: i32) -> (i32, i32) {
    %c0_i32 = arith.constant 0 : i32
    %c0_i32_0 = arith.constant 0 : i32
    %c0_i32_1 = arith.constant 0 : i32
    return %c0_i32, %c0_i32_0 : i32, i32
  }
  func.func @transform_3(%arg0: i32, %arg1: i32, %arg2: i32) -> (i32, i32, i32, i32, i32) {
    %c0_i32 = arith.constant 0 : i32
    %c0_i32_0 = arith.constant 0 : i32
    %c0_i32_1 = arith.constant 0 : i32
    %c0_i32_2 = arith.constant 0 : i32
    return %arg0, %arg1, %c0_i32, %c0_i32_0, %c0_i32_1 : i32, i32, i32, i32, i32
  }
}

module attributes {stable_mosaic.version = 11 : i64} {
  func.func @_conv3x3_kernel(%arg0: i32, %arg1: i32, %arg2: i32, %arg3: memref<1x1x10x10x128xbf16, #tpu.memory_space<vmem>>, %arg4: memref<3x1152x64xbf16, #tpu.memory_space<vmem>>, %arg5: memref<1x64xf32, #tpu.memory_space<vmem>>, %arg6: memref<1x1x8x8x64xf32, #tpu.memory_space<vmem>>, %arg7: memref<64x64xf32, #tpu.memory_space<vmem>>) attributes {dimension_semantics = [#tpu.dimension_semantics<parallel>, #tpu.dimension_semantics<parallel>, #tpu.dimension_semantics<arbitrary>], iteration_bounds = array<i64: 2, 4, 3>, scalar_prefetch = 0 : i64, scratch_operands = 1 : i64, tpu.core_type = #tpu.core_type<tc>, window_params = [{transform_indices = @transform_0, window_bounds = array<i64: 1, 1, 10, 10, 128>}, {pipeline_mode = #tpu.pipeline_mode<synchronous>, transform_indices = @transform_1, window_bounds = array<i64: 3, 1152, 64>}, {pipeline_mode = #tpu.pipeline_mode<synchronous>, transform_indices = @transform_2, window_bounds = array<i64: 1, 64>}, {transform_indices = @transform_3, window_bounds = array<i64: 1, 1, 8, 8, 64>}]} {
    %c0_i32 = arith.constant 0 : i32
    %0 = arith.cmpi eq, %arg2, %c0_i32 : i32
    %1 = arith.extui %0 : i1 to i32
    %c0_i32_0 = arith.constant 0 : i32
    %2 = arith.cmpi ne, %1, %c0_i32_0 : i32
    scf.if %2 {
      %cst_12 = arith.constant 0.000000e+00 : f32
      %26 = vector.broadcast %cst_12 : f32 to vector<64x64xf32>
      %c0_13 = arith.constant 0 : index
      %c0_14 = arith.constant 0 : index
      %27 = vector.load %arg7[%c0_13, %c0_14] : memref<64x64xf32, #tpu.memory_space<vmem>>, vector<64x64xf32>
      tpu.vector_store %arg7[%c0_13, %c0_14], %26 {strides = array<i32>} : memref<64x64xf32, #tpu.memory_space<vmem>>, vector<64x64xf32>,
    } else {
    }
    %c0 = arith.constant 0 : index
    %c0_1 = arith.constant 0 : index
    %c0_2 = arith.constant 0 : index
    %c0_3 = arith.constant 0 : index
    %c0_4 = arith.constant 0 : index
    %3 = vector.load %arg3[%c0, %c0_1, %c0_2, %c0_3, %c0_4] : memref<1x1x10x10x128xbf16, #tpu.memory_space<vmem>>, vector<1x1x10x10x128xbf16>
    %4 = vector.shape_cast %3 : vector<1x1x10x10x128xbf16> to vector<10x10x128xbf16>
    %5 = vector.extract_strided_slice %4 {offsets = [0, 0, 0], sizes = [8, 8, 128], strides = [1, 1, 1]} : vector<10x10x128xbf16> to vector<8x8x128xbf16>
    %6 = vector.extract_strided_slice %4 {offsets = [0, 1, 0], sizes = [8, 8, 128], strides = [1, 1, 1]} : vector<10x10x128xbf16> to vector<8x8x128xbf16>
    %7 = vector.extract_strided_slice %4 {offsets = [0, 2, 0], sizes = [8, 8, 128], strides = [1, 1, 1]} : vector<10x10x128xbf16> to vector<8x8x128xbf16>
    %8 = vector.extract_strided_slice %4 {offsets = [1, 0, 0], sizes = [8, 8, 128], strides = [1, 1, 1]} : vector<10x10x128xbf16> to vector<8x8x128xbf16>
    %9 = vector.extract_strided_slice %4 {offsets = [1, 1, 0], sizes = [8, 8, 128], strides = [1, 1, 1]} : vector<10x10x128xbf16> to vector<8x8x128xbf16>
    %10 = vector.extract_strided_slice %4 {offsets = [1, 2, 0], sizes = [8, 8, 128], strides = [1, 1, 1]} : vector<10x10x128xbf16> to vector<8x8x128xbf16>
    %11 = vector.extract_strided_slice %4 {offsets = [2, 0, 0], sizes = [8, 8, 128], strides = [1, 1, 1]} : vector<10x10x128xbf16> to vector<8x8x128xbf16>
    %12 = vector.extract_strided_slice %4 {offsets = [2, 1, 0], sizes = [8, 8, 128], strides = [1, 1, 1]} : vector<10x10x128xbf16> to vector<8x8x128xbf16>
    %13 = vector.extract_strided_slice %4 {offsets = [2, 2, 0], sizes = [8, 8, 128], strides = [1, 1, 1]} : vector<10x10x128xbf16> to vector<8x8x128xbf16>
    %14 = tpu.concatenate %5, %6, %7, %8, %9, %10, %11, %12, %13 in 2 : vector<8x8x128xbf16>, vector<8x8x128xbf16>, vector<8x8x128xbf16>, vector<8x8x128xbf16>, vector<8x8x128xbf16>, vector<8x8x128xbf16>, vector<8x8x128xbf16>, vector<8x8x128xbf16>, vector<8x8x128xbf16> -> vector<8x8x1152xbf16>
    %15 = vector.shape_cast %14 : vector<8x8x1152xbf16> to vector<64x1152xbf16>
    %c0_5 = arith.constant 0 : index
    %c0_6 = arith.constant 0 : index
    %16 = vector.load %arg7[%c0_5, %c0_6] : memref<64x64xf32, #tpu.memory_space<vmem>>, vector<64x64xf32>
    %17 = arith.index_cast %arg2 : i32 to index
    %c0_7 = arith.constant 0 : index
    %c0_8 = arith.constant 0 : index
    %18 = vector.load %arg4[%17, %c0_7, %c0_8] : memref<3x1152x64xbf16, #tpu.memory_space<vmem>>, vector<1x1152x64xbf16>
    %19 = vector.shape_cast %18 : vector<1x1152x64xbf16> to vector<1152x64xbf16>
    %cst = arith.constant dense<0.000000e+00> : vector<64x64xf32>
    %20 = tpu.matmul %15, %19, %cst {dimension_numbers = #tpu.dot_dimension_numbers<[1], [0], [0], [1], [0, 0, 1, 1], [], []>} : vector<64x1152xbf16>, vector<1152x64xbf16>, vector<64x64xf32> -> vector<64x64xf32>
    %21 = arith.addf %16, %20 : vector<64x64xf32>
    %c0_9 = arith.constant 0 : index
    %c0_10 = arith.constant 0 : index
    %22 = vector.load %arg7[%c0_9, %c0_10] : memref<64x64xf32, #tpu.memory_space<vmem>>, vector<64x64xf32>
    tpu.vector_store %arg7[%c0_9, %c0_10], %21 {strides = array<i32>} : memref<64x64xf32, #tpu.memory_space<vmem>>, vector<64x64xf32>,
    %c2_i32 = arith.constant 2 : i32
    %23 = arith.cmpi eq, %arg2, %c2_i32 : i32
    %24 = arith.extui %23 : i1 to i32
    %c0_i32_11 = arith.constant 0 : i32
    %25 = arith.cmpi ne, %24, %c0_i32_11 : i32
    scf.if %25 {
      %c0_12 = arith.constant 0 : index
      %c0_13 = arith.constant 0 : index
      %26 = vector.load %arg7[%c0_12, %c0_13] : memref<64x64xf32, #tpu.memory_space<vmem>>, vector<64x64xf32>
      %c0_14 = arith.constant 0 : index
      %c0_15 = arith.constant 0 : index
      %27 = vector.load %arg5[%c0_14, %c0_15] : memref<1x64xf32, #tpu.memory_space<vmem>>, vector<1x64xf32>
      %28 = vector.broadcast %27 : vector<1x64xf32> to vector<64x64xf32>
      %29 = arith.addf %26, %28 : vector<64x64xf32>
      %cst_16 = arith.constant 0.000000e+00 : f32
      %30 = vector.broadcast %cst_16 : f32 to vector<64x64xf32>
      %31 = arith.maximumf %29, %30 : vector<64x64xf32>
      %32 = vector.shape_cast %31 : vector<64x64xf32> to vector<8x8x64xf32>
      %c0_17 = arith.constant 0 : index
      %c0_18 = arith.constant 0 : index
      %c0_19 = arith.constant 0 : index
      %c0_20 = arith.constant 0 : index
      %c0_21 = arith.constant 0 : index
      %33 = vector.load %arg6[%c0_17, %c0_18, %c0_19, %c0_20, %c0_21] : memref<1x1x8x8x64xf32, #tpu.memory_space<vmem>>, vector<1x1x8x8x64xf32>
      %34 = vector.shape_cast %33 : vector<1x1x8x8x64xf32> to vector<8x8x64xf32>
      %35 = vector.shape_cast %32 : vector<8x8x64xf32> to vector<1x1x8x8x64xf32>
      tpu.vector_store %arg6[%c0_17, %c0_18, %c0_19, %c0_20, %c0_21], %35 {strides = array<i32>} : memref<1x1x8x8x64xf32, #tpu.memory_space<vmem>>, vector<1x1x8x8x64xf32>,
    } else {
    }
    return
  }
  func.func @transform_0(%arg0: i32, %arg1: i32, %arg2: i32) -> (i32, i32, i32, i32, i32) {
    %0 = arith.addi %arg1, %arg2 : i32
    %c0_i32 = arith.constant 0 : i32
    %c0_i32_0 = arith.constant 0 : i32
    %c0_i32_1 = arith.constant 0 : i32
    %c0_i32_2 = arith.constant 0 : i32
    return %arg0, %0, %c0_i32, %c0_i32_0, %c0_i32_1 : i32, i32, i32, i32, i32
  }
  func.func @transform_1(%arg0: i32, %arg1: i32, %arg2: i32) -> (i32, i32, i32) {
    %c0_i32 = arith.constant 0 : i32
    %c0_i32_0 = arith.constant 0 : i32
    %c0_i32_1 = arith.constant 0 : i32
    %c0_i32_2 = arith.constant 0 : i32
    return %c0_i32, %c0_i32_0, %c0_i32_1 : i32, i32, i32
  }
  func.func @transform_2(%arg0: i32, %arg1: i32, %arg2: i32) -> (i32, i32) {
    %c0_i32 = arith.constant 0 : i32
    %c0_i32_0 = arith.constant 0 : i32
    %c0_i32_1 = arith.constant 0 : i32
    return %c0_i32, %c0_i32_0 : i32, i32
  }
  func.func @transform_3(%arg0: i32, %arg1: i32, %arg2: i32) -> (i32, i32, i32, i32, i32) {
    %c0_i32 = arith.constant 0 : i32
    %c0_i32_0 = arith.constant 0 : i32
    %c0_i32_1 = arith.constant 0 : i32
    %c0_i32_2 = arith.constant 0 : i32
    return %arg0, %arg1, %c0_i32, %c0_i32_0, %c0_i32_1 : i32, i32, i32, i32, i32
  }
}

module attributes {stable_mosaic.version = 11 : i64} {
  func.func @_pool_conv1x1_kernel(%arg0: i32, %arg1: i32, %arg2: i32, %arg3: memref<1x1x8x8x512xbf16, #tpu.memory_space<vmem>>, %arg4: memref<512x64xbf16, #tpu.memory_space<vmem>>, %arg5: memref<1x64xf32, #tpu.memory_space<vmem>>, %arg6: memref<1x1x8x8x64xf32, #tpu.memory_space<vmem>>, %arg7: memref<8x8x512xbf16, #tpu.memory_space<vmem>>) attributes {dimension_semantics = [#tpu.dimension_semantics<parallel>, #tpu.dimension_semantics<parallel>, #tpu.dimension_semantics<arbitrary>], iteration_bounds = array<i64: 2, 4, 3>, scalar_prefetch = 0 : i64, scratch_operands = 1 : i64, tpu.core_type = #tpu.core_type<tc>, window_params = [{transform_indices = @transform_0, window_bounds = array<i64: 1, 1, 8, 8, 512>}, {pipeline_mode = #tpu.pipeline_mode<synchronous>, transform_indices = @transform_1, window_bounds = array<i64: 512, 64>}, {pipeline_mode = #tpu.pipeline_mode<synchronous>, transform_indices = @transform_2, window_bounds = array<i64: 1, 64>}, {transform_indices = @transform_3, window_bounds = array<i64: 1, 1, 8, 8, 64>}]} {
    %c0 = arith.constant 0 : index
    %c0_0 = arith.constant 0 : index
    %c0_1 = arith.constant 0 : index
    %c0_2 = arith.constant 0 : index
    %c0_3 = arith.constant 0 : index
    %0 = vector.load %arg3[%c0, %c0_0, %c0_1, %c0_2, %c0_3] : memref<1x1x8x8x512xbf16, #tpu.memory_space<vmem>>, vector<1x1x8x8x512xbf16>
    %1 = vector.shape_cast %0 : vector<1x1x8x8x512xbf16> to vector<8x8x512xbf16>
    %c0_i32 = arith.constant 0 : i32
    %2 = arith.cmpi eq, %arg2, %c0_i32 : i32
    %3 = arith.extui %2 : i1 to i32
    %c0_i32_4 = arith.constant 0 : i32
    %4 = arith.cmpi ne, %3, %c0_i32_4 : i32
    scf.if %4 {
      %c0_8 = arith.constant 0 : index
      %c0_9 = arith.constant 0 : index
      %c0_10 = arith.constant 0 : index
      %11 = vector.load %arg7[%c0_8, %c0_9, %c0_10] : memref<8x8x512xbf16, #tpu.memory_space<vmem>>, vector<8x8x512xbf16>
      tpu.vector_store %arg7[%c0_8, %c0_9, %c0_10], %1 {strides = array<i32>} : memref<8x8x512xbf16, #tpu.memory_space<vmem>>, vector<8x8x512xbf16>,
    } else {
    }
    %c0_i32_5 = arith.constant 0 : i32
    %5 = arith.cmpi sgt, %arg2, %c0_i32_5 : i32
    %6 = arith.extui %5 : i1 to i32
    %c0_i32_6 = arith.constant 0 : i32
    %7 = arith.cmpi ne, %6, %c0_i32_6 : i32
    scf.if %7 {
      %c0_8 = arith.constant 0 : index
      %c0_9 = arith.constant 0 : index
      %c0_10 = arith.constant 0 : index
      %11 = vector.load %arg7[%c0_8, %c0_9, %c0_10] : memref<8x8x512xbf16, #tpu.memory_space<vmem>>, vector<8x8x512xbf16>
      %12 = arith.maximumf %11, %1 : vector<8x8x512xbf16>
      %c0_11 = arith.constant 0 : index
      %c0_12 = arith.constant 0 : index
      %c0_13 = arith.constant 0 : index
      %13 = vector.load %arg7[%c0_11, %c0_12, %c0_13] : memref<8x8x512xbf16, #tpu.memory_space<vmem>>, vector<8x8x512xbf16>
      tpu.vector_store %arg7[%c0_11, %c0_12, %c0_13], %12 {strides = array<i32>} : memref<8x8x512xbf16, #tpu.memory_space<vmem>>, vector<8x8x512xbf16>,
    } else {
    }
    %c2_i32 = arith.constant 2 : i32
    %8 = arith.cmpi eq, %arg2, %c2_i32 : i32
    %9 = arith.extui %8 : i1 to i32
    %c0_i32_7 = arith.constant 0 : i32
    %10 = arith.cmpi ne, %9, %c0_i32_7 : i32
    scf.if %10 {
      %c0_8 = arith.constant 0 : index
      %c0_9 = arith.constant 0 : index
      %c0_10 = arith.constant 0 : index
      %11 = vector.load %arg7[%c0_8, %c0_9, %c0_10] : memref<8x8x512xbf16, #tpu.memory_space<vmem>>, vector<8x8x512xbf16>
      %12 = vector.extract_strided_slice %11 {offsets = [0, 0, 0], sizes = [8, 1, 512], strides = [1, 1, 1]} : vector<8x8x512xbf16> to vector<8x1x512xbf16>
      %13 = vector.extract_strided_slice %11 {offsets = [0, 0, 0], sizes = [8, 7, 512], strides = [1, 1, 1]} : vector<8x8x512xbf16> to vector<8x7x512xbf16>
      %14 = tpu.concatenate %12, %13 in 1 : vector<8x1x512xbf16>, vector<8x7x512xbf16> -> vector<8x8x512xbf16>
      %15 = vector.extract_strided_slice %11 {offsets = [0, 1, 0], sizes = [8, 7, 512], strides = [1, 1, 1]} : vector<8x8x512xbf16> to vector<8x7x512xbf16>
      %16 = vector.extract_strided_slice %11 {offsets = [0, 7, 0], sizes = [8, 1, 512], strides = [1, 1, 1]} : vector<8x8x512xbf16> to vector<8x1x512xbf16>
      %17 = tpu.concatenate %15, %16 in 1 : vector<8x7x512xbf16>, vector<8x1x512xbf16> -> vector<8x8x512xbf16>
      %18 = arith.maximumf %14, %11 : vector<8x8x512xbf16>
      %19 = arith.maximumf %18, %17 : vector<8x8x512xbf16>
      %20 = vector.extract_strided_slice %19 {offsets = [0, 0, 0], sizes = [1, 8, 512], strides = [1, 1, 1]} : vector<8x8x512xbf16> to vector<1x8x512xbf16>
      %21 = vector.extract_strided_slice %19 {offsets = [0, 0, 0], sizes = [7, 8, 512], strides = [1, 1, 1]} : vector<8x8x512xbf16> to vector<7x8x512xbf16>
      %22 = tpu.concatenate %20, %21 in 0 : vector<1x8x512xbf16>, vector<7x8x512xbf16> -> vector<8x8x512xbf16>
      %23 = vector.extract_strided_slice %19 {offsets = [1, 0, 0], sizes = [7, 8, 512], strides = [1, 1, 1]} : vector<8x8x512xbf16> to vector<7x8x512xbf16>
      %24 = vector.extract_strided_slice %19 {offsets = [7, 0, 0], sizes = [1, 8, 512], strides = [1, 1, 1]} : vector<8x8x512xbf16> to vector<1x8x512xbf16>
      %25 = tpu.concatenate %23, %24 in 0 : vector<7x8x512xbf16>, vector<1x8x512xbf16> -> vector<8x8x512xbf16>
      %26 = arith.maximumf %22, %19 : vector<8x8x512xbf16>
      %27 = arith.maximumf %26, %25 : vector<8x8x512xbf16>
      %28 = vector.shape_cast %27 : vector<8x8x512xbf16> to vector<64x512xbf16>
      %c0_11 = arith.constant 0 : index
      %c0_12 = arith.constant 0 : index
      %29 = vector.load %arg4[%c0_11, %c0_12] : memref<512x64xbf16, #tpu.memory_space<vmem>>, vector<512x64xbf16>
      %cst = arith.constant dense<0.000000e+00> : vector<64x64xf32>
      %30 = tpu.matmul %28, %29, %cst {dimension_numbers = #tpu.dot_dimension_numbers<[1], [0], [0], [1], [0, 0, 1, 1], [], []>} : vector<64x512xbf16>, vector<512x64xbf16>, vector<64x64xf32> -> vector<64x64xf32>
      %c0_13 = arith.constant 0 : index
      %c0_14 = arith.constant 0 : index
      %31 = vector.load %arg5[%c0_13, %c0_14] : memref<1x64xf32, #tpu.memory_space<vmem>>, vector<1x64xf32>
      %32 = vector.broadcast %31 : vector<1x64xf32> to vector<64x64xf32>
      %33 = arith.addf %30, %32 : vector<64x64xf32>
      %cst_15 = arith.constant 0.000000e+00 : f32
      %34 = vector.broadcast %cst_15 : f32 to vector<64x64xf32>
      %35 = arith.maximumf %33, %34 : vector<64x64xf32>
      %36 = vector.shape_cast %35 : vector<64x64xf32> to vector<8x8x64xf32>
      %c0_16 = arith.constant 0 : index
      %c0_17 = arith.constant 0 : index
      %c0_18 = arith.constant 0 : index
      %c0_19 = arith.constant 0 : index
      %c0_20 = arith.constant 0 : index
      %37 = vector.load %arg6[%c0_16, %c0_17, %c0_18, %c0_19, %c0_20] : memref<1x1x8x8x64xf32, #tpu.memory_space<vmem>>, vector<1x1x8x8x64xf32>
      %38 = vector.shape_cast %37 : vector<1x1x8x8x64xf32> to vector<8x8x64xf32>
      %39 = vector.shape_cast %36 : vector<8x8x64xf32> to vector<1x1x8x8x64xf32>
      tpu.vector_store %arg6[%c0_16, %c0_17, %c0_18, %c0_19, %c0_20], %39 {strides = array<i32>} : memref<1x1x8x8x64xf32, #tpu.memory_space<vmem>>, vector<1x1x8x8x64xf32>,
    } else {
    }
    return
  }
  func.func @transform_0(%arg0: i32, %arg1: i32, %arg2: i32) -> (i32, i32, i32, i32, i32) {
    %0 = arith.addi %arg1, %arg2 : i32
    %c1_i32 = arith.constant 1 : i32
    %1 = arith.subi %0, %c1_i32 : i32
    %c0_i32 = arith.constant 0 : i32
    %2 = arith.maxsi %1, %c0_i32 : i32
    %c3_i32 = arith.constant 3 : i32
    %3 = arith.minsi %2, %c3_i32 : i32
    %c0_i32_0 = arith.constant 0 : i32
    %c0_i32_1 = arith.constant 0 : i32
    %c0_i32_2 = arith.constant 0 : i32
    %c0_i32_3 = arith.constant 0 : i32
    return %arg0, %3, %c0_i32_0, %c0_i32_1, %c0_i32_2 : i32, i32, i32, i32, i32
  }
  func.func @transform_1(%arg0: i32, %arg1: i32, %arg2: i32) -> (i32, i32) {
    %c0_i32 = arith.constant 0 : i32
    %c0_i32_0 = arith.constant 0 : i32
    %c0_i32_1 = arith.constant 0 : i32
    return %c0_i32, %c0_i32_0 : i32, i32
  }
  func.func @transform_2(%arg0: i32, %arg1: i32, %arg2: i32) -> (i32, i32) {
    %c0_i32 = arith.constant 0 : i32
    %c0_i32_0 = arith.constant 0 : i32
    %c0_i32_1 = arith.constant 0 : i32
    return %c0_i32, %c0_i32_0 : i32, i32
  }
  func.func @transform_3(%arg0: i32, %arg1: i32, %arg2: i32) -> (i32, i32, i32, i32, i32) {
    %c0_i32 = arith.constant 0 : i32
    %c0_i32_0 = arith.constant 0 : i32
    %c0_i32_1 = arith.constant 0 : i32
    %c0_i32_2 = arith.constant 0 : i32
    return %arg0, %arg1, %c0_i32, %c0_i32_0, %c0_i32_1 : i32, i32, i32, i32, i32
  }
}

</mosaic_0001>

<llo_original>
// kernel: mixed_4c_forward.4
$region0: #{mixed_4c_forward.4}
  #allocation0 [shape = 'u32[]', space=smem, size = 0x4, offset = 0x4, fixed_abs, tag = 'smem constant byte address 0x4 - core index']
  #allocation1 [shape = 'u32[144,128]{1,0:T(1,128)}', space=vmem, size = 0x12000, scoped, tag = 'internal scratch']
  %s0 = inlined_call_operand.vmem [shape: bf16[512,512], index: 0, kind: input, shape index: {}]
  %s1 = inlined_call_operand.vmem [shape: bf16[512,160], index: 1, kind: input, shape index: {}]
  %s2 = inlined_call_operand.vmem [shape: bf16[512,128], index: 2, kind: input, shape index: {}]
  %s3 = inlined_call_operand.vmem [shape: bf16[512,128], index: 3, kind: input, shape index: {}]
  %s4 = inlined_call_operand.vmem [shape: f32[1,160], index: 4, kind: input, shape index: {}]
  %s5 = inlined_call_operand.vmem [shape: f32[1,128], index: 5, kind: input, shape index: {}]
  %s6 = inlined_call_operand.vmem [shape: f32[1,128], index: 6, kind: input, shape index: {}]
  %s7 = inlined_call_operand.vmem [shape: f32[512,160], index: 7, kind: output, shape index: {0}]
  %s8 = inlined_call_operand.vmem [shape: bf16[512,128], index: 8, kind: output, shape index: {1}]
  %s9 = inlined_call_operand.vmem [shape: bf16[512,128], index: 9, kind: output, shape index: {2}]
  %10 = xla_tuple %s7, %s8, %s9
  %s11 = sld [smem:[#allocation0]]
  $region77: #{mixed_4c_forward.4} parent=0
    _
  %s13 = ssub.s32 1, %s11
  %s14 = scalar_select 0, %s13, %s11
  loop: start=0, step=1, limit=4
  $region2: #{mixed_4c_forward.4} parent=0 // loop_pre_header
    _
  $region3: #{mixed_4c_forward.4} parent=0 // loop_header
    %s16 = sphi 0, %s20
    %p17 = scmp.ge.s32.totalorder %s16, 4
    %s26 = sphi 0, %s28
    %s29 = sphi 0, %s26
    %s30 = sphi 0, %s29
    %s46 = sphi 0, %s30
    %s50 = sphi 0, %s50
    %s52 = sphi 0, %s50
    %s53 = sphi 0, %s52
    %s67 = sphi 0, %s53
    %s71 = sphi 0, %s71
    %s73 = sphi 0, %s71
    %s74 = sphi 0, %s73
    %s88 = sphi 0, %s74
    %s92 = sphi 0, %s92
    %s94 = sphi 0, %s92
    %s95 = sphi 0, %s94
    %s109 = sphi 0, %s95
    %s113 = sphi 0, %s113
    %s115 = sphi 0, %s113
    %s116 = sphi 0, %s115
    %s130 = sphi 0, %s116
    %s134 = sphi 0, %s134
    %s136 = sphi 0, %s134
    %s137 = sphi 0, %s136
    %s151 = sphi 0, %s137
    %s155 = sphi 0, %s155
    %s157 = sphi 0, %s155
    %s158 = sphi 0, %s157
    %s172 = sphi 0, %s158
    %s178 = sphi 0, %s180
    %s181 = sphi 0, %s178
    %s182 = sphi 0, %s181
    %s198 = sphi 0, %s182
    %s204 = sphi 0, %s206
    %s207 = sphi 0, %s204
    %s208 = sphi 0, %s207
    %s224 = sphi 0, %s208
    %s230 = sphi 0, %s232
    %s233 = sphi 0, %s230
    %s234 = sphi 0, %s233
    %s250 = sphi 0, %s234
  $region4: #{mixed_4c_forward.4} parent=0 // loop_header_branch
    %19 = sbr.rel (%p17) target = $region8
  $region5: #{mixed_4c_forward.4} parent=0 // loop_body
    %s21 = ssub.s32 %s16, 1
    %s22 = ssub.s32 %s16, 2
    %s23 = sadd.s32 %s16, 1
    %s24 = ssub.s32 %s16, %s23
    %p25 = scmp.eq.s32.totalorder %s24, 0
    %s27 = sadd.s32 %s26, 1
    %s28 = scalar_select %p25, %s26, %s27
    %p31 = pneg %p25
    %p32 = scmp.eq.s32.totalorder %s16, 1
    %p33 = por %p31, %p32
    %p34 = scmp.ne.s32.totalorder %s26, %s29
    %p35 = scmp.eq.s32.totalorder %s16, 0
    %p36 = por %p34, %p35
    %p37 = scmp.ne.s32.totalorder %s26, %s29
    %p38 = scmp.eq.s32.totalorder %s21, 1
    %p39 = por %p37, %p38
    %p40 = scmp.ne.s32.totalorder %s29, %s30
    %p41 = scmp.eq.s32.totalorder %s21, 0
    %p42 = por %p40, %p41
    %p43 = scmp.ne.s32.totalorder %s29, %s30
    %p44 = scmp.eq.s32.totalorder %s22, 1
    %p45 = por %p43, %p44
    %p47 = scmp.ne.s32.totalorder %s30, %s46
    %p48 = scmp.eq.s32.totalorder %s22, 0
    %p49 = por %p47, %p48
    %s51 = sadd.s32 %s50, 1
    %p54 = scmp.eq.s32.totalorder %s16, 1
    %p55 = scmp.ne.s32.totalorder %s50, %s52
    %p56 = scmp.eq.s32.totalorder %s16, 0
    %p57 = por %p55, %p56
    %p58 = scmp.ne.s32.totalorder %s50, %s52
    %p59 = scmp.eq.s32.totalorder %s21, 1
    %p60 = por %p58, %p59
    %p61 = scmp.ne.s32.totalorder %s52, %s53
    %p62 = scmp.eq.s32.totalorder %s21, 0
    %p63 = por %p61, %p62
    %p64 = scmp.ne.s32.totalorder %s52, %s53
    %p65 = scmp.eq.s32.totalorder %s22, 1
    %p66 = por %p64, %p65
    %p68 = scmp.ne.s32.totalorder %s53, %s67
    %p69 = scmp.eq.s32.totalorder %s22, 0
    %p70 = por %p68, %p69
    %s72 = sadd.s32 %s71, 1
    %p75 = scmp.eq.s32.totalorder %s16, 1
    %p76 = scmp.ne.s32.totalorder %s71, %s73
    %p77 = scmp.eq.s32.totalorder %s16, 0
    %p78 = por %p76, %p77
    %p79 = scmp.ne.s32.totalorder %s71, %s73
    %p80 = scmp.eq.s32.totalorder %s21, 1
    %p81 = por %p79, %p80
    %p82 = scmp.ne.s32.totalorder %s73, %s74
    %p83 = scmp.eq.s32.totalorder %s21, 0
    %p84 = por %p82, %p83
    %p85 = scmp.ne.s32.totalorder %s73, %s74
    %p86 = scmp.eq.s32.totalorder %s22, 1
    %p87 = por %p85, %p86
    %p89 = scmp.ne.s32.totalorder %s74, %s88
    %p90 = scmp.eq.s32.totalorder %s22, 0
    %p91 = por %p89, %p90
    %s93 = sadd.s32 %s92, 1
    %p96 = scmp.eq.s32.totalorder %s16, 1
    %p97 = scmp.ne.s32.totalorder %s92, %s94
    %p98 = scmp.eq.s32.totalorder %s16, 0
    %p99 = por %p97, %p98
    %p100 = scmp.ne.s32.totalorder %s92, %s94
    %p101 = scmp.eq.s32.totalorder %s21, 1
    %p102 = por %p100, %p101
    %p103 = scmp.ne.s32.totalorder %s94, %s95
    %p104 = scmp.eq.s32.totalorder %s21, 0
    %p105 = por %p103, %p104
    %p106 = scmp.ne.s32.totalorder %s94, %s95
    %p107 = scmp.eq.s32.totalorder %s22, 1
    %p108 = por %p106, %p107
    %p110 = scmp.ne.s32.totalorder %s95, %s109
    %p111 = scmp.eq.s32.totalorder %s22, 0
    %p112 = por %p110, %p111
    %s114 = sadd.s32 %s113, 1
    %p117 = scmp.eq.s32.totalorder %s16, 1
    %p118 = scmp.ne.s32.totalorder %s113, %s115
    %p119 = scmp.eq.s32.totalorder %s16, 0
    %p120 = por %p118, %p119
    %p121 = scmp.ne.s32.totalorder %s113, %s115
    %p122 = scmp.eq.s32.totalorder %s21, 1
    %p123 = por %p121, %p122
    %p124 = scmp.ne.s32.totalorder %s115, %s116
    %p125 = scmp.eq.s32.totalorder %s21, 0
    %p126 = por %p124, %p125
    %p127 = scmp.ne.s32.totalorder %s115, %s116
    %p128 = scmp.eq.s32.totalorder %s22, 1
    %p129 = por %p127, %p128
    %p131 = scmp.ne.s32.totalorder %s116, %s130
    %p132 = scmp.eq.s32.totalorder %s22, 0
    %p133 = por %p131, %p132
    %s135 = sadd.s32 %s134, 1
    %p138 = scmp.eq.s32.totalorder %s16, 1
    %p139 = scmp.ne.s32.totalorder %s134, %s136
    %p140 = scmp.eq.s32.totalorder %s16, 0
    %p141 = por %p139, %p140
    %p142 = scmp.ne.s32.totalorder %s134, %s136
    %p143 = scmp.eq.s32.totalorder %s21, 1
    %p144 = por %p142, %p143
    %p145 = scmp.ne.s32.totalorder %s136, %s137
    %p146 = scmp.eq.s32.totalorder %s21, 0
    %p147 = por %p145, %p146
    %p148 = scmp.ne.s32.totalorder %s136, %s137
    %p149 = scmp.eq.s32.totalorder %s22, 1
    %p150 = por %p148, %p149
    %p152 = scmp.ne.s32.totalorder %s137, %s151
    %p153 = scmp.eq.s32.totalorder %s22, 0
    %p154 = por %p152, %p153
    %s156 = sadd.s32 %s155, 1
    %p159 = scmp.eq.s32.totalorder %s16, 1
    %p160 = scmp.ne.s32.totalorder %s155, %s157
    %p161 = scmp.eq.s32.totalorder %s16, 0
    %p162 = por %p160, %p161
    %p163 = scmp.ne.s32.totalorder %s155, %s157
    %p164 = scmp.eq.s32.totalorder %s21, 1
    %p165 = por %p163, %p164
    %p166 = scmp.ne.s32.totalorder %s157, %s158
    %p167 = scmp.eq.s32.totalorder %s21, 0
    %p168 = por %p166, %p167
    %p169 = scmp.ne.s32.totalorder %s157, %s158
    %p170 = scmp.eq.s32.totalorder %s22, 1
    %p171 = por %p169, %p170
    %p173 = scmp.ne.s32.totalorder %s158, %s172
    %p174 = scmp.eq.s32.totalorder %s22, 0
    %p175 = por %p173, %p174
    %s176 = ssub.s32 %s16, %s23
    %p177 = scmp.eq.s32.totalorder %s176, 0
    %s179 = sadd.s32 %s178, 1
    %s180 = scalar_select %p177, %s178, %s179
    %p183 = pneg %p177
    %p184 = scmp.eq.s32.totalorder %s16, 1
    %p185 = por %p183, %p184
    %p186 = scmp.ne.s32.totalorder %s178, %s181
    %p187 = scmp.eq.s32.totalorder %s16, 0
    %p188 = por %p186, %p187
    %p189 = scmp.ne.s32.totalorder %s178, %s181
    %p190 = scmp.eq.s32.totalorder %s21, 1
    %p191 = por %p189, %p190
    %p192 = scmp.ne.s32.totalorder %s181, %s182
    %p193 = scmp.eq.s32.totalorder %s21, 0
    %p194 = por %p192, %p193
    %p195 = scmp.ne.s32.totalorder %s181, %s182
    %p196 = scmp.eq.s32.totalorder %s22, 1
    %p197 = por %p195, %p196
    %p199 = scmp.ne.s32.totalorder %s182, %s198
    %p200 = scmp.eq.s32.totalorder %s22, 0
    %p201 = por %p199, %p200
    %s202 = ssub.s32 %s16, %s23
    %p203 = scmp.eq.s32.totalorder %s202, 0
    %s205 = sadd.s32 %s204, 1
    %s206 = scalar_select %p203, %s204, %s205
    %p209 = pneg %p203
    %p210 = scmp.eq.s32.totalorder %s16, 1
    %p211 = por %p209, %p210
    %p212 = scmp.ne.s32.totalorder %s204, %s207
    %p213 = scmp.eq.s32.totalorder %s16, 0
    %p214 = por %p212, %p213
    %p215 = scmp.ne.s32.totalorder %s204, %s207
    %p216 = scmp.eq.s32.totalorder %s21, 1
    %p217 = por %p215, %p216
    %p218 = scmp.ne.s32.totalorder %s207, %s208
    %p219 = scmp.eq.s32.totalorder %s21, 0
    %p220 = por %p218, %p219
    %p221 = scmp.ne.s32.totalorder %s207, %s208
    %p222 = scmp.eq.s32.totalorder %s22, 1
    %p223 = por %p221, %p222
    %p225 = scmp.ne.s32.totalorder %s208, %s224
    %p226 = scmp.eq.s32.totalorder %s22, 0
    %p227 = por %p225, %p226
    %s228 = ssub.s32 %s16, %s23
    %p229 = scmp.eq.s32.totalorder %s228, 0
    %s231 = sadd.s32 %s230, 1
    %s232 = scalar_select %p229, %s230, %s231
    %p235 = pneg %p229
    %p236 = scmp.eq.s32.totalorder %s16, 1
    %p237 = por %p235, %p236
    %p238 = scmp.ne.s32.totalorder %s230, %s233
    %p239 = scmp.eq.s32.totalorder %s16, 0
    %p240 = por %p238, %p239
    %p241 = scmp.ne.s32.totalorder %s230, %s233
    %p242 = scmp.eq.s32.totalorder %s21, 1
    %p243 = por %p241, %p242
    %p244 = scmp.ne.s32.totalorder %s233, %s234
    %p245 = scmp.eq.s32.totalorder %s21, 0
    %p246 = por %p244, %p245
    %p247 = scmp.ne.s32.totalorder %s233, %s234
    %p248 = scmp.eq.s32.totalorder %s22, 1
    %p249 = por %p247, %p248
    %p251 = scmp.ne.s32.totalorder %s234, %s250
    %p252 = scmp.eq.s32.totalorder %s22, 0
    %p253 = por %p251, %p252
    %p254 = scmp.le.s32.totalorder 1, %s16
    %p255 = scmp.lt.s32.totalorder %s16, 3
    %p256 = pnand %p254, %p255
    %p257 = pneg %p256
    // Predicated region
    $region9: #{mixed_4c_forward.4} parent=5 // pred_check
      _
    $region10: #{mixed_4c_forward.4} parent=5 // pred_check_branch
      %259 = sbr.rel (%p256) target = $region12
    $region11: #{mixed_4c_forward.4} parent=5 // pred_region
      %s260 = ssub.s32 %s16, 1
      // Predicated region
      $region13: #{mixed_4c_forward.4} parent=11 // pred_check
        %p261 = pneg %p63
      $region14: #{mixed_4c_forward.4} parent=11 // pred_check_branch
        %263 = sbr.rel (%p261) target = $region16
      $region15: #{mixed_4c_forward.4} parent=11 // pred_region
        _
      $region16: #{mixed_4c_forward.4} parent=11 // pred_fallthru
        _
      // Predicated region
      $region17: #{mixed_4c_forward.4} parent=11 // pred_check
        %p264 = pneg %p84
      $region18: #{mixed_4c_forward.4} parent=11 // pred_check_branch
        %266 = sbr.rel (%p264) target = $region20
      $region19: #{mixed_4c_forward.4} parent=11 // pred_region
        _
      $region20: #{mixed_4c_forward.4} parent=11 // pred_fallthru
        _
      // Predicated region
      $region21: #{mixed_4c_forward.4} parent=11 // pred_check
        %p267 = pneg %p105
      $region22: #{mixed_4c_forward.4} parent=11 // pred_check_branch
        %269 = sbr.rel (%p267) target = $region24
      $region23: #{mixed_4c_forward.4} parent=11 // pred_region
        _
      $region24: #{mixed_4c_forward.4} parent=11 // pred_fallthru
        _
      // Predicated region
      $region25: #{mixed_4c_forward.4} parent=11 // pred_check
        %p270 = pneg %p126
      $region26: #{mixed_4c_forward.4} parent=11 // pred_check_branch
        %272 = sbr.rel (%p270) target = $region28
      $region27: #{mixed_4c_forward.4} parent=11 // pred_region
        _
      $region28: #{mixed_4c_forward.4} parent=11 // pred_fallthru
        _
      // Predicated region
      $region29: #{mixed_4c_forward.4} parent=11 // pred_check
        %p273 = pneg %p147
      $region30: #{mixed_4c_forward.4} parent=11 // pred_check_branch
        %275 = sbr.rel (%p273) target = $region32
      $region31: #{mixed_4c_forward.4} parent=11 // pred_region
        _
      $region32: #{mixed_4c_forward.4} parent=11 // pred_fallthru
        _
      // Predicated region
      $region33: #{mixed_4c_forward.4} parent=11 // pred_check
        %p276 = pneg %p168
      $region34: #{mixed_4c_forward.4} parent=11 // pred_check_branch
        %278 = sbr.rel (%p276) target = $region36
      $region35: #{mixed_4c_forward.4} parent=11 // pred_region
        _
      $region36: #{mixed_4c_forward.4} parent=11 // pred_fallthru
        _
    $region12: #{mixed_4c_forward.4} parent=5 // pred_fallthru
      _
    %p279 = scmp.lt.s32.totalorder %s16, 2
    // Predicated region
    $region37: #{mixed_4c_forward.4} parent=5 // pred_check
      %p280 = pneg %p279
    $region38: #{mixed_4c_forward.4} parent=5 // pred_check_branch
      %282 = sbr.rel (%p280) target = $region40
    $region39: #{mixed_4c_forward.4} parent=5 // pred_region
      // Predicated region
      $region41: #{mixed_4c_forward.4} parent=39 // pred_check
        %p283 = pneg %p36
      $region42: #{mixed_4c_forward.4} parent=39 // pred_check_branch
        %285 = sbr.rel (%p283) target = $region44
      $region43: #{mixed_4c_forward.4} parent=39 // pred_region
        %s286 = smul.u32 32, %s16
        %p287 = scmp.lt.s32.totalorder %s286, 63
        %s288 = scalar_select %p287, %s286, 63
        %s289 = smul.addr %s288, 4
        %s290 = smul.addr %s289, 4
        %s291 = scalar_lea.vmem %s0, %s290
        %s292 = smul.u32 32, %s16
      $region44: #{mixed_4c_forward.4} parent=39 // pred_fallthru
        _
    $region40: #{mixed_4c_forward.4} parent=5 // pred_fallthru
      _
    %p293 = scmp.le.s32.totalorder 1, %s16
    %p294 = scmp.lt.s32.totalorder %s16, 3
    %p295 = pnand %p293, %p294
    %p296 = pneg %p295
    // Predicated region
    $region45: #{mixed_4c_forward.4} parent=5 // pred_check
      _
    $region46: #{mixed_4c_forward.4} parent=5 // pred_check_branch
      %298 = sbr.rel (%p295) target = $region48
    $region47: #{mixed_4c_forward.4} parent=5 // pred_region
      %s299 = ssub.s32 %s16, 1
      %s300 = smul.u32 32, %s21
      %p301 = scmp.lt.s32.totalorder %s300, 63
      %s302 = scalar_select %p301, %s300, 63
      %s303 = smul.addr %s302, 4
      %s304 = smul.addr %s303, 4
      %s305 = scalar_lea.vmem %s0, %s304
      %p306 = pneg %p42
      %p307 = pneg %p39
      %p308 = pneg %p63
      %p309 = pneg %p60
      %p310 = pneg %p84
      %p311 = pneg %p81
      %p312 = pneg %p105
      %p313 = pneg %p102
      %p314 = pneg %p126
      %p315 = pneg %p123
      %p316 = pneg %p147
      %p317 = pneg %p144
      %p318 = pneg %p168
      %p319 = pneg %p165
      %p320 = pneg %p194
      %p321 = pneg %p191
      %s322 = smul.u32 32, %s21
      %p323 = scmp.lt.s32.totalorder %s322, 63
      %s324 = scalar_select %p323, %s322, 63
      %s325 = smul.addr %s324, 2
      %s326 = smul.addr %s325, 8
      %s327 = scalar_lea.vmem %s7, %s326
      %p328 = pneg %p220
      %p329 = pneg %p217
      %s330 = smul.u32 32, %s21
      %p331 = scmp.lt.s32.totalorder %s330, 63
      %s332 = scalar_select %p331, %s330, 63
      %s333 = smul.addr %s332, 4
      %s334 = scalar_lea.vmem %s8, %s333
      %p335 = pneg %p246
      %p336 = pneg %p243
      %s337 = smul.u32 32, %s21
      %p338 = scmp.lt.s32.totalorder %s337, 63
      %s339 = scalar_select %p338, %s337, 63
      %s340 = smul.addr %s339, 4
      %s341 = scalar_lea.vmem %s9, %s340
      %s342 = smul.u32 32, %s21
      %p343 = scmp.lt.s32.totalorder %s342, 63
      %s344 = scalar_select %p343, %s342, 63
      %s345 = smul.addr %s344, 4
      %s346 = smul.addr %s345, 4
      %s347 = scalar_lea.vmem %s0, %s346
      %s348 = smul.u32 32, %s21
      %s349 = smul.u32 32, %s21
      %p350 = scmp.lt.s32.totalorder %s349, 63
      %s351 = scalar_select %p350, %s349, 63
      %s352 = smul.addr %s351, 2
      %s353 = smul.addr %s352, 8
      %s354 = scalar_lea.vmem %s7, %s353
      %s355 = smul.u32 32, %s21
      %s356 = smul.u32 32, %s21
      %p357 = scmp.lt.s32.totalorder %s356, 63
      %s358 = scalar_select %p357, %s356, 63
      %s359 = smul.addr %s358, 4
      %s360 = scalar_lea.vmem %s8, %s359
      %s361 = smul.u32 32, %s21
      %s362 = smul.u32 32, %s21
      %p363 = scmp.lt.s32.totalorder %s362, 63
      %s364 = scalar_select %p363, %s362, 63
      %s365 = smul.addr %s364, 4
      %s366 = scalar_lea.vmem %s9, %s365
      %s367 = smul.u32 32, %s21
      %v369 = vld [vmem:[%s347] sm:$0xff]
      %v370 = vld [vmem:[%s347 + $0x8] sm:$0xff]
      %v371 = vld [vmem:[%s347 + $0x10] sm:$0xff]
      %v372 = vld [vmem:[%s347 + $0x18] sm:$0xff]
      %v373 = vld [vmem:[%s347 + $0x20] sm:$0xff]
      %v374 = vld [vmem:[%s347 + $0x28] sm:$0xff]
      %v375 = vld [vmem:[%s347 + $0x30] sm:$0xff]
      %v376 = vld [vmem:[%s347 + $0x38] sm:$0xff]
      %v377 = vld [vmem:[%s347 + $0x40] sm:$0xff]
      %v378 = vld [vmem:[%s347 + $0x48] sm:$0xff]
      %v379 = vld [vmem:[%s347 + $0x50] sm:$0xff]
      %v380 = vld [vmem:[%s347 + $0x58] sm:$0xff]
      %v381 = vld [vmem:[%s347 + $0x60] sm:$0xff]
      %v382 = vld [vmem:[%s347 + $0x68] sm:$0xff]
      %v383 = vld [vmem:[%s347 + $0x70] sm:$0xff]
      %v384 = vld [vmem:[%s347 + $0x78] sm:$0xff]
      %v385 = vld [vmem:[%s347 + $0x80] sm:$0xff]
      %v386 = vld [vmem:[%s347 + $0x88] sm:$0xff]
      %v387 = vld [vmem:[%s347 + $0x90] sm:$0xff]
      %v388 = vld [vmem:[%s347 + $0x98] sm:$0xff]
      %v389 = vld [vmem:[%s347 + $0xa0] sm:$0xff]
      %v390 = vld [vmem:[%s347 + $0xa8] sm:$0xff]
      %v391 = vld [vmem:[%s347 + $0xb0] sm:$0xff]
      %v392 = vld [vmem:[%s347 + $0xb8] sm:$0xff]
      %v393 = vld [vmem:[%s347 + $0xc0] sm:$0xff]
      %v394 = vld [vmem:[%s347 + $0xc8] sm:$0xff]
      %v395 = vld [vmem:[%s347 + $0xd0] sm:$0xff]
      %v396 = vld [vmem:[%s347 + $0xd8] sm:$0xff]
      %v397 = vld [vmem:[%s347 + $0xe0] sm:$0xff]
      %v398 = vld [vmem:[%s347 + $0xe8] sm:$0xff]
      %v399 = vld [vmem:[%s347 + $0xf0] sm:$0xff]
      %v400 = vld [vmem:[%s347 + $0xf8] sm:$0xff]
      %v401 = vld [vmem:[%s347 + $0x100] sm:$0xff]
      %v402 = vld [vmem:[%s347 + $0x108] sm:$0xff]
      %v403 = vld [vmem:[%s347 + $0x110] sm:$0xff]
      %v404 = vld [vmem:[%s347 + $0x118] sm:$0xff]
      %v405 = vld [vmem:[%s347 + $0x120] sm:$0xff]
      %v406 = vld [vmem:[%s347 + $0x128] sm:$0xff]
      %v407 = vld [vmem:[%s347 + $0x130] sm:$0xff]
      %v408 = vld [vmem:[%s347 + $0x138] sm:$0xff]
      %v409 = vld [vmem:[%s347 + $0x140] sm:$0xff]
      %v410 = vld [vmem:[%s347 + $0x148] sm:$0xff]
      %v411 = vld [vmem:[%s347 + $0x150] sm:$0xff]
      %v412 = vld [vmem:[%s347 + $0x158] sm:$0xff]
      %v413 = vld [vmem:[%s347 + $0x160] sm:$0xff]
      %v414 = vld [vmem:[%s347 + $0x168] sm:$0xff]
      %v415 = vld [vmem:[%s347 + $0x170] sm:$0xff]
      %v416 = vld [vmem:[%s347 + $0x178] sm:$0xff]
      %v417 = vld [vmem:[%s347 + $0x180] sm:$0xff]
      %v418 = vld [vmem:[%s347 + $0x188] sm:$0xff]
      %v419 = vld [vmem:[%s347 + $0x190] sm:$0xff]
      %v420 = vld [vmem:[%s347 + $0x198] sm:$0xff]
      %v421 = vld [vmem:[%s347 + $0x1a0] sm:$0xff]
      %v422 = vld [vmem:[%s347 + $0x1a8] sm:$0xff]
      %v423 = vld [vmem:[%s347 + $0x1b0] sm:$0xff]
      %v424 = vld [vmem:[%s347 + $0x1b8] sm:$0xff]
      %v425 = vld [vmem:[%s347 + $0x1c0] sm:$0xff]
      %v426 = vld [vmem:[%s347 + $0x1c8] sm:$0xff]
      %v427 = vld [vmem:[%s347 + $0x1d0] sm:$0xff]
      %v428 = vld [vmem:[%s347 + $0x1d8] sm:$0xff]
      %v429 = vld [vmem:[%s347 + $0x1e0] sm:$0xff]
      %v430 = vld [vmem:[%s347 + $0x1e8] sm:$0xff]
      %v431 = vld [vmem:[%s347 + $0x1f0] sm:$0xff]
      %v432 = vld [vmem:[%s347 + $0x1f8] sm:$0xff]
      %v433 = vld [vmem:[%s1] sm:$0xff]
      %v434 = vld [vmem:[%s1 + $0x8] sm:$0xff]
      %v435 = vld [vmem:[%s1 + $0x10] sm:$0xff]
      %v436 = vld [vmem:[%s1 + $0x18] sm:$0xff]
      %v437 = vld [vmem:[%s1 + $0x20] sm:$0xff]
      %v438 = vld [vmem:[%s1 + $0x28] sm:$0xff]
      %v439 = vld [vmem:[%s1 + $0x30] sm:$0xff]
      %v440 = vld [vmem:[%s1 + $0x38] sm:$0xff]
      %v441 = vld [vmem:[%s1 + $0x40] sm:$0xff]
      %v442 = vld [vmem:[%s1 + $0x48] sm:$0xff]
      %v443 = vld [vmem:[%s1 + $0x50] sm:$0xff]
      %v444 = vld [vmem:[%s1 + $0x58] sm:$0xff]
      %v445 = vld [vmem:[%s1 + $0x60] sm:$0xff]
      %v446 = vld [vmem:[%s1 + $0x68] sm:$0xff]
      %v447 = vld [vmem:[%s1 + $0x70] sm:$0xff]
      %v448 = vld [vmem:[%s1 + $0x78] sm:$0xff]
      %v449 = vld [vmem:[%s1 + $0x80] sm:$0xff]
      %v450 = vld [vmem:[%s1 + $0x88] sm:$0xff]
      %v451 = vld [vmem:[%s1 + $0x90] sm:$0xff]
      %v452 = vld [vmem:[%s1 + $0x98] sm:$0xff]
      %v453 = vld [vmem:[%s1 + $0xa0] sm:$0xff]
      %v454 = vld [vmem:[%s1 + $0xa8] sm:$0xff]
      %v455 = vld [vmem:[%s1 + $0xb0] sm:$0xff]
      %v456 = vld [vmem:[%s1 + $0xb8] sm:$0xff]
      %v457 = vld [vmem:[%s1 + $0xc0] sm:$0xff]
      %v458 = vld [vmem:[%s1 + $0xc8] sm:$0xff]
      %v459 = vld [vmem:[%s1 + $0xd0] sm:$0xff]
      %v460 = vld [vmem:[%s1 + $0xd8] sm:$0xff]
      %v461 = vld [vmem:[%s1 + $0xe0] sm:$0xff]
      %v462 = vld [vmem:[%s1 + $0xe8] sm:$0xff]
      %v463 = vld [vmem:[%s1 + $0xf0] sm:$0xff]
      %v464 = vld [vmem:[%s1 + $0xf8] sm:$0xff]
      %v465 = vld [vmem:[%s1 + $0x100] sm:$0xff]
      %v466 = vld [vmem:[%s1 + $0x108] sm:$0xff]
      %v467 = vld [vmem:[%s1 + $0x110] sm:$0xff]
      %v468 = vld [vmem:[%s1 + $0x118] sm:$0xff]
      %v469 = vld [vmem:[%s1 + $0x120] sm:$0xff]
      %v470 = vld [vmem:[%s1 + $0x128] sm:$0xff]
      %v471 = vld [vmem:[%s1 + $0x130] sm:$0xff]
      %v472 = vld [vmem:[%s1 + $0x138] sm:$0xff]
      %v473 = vld [vmem:[%s1 + $0x140] sm:$0xff]
      %v474 = vld [vmem:[%s1 + $0x148] sm:$0xff]
      %v475 = vld [vmem:[%s1 + $0x150] sm:$0xff]
      %v476 = vld [vmem:[%s1 + $0x158] sm:$0xff]
      %v477 = vld [vmem:[%s1 + $0x160] sm:$0xff]
      %v478 = vld [vmem:[%s1 + $0x168] sm:$0xff]
      %v479 = vld [vmem:[%s1 + $0x170] sm:$0xff]
      %v480 = vld [vmem:[%s1 + $0x178] sm:$0xff]
      %v481 = vld [vmem:[%s1 + $0x180] sm:$0xff]
      %v482 = vld [vmem:[%s1 + $0x188] sm:$0xff]
      %v483 = vld [vmem:[%s1 + $0x190] sm:$0xff]
      %v484 = vld [vmem:[%s1 + $0x198] sm:$0xff]
      %v485 = vld [vmem:[%s1 + $0x1a0] sm:$0xff]
      %v486 = vld [vmem:[%s1 + $0x1a8] sm:$0xff]
      %v487 = vld [vmem:[%s1 + $0x1b0] sm:$0xff]
      %v488 = vld [vmem:[%s1 + $0x1b8] sm:$0xff]
      %v489 = vld [vmem:[%s1 + $0x1c0] sm:$0xff]
      %v490 = vld [vmem:[%s1 + $0x1c8] sm:$0xff]
      %v491 = vld [vmem:[%s1 + $0x1d0] sm:$0xff]
      %v492 = vld [vmem:[%s1 + $0x1d8] sm:$0xff]
      %v493 = vld [vmem:[%s1 + $0x1e0] sm:$0xff]
      %v494 = vld [vmem:[%s1 + $0x1e8] sm:$0xff]
      %v495 = vld [vmem:[%s1 + $0x1f0] sm:$0xff]
      %v496 = vld [vmem:[%s1 + $0x1f8] sm:$0xff]
      %v497 = vld [vmem:[%s4] sm:$0x3]
      %v499 = vlaneseq
      %v500 = vshrl.u32 %v499, 7
      %v501 = vsub.s32 0, %v500
      %v502 = vrot.slane %v497, %v501
      %v503 = vlaneseq
      %v504 = vshrl.u32 %v503, 7
      %v505 = vsub.s32 1, %v504
      %v506 = vrot.slane %v497, %v505
      %v573 = vunpack.c.l.b16 %v369
      %v574 = vunpack.c.h.b16 %v369
      %v575 = vunpack.c.l.b16 %v370
      %v576 = vunpack.c.h.b16 %v370
      %v577 = vunpack.c.l.b16 %v371
      %v578 = vunpack.c.h.b16 %v371
      %v579 = vunpack.c.l.b16 %v372
      %v580 = vunpack.c.h.b16 %v372
      %v581 = vunpack.c.l.b16 %v373
      %v582 = vunpack.c.h.b16 %v373
      %v583 = vunpack.c.l.b16 %v374
      %v584 = vunpack.c.h.b16 %v374
      %v585 = vunpack.c.l.b16 %v375
      %v586 = vunpack.c.h.b16 %v375
      %v587 = vunpack.c.l.b16 %v376
      %v588 = vunpack.c.h.b16 %v376
      %v589 = vunpack.c.l.b16 %v377
      %v590 = vunpack.c.h.b16 %v377
      %v591 = vunpack.c.l.b16 %v378
      %v592 = vunpack.c.h.b16 %v378
      %v593 = vunpack.c.l.b16 %v379
      %v594 = vunpack.c.h.b16 %v379
      %v595 = vunpack.c.l.b16 %v380
      %v596 = vunpack.c.h.b16 %v380
      %v597 = vunpack.c.l.b16 %v381
      %v598 = vunpack.c.h.b16 %v381
      %v599 = vunpack.c.l.b16 %v382
      %v600 = vunpack.c.h.b16 %v382
      %v601 = vunpack.c.l.b16 %v383
      %v602 = vunpack.c.h.b16 %v383
      %v603 = vunpack.c.l.b16 %v384
      %v604 = vunpack.c.h.b16 %v384
      %v605 = vunpack.c.l.b16 %v385
      %v606 = vunpack.c.h.b16 %v385
      %v607 = vunpack.c.l.b16 %v386
      %v608 = vunpack.c.h.b16 %v386
      %v609 = vunpack.c.l.b16 %v387
      %v610 = vunpack.c.h.b16 %v387
      %v611 = vunpack.c.l.b16 %v388
      %v612 = vunpack.c.h.b16 %v388
      %v613 = vunpack.c.l.b16 %v389
      %v614 = vunpack.c.h.b16 %v389
      %v615 = vunpack.c.l.b16 %v390
      %v616 = vunpack.c.h.b16 %v390
      %v617 = vunpack.c.l.b16 %v391
      %v618 = vunpack.c.h.b16 %v391
      %v619 = vunpack.c.l.b16 %v392
      %v620 = vunpack.c.h.b16 %v392
      %v621 = vunpack.c.l.b16 %v393
      %v622 = vunpack.c.h.b16 %v393
      %v623 = vunpack.c.l.b16 %v394
      %v624 = vunpack.c.h.b16 %v394
      %v625 = vunpack.c.l.b16 %v395
      %v626 = vunpack.c.h.b16 %v395
      %v627 = vunpack.c.l.b16 %v396
      %v628 = vunpack.c.h.b16 %v396
      %v629 = vunpack.c.l.b16 %v397
      %v630 = vunpack.c.h.b16 %v397
      %v631 = vunpack.c.l.b16 %v398
      %v632 = vunpack.c.h.b16 %v398
      %v633 = vunpack.c.l.b16 %v399
      %v634 = vunpack.c.h.b16 %v399
      %v635 = vunpack.c.l.b16 %v400
      %v636 = vunpack.c.h.b16 %v400
      %v637 = vunpack.c.l.b16 %v401
      %v638 = vunpack.c.h.b16 %v401
      %v639 = vunpack.c.l.b16 %v402
      %v640 = vunpack.c.h.b16 %v402
      %v641 = vunpack.c.l.b16 %v403
      %v642 = vunpack.c.h.b16 %v403
      %v643 = vunpack.c.l.b16 %v404
      %v644 = vunpack.c.h.b16 %v404
      %v645 = vunpack.c.l.b16 %v405
      %v646 = vunpack.c.h.b16 %v405
      %v647 = vunpack.c.l.b16 %v406
      %v648 = vunpack.c.h.b16 %v406
      %v649 = vunpack.c.l.b16 %v407
      %v650 = vunpack.c.h.b16 %v407
      %v651 = vunpack.c.l.b16 %v408
      %v652 = vunpack.c.h.b16 %v408
      %v653 = vunpack.c.l.b16 %v409
      %v654 = vunpack.c.h.b16 %v409
      %v655 = vunpack.c.l.b16 %v410
      %v656 = vunpack.c.h.b16 %v410
      %v657 = vunpack.c.l.b16 %v411
      %v658 = vunpack.c.h.b16 %v411
      %v659 = vunpack.c.l.b16 %v412
      %v660 = vunpack.c.h.b16 %v412
      %v661 = vunpack.c.l.b16 %v413
      %v662 = vunpack.c.h.b16 %v413
      %v663 = vunpack.c.l.b16 %v414
      %v664 = vunpack.c.h.b16 %v414
      %v665 = vunpack.c.l.b16 %v415
      %v666 = vunpack.c.h.b16 %v415
      %v667 = vunpack.c.l.b16 %v416
      %v668 = vunpack.c.h.b16 %v416
      %v669 = vunpack.c.l.b16 %v417
      %v670 = vunpack.c.h.b16 %v417
      %v671 = vunpack.c.l.b16 %v418
      %v672 = vunpack.c.h.b16 %v418
      %v673 = vunpack.c.l.b16 %v419
      %v674 = vunpack.c.h.b16 %v419
      %v675 = vunpack.c.l.b16 %v420
      %v676 = vunpack.c.h.b16 %v420
      %v677 = vunpack.c.l.b16 %v421
      %v678 = vunpack.c.h.b16 %v421
      %v679 = vunpack.c.l.b16 %v422
      %v680 = vunpack.c.h.b16 %v422
      %v681 = vunpack.c.l.b16 %v423
      %v682 = vunpack.c.h.b16 %v423
      %v683 = vunpack.c.l.b16 %v424
      %v684 = vunpack.c.h.b16 %v424
      %v685 = vunpack.c.l.b16 %v425
      %v686 = vunpack.c.h.b16 %v425
      %v687 = vunpack.c.l.b16 %v426
      %v688 = vunpack.c.h.b16 %v426
      %v689 = vunpack.c.l.b16 %v427
      %v690 = vunpack.c.h.b16 %v427
      %v691 = vunpack.c.l.b16 %v428
      %v692 = vunpack.c.h.b16 %v428
      %v693 = vunpack.c.l.b16 %v429
      %v694 = vunpack.c.h.b16 %v429
      %v695 = vunpack.c.l.b16 %v430
      %v696 = vunpack.c.h.b16 %v430
      %v697 = vunpack.c.l.b16 %v431
      %v698 = vunpack.c.h.b16 %v431
      %v699 = vunpack.c.l.b16 %v432
      %v700 = vunpack.c.h.b16 %v432
      %v701 = vpack.c.b16 %v577, %v573
      %v702 = vpack.c.b16 %v578, %v574
      %v703 = vpack.c.b16 %v579, %v575
      %v704 = vpack.c.b16 %v580, %v576
      %v705 = vpack.c.b16 %v585, %v581
      %v706 = vpack.c.b16 %v586, %v582
      %v707 = vpack.c.b16 %v587, %v583
      %v708 = vpack.c.b16 %v588, %v584
      %v709 = vpack.c.b16 %v593, %v589
      %v710 = vpack.c.b16 %v594, %v590
      %v711 = vpack.c.b16 %v595, %v591
      %v712 = vpack.c.b16 %v596, %v592
      %v713 = vpack.c.b16 %v601, %v597
      %v714 = vpack.c.b16 %v602, %v598
      %v715 = vpack.c.b16 %v603, %v599
      %v716 = vpack.c.b16 %v604, %v600
      %v717 = vpack.c.b16 %v609, %v605
      %v718 = vpack.c.b16 %v610, %v606
      %v719 = vpack.c.b16 %v611, %v607
      %v720 = vpack.c.b16 %v612, %v608
      %v721 = vpack.c.b16 %v617, %v613
      %v722 = vpack.c.b16 %v618, %v614
      %v723 = vpack.c.b16 %v619, %v615
      %v724 = vpack.c.b16 %v620, %v616
      %v725 = vpack.c.b16 %v625, %v621
      %v726 = vpack.c.b16 %v626, %v622
      %v727 = vpack.c.b16 %v627, %v623
      %v728 = vpack.c.b16 %v628, %v624
      %v729 = vpack.c.b16 %v633, %v629
      %v730 = vpack.c.b16 %v634, %v630
      %v731 = vpack.c.b16 %v635, %v631
      %v732 = vpack.c.b16 %v636, %v632
      %v733 = vpack.c.b16 %v641, %v637
      %v734 = vpack.c.b16 %v642, %v638
      %v735 = vpack.c.b16 %v643, %v639
      %v736 = vpack.c.b16 %v644, %v640
      %v737 = vpack.c.b16 %v649, %v645
      %v738 = vpack.c.b16 %v650, %v646
      %v739 = vpack.c.b16 %v651, %v647
      %v740 = vpack.c.b16 %v652, %v648
      %v741 = vpack.c.b16 %v657, %v653
      %v742 = vpack.c.b16 %v658, %v654
      %v743 = vpack.c.b16 %v659, %v655
      %v744 = vpack.c.b16 %v660, %v656
      %v745 = vpack.c.b16 %v665, %v661
      %v746 = vpack.c.b16 %v666, %v662
      %v747 = vpack.c.b16 %v667, %v663
      %v748 = vpack.c.b16 %v668, %v664
      %v749 = vpack.c.b16 %v673, %v669
      %v750 = vpack.c.b16 %v674, %v670
      %v751 = vpack.c.b16 %v675, %v671
      %v752 = vpack.c.b16 %v676, %v672
      %v753 = vpack.c.b16 %v681, %v677
      %v754 = vpack.c.b16 %v682, %v678
      %v755 = vpack.c.b16 %v683, %v679
      %v756 = vpack.c.b16 %v684, %v680
      %v757 = vpack.c.b16 %v689, %v685
      %v758 = vpack.c.b16 %v690, %v686
      %v759 = vpack.c.b16 %v691, %v687
      %v760 = vpack.c.b16 %v692, %v688
      %v761 = vpack.c.b16 %v697, %v693
      %v762 = vpack.c.b16 %v698, %v694
      %v763 = vpack.c.b16 %v699, %v695
      %v764 = vpack.c.b16 %v700, %v696
      %v893 = vunpack.c.l.b16 %v433
      %v894 = vunpack.c.h.b16 %v433
      %v895 = vunpack.c.l.b16 %v434
      %v896 = vunpack.c.h.b16 %v434
      %v897 = vunpack.c.l.b16 %v435
      %v898 = vunpack.c.h.b16 %v435
      %v899 = vunpack.c.l.b16 %v436
      %v900 = vunpack.c.h.b16 %v436
      %v901 = vunpack.c.l.b16 %v437
      %v902 = vunpack.c.h.b16 %v437
      %v903 = vunpack.c.l.b16 %v438
      %v904 = vunpack.c.h.b16 %v438
      %v905 = vunpack.c.l.b16 %v439
      %v906 = vunpack.c.h.b16 %v439
      %v907 = vunpack.c.l.b16 %v440
      %v908 = vunpack.c.h.b16 %v440
      %v909 = vunpack.c.l.b16 %v441
      %v910 = vunpack.c.h.b16 %v441
      %v911 = vunpack.c.l.b16 %v442
      %v912 = vunpack.c.h.b16 %v442
      %v913 = vunpack.c.l.b16 %v443
      %v914 = vunpack.c.h.b16 %v443
      %v915 = vunpack.c.l.b16 %v444
      %v916 = vunpack.c.h.b16 %v444
      %v917 = vunpack.c.l.b16 %v445
      %v918 = vunpack.c.h.b16 %v445
      %v919 = vunpack.c.l.b16 %v446
      %v920 = vunpack.c.h.b16 %v446
      %v921 = vunpack.c.l.b16 %v447
      %v922 = vunpack.c.h.b16 %v447
      %v923 = vunpack.c.l.b16 %v448
      %v924 = vunpack.c.h.b16 %v448
      %v925 = vunpack.c.l.b16 %v449
      %v926 = vunpack.c.h.b16 %v449
      %v927 = vunpack.c.l.b16 %v450
      %v928 = vunpack.c.h.b16 %v450
      %v929 = vunpack.c.l.b16 %v451
      %v930 = vunpack.c.h.b16 %v451
      %v931 = vunpack.c.l.b16 %v452
      %v932 = vunpack.c.h.b16 %v452
      %v933 = vunpack.c.l.b16 %v453
      %v934 = vunpack.c.h.b16 %v453
      %v935 = vunpack.c.l.b16 %v454
      %v936 = vunpack.c.h.b16 %v454
      %v937 = vunpack.c.l.b16 %v455
      %v938 = vunpack.c.h.b16 %v455
      %v939 = vunpack.c.l.b16 %v456
      %v940 = vunpack.c.h.b16 %v456
      %v941 = vunpack.c.l.b16 %v457
      %v942 = vunpack.c.h.b16 %v457
      %v943 = vunpack.c.l.b16 %v458
      %v944 = vunpack.c.h.b16 %v458
      %v945 = vunpack.c.l.b16 %v459
      %v946 = vunpack.c.h.b16 %v459
      %v947 = vunpack.c.l.b16 %v460
      %v948 = vunpack.c.h.b16 %v460
      %v949 = vunpack.c.l.b16 %v461
      %v950 = vunpack.c.h.b16 %v461
      %v951 = vunpack.c.l.b16 %v462
      %v952 = vunpack.c.h.b16 %v462
      %v953 = vunpack.c.l.b16 %v463
      %v954 = vunpack.c.h.b16 %v463
      %v955 = vunpack.c.l.b16 %v464
      %v956 = vunpack.c.h.b16 %v464
      %v957 = vunpack.c.l.b16 %v465
      %v958 = vunpack.c.h.b16 %v465
      %v959 = vunpack.c.l.b16 %v466
      %v960 = vunpack.c.h.b16 %v466
      %v961 = vunpack.c.l.b16 %v467
      %v962 = vunpack.c.h.b16 %v467
      %v963 = vunpack.c.l.b16 %v468
      %v964 = vunpack.c.h.b16 %v468
      %v965 = vunpack.c.l.b16 %v469
      %v966 = vunpack.c.h.b16 %v469
      %v967 = vunpack.c.l.b16 %v470
      %v968 = vunpack.c.h.b16 %v470
      %v969 = vunpack.c.l.b16 %v471
      %v970 = vunpack.c.h.b16 %v471
      %v971 = vunpack.c.l.b16 %v472
      %v972 = vunpack.c.h.b16 %v472
      %v973 = vunpack.c.l.b16 %v473
      %v974 = vunpack.c.h.b16 %v473
      %v975 = vunpack.c.l.b16 %v474
      %v976 = vunpack.c.h.b16 %v474
      %v977 = vunpack.c.l.b16 %v475
      %v978 = vunpack.c.h.b16 %v475
      %v979 = vunpack.c.l.b16 %v476
      %v980 = vunpack.c.h.b16 %v476
      %v981 = vunpack.c.l.b16 %v477
      %v982 = vunpack.c.h.b16 %v477
      %v983 = vunpack.c.l.b16 %v478
      %v984 = vunpack.c.h.b16 %v478
      %v985 = vunpack.c.l.b16 %v479
      %v986 = vunpack.c.h.b16 %v479
      %v987 = vunpack.c.l.b16 %v480
      %v988 = vunpack.c.h.b16 %v480
      %v989 = vunpack.c.l.b16 %v481
      %v990 = vunpack.c.h.b16 %v481
      %v991 = vunpack.c.l.b16 %v482
      %v992 = vunpack.c.h.b16 %v482
      %v993 = vunpack.c.l.b16 %v483
      %v994 = vunpack.c.h.b16 %v483
      %v995 = vunpack.c.l.b16 %v484
      %v996 = vunpack.c.h.b16 %v484
      %v997 = vunpack.c.l.b16 %v485
      %v998 = vunpack.c.h.b16 %v485
      %v999 = vunpack.c.l.b16 %v486
      %v1000 = vunpack.c.h.b16 %v486
      %v1001 = vunpack.c.l.b16 %v487
      %v1002 = vunpack.c.h.b16 %v487
      %v1003 = vunpack.c.l.b16 %v488
      %v1004 = vunpack.c.h.b16 %v488
      %v1005 = vunpack.c.l.b16 %v489
      %v1006 = vunpack.c.h.b16 %v489
      %v1007 = vunpack.c.l.b16 %v490
      %v1008 = vunpack.c.h.b16 %v490
      %v1009 = vunpack.c.l.b16 %v491
      %v1010 = vunpack.c.h.b16 %v491
      %v1011 = vunpack.c.l.b16 %v492
      %v1012 = vunpack.c.h.b16 %v492
      %v1013 = vunpack.c.l.b16 %v493
      %v1014 = vunpack.c.h.b16 %v493
      %v1015 = vunpack.c.l.b16 %v494
      %v1016 = vunpack.c.h.b16 %v494
      %v1017 = vunpack.c.l.b16 %v495
      %v1018 = vunpack.c.h.b16 %v495
      %v1019 = vunpack.c.l.b16 %v496
      %v1020 = vunpack.c.h.b16 %v496
      %v1021 = vpack.c.b16 %v895, %v893
      %v1022 = vpack.c.b16 %v896, %v894
      %v1023 = vpack.c.b16 %v899, %v897
      %v1024 = vpack.c.b16 %v900, %v898
      %v1025 = vpack.c.b16 %v903, %v901
      %v1026 = vpack.c.b16 %v904, %v902
      %v1027 = vpack.c.b16 %v907, %v905
      %v1028 = vpack.c.b16 %v908, %v906
      %v1029 = vpack.c.b16 %v911, %v909
      %v1030 = vpack.c.b16 %v912, %v910
      %v1031 = vpack.c.b16 %v915, %v913
      %v1032 = vpack.c.b16 %v916, %v914
      %v1033 = vpack.c.b16 %v919, %v917
      %v1034 = vpack.c.b16 %v920, %v918
      %v1035 = vpack.c.b16 %v923, %v921
      %v1036 = vpack.c.b16 %v924, %v922
      %v1037 = vpack.c.b16 %v927, %v925
      %v1038 = vpack.c.b16 %v928, %v926
      %v1039 = vpack.c.b16 %v931, %v929
      %v1040 = vpack.c.b16 %v932, %v930
      %v1041 = vpack.c.b16 %v935, %v933
      %v1042 = vpack.c.b16 %v936, %v934
      %v1043 = vpack.c.b16 %v939, %v937
      %v1044 = vpack.c.b16 %v940, %v938
      %v1045 = vpack.c.b16 %v943, %v941
      %v1046 = vpack.c.b16 %v944, %v942
      %v1047 = vpack.c.b16 %v947, %v945
      %v1048 = vpack.c.b16 %v948, %v946
      %v1049 = vpack.c.b16 %v951, %v949
      %v1050 = vpack.c.b16 %v952, %v950
      %v1051 = vpack.c.b16 %v955, %v953
      %v1052 = vpack.c.b16 %v956, %v954
      %v1053 = vpack.c.b16 %v959, %v957
      %v1054 = vpack.c.b16 %v960, %v958
      %v1055 = vpack.c.b16 %v963, %v961
      %v1056 = vpack.c.b16 %v964, %v962
      %v1057 = vpack.c.b16 %v967, %v965
      %v1058 = vpack.c.b16 %v968, %v966
      %v1059 = vpack.c.b16 %v971, %v969
      %v1060 = vpack.c.b16 %v972, %v970
      %v1061 = vpack.c.b16 %v975, %v973
      %v1062 = vpack.c.b16 %v976, %v974
      %v1063 = vpack.c.b16 %v979, %v977
      %v1064 = vpack.c.b16 %v980, %v978
      %v1065 = vpack.c.b16 %v983, %v981
      %v1066 = vpack.c.b16 %v984, %v982
      %v1067 = vpack.c.b16 %v987, %v985
      %v1068 = vpack.c.b16 %v988, %v986
      %v1069 = vpack.c.b16 %v991, %v989
      %v1070 = vpack.c.b16 %v992, %v990
      %v1071 = vpack.c.b16 %v995, %v993
      %v1072 = vpack.c.b16 %v996, %v994
      %v1073 = vpack.c.b16 %v999, %v997
      %v1074 = vpack.c.b16 %v1000, %v998
      %v1075 = vpack.c.b16 %v1003, %v1001
      %v1076 = vpack.c.b16 %v1004, %v1002
      %v1077 = vpack.c.b16 %v1007, %v1005
      %v1078 = vpack.c.b16 %v1008, %v1006
      %v1079 = vpack.c.b16 %v1011, %v1009
      %v1080 = vpack.c.b16 %v1012, %v1010
      %v1081 = vpack.c.b16 %v1015, %v1013
      %v1082 = vpack.c.b16 %v1016, %v1014
      %v1083 = vpack.c.b16 %v1019, %v1017
      %v1084 = vpack.c.b16 %v1020, %v1018
      %1149 = vmatprep.subr.bf16.mxu0 %v1022
      %1150 = vmatpush1.bf16.msra.mxu0 %v1021
      %1151 = vmatprep.subr.bf16.mxu0 %v1024
      %1152 = vmatpush1.bf16.msra.mxu0 %v1023
      %1153 = vmatprep.subr.bf16.mxu0 %v1026
      %1154 = vmatpush1.bf16.msra.mxu0 %v1025
      %1155 = vmatprep.subr.bf16.mxu0 %v1028
      %1156 = vmatpush1.bf16.msra.mxu0 %v1027
      %1157 = vmatprep.subr.bf16.mxu0 %v1030
      %1158 = vmatpush1.bf16.msra.mxu0 %v1029
      %1159 = vmatprep.subr.bf16.mxu0 %v1032
      %1160 = vmatpush1.bf16.msra.mxu0 %v1031
      %1161 = vmatprep.subr.bf16.mxu0 %v1034
      %1162 = vmatpush1.bf16.msra.mxu0 %v1033
      %1163 = vmatprep.subr.bf16.mxu0 %v1036
      %1164 = vmatpush1.bf16.msra.mxu0 %v1035
      %1165 = vmatprep.subr.bf16.mxu0 %v1038
      %1166 = vmatpush1.bf16.msra.mxu0 %v1037
      %1167 = vmatprep.subr.bf16.mxu0 %v1040
      %1168 = vmatpush1.bf16.msra.mxu0 %v1039
      %1169 = vmatprep.subr.bf16.mxu0 %v1042
      %1170 = vmatpush1.bf16.msra.mxu0 %v1041
      %1171 = vmatprep.subr.bf16.mxu0 %v1044
      %1172 = vmatpush1.bf16.msra.mxu0 %v1043
      %1173 = vmatprep.subr.bf16.mxu0 %v1046
      %1174 = vmatpush1.bf16.msra.mxu0 %v1045
      %1175 = vmatprep.subr.bf16.mxu0 %v1048
      %1176 = vmatpush1.bf16.msra.mxu0 %v1047
      %1177 = vmatprep.subr.bf16.mxu0 %v1050
      %1178 = vmatpush1.bf16.msra.mxu0 %v1049
      %1179 = vmatprep.subr.bf16.mxu0 %v1052
      %1180 = vmatpush1.bf16.msra.mxu0 %v1051
      %1181 = vmatprep.mubr.bf16.mxu0 %v702
      %1182 = vmatmul.mubr.bf16.gmra.mrb[0].mxu0 %v701
      %v1183 = vpop.f32.mrb[0].mxu0
      %v1184 = vadd.f32 %v502, %v1183
      %v1185 = vpop.f32.mrb[0].mxu0
      %v1186 = vadd.f32 %v506, %v1185
      %v1187 = vpop.f32.mrb[0].mxu0
      %v1188 = vadd.f32 %v502, %v1187
      %v1189 = vpop.f32.mrb[0].mxu0
      %v1190 = vadd.f32 %v506, %v1189
      %1191 = vmatprep.mubr.bf16.mxu0 %v706
      %1192 = vmatmul.mubr.bf16.gmra.mrb[0].mxu0 %v705
      %v1193 = vpop.f32.mrb[0].mxu0
      %v1194 = vadd.f32 %v502, %v1193
      %v1195 = vpop.f32.mrb[0].mxu0
      %v1196 = vadd.f32 %v506, %v1195
      %v1197 = vpop.f32.mrb[0].mxu0
      %v1198 = vadd.f32 %v502, %v1197
      %v1199 = vpop.f32.mrb[0].mxu0
      %v1200 = vadd.f32 %v506, %v1199
      %1201 = vmatprep.mubr.bf16.mxu0 %v710
      %1202 = vmatmul.mubr.bf16.gmra.mrb[0].mxu0 %v709
      %v1203 = vpop.f32.mrb[0].mxu0
      %v1204 = vadd.f32 %v502, %v1203
      %v1205 = vpop.f32.mrb[0].mxu0
      %v1206 = vadd.f32 %v506, %v1205
      %v1207 = vpop.f32.mrb[0].mxu0
      %v1208 = vadd.f32 %v502, %v1207
      %v1209 = vpop.f32.mrb[0].mxu0
      %v1210 = vadd.f32 %v506, %v1209
      %1211 = vmatprep.mubr.bf16.mxu0 %v714
      %1212 = vmatmul.mubr.bf16.gmra.mrb[0].mxu0 %v713
      %v1213 = vpop.f32.mrb[0].mxu0
      %v1214 = vadd.f32 %v502, %v1213
      %v1215 = vpop.f32.mrb[0].mxu0
      %v1216 = vadd.f32 %v506, %v1215
      %v1217 = vpop.f32.mrb[0].mxu0
      %v1218 = vadd.f32 %v502, %v1217
      %v1219 = vpop.f32.mrb[0].mxu0
      %v1220 = vadd.f32 %v506, %v1219
      %1221 = vmatprep.mubr.bf16.mxu0 %v718
      %1222 = vmatmul.mubr.bf16.gmra.mrb[0].mxu0 %v717
      %v1223 = vpop.f32.mrb[0].mxu0
      %v1224 = vadd.f32 %v502, %v1223
      %v1225 = vpop.f32.mrb[0].mxu0
      %v1226 = vadd.f32 %v506, %v1225
      %v1227 = vpop.f32.mrb[0].mxu0
      %v1228 = vadd.f32 %v502, %v1227
      %v1229 = vpop.f32.mrb[0].mxu0
      %v1230 = vadd.f32 %v506, %v1229
      %1231 = vmatprep.mubr.bf16.mxu0 %v722
      %1232 = vmatmul.mubr.bf16.gmra.mrb[0].mxu0 %v721
      %v1233 = vpop.f32.mrb[0].mxu0
      %v1234 = vadd.f32 %v502, %v1233
      %v1235 = vpop.f32.mrb[0].mxu0
      %v1236 = vadd.f32 %v506, %v1235
      %v1237 = vpop.f32.mrb[0].mxu0
      %v1238 = vadd.f32 %v502, %v1237
      %v1239 = vpop.f32.mrb[0].mxu0
      %v1240 = vadd.f32 %v506, %v1239
      %1241 = vmatprep.mubr.bf16.mxu0 %v726
      %1242 = vmatmul.mubr.bf16.gmra.mrb[0].mxu0 %v725
      %v1243 = vpop.f32.mrb[0].mxu0
      %v1244 = vadd.f32 %v502, %v1243
      %v1245 = vpop.f32.mrb[0].mxu0
      %v1246 = vadd.f32 %v506, %v1245
      %v1247 = vpop.f32.mrb[0].mxu0
      %v1248 = vadd.f32 %v502, %v1247
      %v1249 = vpop.f32.mrb[0].mxu0
      %v1250 = vadd.f32 %v506, %v1249
      %1251 = vmatprep.mubr.bf16.mxu0 %v730
      %1252 = vmatmul.mubr.bf16.gmra.mrb[0].mxu0 %v729
      %v1253 = vpop.f32.mrb[0].mxu0
      %v1254 = vadd.f32 %v502, %v1253
      %v1255 = vpop.f32.mrb[0].mxu0
      %v1256 = vadd.f32 %v506, %v1255
      %v1257 = vpop.f32.mrb[0].mxu0
      %v1258 = vadd.f32 %v502, %v1257
      %v1259 = vpop.f32.mrb[0].mxu0
      %v1260 = vadd.f32 %v506, %v1259
      %1261 = vmatprep.mubr.bf16.mxu0 %v734
      %1262 = vmatmul.mubr.bf16.gmra.mrb[0].mxu0 %v733
      %v1263 = vpop.f32.mrb[0].mxu0
      %v1264 = vadd.f32 %v502, %v1263
      %v1265 = vpop.f32.mrb[0].mxu0
      %v1266 = vadd.f32 %v506, %v1265
      %v1267 = vpop.f32.mrb[0].mxu0
      %v1268 = vadd.f32 %v502, %v1267
      %v1269 = vpop.f32.mrb[0].mxu0
      %v1270 = vadd.f32 %v506, %v1269
      %1271 = vmatprep.mubr.bf16.mxu0 %v738
      %1272 = vmatmul.mubr.bf16.gmra.mrb[0].mxu0 %v737
      %v1273 = vpop.f32.mrb[0].mxu0
      %v1274 = vadd.f32 %v502, %v1273
      %v1275 = vpop.f32.mrb[0].mxu0
      %v1276 = vadd.f32 %v506, %v1275
      %v1277 = vpop.f32.mrb[0].mxu0
      %v1278 = vadd.f32 %v502, %v1277
      %v1279 = vpop.f32.mrb[0].mxu0
      %v1280 = vadd.f32 %v506, %v1279
      %1281 = vmatprep.mubr.bf16.mxu0 %v742
      %1282 = vmatmul.mubr.bf16.gmra.mrb[0].mxu0 %v741
      %v1283 = vpop.f32.mrb[0].mxu0
      %v1284 = vadd.f32 %v502, %v1283
      %v1285 = vpop.f32.mrb[0].mxu0
      %v1286 = vadd.f32 %v506, %v1285
      %v1287 = vpop.f32.mrb[0].mxu0
      %v1288 = vadd.f32 %v502, %v1287
      %v1289 = vpop.f32.mrb[0].mxu0
      %v1290 = vadd.f32 %v506, %v1289
      %1291 = vmatprep.mubr.bf16.mxu0 %v746
      %1292 = vmatmul.mubr.bf16.gmra.mrb[0].mxu0 %v745
      %v1293 = vpop.f32.mrb[0].mxu0
      %v1294 = vadd.f32 %v502, %v1293
      %v1295 = vpop.f32.mrb[0].mxu0
      %v1296 = vadd.f32 %v506, %v1295
      %v1297 = vpop.f32.mrb[0].mxu0
      %v1298 = vadd.f32 %v502, %v1297
      %v1299 = vpop.f32.mrb[0].mxu0
      %v1300 = vadd.f32 %v506, %v1299
      %1301 = vmatprep.mubr.bf16.mxu0 %v750
      %1302 = vmatmul.mubr.bf16.gmra.mrb[0].mxu0 %v749
      %v1303 = vpop.f32.mrb[0].mxu0
      %v1304 = vadd.f32 %v502, %v1303
      %v1305 = vpop.f32.mrb[0].mxu0
      %v1306 = vadd.f32 %v506, %v1305
      %v1307 = vpop.f32.mrb[0].mxu0
      %v1308 = vadd.f32 %v502, %v1307
      %v1309 = vpop.f32.mrb[0].mxu0
      %v1310 = vadd.f32 %v506, %v1309
      %1311 = vmatprep.mubr.bf16.mxu0 %v754
      %1312 = vmatmul.mubr.bf16.gmra.mrb[0].mxu0 %v753
      %v1313 = vpop.f32.mrb[0].mxu0
      %v1314 = vadd.f32 %v502, %v1313
      %v1315 = vpop.f32.mrb[0].mxu0
      %v1316 = vadd.f32 %v506, %v1315
      %v1317 = vpop.f32.mrb[0].mxu0
      %v1318 = vadd.f32 %v502, %v1317
      %v1319 = vpop.f32.mrb[0].mxu0
      %v1320 = vadd.f32 %v506, %v1319
      %1321 = vmatprep.mubr.bf16.mxu0 %v758
      %1322 = vmatmul.mubr.bf16.gmra.mrb[0].mxu0 %v757
      %v1323 = vpop.f32.mrb[0].mxu0
      %v1324 = vadd.f32 %v502, %v1323
      %v1325 = vpop.f32.mrb[0].mxu0
      %v1326 = vadd.f32 %v506, %v1325
      %v1327 = vpop.f32.mrb[0].mxu0
      %v1328 = vadd.f32 %v502, %v1327
      %v1329 = vpop.f32.mrb[0].mxu0
      %v1330 = vadd.f32 %v506, %v1329
      %1331 = vmatprep.mubr.bf16.mxu0 %v762
      %1332 = vmatmul.mubr.bf16.gmra.mrb[0].mxu0 %v761
      %v1333 = vpop.f32.mrb[0].mxu0
      %v1334 = vadd.f32 %v502, %v1333
      %v1335 = vpop.f32.mrb[0].mxu0
      %v1336 = vadd.f32 %v506, %v1335
      %v1337 = vpop.f32.mrb[0].mxu0
      %v1338 = vadd.f32 %v502, %v1337
      %v1339 = vpop.f32.mrb[0].mxu0
      %v1340 = vadd.f32 %v506, %v1339
      %1341 = vdwg.mxu0
      %1342 = vmatprep.subr.bf16.mxu0 %v1054
      %1343 = vmatpush1.bf16.msra.mxu0 %v1053
      %1344 = vmatprep.subr.bf16.mxu0 %v1056
      %1345 = vmatpush1.bf16.msra.mxu0 %v1055
      %1346 = vmatprep.subr.bf16.mxu0 %v1058
      %1347 = vmatpush1.bf16.msra.mxu0 %v1057
      %1348 = vmatprep.subr.bf16.mxu0 %v1060
      %1349 = vmatpush1.bf16.msra.mxu0 %v1059
      %1350 = vmatprep.subr.bf16.mxu0 %v1062
      %1351 = vmatpush1.bf16.msra.mxu0 %v1061
      %1352 = vmatprep.subr.bf16.mxu0 %v1064
      %1353 = vmatpush1.bf16.msra.mxu0 %v1063
      %1354 = vmatprep.subr.bf16.mxu0 %v1066
      %1355 = vmatpush1.bf16.msra.mxu0 %v1065
      %1356 = vmatprep.subr.bf16.mxu0 %v1068
      %1357 = vmatpush1.bf16.msra.mxu0 %v1067
      %1358 = vmatprep.subr.bf16.mxu0 %v1070
      %1359 = vmatpush1.bf16.msra.mxu0 %v1069
      %1360 = vmatprep.subr.bf16.mxu0 %v1072
      %1361 = vmatpush1.bf16.msra.mxu0 %v1071
      %1362 = vmatprep.subr.bf16.mxu0 %v1074
      %1363 = vmatpush1.bf16.msra.mxu0 %v1073
      %1364 = vmatprep.subr.bf16.mxu0 %v1076
      %1365 = vmatpush1.bf16.msra.mxu0 %v1075
      %1366 = vmatprep.subr.bf16.mxu0 %v1078
      %1367 = vmatpush1.bf16.msra.mxu0 %v1077
      %1368 = vmatprep.subr.bf16.mxu0 %v1080
      %1369 = vmatpush1.bf16.msra.mxu0 %v1079
      %1370 = vmatprep.subr.bf16.mxu0 %v1082
      %1371 = vmatpush1.bf16.msra.mxu0 %v1081
      %1372 = vmatprep.subr.bf16.mxu0 %v1084
      %1373 = vmatpush1.bf16.msra.mxu0 %v1083
      %1374 = vmatprep.mubr.bf16.mxu0 %v704
      %1375 = vmatmul.mubr.bf16.gmra.mrb[0].mxu0 %v703
      %v1376 = vpop.f32.mrb[0].mxu0
      %v1377 = vadd.f32 %v1184, %v1376
      %v1378 = vpop.f32.mrb[0].mxu0
      %v1379 = vadd.f32 %v1186, %v1378
      %v1380 = vpop.f32.mrb[0].mxu0
      %v1381 = vadd.f32 %v1188, %v1380
      %v1382 = vpop.f32.mrb[0].mxu0
      %v1383 = vadd.f32 %v1190, %v1382
      %1384 = vmatprep.mubr.bf16.mxu0 %v708
      %1385 = vmatmul.mubr.bf16.gmra.mrb[0].mxu0 %v707
      %v1386 = vpop.f32.mrb[0].mxu0
      %v1387 = vadd.f32 %v1194, %v1386
      %v1388 = vpop.f32.mrb[0].mxu0
      %v1389 = vadd.f32 %v1196, %v1388
      %v1390 = vpop.f32.mrb[0].mxu0
      %v1391 = vadd.f32 %v1198, %v1390
      %v1392 = vpop.f32.mrb[0].mxu0
      %v1393 = vadd.f32 %v1200, %v1392
      %1394 = vmatprep.mubr.bf16.mxu0 %v712
      %1395 = vmatmul.mubr.bf16.gmra.mrb[0].mxu0 %v711
      %v1396 = vpop.f32.mrb[0].mxu0
      %v1397 = vadd.f32 %v1204, %v1396
      %v1398 = vpop.f32.mrb[0].mxu0
      %v1399 = vadd.f32 %v1206, %v1398
      %v1400 = vpop.f32.mrb[0].mxu0
      %v1401 = vadd.f32 %v1208, %v1400
      %v1402 = vpop.f32.mrb[0].mxu0
      %v1403 = vadd.f32 %v1210, %v1402
      %1404 = vmatprep.mubr.bf16.mxu0 %v716
      %1405 = vmatmul.mubr.bf16.gmra.mrb[0].mxu0 %v715
      %v1406 = vpop.f32.mrb[0].mxu0
      %v1407 = vadd.f32 %v1214, %v1406
      %v1408 = vpop.f32.mrb[0].mxu0
      %v1409 = vadd.f32 %v1216, %v1408
      %v1410 = vpop.f32.mrb[0].mxu0
      %v1411 = vadd.f32 %v1218, %v1410
      %v1412 = vpop.f32.mrb[0].mxu0
      %v1413 = vadd.f32 %v1220, %v1412
      %1414 = vmatprep.mubr.bf16.mxu0 %v720
      %1415 = vmatmul.mubr.bf16.gmra.mrb[0].mxu0 %v719
      %v1416 = vpop.f32.mrb[0].mxu0
      %v1417 = vadd.f32 %v1224, %v1416
      %v1418 = vpop.f32.mrb[0].mxu0
      %v1419 = vadd.f32 %v1226, %v1418
      %v1420 = vpop.f32.mrb[0].mxu0
      %v1421 = vadd.f32 %v1228, %v1420
      %v1422 = vpop.f32.mrb[0].mxu0
      %v1423 = vadd.f32 %v1230, %v1422
      %1424 = vmatprep.mubr.bf16.mxu0 %v724
      %1425 = vmatmul.mubr.bf16.gmra.mrb[0].mxu0 %v723
      %v1426 = vpop.f32.mrb[0].mxu0
      %v1427 = vadd.f32 %v1234, %v1426
      %v1428 = vpop.f32.mrb[0].mxu0
      %v1429 = vadd.f32 %v1236, %v1428
      %v1430 = vpop.f32.mrb[0].mxu0
      %v1431 = vadd.f32 %v1238, %v1430
      %v1432 = vpop.f32.mrb[0].mxu0
      %v1433 = vadd.f32 %v1240, %v1432
      %1434 = vmatprep.mubr.bf16.mxu0 %v728
      %1435 = vmatmul.mubr.bf16.gmra.mrb[0].mxu0 %v727
      %v1436 = vpop.f32.mrb[0].mxu0
      %v1437 = vadd.f32 %v1244, %v1436
      %v1438 = vpop.f32.mrb[0].mxu0
      %v1439 = vadd.f32 %v1246, %v1438
      %v1440 = vpop.f32.mrb[0].mxu0
      %v1441 = vadd.f32 %v1248, %v1440
      %v1442 = vpop.f32.mrb[0].mxu0
      %v1443 = vadd.f32 %v1250, %v1442
      %1444 = vmatprep.mubr.bf16.mxu0 %v732
      %1445 = vmatmul.mubr.bf16.gmra.mrb[0].mxu0 %v731
      %v1446 = vpop.f32.mrb[0].mxu0
      %v1447 = vadd.f32 %v1254, %v1446
      %v1448 = vpop.f32.mrb[0].mxu0
      %v1449 = vadd.f32 %v1256, %v1448
      %v1450 = vpop.f32.mrb[0].mxu0
      %v1451 = vadd.f32 %v1258, %v1450
      %v1452 = vpop.f32.mrb[0].mxu0
      %v1453 = vadd.f32 %v1260, %v1452
      %1454 = vmatprep.mubr.bf16.mxu0 %v736
      %1455 = vmatmul.mubr.bf16.gmra.mrb[0].mxu0 %v735
      %v1456 = vpop.f32.mrb[0].mxu0
      %v1457 = vadd.f32 %v1264, %v1456
      %v1458 = vpop.f32.mrb[0].mxu0
      %v1459 = vadd.f32 %v1266, %v1458
      %v1460 = vpop.f32.mrb[0].mxu0
      %v1461 = vadd.f32 %v1268, %v1460
      %v1462 = vpop.f32.mrb[0].mxu0
      %v1463 = vadd.f32 %v1270, %v1462
      %1464 = vmatprep.mubr.bf16.mxu0 %v740
      %1465 = vmatmul.mubr.bf16.gmra.mrb[0].mxu0 %v739
      %v1466 = vpop.f32.mrb[0].mxu0
      %v1467 = vadd.f32 %v1274, %v1466
      %v1468 = vpop.f32.mrb[0].mxu0
      %v1469 = vadd.f32 %v1276, %v1468
      %v1470 = vpop.f32.mrb[0].mxu0
      %v1471 = vadd.f32 %v1278, %v1470
      %v1472 = vpop.f32.mrb[0].mxu0
      %v1473 = vadd.f32 %v1280, %v1472
      %1474 = vmatprep.mubr.bf16.mxu0 %v744
      %1475 = vmatmul.mubr.bf16.gmra.mrb[0].mxu0 %v743
      %v1476 = vpop.f32.mrb[0].mxu0
      %v1477 = vadd.f32 %v1284, %v1476
      %v1478 = vpop.f32.mrb[0].mxu0
      %v1479 = vadd.f32 %v1286, %v1478
      %v1480 = vpop.f32.mrb[0].mxu0
      %v1481 = vadd.f32 %v1288, %v1480
      %v1482 = vpop.f32.mrb[0].mxu0
      %v1483 = vadd.f32 %v1290, %v1482
      %1484 = vmatprep.mubr.bf16.mxu0 %v748
      %1485 = vmatmul.mubr.bf16.gmra.mrb[0].mxu0 %v747
      %v1486 = vpop.f32.mrb[0].mxu0
      %v1487 = vadd.f32 %v1294, %v1486
      %v1488 = vpop.f32.mrb[0].mxu0
      %v1489 = vadd.f32 %v1296, %v1488
      %v1490 = vpop.f32.mrb[0].mxu0
      %v1491 = vadd.f32 %v1298, %v1490
      %v1492 = vpop.f32.mrb[0].mxu0
      %v1493 = vadd.f32 %v1300, %v1492
      %1494 = vmatprep.mubr.bf16.mxu0 %v752
      %1495 = vmatmul.mubr.bf16.gmra.mrb[0].mxu0 %v751
      %v1496 = vpop.f32.mrb[0].mxu0
      %v1497 = vadd.f32 %v1304, %v1496
      %v1498 = vpop.f32.mrb[0].mxu0
      %v1499 = vadd.f32 %v1306, %v1498
      %v1500 = vpop.f32.mrb[0].mxu0
      %v1501 = vadd.f32 %v1308, %v1500
      %v1502 = vpop.f32.mrb[0].mxu0
      %v1503 = vadd.f32 %v1310, %v1502
      %1504 = vmatprep.mubr.bf16.mxu0 %v756
      %1505 = vmatmul.mubr.bf16.gmra.mrb[0].mxu0 %v755
      %v1506 = vpop.f32.mrb[0].mxu0
      %v1507 = vadd.f32 %v1314, %v1506
      %v1508 = vpop.f32.mrb[0].mxu0
      %v1509 = vadd.f32 %v1316, %v1508
      %v1510 = vpop.f32.mrb[0].mxu0
      %v1511 = vadd.f32 %v1318, %v1510
      %v1512 = vpop.f32.mrb[0].mxu0
      %v1513 = vadd.f32 %v1320, %v1512
      %1514 = vmatprep.mubr.bf16.mxu0 %v760
      %1515 = vmatmul.mubr.bf16.gmra.mrb[0].mxu0 %v759
      %v1516 = vpop.f32.mrb[0].mxu0
      %v1517 = vadd.f32 %v1324, %v1516
      %v1518 = vpop.f32.mrb[0].mxu0
      %v1519 = vadd.f32 %v1326, %v1518
      %v1520 = vpop.f32.mrb[0].mxu0
      %v1521 = vadd.f32 %v1328, %v1520
      %v1522 = vpop.f32.mrb[0].mxu0
      %v1523 = vadd.f32 %v1330, %v1522
      %1524 = vmatprep.mubr.bf16.mxu0 %v764
      %1525 = vmatmul.mubr.bf16.gmra.mrb[0].mxu0 %v763
      %v1526 = vpop.f32.mrb[0].mxu0
      %v1527 = vadd.f32 %v1334, %v1526
      %v1528 = vpop.f32.mrb[0].mxu0
      %v1529 = vadd.f32 %v1336, %v1528
      %v1530 = vpop.f32.mrb[0].mxu0
      %v1531 = vadd.f32 %v1338, %v1530
      %v1532 = vpop.f32.mrb[0].mxu0
      %v1533 = vadd.f32 %v1340, %v1532
      %1534 = vdwg.mxu0
      %v1535 = vmax.f32 %v1377, 0.0
      %v1536 = vmax.f32 %v1379, 0.0
      %v1537 = vmax.f32 %v1381, 0.0
      %v1538 = vmax.f32 %v1383, 0.0
      %v1539 = vmax.f32 %v1387, 0.0
      %v1540 = vmax.f32 %v1389, 0.0
      %v1541 = vmax.f32 %v1391, 0.0
      %v1542 = vmax.f32 %v1393, 0.0
      %v1543 = vmax.f32 %v1397, 0.0
      %v1544 = vmax.f32 %v1399, 0.0
      %v1545 = vmax.f32 %v1401, 0.0
      %v1546 = vmax.f32 %v1403, 0.0
      %v1547 = vmax.f32 %v1407, 0.0
      %v1548 = vmax.f32 %v1409, 0.0
      %v1549 = vmax.f32 %v1411, 0.0
      %v1550 = vmax.f32 %v1413, 0.0
      %v1551 = vmax.f32 %v1417, 0.0
      %v1552 = vmax.f32 %v1419, 0.0
      %v1553 = vmax.f32 %v1421, 0.0
      %v1554 = vmax.f32 %v1423, 0.0
      %v1555 = vmax.f32 %v1427, 0.0
      %v1556 = vmax.f32 %v1429, 0.0
      %v1557 = vmax.f32 %v1431, 0.0
      %v1558 = vmax.f32 %v1433, 0.0
      %v1559 = vmax.f32 %v1437, 0.0
      %v1560 = vmax.f32 %v1439, 0.0
      %v1561 = vmax.f32 %v1441, 0.0
      %v1562 = vmax.f32 %v1443, 0.0
      %v1563 = vmax.f32 %v1447, 0.0
      %v1564 = vmax.f32 %v1449, 0.0
      %v1565 = vmax.f32 %v1451, 0.0
      %v1566 = vmax.f32 %v1453, 0.0
      %v1567 = vmax.f32 %v1457, 0.0
      %v1568 = vmax.f32 %v1459, 0.0
      %v1569 = vmax.f32 %v1461, 0.0
      %v1570 = vmax.f32 %v1463, 0.0
      %v1571 = vmax.f32 %v1467, 0.0
      %v1572 = vmax.f32 %v1469, 0.0
      %v1573 = vmax.f32 %v1471, 0.0
      %v1574 = vmax.f32 %v1473, 0.0
      %v1575 = vmax.f32 %v1477, 0.0
      %v1576 = vmax.f32 %v1479, 0.0
      %v1577 = vmax.f32 %v1481, 0.0
      %v1578 = vmax.f32 %v1483, 0.0
      %v1579 = vmax.f32 %v1487, 0.0
      %v1580 = vmax.f32 %v1489, 0.0
      %v1581 = vmax.f32 %v1491, 0.0
      %v1582 = vmax.f32 %v1493, 0.0
      %v1583 = vmax.f32 %v1497, 0.0
      %v1584 = vmax.f32 %v1499, 0.0
      %v1585 = vmax.f32 %v1501, 0.0
      %v1586 = vmax.f32 %v1503, 0.0
      %v1587 = vmax.f32 %v1507, 0.0
      %v1588 = vmax.f32 %v1509, 0.0
      %v1589 = vmax.f32 %v1511, 0.0
      %v1590 = vmax.f32 %v1513, 0.0
      %v1591 = vmax.f32 %v1517, 0.0
      %v1592 = vmax.f32 %v1519, 0.0
      %v1593 = vmax.f32 %v1521, 0.0
      %v1594 = vmax.f32 %v1523, 0.0
      %v1595 = vmax.f32 %v1527, 0.0
      %v1596 = vmax.f32 %v1529, 0.0
      %v1597 = vmax.f32 %v1531, 0.0
      %v1598 = vmax.f32 %v1533, 0.0
      %1599 = vst [vmem:[%s354] sm:$0xff] %v1535
      %vm1600 = vcmask 261120
      %1601 = vst.msk [vmem:[%s354 + $0x8] sm:$0xff] %vm1600, %v1536
      %1602 = vst [vmem:[%s354 + $0x10] sm:$0xff] %v1537
      %1603 = vst.msk [vmem:[%s354 + $0x18] sm:$0xff] %vm1600, %v1538
      %1604 = vst [vmem:[%s354 + $0x20] sm:$0xff] %v1539
      %1605 = vst.msk [vmem:[%s354 + $0x28] sm:$0xff] %vm1600, %v1540
      %1606 = vst [vmem:[%s354 + $0x30] sm:$0xff] %v1541
      %1607 = vst.msk [vmem:[%s354 + $0x38] sm:$0xff] %vm1600, %v1542
      %1608 = vst [vmem:[%s354 + $0x40] sm:$0xff] %v1543
      %1609 = vst.msk [vmem:[%s354 + $0x48] sm:$0xff] %vm1600, %v1544
      %1610 = vst [vmem:[%s354 + $0x50] sm:$0xff] %v1545
      %1611 = vst.msk [vmem:[%s354 + $0x58] sm:$0xff] %vm1600, %v1546
      %1612 = vst [vmem:[%s354 + $0x60] sm:$0xff] %v1547
      %1613 = vst.msk [vmem:[%s354 + $0x68] sm:$0xff] %vm1600, %v1548
      %1614 = vst [vmem:[%s354 + $0x70] sm:$0xff] %v1549
      %1615 = vst.msk [vmem:[%s354 + $0x78] sm:$0xff] %vm1600, %v1550
      %1616 = vst [vmem:[%s354 + $0x80] sm:$0xff] %v1551
      %1617 = vst.msk [vmem:[%s354 + $0x88] sm:$0xff] %vm1600, %v1552
      %1618 = vst [vmem:[%s354 + $0x90] sm:$0xff] %v1553
      %1619 = vst.msk [vmem:[%s354 + $0x98] sm:$0xff] %vm1600, %v1554
      %1620 = vst [vmem:[%s354 + $0xa0] sm:$0xff] %v1555
      %1621 = vst.msk [vmem:[%s354 + $0xa8] sm:$0xff] %vm1600, %v1556
      %1622 = vst [vmem:[%s354 + $0xb0] sm:$0xff] %v1557
      %1623 = vst.msk [vmem:[%s354 + $0xb8] sm:$0xff] %vm1600, %v1558
      %1624 = vst [vmem:[%s354 + $0xc0] sm:$0xff] %v1559
      %1625 = vst.msk [vmem:[%s354 + $0xc8] sm:$0xff] %vm1600, %v1560
      %1626 = vst [vmem:[%s354 + $0xd0] sm:$0xff] %v1561
      %1627 = vst.msk [vmem:[%s354 + $0xd8] sm:$0xff] %vm1600, %v1562
      %1628 = vst [vmem:[%s354 + $0xe0] sm:$0xff] %v1563
      %1629 = vst.msk [vmem:[%s354 + $0xe8] sm:$0xff] %vm1600, %v1564
      %1630 = vst [vmem:[%s354 + $0xf0] sm:$0xff] %v1565
      %1631 = vst.msk [vmem:[%s354 + $0xf8] sm:$0xff] %vm1600, %v1566
      %1632 = vst [vmem:[%s354 + $0x100] sm:$0xff] %v1567
      %1633 = vst.msk [vmem:[%s354 + $0x108] sm:$0xff] %vm1600, %v1568
      %1634 = vst [vmem:[%s354 + $0x110] sm:$0xff] %v1569
      %1635 = vst.msk [vmem:[%s354 + $0x118] sm:$0xff] %vm1600, %v1570
      %1636 = vst [vmem:[%s354 + $0x120] sm:$0xff] %v1571
      %1637 = vst.msk [vmem:[%s354 + $0x128] sm:$0xff] %vm1600, %v1572
      %1638 = vst [vmem:[%s354 + $0x130] sm:$0xff] %v1573
      %1639 = vst.msk [vmem:[%s354 + $0x138] sm:$0xff] %vm1600, %v1574
      %1640 = vst [vmem:[%s354 + $0x140] sm:$0xff] %v1575
      %1641 = vst.msk [vmem:[%s354 + $0x148] sm:$0xff] %vm1600, %v1576
      %1642 = vst [vmem:[%s354 + $0x150] sm:$0xff] %v1577
      %1643 = vst.msk [vmem:[%s354 + $0x158] sm:$0xff] %vm1600, %v1578
      %1644 = vst [vmem:[%s354 + $0x160] sm:$0xff] %v1579
      %1645 = vst.msk [vmem:[%s354 + $0x168] sm:$0xff] %vm1600, %v1580
      %1646 = vst [vmem:[%s354 + $0x170] sm:$0xff] %v1581
      %1647 = vst.msk [vmem:[%s354 + $0x178] sm:$0xff] %vm1600, %v1582
      %1648 = vst [vmem:[%s354 + $0x180] sm:$0xff] %v1583
      %1649 = vst.msk [vmem:[%s354 + $0x188] sm:$0xff] %vm1600, %v1584
      %1650 = vst [vmem:[%s354 + $0x190] sm:$0xff] %v1585
      %1651 = vst.msk [vmem:[%s354 + $0x198] sm:$0xff] %vm1600, %v1586
      %1652 = vst [vmem:[%s354 + $0x1a0] sm:$0xff] %v1587
      %1653 = vst.msk [vmem:[%s354 + $0x1a8] sm:$0xff] %vm1600, %v1588
      %1654 = vst [vmem:[%s354 + $0x1b0] sm:$0xff] %v1589
      %1655 = vst.msk [vmem:[%s354 + $0x1b8] sm:$0xff] %vm1600, %v1590
      %1656 = vst [vmem:[%s354 + $0x1c0] sm:$0xff] %v1591
      %1657 = vst.msk [vmem:[%s354 + $0x1c8] sm:$0xff] %vm1600, %v1592
      %1658 = vst [vmem:[%s354 + $0x1d0] sm:$0xff] %v1593
      %1659 = vst.msk [vmem:[%s354 + $0x1d8] sm:$0xff] %vm1600, %v1594
      %1660 = vst [vmem:[%s354 + $0x1e0] sm:$0xff] %v1595
      %1661 = vst.msk [vmem:[%s354 + $0x1e8] sm:$0xff] %vm1600, %v1596
      %1662 = vst [vmem:[%s354 + $0x1f0] sm:$0xff] %v1597
      %1663 = vst.msk [vmem:[%s354 + $0x1f8] sm:$0xff] %vm1600, %v1598
      %v1664 = vld [vmem:[%s2] sm:$0xf]
      %v1665 = vld [vmem:[%s2 + $0x4] sm:$0xf]
      %v1666 = vld [vmem:[%s2 + $0x8] sm:$0xf]
      %v1667 = vld [vmem:[%s2 + $0xc] sm:$0xf]
      %v1668 = vld [vmem:[%s2 + $0x10] sm:$0xf]
      %v1669 = vld [vmem:[%s2 + $0x14] sm:$0xf]
      %v1670 = vld [vmem:[%s2 + $0x18] sm:$0xf]
      %v1671 = vld [vmem:[%s2 + $0x1c] sm:$0xf]
      %v1672 = vld [vmem:[%s2 + $0x20] sm:$0xf]
      %v1673 = vld [vmem:[%s2 + $0x24] sm:$0xf]
      %v1674 = vld [vmem:[%s2 + $0x28] sm:$0xf]
      %v1675 = vld [vmem:[%s2 + $0x2c] sm:$0xf]
      %v1676 = vld [vmem:[%s2 + $0x30] sm:$0xf]
      %v1677 = vld [vmem:[%s2 + $0x34] sm:$0xf]
      %v1678 = vld [vmem:[%s2 + $0x38] sm:$0xf]
      %v1679 = vld [vmem:[%s2 + $0x3c] sm:$0xf]
      %v1680 = vld [vmem:[%s2 + $0x40] sm:$0xf]
      %v1681 = vld [vmem:[%s2 + $0x44] sm:$0xf]
      %v1682 = vld [vmem:[%s2 + $0x48] sm:$0xf]
      %v1683 = vld [vmem:[%s2 + $0x4c] sm:$0xf]
      %v1684 = vld [vmem:[%s2 + $0x50] sm:$0xf]
      %v1685 = vld [vmem:[%s2 + $0x54] sm:$0xf]
      %v1686 = vld [vmem:[%s2 + $0x58] sm:$0xf]
      %v1687 = vld [vmem:[%s2 + $0x5c] sm:$0xf]
      %v1688 = vld [vmem:[%s2 + $0x60] sm:$0xf]
      %v1689 = vld [vmem:[%s2 + $0x64] sm:$0xf]
      %v1690 = vld [vmem:[%s2 + $0x68] sm:$0xf]
      %v1691 = vld [vmem:[%s2 + $0x6c] sm:$0xf]
      %v1692 = vld [vmem:[%s2 + $0x70] sm:$0xf]
      %v1693 = vld [vmem:[%s2 + $0x74] sm:$0xf]
      %v1694 = vld [vmem:[%s2 + $0x78] sm:$0xf]
      %v1695 = vld [vmem:[%s2 + $0x7c] sm:$0xf]
      %v1696 = vld [vmem:[%s2 + $0x80] sm:$0xf]
      %v1697 = vld [vmem:[%s2 + $0x84] sm:$0xf]
      %v1698 = vld [vmem:[%s2 + $0x88] sm:$0xf]
      %v1699 = vld [vmem:[%s2 + $0x8c] sm:$0xf]
      %v1700 = vld [vmem:[%s2 + $0x90] sm:$0xf]
      %v1701 = vld [vmem:[%s2 + $0x94] sm:$0xf]
      %v1702 = vld [vmem:[%s2 + $0x98] sm:$0xf]
      %v1703 = vld [vmem:[%s2 + $0x9c] sm:$0xf]
      %v1704 = vld [vmem:[%s2 + $0xa0] sm:$0xf]
      %v1705 = vld [vmem:[%s2 + $0xa4] sm:$0xf]
      %v1706 = vld [vmem:[%s2 + $0xa8] sm:$0xf]
      %v1707 = vld [vmem:[%s2 + $0xac] sm:$0xf]
      %v1708 = vld [vmem:[%s2 + $0xb0] sm:$0xf]
      %v1709 = vld [vmem:[%s2 + $0xb4] sm:$0xf]
      %v1710 = vld [vmem:[%s2 + $0xb8] sm:$0xf]
      %v1711 = vld [vmem:[%s2 + $0xbc] sm:$0xf]
      %v1712 = vld [vmem:[%s2 + $0xc0] sm:$0xf]
      %v1713 = vld [vmem:[%s2 + $0xc4] sm:$0xf]
      %v1714 = vld [vmem:[%s2 + $0xc8] sm:$0xf]
      %v1715 = vld [vmem:[%s2 + $0xcc] sm:$0xf]
      %v1716 = vld [vmem:[%s2 + $0xd0] sm:$0xf]
      %v1717 = vld [vmem:[%s2 + $0xd4] sm:$0xf]
      %v1718 = vld [vmem:[%s2 + $0xd8] sm:$0xf]
      %v1719 = vld [vmem:[%s2 + $0xdc] sm:$0xf]
      %v1720 = vld [vmem:[%s2 + $0xe0] sm:$0xf]
      %v1721 = vld [vmem:[%s2 + $0xe4] sm:$0xf]
      %v1722 = vld [vmem:[%s2 + $0xe8] sm:$0xf]
      %v1723 = vld [vmem:[%s2 + $0xec] sm:$0xf]
      %v1724 = vld [vmem:[%s2 + $0xf0] sm:$0xf]
      %v1725 = vld [vmem:[%s2 + $0xf4] sm:$0xf]
      %v1726 = vld [vmem:[%s2 + $0xf8] sm:$0xf]
      %v1727 = vld [vmem:[%s2 + $0xfc] sm:$0xf]
      %v1728 = vld [vmem:[%s5] sm:$0x1]
      %v1730 = vlaneseq
      %v1731 = vshrl.u32 %v1730, 7
      %v1732 = vsub.s32 0, %v1731
      %v1733 = vrot.slane %v1728, %v1732
      %v1799 = vunpack.c.l.b16 %v1664
      %v1800 = vunpack.c.l.b16 %v1665
      %v1801 = vunpack.c.l.b16 %v1666
      %v1802 = vunpack.c.l.b16 %v1667
      %v1803 = vunpack.c.l.b16 %v1668
      %v1804 = vunpack.c.l.b16 %v1669
      %v1805 = vunpack.c.l.b16 %v1670
      %v1806 = vunpack.c.l.b16 %v1671
      %v1807 = vunpack.c.l.b16 %v1672
      %v1808 = vunpack.c.l.b16 %v1673
      %v1809 = vunpack.c.l.b16 %v1674
      %v1810 = vunpack.c.l.b16 %v1675
      %v1811 = vunpack.c.l.b16 %v1676
      %v1812 = vunpack.c.l.b16 %v1677
      %v1813 = vunpack.c.l.b16 %v1678
      %v1814 = vunpack.c.l.b16 %v1679
      %v1815 = vunpack.c.l.b16 %v1680
      %v1816 = vunpack.c.l.b16 %v1681
      %v1817 = vunpack.c.l.b16 %v1682
      %v1818 = vunpack.c.l.b16 %v1683
      %v1819 = vunpack.c.l.b16 %v1684
      %v1820 = vunpack.c.l.b16 %v1685
      %v1821 = vunpack.c.l.b16 %v1686
      %v1822 = vunpack.c.l.b16 %v1687
      %v1823 = vunpack.c.l.b16 %v1688
      %v1824 = vunpack.c.l.b16 %v1689
      %v1825 = vunpack.c.l.b16 %v1690
      %v1826 = vunpack.c.l.b16 %v1691
      %v1827 = vunpack.c.l.b16 %v1692
      %v1828 = vunpack.c.l.b16 %v1693
      %v1829 = vunpack.c.l.b16 %v1694
      %v1830 = vunpack.c.l.b16 %v1695
      %v1831 = vunpack.c.l.b16 %v1696
      %v1832 = vunpack.c.l.b16 %v1697
      %v1833 = vunpack.c.l.b16 %v1698
      %v1834 = vunpack.c.l.b16 %v1699
      %v1835 = vunpack.c.l.b16 %v1700
      %v1836 = vunpack.c.l.b16 %v1701
      %v1837 = vunpack.c.l.b16 %v1702
      %v1838 = vunpack.c.l.b16 %v1703
      %v1839 = vunpack.c.l.b16 %v1704
      %v1840 = vunpack.c.l.b16 %v1705
      %v1841 = vunpack.c.l.b16 %v1706
      %v1842 = vunpack.c.l.b16 %v1707
      %v1843 = vunpack.c.l.b16 %v1708
      %v1844 = vunpack.c.l.b16 %v1709
      %v1845 = vunpack.c.l.b16 %v1710
      %v1846 = vunpack.c.l.b16 %v1711
      %v1847 = vunpack.c.l.b16 %v1712
      %v1848 = vunpack.c.l.b16 %v1713
      %v1849 = vunpack.c.l.b16 %v1714
      %v1850 = vunpack.c.l.b16 %v1715
      %v1851 = vunpack.c.l.b16 %v1716
      %v1852 = vunpack.c.l.b16 %v1717
      %v1853 = vunpack.c.l.b16 %v1718
      %v1854 = vunpack.c.l.b16 %v1719
      %v1855 = vunpack.c.l.b16 %v1720
      %v1856 = vunpack.c.l.b16 %v1721
      %v1857 = vunpack.c.l.b16 %v1722
      %v1858 = vunpack.c.l.b16 %v1723
      %v1859 = vunpack.c.l.b16 %v1724
      %v1860 = vunpack.c.l.b16 %v1725
      %v1861 = vunpack.c.l.b16 %v1726
      %v1862 = vunpack.c.l.b16 %v1727
      %v1863 = vpack.c.b16 %v1800, %v1799
      %v1864 = vpack.c.b16 %v1802, %v1801
      %v1865 = vpack.c.b16 %v1804, %v1803
      %v1866 = vpack.c.b16 %v1806, %v1805
      %v1867 = vpack.c.b16 %v1808, %v1807
      %v1868 = vpack.c.b16 %v1810, %v1809
      %v1869 = vpack.c.b16 %v1812, %v1811
      %v1870 = vpack.c.b16 %v1814, %v1813
      %v1871 = vpack.c.b16 %v1816, %v1815
      %v1872 = vpack.c.b16 %v1818, %v1817
      %v1873 = vpack.c.b16 %v1820, %v1819
      %v1874 = vpack.c.b16 %v1822, %v1821
      %v1875 = vpack.c.b16 %v1824, %v1823
      %v1876 = vpack.c.b16 %v1826, %v1825
      %v1877 = vpack.c.b16 %v1828, %v1827
      %v1878 = vpack.c.b16 %v1830, %v1829
      %v1879 = vpack.c.b16 %v1832, %v1831
      %v1880 = vpack.c.b16 %v1834, %v1833
      %v1881 = vpack.c.b16 %v1836, %v1835
      %v1882 = vpack.c.b16 %v1838, %v1837
      %v1883 = vpack.c.b16 %v1840, %v1839
      %v1884 = vpack.c.b16 %v1842, %v1841
      %v1885 = vpack.c.b16 %v1844, %v1843
      %v1886 = vpack.c.b16 %v1846, %v1845
      %v1887 = vpack.c.b16 %v1848, %v1847
      %v1888 = vpack.c.b16 %v1850, %v1849
      %v1889 = vpack.c.b16 %v1852, %v1851
      %v1890 = vpack.c.b16 %v1854, %v1853
      %v1891 = vpack.c.b16 %v1856, %v1855
      %v1892 = vpack.c.b16 %v1858, %v1857
      %v1893 = vpack.c.b16 %v1860, %v1859
      %v1894 = vpack.c.b16 %v1862, %v1861
      %1927 = vmatprep.subr.bf16.mxu0 0
      %1928 = vmatpush1.bf16.msra.mxu0 %v1863
      %1929 = vmatprep.subr.bf16.mxu0 0
      %1930 = vmatpush1.bf16.msra.mxu0 %v1864
      %1931 = vmatprep.subr.bf16.mxu0 0
      %1932 = vmatpush1.bf16.msra.mxu0 %v1865
      %1933 = vmatprep.subr.bf16.mxu0 0
      %1934 = vmatpush1.bf16.msra.mxu0 %v1866
      %1935 = vmatprep.subr.bf16.mxu0 0
      %1936 = vmatpush1.bf16.msra.mxu0 %v1867
      %1937 = vmatprep.subr.bf16.mxu0 0
      %1938 = vmatpush1.bf16.msra.mxu0 %v1868
      %1939 = vmatprep.subr.bf16.mxu0 0
      %1940 = vmatpush1.bf16.msra.mxu0 %v1869
      %1941 = vmatprep.subr.bf16.mxu0 0
      %1942 = vmatpush1.bf16.msra.mxu0 %v1870
      %1943 = vmatprep.subr.bf16.mxu0 0
      %1944 = vmatpush1.bf16.msra.mxu0 %v1871
      %1945 = vmatprep.subr.bf16.mxu0 0
      %1946 = vmatpush1.bf16.msra.mxu0 %v1872
      %1947 = vmatprep.subr.bf16.mxu0 0
      %1948 = vmatpush1.bf16.msra.mxu0 %v1873
      %1949 = vmatprep.subr.bf16.mxu0 0
      %1950 = vmatpush1.bf16.msra.mxu0 %v1874
      %1951 = vmatprep.subr.bf16.mxu0 0
      %1952 = vmatpush1.bf16.msra.mxu0 %v1875
      %1953 = vmatprep.subr.bf16.mxu0 0
      %1954 = vmatpush1.bf16.msra.mxu0 %v1876
      %1955 = vmatprep.subr.bf16.mxu0 0
      %1956 = vmatpush1.bf16.msra.mxu0 %v1877
      %1957 = vmatprep.subr.bf16.mxu0 0
      %1958 = vmatpush1.bf16.msra.mxu0 %v1878
      %1959 = vmatprep.mubr.bf16.mxu0 %v702
      %1960 = vmatmul.mubr.bf16.gmra.mrb[0].mxu0 %v701
      %v1961 = vpop.f32.mrb[0].mxu0
      %v1962 = vadd.f32 %v1733, %v1961
      %v1963 = vpop.f32.mrb[0].mxu0
      %v1964 = vpop.f32.mrb[0].mxu0
      %v1965 = vadd.f32 %v1733, %v1964
      %v1966 = vpop.f32.mrb[0].mxu0
      %1967 = vmatprep.mubr.bf16.mxu0 %v706
      %1968 = vmatmul.mubr.bf16.gmra.mrb[0].mxu0 %v705
      %v1969 = vpop.f32.mrb[0].mxu0
      %v1970 = vadd.f32 %v1733, %v1969
      %v1971 = vpop.f32.mrb[0].mxu0
      %v1972 = vpop.f32.mrb[0].mxu0
      %v1973 = vadd.f32 %v1733, %v1972
      %v1974 = vpop.f32.mrb[0].mxu0
      %1975 = vmatprep.mubr.bf16.mxu0 %v710
      %1976 = vmatmul.mubr.bf16.gmra.mrb[0].mxu0 %v709
      %v1977 = vpop.f32.mrb[0].mxu0
      %v1978 = vadd.f32 %v1733, %v1977
      %v1979 = vpop.f32.mrb[0].mxu0
      %v1980 = vpop.f32.mrb[0].mxu0
      %v1981 = vadd.f32 %v1733, %v1980
      %v1982 = vpop.f32.mrb[0].mxu0
      %1983 = vmatprep.mubr.bf16.mxu0 %v714
      %1984 = vmatmul.mubr.bf16.gmra.mrb[0].mxu0 %v713
      %v1985 = vpop.f32.mrb[0].mxu0
      %v1986 = vadd.f32 %v1733, %v1985
      %v1987 = vpop.f32.mrb[0].mxu0
      %v1988 = vpop.f32.mrb[0].mxu0
      %v1989 = vadd.f32 %v1733, %v1988
      %v1990 = vpop.f32.mrb[0].mxu0
      %1991 = vmatprep.mubr.bf16.mxu0 %v718
      %1992 = vmatmul.mubr.bf16.gmra.mrb[0].mxu0 %v717
      %v1993 = vpop.f32.mrb[0].mxu0
      %v1994 = vadd.f32 %v1733, %v1993
      %v1995 = vpop.f32.mrb[0].mxu0
      %v1996 = vpop.f32.mrb[0].mxu0
      %v1997 = vadd.f32 %v1733, %v1996
      %v1998 = vpop.f32.mrb[0].mxu0
      %1999 = vmatprep.mubr.bf16.mxu0 %v722
      %2000 = vmatmul.mubr.bf16.gmra.mrb[0].mxu0 %v721
      %v2001 = vpop.f32.mrb[0].mxu0
      %v2002 = vadd.f32 %v1733, %v2001
      %v2003 = vpop.f32.mrb[0].mxu0
      %v2004 = vpop.f32.mrb[0].mxu0
      %v2005 = vadd.f32 %v1733, %v2004
      %v2006 = vpop.f32.mrb[0].mxu0
      %2007 = vmatprep.mubr.bf16.mxu0 %v726
      %2008 = vmatmul.mubr.bf16.gmra.mrb[0].mxu0 %v725
      %v2009 = vpop.f32.mrb[0].mxu0
      %v2010 = vadd.f32 %v1733, %v2009
      %v2011 = vpop.f32.mrb[0].mxu0
      %v2012 = vpop.f32.mrb[0].mxu0
      %v2013 = vadd.f32 %v1733, %v2012
      %v2014 = vpop.f32.mrb[0].mxu0
      %2015 = vmatprep.mubr.bf16.mxu0 %v730
      %2016 = vmatmul.mubr.bf16.gmra.mrb[0].mxu0 %v729
      %v2017 = vpop.f32.mrb[0].mxu0
      %v2018 = vadd.f32 %v1733, %v2017
      %v2019 = vpop.f32.mrb[0].mxu0
      %v2020 = vpop.f32.mrb[0].mxu0
      %v2021 = vadd.f32 %v1733, %v2020
      %v2022 = vpop.f32.mrb[0].mxu0
      %2023 = vmatprep.mubr.bf16.mxu0 %v734
      %2024 = vmatmul.mubr.bf16.gmra.mrb[0].mxu0 %v733
      %v2025 = vpop.f32.mrb[0].mxu0
      %v2026 = vadd.f32 %v1733, %v2025
      %v2027 = vpop.f32.mrb[0].mxu0
      %v2028 = vpop.f32.mrb[0].mxu0
      %v2029 = vadd.f32 %v1733, %v2028
      %v2030 = vpop.f32.mrb[0].mxu0
      %2031 = vmatprep.mubr.bf16.mxu0 %v738
      %2032 = vmatmul.mubr.bf16.gmra.mrb[0].mxu0 %v737
      %v2033 = vpop.f32.mrb[0].mxu0
      %v2034 = vadd.f32 %v1733, %v2033
      %v2035 = vpop.f32.mrb[0].mxu0
      %v2036 = vpop.f32.mrb[0].mxu0
      %v2037 = vadd.f32 %v1733, %v2036
      %v2038 = vpop.f32.mrb[0].mxu0
      %2039 = vmatprep.mubr.bf16.mxu0 %v742
      %2040 = vmatmul.mubr.bf16.gmra.mrb[0].mxu0 %v741
      %v2041 = vpop.f32.mrb[0].mxu0
      %v2042 = vadd.f32 %v1733, %v2041
      %v2043 = vpop.f32.mrb[0].mxu0
      %v2044 = vpop.f32.mrb[0].mxu0
      %v2045 = vadd.f32 %v1733, %v2044
      %v2046 = vpop.f32.mrb[0].mxu0
      %2047 = vmatprep.mubr.bf16.mxu0 %v746
      %2048 = vmatmul.mubr.bf16.gmra.mrb[0].mxu0 %v745
      %v2049 = vpop.f32.mrb[0].mxu0
      %v2050 = vadd.f32 %v1733, %v2049
      %v2051 = vpop.f32.mrb[0].mxu0
      %v2052 = vpop.f32.mrb[0].mxu0
      %v2053 = vadd.f32 %v1733, %v2052
      %v2054 = vpop.f32.mrb[0].mxu0
      %2055 = vmatprep.mubr.bf16.mxu0 %v750
      %2056 = vmatmul.mubr.bf16.gmra.mrb[0].mxu0 %v749
      %v2057 = vpop.f32.mrb[0].mxu0
      %v2058 = vadd.f32 %v1733, %v2057
      %v2059 = vpop.f32.mrb[0].mxu0
      %v2060 = vpop.f32.mrb[0].mxu0
      %v2061 = vadd.f32 %v1733, %v2060
      %v2062 = vpop.f32.mrb[0].mxu0
      %2063 = vmatprep.mubr.bf16.mxu0 %v754
      %2064 = vmatmul.mubr.bf16.gmra.mrb[0].mxu0 %v753
      %v2065 = vpop.f32.mrb[0].mxu0
      %v2066 = vadd.f32 %v1733, %v2065
      %v2067 = vpop.f32.mrb[0].mxu0
      %v2068 = vpop.f32.mrb[0].mxu0
      %v2069 = vadd.f32 %v1733, %v2068
      %v2070 = vpop.f32.mrb[0].mxu0
      %2071 = vmatprep.mubr.bf16.mxu0 %v758
      %2072 = vmatmul.mubr.bf16.gmra.mrb[0].mxu0 %v757
      %v2073 = vpop.f32.mrb[0].mxu0
      %v2074 = vadd.f32 %v1733, %v2073
      %v2075 = vpop.f32.mrb[0].mxu0
      %v2076 = vpop.f32.mrb[0].mxu0
      %v2077 = vadd.f32 %v1733, %v2076
      %v2078 = vpop.f32.mrb[0].mxu0
      %2079 = vmatprep.mubr.bf16.mxu0 %v762
      %2080 = vmatmul.mubr.bf16.gmra.mrb[0].mxu0 %v761
      %v2081 = vpop.f32.mrb[0].mxu0
      %v2082 = vadd.f32 %v1733, %v2081
      %v2083 = vpop.f32.mrb[0].mxu0
      %v2084 = vpop.f32.mrb[0].mxu0
      %v2085 = vadd.f32 %v1733, %v2084
      %v2086 = vpop.f32.mrb[0].mxu0
      %2087 = vdwg.mxu0
      %2088 = vmatprep.subr.bf16.mxu0 0
      %2089 = vmatpush1.bf16.msra.mxu0 %v1879
      %2090 = vmatprep.subr.bf16.mxu0 0
      %2091 = vmatpush1.bf16.msra.mxu0 %v1880
      %2092 = vmatprep.subr.bf16.mxu0 0
      %2093 = vmatpush1.bf16.msra.mxu0 %v1881
      %2094 = vmatprep.subr.bf16.mxu0 0
      %2095 = vmatpush1.bf16.msra.mxu0 %v1882
      %2096 = vmatprep.subr.bf16.mxu0 0
      %2097 = vmatpush1.bf16.msra.mxu0 %v1883
      %2098 = vmatprep.subr.bf16.mxu0 0
      %2099 = vmatpush1.bf16.msra.mxu0 %v1884
      %2100 = vmatprep.subr.bf16.mxu0 0
      %2101 = vmatpush1.bf16.msra.mxu0 %v1885
      %2102 = vmatprep.subr.bf16.mxu0 0
      %2103 = vmatpush1.bf16.msra.mxu0 %v1886
      %2104 = vmatprep.subr.bf16.mxu0 0
      %2105 = vmatpush1.bf16.msra.mxu0 %v1887
      %2106 = vmatprep.subr.bf16.mxu0 0
      %2107 = vmatpush1.bf16.msra.mxu0 %v1888
      %2108 = vmatprep.subr.bf16.mxu0 0
      %2109 = vmatpush1.bf16.msra.mxu0 %v1889
      %2110 = vmatprep.subr.bf16.mxu0 0
      %2111 = vmatpush1.bf16.msra.mxu0 %v1890
      %2112 = vmatprep.subr.bf16.mxu0 0
      %2113 = vmatpush1.bf16.msra.mxu0 %v1891
      %2114 = vmatprep.subr.bf16.mxu0 0
      %2115 = vmatpush1.bf16.msra.mxu0 %v1892
      %2116 = vmatprep.subr.bf16.mxu0 0
      %2117 = vmatpush1.bf16.msra.mxu0 %v1893
      %2118 = vmatprep.subr.bf16.mxu0 0
      %2119 = vmatpush1.bf16.msra.mxu0 %v1894
      %2120 = vmatprep.mubr.bf16.mxu0 %v704
      %2121 = vmatmul.mubr.bf16.gmra.mrb[0].mxu0 %v703
      %v2122 = vpop.f32.mrb[0].mxu0
      %v2123 = vadd.f32 %v1962, %v2122
      %v2124 = vpop.f32.mrb[0].mxu0
      %v2125 = vpop.f32.mrb[0].mxu0
      %v2126 = vadd.f32 %v1965, %v2125
      %v2127 = vpop.f32.mrb[0].mxu0
      %2128 = vmatprep.mubr.bf16.mxu0 %v708
      %2129 = vmatmul.mubr.bf16.gmra.mrb[0].mxu0 %v707
      %v2130 = vpop.f32.mrb[0].mxu0
      %v2131 = vadd.f32 %v1970, %v2130
      %v2132 = vpop.f32.mrb[0].mxu0
      %v2133 = vpop.f32.mrb[0].mxu0
      %v2134 = vadd.f32 %v1973, %v2133
      %v2135 = vpop.f32.mrb[0].mxu0
      %2136 = vmatprep.mubr.bf16.mxu0 %v712
      %2137 = vmatmul.mubr.bf16.gmra.mrb[0].mxu0 %v711
      %v2138 = vpop.f32.mrb[0].mxu0
      %v2139 = vadd.f32 %v1978, %v2138
      %v2140 = vpop.f32.mrb[0].mxu0
      %v2141 = vpop.f32.mrb[0].mxu0
      %v2142 = vadd.f32 %v1981, %v2141
      %v2143 = vpop.f32.mrb[0].mxu0
      %2144 = vmatprep.mubr.bf16.mxu0 %v716
      %2145 = vmatmul.mubr.bf16.gmra.mrb[0].mxu0 %v715
      %v2146 = vpop.f32.mrb[0].mxu0
      %v2147 = vadd.f32 %v1986, %v2146
      %v2148 = vpop.f32.mrb[0].mxu0
      %v2149 = vpop.f32.mrb[0].mxu0
      %v2150 = vadd.f32 %v1989, %v2149
      %v2151 = vpop.f32.mrb[0].mxu0
      %2152 = vmatprep.mubr.bf16.mxu0 %v720
      %2153 = vmatmul.mubr.bf16.gmra.mrb[0].mxu0 %v719
      %v2154 = vpop.f32.mrb[0].mxu0
      %v2155 = vadd.f32 %v1994, %v2154
      %v2156 = vpop.f32.mrb[0].mxu0
      %v2157 = vpop.f32.mrb[0].mxu0
      %v2158 = vadd.f32 %v1997, %v2157
      %v2159 = vpop.f32.mrb[0].mxu0
      %2160 = vmatprep.mubr.bf16.mxu0 %v724
      %2161 = vmatmul.mubr.bf16.gmra.mrb[0].mxu0 %v723
      %v2162 = vpop.f32.mrb[0].mxu0
      %v2163 = vadd.f32 %v2002, %v2162
      %v2164 = vpop.f32.mrb[0].mxu0
      %v2165 = vpop.f32.mrb[0].mxu0
      %v2166 = vadd.f32 %v2005, %v2165
      %v2167 = vpop.f32.mrb[0].mxu0
      %2168 = vmatprep.mubr.bf16.mxu0 %v728
      %2169 = vmatmul.mubr.bf16.gmra.mrb[0].mxu0 %v727
      %v2170 = vpop.f32.mrb[0].mxu0
      %v2171 = vadd.f32 %v2010, %v2170
      %v2172 = vpop.f32.mrb[0].mxu0
      %v2173 = vpop.f32.mrb[0].mxu0
      %v2174 = vadd.f32 %v2013, %v2173
      %v2175 = vpop.f32.mrb[0].mxu0
      %2176 = vmatprep.mubr.bf16.mxu0 %v732
      %2177 = vmatmul.mubr.bf16.gmra.mrb[0].mxu0 %v731
      %v2178 = vpop.f32.mrb[0].mxu0
      %v2179 = vadd.f32 %v2018, %v2178
      %v2180 = vpop.f32.mrb[0].mxu0
      %v2181 = vpop.f32.mrb[0].mxu0
      %v2182 = vadd.f32 %v2021, %v2181
      %v2183 = vpop.f32.mrb[0].mxu0
      %2184 = vmatprep.mubr.bf16.mxu0 %v736
      %2185 = vmatmul.mubr.bf16.gmra.mrb[0].mxu0 %v735
      %v2186 = vpop.f32.mrb[0].mxu0
      %v2187 = vadd.f32 %v2026, %v2186
      %v2188 = vpop.f32.mrb[0].mxu0
      %v2189 = vpop.f32.mrb[0].mxu0
      %v2190 = vadd.f32 %v2029, %v2189
      %v2191 = vpop.f32.mrb[0].mxu0
      %2192 = vmatprep.mubr.bf16.mxu0 %v740
      %2193 = vmatmul.mubr.bf16.gmra.mrb[0].mxu0 %v739
      %v2194 = vpop.f32.mrb[0].mxu0
      %v2195 = vadd.f32 %v2034, %v2194
      %v2196 = vpop.f32.mrb[0].mxu0
      %v2197 = vpop.f32.mrb[0].mxu0
      %v2198 = vadd.f32 %v2037, %v2197
      %v2199 = vpop.f32.mrb[0].mxu0
      %2200 = vmatprep.mubr.bf16.mxu0 %v744
      %2201 = vmatmul.mubr.bf16.gmra.mrb[0].mxu0 %v743
      %v2202 = vpop.f32.mrb[0].mxu0
      %v2203 = vadd.f32 %v2042, %v2202
      %v2204 = vpop.f32.mrb[0].mxu0
      %v2205 = vpop.f32.mrb[0].mxu0
      %v2206 = vadd.f32 %v2045, %v2205
      %v2207 = vpop.f32.mrb[0].mxu0
      %2208 = vmatprep.mubr.bf16.mxu0 %v748
      %2209 = vmatmul.mubr.bf16.gmra.mrb[0].mxu0 %v747
      %v2210 = vpop.f32.mrb[0].mxu0
      %v2211 = vadd.f32 %v2050, %v2210
      %v2212 = vpop.f32.mrb[0].mxu0
      %v2213 = vpop.f32.mrb[0].mxu0
      %v2214 = vadd.f32 %v2053, %v2213
      %v2215 = vpop.f32.mrb[0].mxu0
      %2216 = vmatprep.mubr.bf16.mxu0 %v752
      %2217 = vmatmul.mubr.bf16.gmra.mrb[0].mxu0 %v751
      %v2218 = vpop.f32.mrb[0].mxu0
      %v2219 = vadd.f32 %v2058, %v2218
      %v2220 = vpop.f32.mrb[0].mxu0
      %v2221 = vpop.f32.mrb[0].mxu0
      %v2222 = vadd.f32 %v2061, %v2221
      %v2223 = vpop.f32.mrb[0].mxu0
      %2224 = vmatprep.mubr.bf16.mxu0 %v756
      %2225 = vmatmul.mubr.bf16.gmra.mrb[0].mxu0 %v755
      %v2226 = vpop.f32.mrb[0].mxu0
      %v2227 = vadd.f32 %v2066, %v2226
      %v2228 = vpop.f32.mrb[0].mxu0
      %v2229 = vpop.f32.mrb[0].mxu0
      %v2230 = vadd.f32 %v2069, %v2229
      %v2231 = vpop.f32.mrb[0].mxu0
      %2232 = vmatprep.mubr.bf16.mxu0 %v760
      %2233 = vmatmul.mubr.bf16.gmra.mrb[0].mxu0 %v759
      %v2234 = vpop.f32.mrb[0].mxu0
      %v2235 = vadd.f32 %v2074, %v2234
      %v2236 = vpop.f32.mrb[0].mxu0
      %v2237 = vpop.f32.mrb[0].mxu0
      %v2238 = vadd.f32 %v2077, %v2237
      %v2239 = vpop.f32.mrb[0].mxu0
      %2240 = vmatprep.mubr.bf16.mxu0 %v764
      %2241 = vmatmul.mubr.bf16.gmra.mrb[0].mxu0 %v763
      %v2242 = vpop.f32.mrb[0].mxu0
      %v2243 = vadd.f32 %v2082, %v2242
      %v2244 = vpop.f32.mrb[0].mxu0
      %v2245 = vpop.f32.mrb[0].mxu0
      %v2246 = vadd.f32 %v2085, %v2245
      %v2247 = vpop.f32.mrb[0].mxu0
      %2248 = vdwg.mxu0
      %v2249 = vmax.f32 %v2123, 0.0
      %v2250 = vmax.f32 %v2126, 0.0
      %v2251 = vmax.f32 %v2131, 0.0
      %v2252 = vmax.f32 %v2134, 0.0
      %v2253 = vmax.f32 %v2139, 0.0
      %v2254 = vmax.f32 %v2142, 0.0
      %v2255 = vmax.f32 %v2147, 0.0
      %v2256 = vmax.f32 %v2150, 0.0
      %v2257 = vmax.f32 %v2155, 0.0
      %v2258 = vmax.f32 %v2158, 0.0
      %v2259 = vmax.f32 %v2163, 0.0
      %v2260 = vmax.f32 %v2166, 0.0
      %v2261 = vmax.f32 %v2171, 0.0
      %v2262 = vmax.f32 %v2174, 0.0
      %v2263 = vmax.f32 %v2179, 0.0
      %v2264 = vmax.f32 %v2182, 0.0
      %v2265 = vmax.f32 %v2187, 0.0
      %v2266 = vmax.f32 %v2190, 0.0
      %v2267 = vmax.f32 %v2195, 0.0
      %v2268 = vmax.f32 %v2198, 0.0
      %v2269 = vmax.f32 %v2203, 0.0
      %v2270 = vmax.f32 %v2206, 0.0
      %v2271 = vmax.f32 %v2211, 0.0
      %v2272 = vmax.f32 %v2214, 0.0
      %v2273 = vmax.f32 %v2219, 0.0
      %v2274 = vmax.f32 %v2222, 0.0
      %v2275 = vmax.f32 %v2227, 0.0
      %v2276 = vmax.f32 %v2230, 0.0
      %v2277 = vmax.f32 %v2235, 0.0
      %v2278 = vmax.f32 %v2238, 0.0
      %v2279 = vmax.f32 %v2243, 0.0
      %v2280 = vmax.f32 %v2246, 0.0
      %v2281 = vpack.c.bf16 %v2250, %v2249
      %v2282 = vpack.c.bf16 %v2252, %v2251
      %v2283 = vpack.c.bf16 %v2254, %v2253
      %v2284 = vpack.c.bf16 %v2256, %v2255
      %v2285 = vpack.c.bf16 %v2258, %v2257
      %v2286 = vpack.c.bf16 %v2260, %v2259
      %v2287 = vpack.c.bf16 %v2262, %v2261
      %v2288 = vpack.c.bf16 %v2264, %v2263
      %v2289 = vpack.c.bf16 %v2266, %v2265
      %v2290 = vpack.c.bf16 %v2268, %v2267
      %v2291 = vpack.c.bf16 %v2270, %v2269
      %v2292 = vpack.c.bf16 %v2272, %v2271
      %v2293 = vpack.c.bf16 %v2274, %v2273
      %v2294 = vpack.c.bf16 %v2276, %v2275
      %v2295 = vpack.c.bf16 %v2278, %v2277
      %v2296 = vpack.c.bf16 %v2280, %v2279
      %v2313 = vunpack.c.l.b16 %v2281
      %v2314 = vunpack.c.h.b16 %v2281
      %v2315 = vunpack.c.l.b16 %v2282
      %v2316 = vunpack.c.h.b16 %v2282
      %v2317 = vunpack.c.l.b16 %v2283
      %v2318 = vunpack.c.h.b16 %v2283
      %v2319 = vunpack.c.l.b16 %v2284
      %v2320 = vunpack.c.h.b16 %v2284
      %v2321 = vunpack.c.l.b16 %v2285
      %v2322 = vunpack.c.h.b16 %v2285
      %v2323 = vunpack.c.l.b16 %v2286
      %v2324 = vunpack.c.h.b16 %v2286
      %v2325 = vunpack.c.l.b16 %v2287
      %v2326 = vunpack.c.h.b16 %v2287
      %v2327 = vunpack.c.l.b16 %v2288
      %v2328 = vunpack.c.h.b16 %v2288
      %v2329 = vunpack.c.l.b16 %v2289
      %v2330 = vunpack.c.h.b16 %v2289
      %v2331 = vunpack.c.l.b16 %v2290
      %v2332 = vunpack.c.h.b16 %v2290
      %v2333 = vunpack.c.l.b16 %v2291
      %v2334 = vunpack.c.h.b16 %v2291
      %v2335 = vunpack.c.l.b16 %v2292
      %v2336 = vunpack.c.h.b16 %v2292
      %v2337 = vunpack.c.l.b16 %v2293
      %v2338 = vunpack.c.h.b16 %v2293
      %v2339 = vunpack.c.l.b16 %v2294
      %v2340 = vunpack.c.h.b16 %v2294
      %v2341 = vunpack.c.l.b16 %v2295
      %v2342 = vunpack.c.h.b16 %v2295
      %v2343 = vunpack.c.l.b16 %v2296
      %v2344 = vunpack.c.h.b16 %v2296
      %v2345 = vpack.c.b16 %v2313, %v2313
      %v2346 = vpack.c.b16 %v2314, %v2314
      %v2347 = vpack.c.b16 %v2315, %v2315
      %v2348 = vpack.c.b16 %v2316, %v2316
      %v2349 = vpack.c.b16 %v2317, %v2317
      %v2350 = vpack.c.b16 %v2318, %v2318
      %v2351 = vpack.c.b16 %v2319, %v2319
      %v2352 = vpack.c.b16 %v2320, %v2320
      %v2353 = vpack.c.b16 %v2321, %v2321
      %v2354 = vpack.c.b16 %v2322, %v2322
      %v2355 = vpack.c.b16 %v2323, %v2323
      %v2356 = vpack.c.b16 %v2324, %v2324
      %v2357 = vpack.c.b16 %v2325, %v2325
      %v2358 = vpack.c.b16 %v2326, %v2326
      %v2359 = vpack.c.b16 %v2327, %v2327
      %v2360 = vpack.c.b16 %v2328, %v2328
      %v2361 = vpack.c.b16 %v2329, %v2329
      %v2362 = vpack.c.b16 %v2330, %v2330
      %v2363 = vpack.c.b16 %v2331, %v2331
      %v2364 = vpack.c.b16 %v2332, %v2332
      %v2365 = vpack.c.b16 %v2333, %v2333
      %v2366 = vpack.c.b16 %v2334, %v2334
      %v2367 = vpack.c.b16 %v2335, %v2335
      %v2368 = vpack.c.b16 %v2336, %v2336
      %v2369 = vpack.c.b16 %v2337, %v2337
      %v2370 = vpack.c.b16 %v2338, %v2338
      %v2371 = vpack.c.b16 %v2339, %v2339
      %v2372 = vpack.c.b16 %v2340, %v2340
      %v2373 = vpack.c.b16 %v2341, %v2341
      %v2374 = vpack.c.b16 %v2342, %v2342
      %v2375 = vpack.c.b16 %v2343, %v2343
      %v2376 = vpack.c.b16 %v2344, %v2344
      %2409 = vst [vmem:[%s360] sm:$0xf] %v2345
      %2410 = vst [vmem:[%s360 + $0x4] sm:$0xf] %v2346
      %2411 = vst [vmem:[%s360 + $0x8] sm:$0xf] %v2347
      %2412 = vst [vmem:[%s360 + $0xc] sm:$0xf] %v2348
      %2413 = vst [vmem:[%s360 + $0x10] sm:$0xf] %v2349
      %2414 = vst [vmem:[%s360 + $0x14] sm:$0xf] %v2350
      %2415 = vst [vmem:[%s360 + $0x18] sm:$0xf] %v2351
      %2416 = vst [vmem:[%s360 + $0x1c] sm:$0xf] %v2352
      %2417 = vst [vmem:[%s360 + $0x20] sm:$0xf] %v2353
      %2418 = vst [vmem:[%s360 + $0x24] sm:$0xf] %v2354
      %2419 = vst [vmem:[%s360 + $0x28] sm:$0xf] %v2355
      %2420 = vst [vmem:[%s360 + $0x2c] sm:$0xf] %v2356
      %2421 = vst [vmem:[%s360 + $0x30] sm:$0xf] %v2357
      %2422 = vst [vmem:[%s360 + $0x34] sm:$0xf] %v2358
      %2423 = vst [vmem:[%s360 + $0x38] sm:$0xf] %v2359
      %2424 = vst [vmem:[%s360 + $0x3c] sm:$0xf] %v2360
      %2425 = vst [vmem:[%s360 + $0x40] sm:$0xf] %v2361
      %2426 = vst [vmem:[%s360 + $0x44] sm:$0xf] %v2362
      %2427 = vst [vmem:[%s360 + $0x48] sm:$0xf] %v2363
      %2428 = vst [vmem:[%s360 + $0x4c] sm:$0xf] %v2364
      %2429 = vst [vmem:[%s360 + $0x50] sm:$0xf] %v2365
      %2430 = vst [vmem:[%s360 + $0x54] sm:$0xf] %v2366
      %2431 = vst [vmem:[%s360 + $0x58] sm:$0xf] %v2367
      %2432 = vst [vmem:[%s360 + $0x5c] sm:$0xf] %v2368
      %2433 = vst [vmem:[%s360 + $0x60] sm:$0xf] %v2369
      %2434 = vst [vmem:[%s360 + $0x64] sm:$0xf] %v2370
      %2435 = vst [vmem:[%s360 + $0x68] sm:$0xf] %v2371
      %2436 = vst [vmem:[%s360 + $0x6c] sm:$0xf] %v2372
      %2437 = vst [vmem:[%s360 + $0x70] sm:$0xf] %v2373
      %2438 = vst [vmem:[%s360 + $0x74] sm:$0xf] %v2374
      %2439 = vst [vmem:[%s360 + $0x78] sm:$0xf] %v2375
      %2440 = vst [vmem:[%s360 + $0x7c] sm:$0xf] %v2376
      %v2441 = vld [vmem:[%s3] sm:$0xf]
      %v2442 = vld [vmem:[%s3 + $0x4] sm:$0xf]
      %v2443 = vld [vmem:[%s3 + $0x8] sm:$0xf]
      %v2444 = vld [vmem:[%s3 + $0xc] sm:$0xf]
      %v2445 = vld [vmem:[%s3 + $0x10] sm:$0xf]
      %v2446 = vld [vmem:[%s3 + $0x14] sm:$0xf]
      %v2447 = vld [vmem:[%s3 + $0x18] sm:$0xf]
      %v2448 = vld [vmem:[%s3 + $0x1c] sm:$0xf]
      %v2449 = vld [vmem:[%s3 + $0x20] sm:$0xf]
      %v2450 = vld [vmem:[%s3 + $0x24] sm:$0xf]
      %v2451 = vld [vmem:[%s3 + $0x28] sm:$0xf]
      %v2452 = vld [vmem:[%s3 + $0x2c] sm:$0xf]
      %v2453 = vld [vmem:[%s3 + $0x30] sm:$0xf]
      %v2454 = vld [vmem:[%s3 + $0x34] sm:$0xf]
      %v2455 = vld [vmem:[%s3 + $0x38] sm:$0xf]
      %v2456 = vld [vmem:[%s3 + $0x3c] sm:$0xf]
      %v2457 = vld [vmem:[%s3 + $0x40] sm:$0xf]
      %v2458 = vld [vmem:[%s3 + $0x44] sm:$0xf]
      %v2459 = vld [vmem:[%s3 + $0x48] sm:$0xf]
      %v2460 = vld [vmem:[%s3 + $0x4c] sm:$0xf]
      %v2461 = vld [vmem:[%s3 + $0x50] sm:$0xf]
      %v2462 = vld [vmem:[%s3 + $0x54] sm:$0xf]
      %v2463 = vld [vmem:[%s3 + $0x58] sm:$0xf]
      %v2464 = vld [vmem:[%s3 + $0x5c] sm:$0xf]
      %v2465 = vld [vmem:[%s3 + $0x60] sm:$0xf]
      %v2466 = vld [vmem:[%s3 + $0x64] sm:$0xf]
      %v2467 = vld [vmem:[%s3 + $0x68] sm:$0xf]
      %v2468 = vld [vmem:[%s3 + $0x6c] sm:$0xf]
      %v2469 = vld [vmem:[%s3 + $0x70] sm:$0xf]
      %v2470 = vld [vmem:[%s3 + $0x74] sm:$0xf]
      %v2471 = vld [vmem:[%s3 + $0x78] sm:$0xf]
      %v2472 = vld [vmem:[%s3 + $0x7c] sm:$0xf]
      %v2473 = vld [vmem:[%s3 + $0x80] sm:$0xf]
      %v2474 = vld [vmem:[%s3 + $0x84] sm:$0xf]
      %v2475 = vld [vmem:[%s3 + $0x88] sm:$0xf]
      %v2476 = vld [vmem:[%s3 + $0x8c] sm:$0xf]
      %v2477 = vld [vmem:[%s3 + $0x90] sm:$0xf]
      %v2478 = vld [vmem:[%s3 + $0x94] sm:$0xf]
      %v2479 = vld [vmem:[%s3 + $0x98] sm:$0xf]
      %v2480 = vld [vmem:[%s3 + $0x9c] sm:$0xf]
      %v2481 = vld [vmem:[%s3 + $0xa0] sm:$0xf]
      %v2482 = vld [vmem:[%s3 + $0xa4] sm:$0xf]
      %v2483 = vld [vmem:[%s3 + $0xa8] sm:$0xf]
      %v2484 = vld [vmem:[%s3 + $0xac] sm:$0xf]
      %v2485 = vld [vmem:[%s3 + $0xb0] sm:$0xf]
      %v2486 = vld [vmem:[%s3 + $0xb4] sm:$0xf]
      %v2487 = vld [vmem:[%s3 + $0xb8] sm:$0xf]
      %v2488 = vld [vmem:[%s3 + $0xbc] sm:$0xf]
      %v2489 = vld [vmem:[%s3 + $0xc0] sm:$0xf]
      %v2490 = vld [vmem:[%s3 + $0xc4] sm:$0xf]
      %v2491 = vld [vmem:[%s3 + $0xc8] sm:$0xf]
      %v2492 = vld [vmem:[%s3 + $0xcc] sm:$0xf]
      %v2493 = vld [vmem:[%s3 + $0xd0] sm:$0xf]
      %v2494 = vld [vmem:[%s3 + $0xd4] sm:$0xf]
      %v2495 = vld [vmem:[%s3 + $0xd8] sm:$0xf]
      %v2496 = vld [vmem:[%s3 + $0xdc] sm:$0xf]
      %v2497 = vld [vmem:[%s3 + $0xe0] sm:$0xf]
      %v2498 = vld [vmem:[%s3 + $0xe4] sm:$0xf]
      %v2499 = vld [vmem:[%s3 + $0xe8] sm:$0xf]
      %v2500 = vld [vmem:[%s3 + $0xec] sm:$0xf]
      %v2501 = vld [vmem:[%s3 + $0xf0] sm:$0xf]
      %v2502 = vld [vmem:[%s3 + $0xf4] sm:$0xf]
      %v2503 = vld [vmem:[%s3 + $0xf8] sm:$0xf]
      %v2504 = vld [vmem:[%s3 + $0xfc] sm:$0xf]
      %v2505 = vld [vmem:[%s6] sm:$0x1]
      %v2507 = vlaneseq
      %v2508 = vshrl.u32 %v2507, 7
      %v2509 = vsub.s32 0, %v2508
      %v2510 = vrot.slane %v2505, %v2509
      %v2576 = vunpack.c.l.b16 %v2441
      %v2577 = vunpack.c.l.b16 %v2442
      %v2578 = vunpack.c.l.b16 %v2443
      %v2579 = vunpack.c.l.b16 %v2444
      %v2580 = vunpack.c.l.b16 %v2445
      %v2581 = vunpack.c.l.b16 %v2446
      %v2582 = vunpack.c.l.b16 %v2447
      %v2583 = vunpack.c.l.b16 %v2448
      %v2584 = vunpack.c.l.b16 %v2449
      %v2585 = vunpack.c.l.b16 %v2450
      %v2586 = vunpack.c.l.b16 %v2451
      %v2587 = vunpack.c.l.b16 %v2452
      %v2588 = vunpack.c.l.b16 %v2453
      %v2589 = vunpack.c.l.b16 %v2454
      %v2590 = vunpack.c.l.b16 %v2455
      %v2591 = vunpack.c.l.b16 %v2456
      %v2592 = vunpack.c.l.b16 %v2457
      %v2593 = vunpack.c.l.b16 %v2458
      %v2594 = vunpack.c.l.b16 %v2459
      %v2595 = vunpack.c.l.b16 %v2460
      %v2596 = vunpack.c.l.b16 %v2461
      %v2597 = vunpack.c.l.b16 %v2462
      %v2598 = vunpack.c.l.b16 %v2463
      %v2599 = vunpack.c.l.b16 %v2464
      %v2600 = vunpack.c.l.b16 %v2465
      %v2601 = vunpack.c.l.b16 %v2466
      %v2602 = vunpack.c.l.b16 %v2467
      %v2603 = vunpack.c.l.b16 %v2468
      %v2604 = vunpack.c.l.b16 %v2469
      %v2605 = vunpack.c.l.b16 %v2470
      %v2606 = vunpack.c.l.b16 %v2471
      %v2607 = vunpack.c.l.b16 %v2472
      %v2608 = vunpack.c.l.b16 %v2473
      %v2609 = vunpack.c.l.b16 %v2474
      %v2610 = vunpack.c.l.b16 %v2475
      %v2611 = vunpack.c.l.b16 %v2476
      %v2612 = vunpack.c.l.b16 %v2477
      %v2613 = vunpack.c.l.b16 %v2478
      %v2614 = vunpack.c.l.b16 %v2479
      %v2615 = vunpack.c.l.b16 %v2480
      %v2616 = vunpack.c.l.b16 %v2481
      %v2617 = vunpack.c.l.b16 %v2482
      %v2618 = vunpack.c.l.b16 %v2483
      %v2619 = vunpack.c.l.b16 %v2484
      %v2620 = vunpack.c.l.b16 %v2485
      %v2621 = vunpack.c.l.b16 %v2486
      %v2622 = vunpack.c.l.b16 %v2487
      %v2623 = vunpack.c.l.b16 %v2488
      %v2624 = vunpack.c.l.b16 %v2489
      %v2625 = vunpack.c.l.b16 %v2490
      %v2626 = vunpack.c.l.b16 %v2491
      %v2627 = vunpack.c.l.b16 %v2492
      %v2628 = vunpack.c.l.b16 %v2493
      %v2629 = vunpack.c.l.b16 %v2494
      %v2630 = vunpack.c.l.b16 %v2495
      %v2631 = vunpack.c.l.b16 %v2496
      %v2632 = vunpack.c.l.b16 %v2497
      %v2633 = vunpack.c.l.b16 %v2498
      %v2634 = vunpack.c.l.b16 %v2499
      %v2635 = vunpack.c.l.b16 %v2500
      %v2636 = vunpack.c.l.b16 %v2501
      %v2637 = vunpack.c.l.b16 %v2502
      %v2638 = vunpack.c.l.b16 %v2503
      %v2639 = vunpack.c.l.b16 %v2504
      %v2640 = vpack.c.b16 %v2577, %v2576
      %v2641 = vpack.c.b16 %v2579, %v2578
      %v2642 = vpack.c.b16 %v2581, %v2580
      %v2643 = vpack.c.b16 %v2583, %v2582
      %v2644 = vpack.c.b16 %v2585, %v2584
      %v2645 = vpack.c.b16 %v2587, %v2586
      %v2646 = vpack.c.b16 %v2589, %v2588
      %v2647 = vpack.c.b16 %v2591, %v2590
      %v2648 = vpack.c.b16 %v2593, %v2592
      %v2649 = vpack.c.b16 %v2595, %v2594
      %v2650 = vpack.c.b16 %v2597, %v2596
      %v2651 = vpack.c.b16 %v2599, %v2598
      %v2652 = vpack.c.b16 %v2601, %v2600
      %v2653 = vpack.c.b16 %v2603, %v2602
      %v2654 = vpack.c.b16 %v2605, %v2604
      %v2655 = vpack.c.b16 %v2607, %v2606
      %v2656 = vpack.c.b16 %v2609, %v2608
      %v2657 = vpack.c.b16 %v2611, %v2610
      %v2658 = vpack.c.b16 %v2613, %v2612
      %v2659 = vpack.c.b16 %v2615, %v2614
      %v2660 = vpack.c.b16 %v2617, %v2616
      %v2661 = vpack.c.b16 %v2619, %v2618
      %v2662 = vpack.c.b16 %v2621, %v2620
      %v2663 = vpack.c.b16 %v2623, %v2622
      %v2664 = vpack.c.b16 %v2625, %v2624
      %v2665 = vpack.c.b16 %v2627, %v2626
      %v2666 = vpack.c.b16 %v2629, %v2628
      %v2667 = vpack.c.b16 %v2631, %v2630
      %v2668 = vpack.c.b16 %v2633, %v2632
      %v2669 = vpack.c.b16 %v2635, %v2634
      %v2670 = vpack.c.b16 %v2637, %v2636
      %v2671 = vpack.c.b16 %v2639, %v2638
      %2704 = vmatprep.subr.bf16.mxu0 0
      %2705 = vmatpush1.bf16.msra.mxu0 %v2640
      %2706 = vmatprep.subr.bf16.mxu0 0
      %2707 = vmatpush1.bf16.msra.mxu0 %v2641
      %2708 = vmatprep.subr.bf16.mxu0 0
      %2709 = vmatpush1.bf16.msra.mxu0 %v2642
      %2710 = vmatprep.subr.bf16.mxu0 0
      %2711 = vmatpush1.bf16.msra.mxu0 %v2643
      %2712 = vmatprep.subr.bf16.mxu0 0
      %2713 = vmatpush1.bf16.msra.mxu0 %v2644
      %2714 = vmatprep.subr.bf16.mxu0 0
      %2715 = vmatpush1.bf16.msra.mxu0 %v2645
      %2716 = vmatprep.subr.bf16.mxu0 0
      %2717 = vmatpush1.bf16.msra.mxu0 %v2646
      %2718 = vmatprep.subr.bf16.mxu0 0
      %2719 = vmatpush1.bf16.msra.mxu0 %v2647
      %2720 = vmatprep.subr.bf16.mxu0 0
      %2721 = vmatpush1.bf16.msra.mxu0 %v2648
      %2722 = vmatprep.subr.bf16.mxu0 0
      %2723 = vmatpush1.bf16.msra.mxu0 %v2649
      %2724 = vmatprep.subr.bf16.mxu0 0
      %2725 = vmatpush1.bf16.msra.mxu0 %v2650
      %2726 = vmatprep.subr.bf16.mxu0 0
      %2727 = vmatpush1.bf16.msra.mxu0 %v2651
      %2728 = vmatprep.subr.bf16.mxu0 0
      %2729 = vmatpush1.bf16.msra.mxu0 %v2652
      %2730 = vmatprep.subr.bf16.mxu0 0
      %2731 = vmatpush1.bf16.msra.mxu0 %v2653
      %2732 = vmatprep.subr.bf16.mxu0 0
      %2733 = vmatpush1.bf16.msra.mxu0 %v2654
      %2734 = vmatprep.subr.bf16.mxu0 0
      %2735 = vmatpush1.bf16.msra.mxu0 %v2655
      %2736 = vmatprep.mubr.bf16.mxu0 %v702
      %2737 = vmatmul.mubr.bf16.gmra.mrb[0].mxu0 %v701
      %v2738 = vpop.f32.mrb[0].mxu0
      %v2739 = vadd.f32 %v2510, %v2738
      %v2740 = vpop.f32.mrb[0].mxu0
      %v2741 = vpop.f32.mrb[0].mxu0
      %v2742 = vadd.f32 %v2510, %v2741
      %v2743 = vpop.f32.mrb[0].mxu0
      %2744 = vmatprep.mubr.bf16.mxu0 %v706
      %2745 = vmatmul.mubr.bf16.gmra.mrb[0].mxu0 %v705
      %v2746 = vpop.f32.mrb[0].mxu0
      %v2747 = vadd.f32 %v2510, %v2746
      %v2748 = vpop.f32.mrb[0].mxu0
      %v2749 = vpop.f32.mrb[0].mxu0
      %v2750 = vadd.f32 %v2510, %v2749
      %v2751 = vpop.f32.mrb[0].mxu0
      %2752 = vmatprep.mubr.bf16.mxu0 %v710
      %2753 = vmatmul.mubr.bf16.gmra.mrb[0].mxu0 %v709
      %v2754 = vpop.f32.mrb[0].mxu0
      %v2755 = vadd.f32 %v2510, %v2754
      %v2756 = vpop.f32.mrb[0].mxu0
      %v2757 = vpop.f32.mrb[0].mxu0
      %v2758 = vadd.f32 %v2510, %v2757
      %v2759 = vpop.f32.mrb[0].mxu0
      %2760 = vmatprep.mubr.bf16.mxu0 %v714
      %2761 = vmatmul.mubr.bf16.gmra.mrb[0].mxu0 %v713
      %v2762 = vpop.f32.mrb[0].mxu0
      %v2763 = vadd.f32 %v2510, %v2762
      %v2764 = vpop.f32.mrb[0].mxu0
      %v2765 = vpop.f32.mrb[0].mxu0
      %v2766 = vadd.f32 %v2510, %v2765
      %v2767 = vpop.f32.mrb[0].mxu0
      %2768 = vmatprep.mubr.bf16.mxu0 %v718
      %2769 = vmatmul.mubr.bf16.gmra.mrb[0].mxu0 %v717
      %v2770 = vpop.f32.mrb[0].mxu0
      %v2771 = vadd.f32 %v2510, %v2770
      %v2772 = vpop.f32.mrb[0].mxu0
      %v2773 = vpop.f32.mrb[0].mxu0
      %v2774 = vadd.f32 %v2510, %v2773
      %v2775 = vpop.f32.mrb[0].mxu0
      %2776 = vmatprep.mubr.bf16.mxu0 %v722
      %2777 = vmatmul.mubr.bf16.gmra.mrb[0].mxu0 %v721
      %v2778 = vpop.f32.mrb[0].mxu0
      %v2779 = vadd.f32 %v2510, %v2778
      %v2780 = vpop.f32.mrb[0].mxu0
      %v2781 = vpop.f32.mrb[0].mxu0
      %v2782 = vadd.f32 %v2510, %v2781
      %v2783 = vpop.f32.mrb[0].mxu0
      %2784 = vmatprep.mubr.bf16.mxu0 %v726
      %2785 = vmatmul.mubr.bf16.gmra.mrb[0].mxu0 %v725
      %v2786 = vpop.f32.mrb[0].mxu0
      %v2787 = vadd.f32 %v2510, %v2786
      %v2788 = vpop.f32.mrb[0].mxu0
      %v2789 = vpop.f32.mrb[0].mxu0
      %v2790 = vadd.f32 %v2510, %v2789
      %v2791 = vpop.f32.mrb[0].mxu0
      %2792 = vmatprep.mubr.bf16.mxu0 %v730
      %2793 = vmatmul.mubr.bf16.gmra.mrb[0].mxu0 %v729
      %v2794 = vpop.f32.mrb[0].mxu0
      %v2795 = vadd.f32 %v2510, %v2794
      %v2796 = vpop.f32.mrb[0].mxu0
      %v2797 = vpop.f32.mrb[0].mxu0
      %v2798 = vadd.f32 %v2510, %v2797
      %v2799 = vpop.f32.mrb[0].mxu0
      %2800 = vmatprep.mubr.bf16.mxu0 %v734
      %2801 = vmatmul.mubr.bf16.gmra.mrb[0].mxu0 %v733
      %v2802 = vpop.f32.mrb[0].mxu0
      %v2803 = vadd.f32 %v2510, %v2802
      %v2804 = vpop.f32.mrb[0].mxu0
      %v2805 = vpop.f32.mrb[0].mxu0
      %v2806 = vadd.f32 %v2510, %v2805
      %v2807 = vpop.f32.mrb[0].mxu0
      %2808 = vmatprep.mubr.bf16.mxu0 %v738
      %2809 = vmatmul.mubr.bf16.gmra.mrb[0].mxu0 %v737
      %v2810 = vpop.f32.mrb[0].mxu0
      %v2811 = vadd.f32 %v2510, %v2810
      %v2812 = vpop.f32.mrb[0].mxu0
      %v2813 = vpop.f32.mrb[0].mxu0
      %v2814 = vadd.f32 %v2510, %v2813
      %v2815 = vpop.f32.mrb[0].mxu0
      %2816 = vmatprep.mubr.bf16.mxu0 %v742
      %2817 = vmatmul.mubr.bf16.gmra.mrb[0].mxu0 %v741
      %v2818 = vpop.f32.mrb[0].mxu0
      %v2819 = vadd.f32 %v2510, %v2818
      %v2820 = vpop.f32.mrb[0].mxu0
      %v2821 = vpop.f32.mrb[0].mxu0
      %v2822 = vadd.f32 %v2510, %v2821
      %v2823 = vpop.f32.mrb[0].mxu0
      %2824 = vmatprep.mubr.bf16.mxu0 %v746
      %2825 = vmatmul.mubr.bf16.gmra.mrb[0].mxu0 %v745
      %v2826 = vpop.f32.mrb[0].mxu0
      %v2827 = vadd.f32 %v2510, %v2826
      %v2828 = vpop.f32.mrb[0].mxu0
      %v2829 = vpop.f32.mrb[0].mxu0
      %v2830 = vadd.f32 %v2510, %v2829
      %v2831 = vpop.f32.mrb[0].mxu0
      %2832 = vmatprep.mubr.bf16.mxu0 %v750
      %2833 = vmatmul.mubr.bf16.gmra.mrb[0].mxu0 %v749
      %v2834 = vpop.f32.mrb[0].mxu0
      %v2835 = vadd.f32 %v2510, %v2834
      %v2836 = vpop.f32.mrb[0].mxu0
      %v2837 = vpop.f32.mrb[0].mxu0
      %v2838 = vadd.f32 %v2510, %v2837
      %v2839 = vpop.f32.mrb[0].mxu0
      %2840 = vmatprep.mubr.bf16.mxu0 %v754
      %2841 = vmatmul.mubr.bf16.gmra.mrb[0].mxu0 %v753
      %v2842 = vpop.f32.mrb[0].mxu0
      %v2843 = vadd.f32 %v2510, %v2842
      %v2844 = vpop.f32.mrb[0].mxu0
      %v2845 = vpop.f32.mrb[0].mxu0
      %v2846 = vadd.f32 %v2510, %v2845
      %v2847 = vpop.f32.mrb[0].mxu0
      %2848 = vmatprep.mubr.bf16.mxu0 %v758
      %2849 = vmatmul.mubr.bf16.gmra.mrb[0].mxu0 %v757
      %v2850 = vpop.f32.mrb[0].mxu0
      %v2851 = vadd.f32 %v2510, %v2850
      %v2852 = vpop.f32.mrb[0].mxu0
      %v2853 = vpop.f32.mrb[0].mxu0
      %v2854 = vadd.f32 %v2510, %v2853
      %v2855 = vpop.f32.mrb[0].mxu0
      %2856 = vmatprep.mubr.bf16.mxu0 %v762
      %2857 = vmatmul.mubr.bf16.gmra.mrb[0].mxu0 %v761
      %v2858 = vpop.f32.mrb[0].mxu0
      %v2859 = vadd.f32 %v2510, %v2858
      %v2860 = vpop.f32.mrb[0].mxu0
      %v2861 = vpop.f32.mrb[0].mxu0
      %v2862 = vadd.f32 %v2510, %v2861
      %v2863 = vpop.f32.mrb[0].mxu0
      %2864 = vdwg.mxu0
      %2865 = vmatprep.subr.bf16.mxu0 0
      %2866 = vmatpush1.bf16.msra.mxu0 %v2656
      %2867 = vmatprep.subr.bf16.mxu0 0
      %2868 = vmatpush1.bf16.msra.mxu0 %v2657
      %2869 = vmatprep.subr.bf16.mxu0 0
      %2870 = vmatpush1.bf16.msra.mxu0 %v2658
      %2871 = vmatprep.subr.bf16.mxu0 0
      %2872 = vmatpush1.bf16.msra.mxu0 %v2659
      %2873 = vmatprep.subr.bf16.mxu0 0
      %2874 = vmatpush1.bf16.msra.mxu0 %v2660
      %2875 = vmatprep.subr.bf16.mxu0 0
      %2876 = vmatpush1.bf16.msra.mxu0 %v2661
      %2877 = vmatprep.subr.bf16.mxu0 0
      %2878 = vmatpush1.bf16.msra.mxu0 %v2662
      %2879 = vmatprep.subr.bf16.mxu0 0
      %2880 = vmatpush1.bf16.msra.mxu0 %v2663
      %2881 = vmatprep.subr.bf16.mxu0 0
      %2882 = vmatpush1.bf16.msra.mxu0 %v2664
      %2883 = vmatprep.subr.bf16.mxu0 0
      %2884 = vmatpush1.bf16.msra.mxu0 %v2665
      %2885 = vmatprep.subr.bf16.mxu0 0
      %2886 = vmatpush1.bf16.msra.mxu0 %v2666
      %2887 = vmatprep.subr.bf16.mxu0 0
      %2888 = vmatpush1.bf16.msra.mxu0 %v2667
      %2889 = vmatprep.subr.bf16.mxu0 0
      %2890 = vmatpush1.bf16.msra.mxu0 %v2668
      %2891 = vmatprep.subr.bf16.mxu0 0
      %2892 = vmatpush1.bf16.msra.mxu0 %v2669
      %2893 = vmatprep.subr.bf16.mxu0 0
      %2894 = vmatpush1.bf16.msra.mxu0 %v2670
      %2895 = vmatprep.subr.bf16.mxu0 0
      %2896 = vmatpush1.bf16.msra.mxu0 %v2671
      %2897 = vmatprep.mubr.bf16.mxu0 %v704
      %2898 = vmatmul.mubr.bf16.gmra.mrb[0].mxu0 %v703
      %v2899 = vpop.f32.mrb[0].mxu0
      %v2900 = vadd.f32 %v2739, %v2899
      %v2901 = vpop.f32.mrb[0].mxu0
      %v2902 = vpop.f32.mrb[0].mxu0
      %v2903 = vadd.f32 %v2742, %v2902
      %v2904 = vpop.f32.mrb[0].mxu0
      %2905 = vmatprep.mubr.bf16.mxu0 %v708
      %2906 = vmatmul.mubr.bf16.gmra.mrb[0].mxu0 %v707
      %v2907 = vpop.f32.mrb[0].mxu0
      %v2908 = vadd.f32 %v2747, %v2907
      %v2909 = vpop.f32.mrb[0].mxu0
      %v2910 = vpop.f32.mrb[0].mxu0
      %v2911 = vadd.f32 %v2750, %v2910
      %v2912 = vpop.f32.mrb[0].mxu0
      %2913 = vmatprep.mubr.bf16.mxu0 %v712
      %2914 = vmatmul.mubr.bf16.gmra.mrb[0].mxu0 %v711
      %v2915 = vpop.f32.mrb[0].mxu0
      %v2916 = vadd.f32 %v2755, %v2915
      %v2917 = vpop.f32.mrb[0].mxu0
      %v2918 = vpop.f32.mrb[0].mxu0
      %v2919 = vadd.f32 %v2758, %v2918
      %v2920 = vpop.f32.mrb[0].mxu0
      %2921 = vmatprep.mubr.bf16.mxu0 %v716
      %2922 = vmatmul.mubr.bf16.gmra.mrb[0].mxu0 %v715
      %v2923 = vpop.f32.mrb[0].mxu0
      %v2924 = vadd.f32 %v2763, %v2923
      %v2925 = vpop.f32.mrb[0].mxu0
      %v2926 = vpop.f32.mrb[0].mxu0
      %v2927 = vadd.f32 %v2766, %v2926
      %v2928 = vpop.f32.mrb[0].mxu0
      %2929 = vmatprep.mubr.bf16.mxu0 %v720
      %2930 = vmatmul.mubr.bf16.gmra.mrb[0].mxu0 %v719
      %v2931 = vpop.f32.mrb[0].mxu0
      %v2932 = vadd.f32 %v2771, %v2931
      %v2933 = vpop.f32.mrb[0].mxu0
      %v2934 = vpop.f32.mrb[0].mxu0
      %v2935 = vadd.f32 %v2774, %v2934
      %v2936 = vpop.f32.mrb[0].mxu0
      %2937 = vmatprep.mubr.bf16.mxu0 %v724
      %2938 = vmatmul.mubr.bf16.gmra.mrb[0].mxu0 %v723
      %v2939 = vpop.f32.mrb[0].mxu0
      %v2940 = vadd.f32 %v2779, %v2939
      %v2941 = vpop.f32.mrb[0].mxu0
      %v2942 = vpop.f32.mrb[0].mxu0
      %v2943 = vadd.f32 %v2782, %v2942
      %v2944 = vpop.f32.mrb[0].mxu0
      %2945 = vmatprep.mubr.bf16.mxu0 %v728
      %2946 = vmatmul.mubr.bf16.gmra.mrb[0].mxu0 %v727
      %v2947 = vpop.f32.mrb[0].mxu0
      %v2948 = vadd.f32 %v2787, %v2947
      %v2949 = vpop.f32.mrb[0].mxu0
      %v2950 = vpop.f32.mrb[0].mxu0
      %v2951 = vadd.f32 %v2790, %v2950
      %v2952 = vpop.f32.mrb[0].mxu0
      %2953 = vmatprep.mubr.bf16.mxu0 %v732
      %2954 = vmatmul.mubr.bf16.gmra.mrb[0].mxu0 %v731
      %v2955 = vpop.f32.mrb[0].mxu0
      %v2956 = vadd.f32 %v2795, %v2955
      %v2957 = vpop.f32.mrb[0].mxu0
      %v2958 = vpop.f32.mrb[0].mxu0
      %v2959 = vadd.f32 %v2798, %v2958
      %v2960 = vpop.f32.mrb[0].mxu0
      %2961 = vmatprep.mubr.bf16.mxu0 %v736
      %2962 = vmatmul.mubr.bf16.gmra.mrb[0].mxu0 %v735
      %v2963 = vpop.f32.mrb[0].mxu0
      %v2964 = vadd.f32 %v2803, %v2963
      %v2965 = vpop.f32.mrb[0].mxu0
      %v2966 = vpop.f32.mrb[0].mxu0
      %v2967 = vadd.f32 %v2806, %v2966
      %v2968 = vpop.f32.mrb[0].mxu0
      %2969 = vmatprep.mubr.bf16.mxu0 %v740
      %2970 = vmatmul.mubr.bf16.gmra.mrb[0].mxu0 %v739
      %v2971 = vpop.f32.mrb[0].mxu0
      %v2972 = vadd.f32 %v2811, %v2971
      %v2973 = vpop.f32.mrb[0].mxu0
      %v2974 = vpop.f32.mrb[0].mxu0
      %v2975 = vadd.f32 %v2814, %v2974
      %v2976 = vpop.f32.mrb[0].mxu0
      %2977 = vmatprep.mubr.bf16.mxu0 %v744
      %2978 = vmatmul.mubr.bf16.gmra.mrb[0].mxu0 %v743
      %v2979 = vpop.f32.mrb[0].mxu0
      %v2980 = vadd.f32 %v2819, %v2979
      %v2981 = vpop.f32.mrb[0].mxu0
      %v2982 = vpop.f32.mrb[0].mxu0
      %v2983 = vadd.f32 %v2822, %v2982
      %v2984 = vpop.f32.mrb[0].mxu0
      %2985 = vmatprep.mubr.bf16.mxu0 %v748
      %2986 = vmatmul.mubr.bf16.gmra.mrb[0].mxu0 %v747
      %v2987 = vpop.f32.mrb[0].mxu0
      %v2988 = vadd.f32 %v2827, %v2987
      %v2989 = vpop.f32.mrb[0].mxu0
      %v2990 = vpop.f32.mrb[0].mxu0
      %v2991 = vadd.f32 %v2830, %v2990
      %v2992 = vpop.f32.mrb[0].mxu0
      %2993 = vmatprep.mubr.bf16.mxu0 %v752
      %2994 = vmatmul.mubr.bf16.gmra.mrb[0].mxu0 %v751
      %v2995 = vpop.f32.mrb[0].mxu0
      %v2996 = vadd.f32 %v2835, %v2995
      %v2997 = vpop.f32.mrb[0].mxu0
      %v2998 = vpop.f32.mrb[0].mxu0
      %v2999 = vadd.f32 %v2838, %v2998
      %v3000 = vpop.f32.mrb[0].mxu0
      %3001 = vmatprep.mubr.bf16.mxu0 %v756
      %3002 = vmatmul.mubr.bf16.gmra.mrb[0].mxu0 %v755
      %v3003 = vpop.f32.mrb[0].mxu0
      %v3004 = vadd.f32 %v2843, %v3003
      %v3005 = vpop.f32.mrb[0].mxu0
      %v3006 = vpop.f32.mrb[0].mxu0
      %v3007 = vadd.f32 %v2846, %v3006
      %v3008 = vpop.f32.mrb[0].mxu0
      %3009 = vmatprep.mubr.bf16.mxu0 %v760
      %3010 = vmatmul.mubr.bf16.gmra.mrb[0].mxu0 %v759
      %v3011 = vpop.f32.mrb[0].mxu0
      %v3012 = vadd.f32 %v2851, %v3011
      %v3013 = vpop.f32.mrb[0].mxu0
      %v3014 = vpop.f32.mrb[0].mxu0
      %v3015 = vadd.f32 %v2854, %v3014
      %v3016 = vpop.f32.mrb[0].mxu0
      %3017 = vmatprep.mubr.bf16.mxu0 %v764
      %3018 = vmatmul.mubr.bf16.gmra.mrb[0].mxu0 %v763
      %v3019 = vpop.f32.mrb[0].mxu0
      %v3020 = vadd.f32 %v2859, %v3019
      %v3021 = vpop.f32.mrb[0].mxu0
      %v3022 = vpop.f32.mrb[0].mxu0
      %v3023 = vadd.f32 %v2862, %v3022
      %v3024 = vpop.f32.mrb[0].mxu0
      %3025 = vdwg.mxu0
      %v3026 = vmax.f32 %v2900, 0.0
      %v3027 = vmax.f32 %v2903, 0.0
      %v3028 = vmax.f32 %v2908, 0.0
      %v3029 = vmax.f32 %v2911, 0.0
      %v3030 = vmax.f32 %v2916, 0.0
      %v3031 = vmax.f32 %v2919, 0.0
      %v3032 = vmax.f32 %v2924, 0.0
      %v3033 = vmax.f32 %v2927, 0.0
      %v3034 = vmax.f32 %v2932, 0.0
      %v3035 = vmax.f32 %v2935, 0.0
      %v3036 = vmax.f32 %v2940, 0.0
      %v3037 = vmax.f32 %v2943, 0.0
      %v3038 = vmax.f32 %v2948, 0.0
      %v3039 = vmax.f32 %v2951, 0.0
      %v3040 = vmax.f32 %v2956, 0.0
      %v3041 = vmax.f32 %v2959, 0.0
      %v3042 = vmax.f32 %v2964, 0.0
      %v3043 = vmax.f32 %v2967, 0.0
      %v3044 = vmax.f32 %v2972, 0.0
      %v3045 = vmax.f32 %v2975, 0.0
      %v3046 = vmax.f32 %v2980, 0.0
      %v3047 = vmax.f32 %v2983, 0.0
      %v3048 = vmax.f32 %v2988, 0.0
      %v3049 = vmax.f32 %v2991, 0.0
      %v3050 = vmax.f32 %v2996, 0.0
      %v3051 = vmax.f32 %v2999, 0.0
      %v3052 = vmax.f32 %v3004, 0.0
      %v3053 = vmax.f32 %v3007, 0.0
      %v3054 = vmax.f32 %v3012, 0.0
      %v3055 = vmax.f32 %v3015, 0.0
      %v3056 = vmax.f32 %v3020, 0.0
      %v3057 = vmax.f32 %v3023, 0.0
      %v3058 = vpack.c.bf16 %v3027, %v3026
      %v3059 = vpack.c.bf16 %v3029, %v3028
      %v3060 = vpack.c.bf16 %v3031, %v3030
      %v3061 = vpack.c.bf16 %v3033, %v3032
      %v3062 = vpack.c.bf16 %v3035, %v3034
      %v3063 = vpack.c.bf16 %v3037, %v3036
      %v3064 = vpack.c.bf16 %v3039, %v3038
      %v3065 = vpack.c.bf16 %v3041, %v3040
      %v3066 = vpack.c.bf16 %v3043, %v3042
      %v3067 = vpack.c.bf16 %v3045, %v3044
      %v3068 = vpack.c.bf16 %v3047, %v3046
      %v3069 = vpack.c.bf16 %v3049, %v3048
      %v3070 = vpack.c.bf16 %v3051, %v3050
      %v3071 = vpack.c.bf16 %v3053, %v3052
      %v3072 = vpack.c.bf16 %v3055, %v3054
      %v3073 = vpack.c.bf16 %v3057, %v3056
      %v3090 = vunpack.c.l.b16 %v3058
      %v3091 = vunpack.c.h.b16 %v3058
      %v3092 = vunpack.c.l.b16 %v3059
      %v3093 = vunpack.c.h.b16 %v3059
      %v3094 = vunpack.c.l.b16 %v3060
      %v3095 = vunpack.c.h.b16 %v3060
      %v3096 = vunpack.c.l.b16 %v3061
      %v3097 = vunpack.c.h.b16 %v3061
      %v3098 = vunpack.c.l.b16 %v3062
      %v3099 = vunpack.c.h.b16 %v3062
      %v3100 = vunpack.c.l.b16 %v3063
      %v3101 = vunpack.c.h.b16 %v3063
      %v3102 = vunpack.c.l.b16 %v3064
      %v3103 = vunpack.c.h.b16 %v3064
      %v3104 = vunpack.c.l.b16 %v3065
      %v3105 = vunpack.c.h.b16 %v3065
      %v3106 = vunpack.c.l.b16 %v3066
      %v3107 = vunpack.c.h.b16 %v3066
      %v3108 = vunpack.c.l.b16 %v3067
      %v3109 = vunpack.c.h.b16 %v3067
      %v3110 = vunpack.c.l.b16 %v3068
      %v3111 = vunpack.c.h.b16 %v3068
      %v3112 = vunpack.c.l.b16 %v3069
      %v3113 = vunpack.c.h.b16 %v3069
      %v3114 = vunpack.c.l.b16 %v3070
      %v3115 = vunpack.c.h.b16 %v3070
      %v3116 = vunpack.c.l.b16 %v3071
      %v3117 = vunpack.c.h.b16 %v3071
      %v3118 = vunpack.c.l.b16 %v3072
      %v3119 = vunpack.c.h.b16 %v3072
      %v3120 = vunpack.c.l.b16 %v3073
      %v3121 = vunpack.c.h.b16 %v3073
      %v3122 = vpack.c.b16 %v3090, %v3090
      %v3123 = vpack.c.b16 %v3091, %v3091
      %v3124 = vpack.c.b16 %v3092, %v3092
      %v3125 = vpack.c.b16 %v3093, %v3093
      %v3126 = vpack.c.b16 %v3094, %v3094
      %v3127 = vpack.c.b16 %v3095, %v3095
      %v3128 = vpack.c.b16 %v3096, %v3096
      %v3129 = vpack.c.b16 %v3097, %v3097
      %v3130 = vpack.c.b16 %v3098, %v3098
      %v3131 = vpack.c.b16 %v3099, %v3099
      %v3132 = vpack.c.b16 %v3100, %v3100
      %v3133 = vpack.c.b16 %v3101, %v3101
      %v3134 = vpack.c.b16 %v3102, %v3102
      %v3135 = vpack.c.b16 %v3103, %v3103
      %v3136 = vpack.c.b16 %v3104, %v3104
      %v3137 = vpack.c.b16 %v3105, %v3105
      %v3138 = vpack.c.b16 %v3106, %v3106
      %v3139 = vpack.c.b16 %v3107, %v3107
      %v3140 = vpack.c.b16 %v3108, %v3108
      %v3141 = vpack.c.b16 %v3109, %v3109
      %v3142 = vpack.c.b16 %v3110, %v3110
      %v3143 = vpack.c.b16 %v3111, %v3111
      %v3144 = vpack.c.b16 %v3112, %v3112
      %v3145 = vpack.c.b16 %v3113, %v3113
      %v3146 = vpack.c.b16 %v3114, %v3114
      %v3147 = vpack.c.b16 %v3115, %v3115
      %v3148 = vpack.c.b16 %v3116, %v3116
      %v3149 = vpack.c.b16 %v3117, %v3117
      %v3150 = vpack.c.b16 %v3118, %v3118
      %v3151 = vpack.c.b16 %v3119, %v3119
      %v3152 = vpack.c.b16 %v3120, %v3120
      %v3153 = vpack.c.b16 %v3121, %v3121
      %3186 = vst [vmem:[%s366] sm:$0xf] %v3122
      %3187 = vst [vmem:[%s366 + $0x4] sm:$0xf] %v3123
      %3188 = vst [vmem:[%s366 + $0x8] sm:$0xf] %v3124
      %3189 = vst [vmem:[%s366 + $0xc] sm:$0xf] %v3125
      %3190 = vst [vmem:[%s366 + $0x10] sm:$0xf] %v3126
      %3191 = vst [vmem:[%s366 + $0x14] sm:$0xf] %v3127
      %3192 = vst [vmem:[%s366 + $0x18] sm:$0xf] %v3128
      %3193 = vst [vmem:[%s366 + $0x1c] sm:$0xf] %v3129
      %3194 = vst [vmem:[%s366 + $0x20] sm:$0xf] %v3130
      %3195 = vst [vmem:[%s366 + $0x24] sm:$0xf] %v3131
      %3196 = vst [vmem:[%s366 + $0x28] sm:$0xf] %v3132
      %3197 = vst [vmem:[%s366 + $0x2c] sm:$0xf] %v3133
      %3198 = vst [vmem:[%s366 + $0x30] sm:$0xf] %v3134
      %3199 = vst [vmem:[%s366 + $0x34] sm:$0xf] %v3135
      %3200 = vst [vmem:[%s366 + $0x38] sm:$0xf] %v3136
      %3201 = vst [vmem:[%s366 + $0x3c] sm:$0xf] %v3137
      %3202 = vst [vmem:[%s366 + $0x40] sm:$0xf] %v3138
      %3203 = vst [vmem:[%s366 + $0x44] sm:$0xf] %v3139
      %3204 = vst [vmem:[%s366 + $0x48] sm:$0xf] %v3140
      %3205 = vst [vmem:[%s366 + $0x4c] sm:$0xf] %v3141
      %3206 = vst [vmem:[%s366 + $0x50] sm:$0xf] %v3142
      %3207 = vst [vmem:[%s366 + $0x54] sm:$0xf] %v3143
      %3208 = vst [vmem:[%s366 + $0x58] sm:$0xf] %v3144
      %3209 = vst [vmem:[%s366 + $0x5c] sm:$0xf] %v3145
      %3210 = vst [vmem:[%s366 + $0x60] sm:$0xf] %v3146
      %3211 = vst [vmem:[%s366 + $0x64] sm:$0xf] %v3147
      %3212 = vst [vmem:[%s366 + $0x68] sm:$0xf] %v3148
      %3213 = vst [vmem:[%s366 + $0x6c] sm:$0xf] %v3149
      %3214 = vst [vmem:[%s366 + $0x70] sm:$0xf] %v3150
      %3215 = vst [vmem:[%s366 + $0x74] sm:$0xf] %v3151
      %3216 = vst [vmem:[%s366 + $0x78] sm:$0xf] %v3152
      %3217 = vst [vmem:[%s366 + $0x7c] sm:$0xf] %v3153
      %s3218 = smul.u32 32, %s21
      %p3219 = scmp.lt.s32.totalorder %s3218, 63
      %s3220 = scalar_select %p3219, %s3218, 63
      %s3221 = smul.addr %s3220, 2
      %s3222 = smul.addr %s3221, 8
      %s3223 = scalar_lea.vmem %s7, %s3222
      %s3224 = smul.u32 32, %s21
      %p3225 = scmp.lt.s32.totalorder %s3224, 63
      %s3226 = scalar_select %p3225, %s3224, 63
      %s3227 = smul.addr %s3226, 4
      %s3228 = scalar_lea.vmem %s8, %s3227
      %s3229 = smul.u32 32, %s21
      %p3230 = scmp.lt.s32.totalorder %s3229, 63
      %s3231 = scalar_select %p3230, %s3229, 63
      %s3232 = smul.addr %s3231, 4
      %s3233 = scalar_lea.vmem %s9, %s3232
      // Predicated region
      $region49: #{mixed_4c_forward.4} parent=47 // pred_check
        %p3234 = pneg %p191
      $region50: #{mixed_4c_forward.4} parent=47 // pred_check_branch
        %3236 = sbr.rel (%p3234) target = $region52
      $region51: #{mixed_4c_forward.4} parent=47 // pred_region
        %s3237 = smul.u32 32, %s21
      $region52: #{mixed_4c_forward.4} parent=47 // pred_fallthru
        _
      // Predicated region
      $region53: #{mixed_4c_forward.4} parent=47 // pred_check
        %p3238 = pneg %p217
      $region54: #{mixed_4c_forward.4} parent=47 // pred_check_branch
        %3240 = sbr.rel (%p3238) target = $region56
      $region55: #{mixed_4c_forward.4} parent=47 // pred_region
        %s3241 = smul.u32 32, %s21
      $region56: #{mixed_4c_forward.4} parent=47 // pred_fallthru
        _
      // Predicated region
      $region57: #{mixed_4c_forward.4} parent=47 // pred_check
        %p3242 = pneg %p243
      $region58: #{mixed_4c_forward.4} parent=47 // pred_check_branch
        %3244 = sbr.rel (%p3242) target = $region60
      $region59: #{mixed_4c_forward.4} parent=47 // pred_region
        %s3245 = smul.u32 32, %s21
      $region60: #{mixed_4c_forward.4} parent=47 // pred_fallthru
        _
    $region48: #{mixed_4c_forward.4} parent=5 // pred_fallthru
      _
    %p3246 = scmp.le.s32.totalorder 2, %s16
    // Predicated region
    $region61: #{mixed_4c_forward.4} parent=5 // pred_check
      %p3247 = pneg %p3246
    $region62: #{mixed_4c_forward.4} parent=5 // pred_check_branch
      %3249 = sbr.rel (%p3247) target = $region64
    $region63: #{mixed_4c_forward.4} parent=5 // pred_region
      %s3250 = ssub.s32 %s16, 2
      // Predicated region
      $region65: #{mixed_4c_forward.4} parent=63 // pred_check
        %p3251 = pneg %p197
      $region66: #{mixed_4c_forward.4} parent=63 // pred_check_branch
        %3253 = sbr.rel (%p3251) target = $region68
      $region67: #{mixed_4c_forward.4} parent=63 // pred_region
        %s3254 = smul.u32 32, %s22
        %p3255 = scmp.lt.s32.totalorder %s3254, 63
        %s3256 = scalar_select %p3255, %s3254, 63
        %s3257 = smul.addr %s3256, 2
        %s3258 = smul.addr %s3257, 8
        %s3259 = scalar_lea.vmem %s7, %s3258
      $region68: #{mixed_4c_forward.4} parent=63 // pred_fallthru
        _
      // Predicated region
      $region69: #{mixed_4c_forward.4} parent=63 // pred_check
        %p3260 = pneg %p223
      $region70: #{mixed_4c_forward.4} parent=63 // pred_check_branch
        %3262 = sbr.rel (%p3260) target = $region72
      $region71: #{mixed_4c_forward.4} parent=63 // pred_region
        %s3263 = smul.u32 32, %s22
        %p3264 = scmp.lt.s32.totalorder %s3263, 63
        %s3265 = scalar_select %p3264, %s3263, 63
        %s3266 = smul.addr %s3265, 4
        %s3267 = scalar_lea.vmem %s8, %s3266
      $region72: #{mixed_4c_forward.4} parent=63 // pred_fallthru
        _
      // Predicated region
      $region73: #{mixed_4c_forward.4} parent=63 // pred_check
        %p3268 = pneg %p249
      $region74: #{mixed_4c_forward.4} parent=63 // pred_check_branch
        %3270 = sbr.rel (%p3268) target = $region76
      $region75: #{mixed_4c_forward.4} parent=63 // pred_region
        %s3271 = smul.u32 32, %s22
        %p3272 = scmp.lt.s32.totalorder %s3271, 63
        %s3273 = scalar_select %p3272, %s3271, 63
        %s3274 = smul.addr %s3273, 4
        %s3275 = scalar_lea.vmem %s9, %s3274
      $region76: #{mixed_4c_forward.4} parent=63 // pred_fallthru
        _
    $region64: #{mixed_4c_forward.4} parent=5 // pred_fallthru
      _
  $region6: #{mixed_4c_forward.4} parent=0 // loop_footer
    %s20 = sadd.s32 1, %s16
  $region7: #{mixed_4c_forward.4} parent=0 // loop_footer_branch
    %15 = sbr.rel target = $region3
  $region8: #{mixed_4c_forward.4} parent=0 // loop_exit
    _

// kernel: mixed_4c_forward.5
$region0: #{mixed_4c_forward.5}
  #allocation0 [shape = 'u32[]', space=smem, size = 0x4, offset = 0x4, fixed_abs, tag = 'smem constant byte address 0x4 - core index']
  #allocation1 [shape = 'u32[144,128]{1,0:T(1,128)}', space=vmem, size = 0x12000, scoped, tag = 'internal scratch']
  #allocation2 [shape = 'f32[64,224]{1,0:T(8,128)}', space=vmem, size = 0x10000, scoped, tag = 'scratch operand']
  %s0 = inlined_call_operand.vmem [shape: bf16[2,6,10,10,128], index: 0, kind: input, shape index: {}]
  %s1 = inlined_call_operand.vmem [shape: bf16[3,1152,224], index: 1, kind: input, shape index: {}]
  %s2 = inlined_call_operand.vmem [shape: f32[1,224], index: 2, kind: input, shape index: {}]
  %s3 = inlined_call_operand.vmem [shape: f32[2,4,8,8,224], index: 3, kind: output, shape index: {}]
  %s4 = sld [smem:[#allocation0]]
  $region53: #{mixed_4c_forward.5} parent=0
    _
  %s6 = ssub.s32 1, %s4
  %s7 = scalar_select 0, %s6, %s4
  loop: start=0, step=1, limit=26
  $region2: #{mixed_4c_forward.5} parent=0 // loop_pre_header
    _
  $region3: #{mixed_4c_forward.5} parent=0 // loop_header
    %s9 = sphi 0, %s13
    %p10 = scmp.ge.s32.totalorder %s9, 26
    %s16 = sphi 0, %s35
    %s17 = sphi 0, %s31
    %s18 = sphi 0, %s27
    %s19 = sphi 0, %s16
    %s20 = sphi 0, %s17
    %s21 = sphi 0, %s18
    %s22 = sphi 0, %s19
    %s23 = sphi 0, %s20
    %s24 = sphi 0, %s21
    %s42 = sphi 0, %s44
    %s45 = sphi 0, %s42
    %s46 = sphi 0, %s45
    %s62 = sphi 0, %s46
    %s66 = sphi 0, %s66
    %s68 = sphi 0, %s66
    %s69 = sphi 0, %s68
    %s83 = sphi 0, %s69
    %s87 = sphi 0, %s87
    %s89 = sphi 0, %s87
    %s90 = sphi 0, %s89
    %s104 = sphi 0, %s90
    %s112 = sphi 0, %s114
    %s115 = sphi 0, %s112
    %s116 = sphi 0, %s115
    %s132 = sphi 0, %s116
  $region4: #{mixed_4c_forward.5} parent=0 // loop_header_branch
    %12 = sbr.rel (%p10) target = $region8
  $region5: #{mixed_4c_forward.5} parent=0 // loop_body
    %s14 = ssub.s32 %s9, 1
    %s15 = ssub.s32 %s9, 2
    %s25 = sadd.s32 1, %s18
    %p26 = scmp.ge.s32.totalorder %s25, 3
    %s27 = scalar_select %p26, 0, %s25
    %s28 = sadd.s32 1, %s17
    %s29 = scalar_select %p26, %s28, %s17
    %p30 = scmp.ge.s32.totalorder %s29, 4
    %s31 = scalar_select %p30, 0, %s29
    %s32 = sadd.s32 1, %s16
    %s33 = scalar_select %p30, %s32, %s16
    %p34 = scmp.ge.s32.totalorder %s33, 2
    %s35 = scalar_select %p34, 0, %s33
    %s36 = sadd.s32 %s17, %s18
    %s37 = sadd.s32 %s31, %s27
    %s38 = ssub.s32 %s16, %s35
    %s39 = ssub.s32 %s36, %s37
    %s40 = sor.u32 %s38, %s39
    %p41 = scmp.eq.s32.totalorder %s40, 0
    %s43 = sadd.s32 %s42, 1
    %s44 = scalar_select %p41, %s42, %s43
    %p47 = pneg %p41
    %p48 = scmp.eq.s32.totalorder %s9, 23
    %p49 = por %p47, %p48
    %p50 = scmp.ne.s32.totalorder %s42, %s45
    %p51 = scmp.eq.s32.totalorder %s9, 0
    %p52 = por %p50, %p51
    %p53 = scmp.ne.s32.totalorder %s42, %s45
    %p54 = scmp.eq.s32.totalorder %s14, 23
    %p55 = por %p53, %p54
    %p56 = scmp.ne.s32.totalorder %s45, %s46
    %p57 = scmp.eq.s32.totalorder %s14, 0
    %p58 = por %p56, %p57
    %p59 = scmp.ne.s32.totalorder %s45, %s46
    %p60 = scmp.eq.s32.totalorder %s15, 23
    %p61 = por %p59, %p60
    %p63 = scmp.ne.s32.totalorder %s46, %s62
    %p64 = scmp.eq.s32.totalorder %s15, 0
    %p65 = por %p63, %p64
    %s67 = sadd.s32 %s66, 1
    %p70 = scmp.eq.s32.totalorder %s9, 23
    %p71 = scmp.ne.s32.totalorder %s66, %s68
    %p72 = scmp.eq.s32.totalorder %s9, 0
    %p73 = por %p71, %p72
    %p74 = scmp.ne.s32.totalorder %s66, %s68
    %p75 = scmp.eq.s32.totalorder %s14, 23
    %p76 = por %p74, %p75
    %p77 = scmp.ne.s32.totalorder %s68, %s69
    %p78 = scmp.eq.s32.totalorder %s14, 0
    %p79 = por %p77, %p78
    %p80 = scmp.ne.s32.totalorder %s68, %s69
    %p81 = scmp.eq.s32.totalorder %s15, 23
    %p82 = por %p80, %p81
    %p84 = scmp.ne.s32.totalorder %s69, %s83
    %p85 = scmp.eq.s32.totalorder %s15, 0
    %p86 = por %p84, %p85
    %s88 = sadd.s32 %s87, 1
    %p91 = scmp.eq.s32.totalorder %s9, 23
    %p92 = scmp.ne.s32.totalorder %s87, %s89
    %p93 = scmp.eq.s32.totalorder %s9, 0
    %p94 = por %p92, %p93
    %p95 = scmp.ne.s32.totalorder %s87, %s89
    %p96 = scmp.eq.s32.totalorder %s14, 23
    %p97 = por %p95, %p96
    %p98 = scmp.ne.s32.totalorder %s89, %s90
    %p99 = scmp.eq.s32.totalorder %s14, 0
    %p100 = por %p98, %p99
    %p101 = scmp.ne.s32.totalorder %s89, %s90
    %p102 = scmp.eq.s32.totalorder %s15, 23
    %p103 = por %p101, %p102
    %p105 = scmp.ne.s32.totalorder %s90, %s104
    %p106 = scmp.eq.s32.totalorder %s15, 0
    %p107 = por %p105, %p106
    %s108 = ssub.s32 %s16, %s35
    %s109 = ssub.s32 %s17, %s31
    %s110 = sor.u32 %s108, %s109
    %p111 = scmp.eq.s32.totalorder %s110, 0
    %s113 = sadd.s32 %s112, 1
    %s114 = scalar_select %p111, %s112, %s113
    %p117 = pneg %p111
    %p118 = scmp.eq.s32.totalorder %s9, 23
    %p119 = por %p117, %p118
    %p120 = scmp.ne.s32.totalorder %s112, %s115
    %p121 = scmp.eq.s32.totalorder %s9, 0
    %p122 = por %p120, %p121
    %p123 = scmp.ne.s32.totalorder %s112, %s115
    %p124 = scmp.eq.s32.totalorder %s14, 23
    %p125 = por %p123, %p124
    %p126 = scmp.ne.s32.totalorder %s115, %s116
    %p127 = scmp.eq.s32.totalorder %s14, 0
    %p128 = por %p126, %p127
    %p129 = scmp.ne.s32.totalorder %s115, %s116
    %p130 = scmp.eq.s32.totalorder %s15, 23
    %p131 = por %p129, %p130
    %p133 = scmp.ne.s32.totalorder %s116, %s132
    %p134 = scmp.eq.s32.totalorder %s15, 0
    %p135 = por %p133, %p134
    %p136 = scmp.le.s32.totalorder 1, %s9
    %p137 = scmp.lt.s32.totalorder %s9, 25
    %p138 = pnand %p136, %p137
    %p139 = pneg %p138
    // Predicated region
    $region9: #{mixed_4c_forward.5} parent=5 // pred_check
      _
    $region10: #{mixed_4c_forward.5} parent=5 // pred_check_branch
      %141 = sbr.rel (%p138) target = $region12
    $region11: #{mixed_4c_forward.5} parent=5 // pred_region
      %s142 = ssub.s32 %s9, 1
      // Predicated region
      $region13: #{mixed_4c_forward.5} parent=11 // pred_check
        %p143 = pneg %p79
      $region14: #{mixed_4c_forward.5} parent=11 // pred_check_branch
        %145 = sbr.rel (%p143) target = $region16
      $region15: #{mixed_4c_forward.5} parent=11 // pred_region
        _
      $region16: #{mixed_4c_forward.5} parent=11 // pred_fallthru
        _
      // Predicated region
      $region17: #{mixed_4c_forward.5} parent=11 // pred_check
        %p146 = pneg %p100
      $region18: #{mixed_4c_forward.5} parent=11 // pred_check_branch
        %148 = sbr.rel (%p146) target = $region20
      $region19: #{mixed_4c_forward.5} parent=11 // pred_region
        _
      $region20: #{mixed_4c_forward.5} parent=11 // pred_fallthru
        _
    $region12: #{mixed_4c_forward.5} parent=5 // pred_fallthru
      _
    %p149 = scmp.lt.s32.totalorder %s9, 24
    // Predicated region
    $region21: #{mixed_4c_forward.5} parent=5 // pred_check
      %p150 = pneg %p149
    $region22: #{mixed_4c_forward.5} parent=5 // pred_check_branch
      %152 = sbr.rel (%p150) target = $region24
    $region23: #{mixed_4c_forward.5} parent=5 // pred_region
      // Predicated region
      $region25: #{mixed_4c_forward.5} parent=23 // pred_check
        %p153 = pneg %p52
      $region26: #{mixed_4c_forward.5} parent=23 // pred_check_branch
        %155 = sbr.rel (%p153) target = $region28
      $region27: #{mixed_4c_forward.5} parent=23 // pred_region
        %s156 = sadd.s32 %s17, %s18
        %p157 = scmp.lt.s32.totalorder %s16, 1
        %s158 = scalar_select %p157, %s16, 1
        %p159 = scmp.lt.s32.totalorder %s156, 5
        %s160 = scalar_select %p159, %s156, 5
        %s161 = smul.addr %s160, 20
        %s162 = smul.addr %s158, 120
        %s163 = sadd.s32 %s161, %s162
        %s164 = smul.addr %s163, 4
        %s165 = scalar_lea.vmem %s0, %s164
        %s166 = sadd.s32 %s17, %s18
      $region28: #{mixed_4c_forward.5} parent=23 // pred_fallthru
        _
    $region24: #{mixed_4c_forward.5} parent=5 // pred_fallthru
      _
    %p167 = scmp.le.s32.totalorder 1, %s9
    %p168 = scmp.lt.s32.totalorder %s9, 25
    %p169 = pnand %p167, %p168
    %p170 = pneg %p169
    // Predicated region
    $region29: #{mixed_4c_forward.5} parent=5 // pred_check
      _
    $region30: #{mixed_4c_forward.5} parent=5 // pred_check_branch
      %172 = sbr.rel (%p169) target = $region32
    $region31: #{mixed_4c_forward.5} parent=5 // pred_region
      %s173 = ssub.s32 %s9, 1
      %s174 = sadd.s32 %s20, %s21
      %p175 = scmp.lt.s32.totalorder %s19, 1
      %s176 = scalar_select %p175, %s19, 1
      %p177 = scmp.lt.s32.totalorder %s174, 5
      %s178 = scalar_select %p177, %s174, 5
      %s179 = smul.addr %s178, 20
      %s180 = smul.addr %s176, 120
      %s181 = sadd.s32 %s179, %s180
      %s182 = smul.addr %s181, 4
      %s183 = scalar_lea.vmem %s0, %s182
      %p184 = pneg %p58
      %p185 = pneg %p55
      %p186 = pneg %p79
      %p187 = pneg %p76
      %p188 = pneg %p100
      %p189 = pneg %p97
      %p190 = pneg %p128
      %p191 = pneg %p125
      %p192 = scmp.lt.s32.totalorder %s19, 1
      %s193 = scalar_select %p192, %s19, 1
      %p194 = scmp.lt.s32.totalorder %s20, 3
      %s195 = scalar_select %p194, %s20, 3
      %s196 = smul.addr %s195, 16
      %s197 = smul.addr %s193, 64
      %s198 = sadd.s32 %s196, %s197
      %s199 = smul.addr %s198, 8
      %s200 = scalar_lea.vmem %s3, %s199
      %s201 = sadd.s32 %s20, %s21
      %p202 = scmp.lt.s32.totalorder %s19, 1
      %s203 = scalar_select %p202, %s19, 1
      %p204 = scmp.lt.s32.totalorder %s201, 5
      %s205 = scalar_select %p204, %s201, 5
      %s206 = smul.addr %s205, 20
      %s207 = smul.addr %s203, 120
      %s208 = sadd.s32 %s206, %s207
      %s209 = smul.addr %s208, 4
      %s210 = scalar_lea.vmem %s0, %s209
      %s211 = sadd.s32 %s20, %s21
      %p212 = scmp.lt.s32.totalorder %s19, 1
      %s213 = scalar_select %p212, %s19, 1
      %p214 = scmp.lt.s32.totalorder %s20, 3
      %s215 = scalar_select %p214, %s20, 3
      %s216 = smul.addr %s215, 16
      %s217 = smul.addr %s213, 64
      %s218 = sadd.s32 %s216, %s217
      %s219 = smul.addr %s218, 8
      %s220 = scalar_lea.vmem %s3, %s219
      %p222 = scmp.eq.s32.totalorder %s21, 0
      // Predicated region
      $region33: #{mixed_4c_forward.5} parent=31 // pred_check
        %p223 = pneg %p222
      $region34: #{mixed_4c_forward.5} parent=31 // pred_check_branch
        %225 = sbr.rel (%p223) target = $region36
      $region35: #{mixed_4c_forward.5} parent=31 // pred_region
        %226 = vst [vmem:[#allocation2] sm:$0xff] 0.0
        %vm227 = vcmask 785408
        %228 = vst.msk [vmem:[#allocation2 + $0x8] sm:$0xff] %vm227, 0.0
        %229 = vst [vmem:[#allocation2 + $0x10] sm:$0xff] 0.0
        %230 = vst.msk [vmem:[#allocation2 + $0x18] sm:$0xff] %vm227, 0.0
        %231 = vst [vmem:[#allocation2 + $0x20] sm:$0xff] 0.0
        %232 = vst.msk [vmem:[#allocation2 + $0x28] sm:$0xff] %vm227, 0.0
        %233 = vst [vmem:[#allocation2 + $0x30] sm:$0xff] 0.0
        %234 = vst.msk [vmem:[#allocation2 + $0x38] sm:$0xff] %vm227, 0.0
        %235 = vst [vmem:[#allocation2 + $0x40] sm:$0xff] 0.0
        %236 = vst.msk [vmem:[#allocation2 + $0x48] sm:$0xff] %vm227, 0.0
        %237 = vst [vmem:[#allocation2 + $0x50] sm:$0xff] 0.0
        %238 = vst.msk [vmem:[#allocation2 + $0x58] sm:$0xff] %vm227, 0.0
        %239 = vst [vmem:[#allocation2 + $0x60] sm:$0xff] 0.0
        %240 = vst.msk [vmem:[#allocation2 + $0x68] sm:$0xff] %vm227, 0.0
        %241 = vst [vmem:[#allocation2 + $0x70] sm:$0xff] 0.0
        %242 = vst.msk [vmem:[#allocation2 + $0x78] sm:$0xff] %vm227, 0.0
      $region36: #{mixed_4c_forward.5} parent=31 // pred_fallthru
        _
      %v243 = vld [vmem:[%s210] sm:$0xf]
      %v244 = vld [vmem:[%s210 + $0x4] sm:$0x1]
      %v245 = vld [vmem:[%s210 + $0x8] sm:$0xf]
      %v246 = vld [vmem:[%s210 + $0xc] sm:$0x1]
      %v247 = vld [vmem:[%s210 + $0x10] sm:$0xf]
      %v248 = vld [vmem:[%s210 + $0x14] sm:$0x1]
      %v249 = vld [vmem:[%s210 + $0x18] sm:$0xf]
      %v250 = vld [vmem:[%s210 + $0x1c] sm:$0x1]
      %v251 = vld [vmem:[%s210 + $0x20] sm:$0xf]
      %v252 = vld [vmem:[%s210 + $0x24] sm:$0x1]
      %v253 = vld [vmem:[%s210 + $0x28] sm:$0xf]
      %v254 = vld [vmem:[%s210 + $0x2c] sm:$0x1]
      %v255 = vld [vmem:[%s210 + $0x30] sm:$0xf]
      %v256 = vld [vmem:[%s210 + $0x34] sm:$0x1]
      %v257 = vld [vmem:[%s210 + $0x38] sm:$0xf]
      %v258 = vld [vmem:[%s210 + $0x3c] sm:$0x1]
      %v259 = vld [vmem:[%s210 + $0x40] sm:$0xf]
      %v260 = vld [vmem:[%s210 + $0x44] sm:$0x1]
      %v261 = vld [vmem:[%s210 + $0x48] sm:$0xf]
      %v262 = vld [vmem:[%s210 + $0x4c] sm:$0x1]
      %v279 = vunpack.c.l.b16 %v243
      %v280 = vunpack.c.l.b16 %v244
      %v281 = vunpack.c.l.b16 %v245
      %v282 = vunpack.c.l.b16 %v246
      %v283 = vunpack.c.l.b16 %v247
      %v284 = vunpack.c.l.b16 %v248
      %v285 = vunpack.c.l.b16 %v249
      %v286 = vunpack.c.l.b16 %v250
      %v287 = vunpack.c.l.b16 %v251
      %v288 = vunpack.c.l.b16 %v252
      %v289 = vunpack.c.l.b16 %v253
      %v290 = vunpack.c.l.b16 %v254
      %v291 = vunpack.c.l.b16 %v255
      %v292 = vunpack.c.l.b16 %v256
      %v293 = vunpack.c.l.b16 %v257
      %v294 = vunpack.c.l.b16 %v258
      %v295 = vpack.c.b16 %v280, %v279
      %v296 = vpack.c.b16 %v282, %v281
      %v297 = vpack.c.b16 %v284, %v283
      %v298 = vpack.c.b16 %v286, %v285
      %v299 = vpack.c.b16 %v288, %v287
      %v300 = vpack.c.b16 %v290, %v289
      %v301 = vpack.c.b16 %v292, %v291
      %v302 = vpack.c.b16 %v294, %v293
      %v304 = vshrl.u32 %v295, 16
      %v306 = vshll.u32 %v295, 16
      %v308 = vrot.slane %v306, 1
      %v309 = vor.u32 %v304, %v308
      %v311 = vshrl.u32 %v296, 16
      %v313 = vshll.u32 %v296, 16
      %v315 = vrot.slane %v313, 1
      %v316 = vor.u32 %v311, %v315
      %v318 = vshrl.u32 %v297, 16
      %v320 = vshll.u32 %v297, 16
      %v322 = vrot.slane %v320, 1
      %v323 = vor.u32 %v318, %v322
      %v325 = vshrl.u32 %v298, 16
      %v327 = vshll.u32 %v298, 16
      %v329 = vrot.slane %v327, 1
      %v330 = vor.u32 %v325, %v329
      %v332 = vshrl.u32 %v299, 16
      %v334 = vshll.u32 %v299, 16
      %v336 = vrot.slane %v334, 1
      %v337 = vor.u32 %v332, %v336
      %v339 = vshrl.u32 %v300, 16
      %v341 = vshll.u32 %v300, 16
      %v343 = vrot.slane %v341, 1
      %v344 = vor.u32 %v339, %v343
      %v346 = vshrl.u32 %v301, 16
      %v348 = vshll.u32 %v301, 16
      %v350 = vrot.slane %v348, 1
      %v351 = vor.u32 %v346, %v350
      %v353 = vshrl.u32 %v302, 16
      %v355 = vshll.u32 %v302, 16
      %v357 = vrot.slane %v355, 1
      %v358 = vor.u32 %v353, %v357
      %v359 = vrot.slane %v295, 1
      %v360 = vrot.slane %v296, 1
      %v361 = vrot.slane %v297, 1
      %v362 = vrot.slane %v298, 1
      %v363 = vrot.slane %v299, 1
      %v364 = vrot.slane %v300, 1
      %v365 = vrot.slane %v301, 1
      %v366 = vrot.slane %v302, 1
      %v369 = vunpack.c.l.b16 %v259
      %v370 = vunpack.c.l.b16 %v260
      %v371 = vpack.c.b16 %v370, %v369
      %v373 = vshrl.u32 %v371, 16
      %v375 = vshll.u32 %v371, 16
      %v377 = vrot.slane %v375, 1
      %v378 = vor.u32 %v373, %v377
      %v379 = vrot.slane %v371, 1
      %v382 = vunpack.c.l.b16 %v261
      %v383 = vunpack.c.l.b16 %v262
      %v384 = vpack.c.b16 %v383, %v382
      %v386 = vshrl.u32 %v384, 16
      %v388 = vshll.u32 %v384, 16
      %v390 = vrot.slane %v388, 1
      %v391 = vor.u32 %v386, %v390
      %v392 = vrot.slane %v384, 1
      %v393 = vunpack.c.l.b16 %v309
      %v394 = vunpack.c.l.b16 %v359
      %v395 = vunpack.c.l.b16 %v316
      %v396 = vunpack.c.l.b16 %v360
      %v397 = vunpack.c.l.b16 %v323
      %v398 = vunpack.c.l.b16 %v361
      %v399 = vunpack.c.l.b16 %v330
      %v400 = vunpack.c.l.b16 %v362
      %v401 = vunpack.c.l.b16 %v337
      %v402 = vunpack.c.l.b16 %v363
      %v403 = vunpack.c.l.b16 %v344
      %v404 = vunpack.c.l.b16 %v364
      %v405 = vunpack.c.l.b16 %v351
      %v406 = vunpack.c.l.b16 %v365
      %v407 = vunpack.c.l.b16 %v358
      %v408 = vunpack.c.l.b16 %v366
      %v409 = vunpack.c.l.b16 %v378
      %v410 = vunpack.c.l.b16 %v379
      %v411 = vunpack.c.l.b16 %v391
      %v412 = vunpack.c.l.b16 %v392
      %v413 = vld [vmem:[#allocation2] sm:$0xff]
      %v414 = vld [vmem:[#allocation2 + $0x8] sm:$0xff]
      %v415 = vld [vmem:[#allocation2 + $0x10] sm:$0xff]
      %v416 = vld [vmem:[#allocation2 + $0x18] sm:$0xff]
      %v417 = vld [vmem:[#allocation2 + $0x20] sm:$0xff]
      %v418 = vld [vmem:[#allocation2 + $0x28] sm:$0xff]
      %v419 = vld [vmem:[#allocation2 + $0x30] sm:$0xff]
      %v420 = vld [vmem:[#allocation2 + $0x38] sm:$0xff]
      %v421 = vld [vmem:[#allocation2 + $0x40] sm:$0xff]
      %v422 = vld [vmem:[#allocation2 + $0x48] sm:$0xff]
      %v423 = vld [vmem:[#allocation2 + $0x50] sm:$0xff]
      %v424 = vld [vmem:[#allocation2 + $0x58] sm:$0xff]
      %v425 = vld [vmem:[#allocation2 + $0x60] sm:$0xff]
      %v426 = vld [vmem:[#allocation2 + $0x68] sm:$0xff]
      %v427 = vld [vmem:[#allocation2 + $0x70] sm:$0xff]
      %v428 = vld [vmem:[#allocation2 + $0x78] sm:$0xff]
      %s429 = smul.u32 %s21, 288
      %s430 = smul.addr %s429, 4
      %s431 = scalar_lea.vmem %s1, %s430
      %v432 = vld [vmem:[%s431] sm:$0xff]
      %v433 = vld [vmem:[%s431 + $0x8] sm:$0xff]
      %v434 = vld [vmem:[%s431 + $0x10] sm:$0xff]
      %v435 = vld [vmem:[%s431 + $0x18] sm:$0xff]
      %v436 = vld [vmem:[%s431 + $0x20] sm:$0xff]
      %v437 = vld [vmem:[%s431 + $0x28] sm:$0xff]
      %v438 = vld [vmem:[%s431 + $0x30] sm:$0xff]
      %v439 = vld [vmem:[%s431 + $0x38] sm:$0xff]
      %v440 = vld [vmem:[%s431 + $0x40] sm:$0xff]
      %v441 = vld [vmem:[%s431 + $0x48] sm:$0xff]
      %v442 = vld [vmem:[%s431 + $0x50] sm:$0xff]
      %v443 = vld [vmem:[%s431 + $0x58] sm:$0xff]
      %v444 = vld [vmem:[%s431 + $0x60] sm:$0xff]
      %v445 = vld [vmem:[%s431 + $0x68] sm:$0xff]
      %v446 = vld [vmem:[%s431 + $0x70] sm:$0xff]
      %v447 = vld [vmem:[%s431 + $0x78] sm:$0xff]
      %v448 = vld [vmem:[%s431 + $0x80] sm:$0xff]
      %v449 = vld [vmem:[%s431 + $0x88] sm:$0xff]
      %v450 = vld [vmem:[%s431 + $0x90] sm:$0xff]
      %v451 = vld [vmem:[%s431 + $0x98] sm:$0xff]
      %v452 = vld [vmem:[%s431 + $0xa0] sm:$0xff]
      %v453 = vld [vmem:[%s431 + $0xa8] sm:$0xff]
      %v454 = vld [vmem:[%s431 + $0xb0] sm:$0xff]
      %v455 = vld [vmem:[%s431 + $0xb8] sm:$0xff]
      %v456 = vld [vmem:[%s431 + $0xc0] sm:$0xff]
      %v457 = vld [vmem:[%s431 + $0xc8] sm:$0xff]
      %v458 = vld [vmem:[%s431 + $0xd0] sm:$0xff]
      %v459 = vld [vmem:[%s431 + $0xd8] sm:$0xff]
      %v460 = vld [vmem:[%s431 + $0xe0] sm:$0xff]
      %v461 = vld [vmem:[%s431 + $0xe8] sm:$0xff]
      %v462 = vld [vmem:[%s431 + $0xf0] sm:$0xff]
      %v463 = vld [vmem:[%s431 + $0xf8] sm:$0xff]
      %v464 = vld [vmem:[%s431 + $0x100] sm:$0xff]
      %v465 = vld [vmem:[%s431 + $0x108] sm:$0xff]
      %v466 = vld [vmem:[%s431 + $0x110] sm:$0xff]
      %v467 = vld [vmem:[%s431 + $0x118] sm:$0xff]
      %v468 = vld [vmem:[%s431 + $0x120] sm:$0xff]
      %v469 = vld [vmem:[%s431 + $0x128] sm:$0xff]
      %v470 = vld [vmem:[%s431 + $0x130] sm:$0xff]
      %v471 = vld [vmem:[%s431 + $0x138] sm:$0xff]
      %v472 = vld [vmem:[%s431 + $0x140] sm:$0xff]
      %v473 = vld [vmem:[%s431 + $0x148] sm:$0xff]
      %v474 = vld [vmem:[%s431 + $0x150] sm:$0xff]
      %v475 = vld [vmem:[%s431 + $0x158] sm:$0xff]
      %v476 = vld [vmem:[%s431 + $0x160] sm:$0xff]
      %v477 = vld [vmem:[%s431 + $0x168] sm:$0xff]
      %v478 = vld [vmem:[%s431 + $0x170] sm:$0xff]
      %v479 = vld [vmem:[%s431 + $0x178] sm:$0xff]
      %v480 = vld [vmem:[%s431 + $0x180] sm:$0xff]
      %v481 = vld [vmem:[%s431 + $0x188] sm:$0xff]
      %v482 = vld [vmem:[%s431 + $0x190] sm:$0xff]
      %v483 = vld [vmem:[%s431 + $0x198] sm:$0xff]
      %v484 = vld [vmem:[%s431 + $0x1a0] sm:$0xff]
      %v485 = vld [vmem:[%s431 + $0x1a8] sm:$0xff]
      %v486 = vld [vmem:[%s431 + $0x1b0] sm:$0xff]
      %v487 = vld [vmem:[%s431 + $0x1b8] sm:$0xff]
      %v488 = vld [vmem:[%s431 + $0x1c0] sm:$0xff]
      %v489 = vld [vmem:[%s431 + $0x1c8] sm:$0xff]
      %v490 = vld [vmem:[%s431 + $0x1d0] sm:$0xff]
      %v491 = vld [vmem:[%s431 + $0x1d8] sm:$0xff]
      %v492 = vld [vmem:[%s431 + $0x1e0] sm:$0xff]
      %v493 = vld [vmem:[%s431 + $0x1e8] sm:$0xff]
      %v494 = vld [vmem:[%s431 + $0x1f0] sm:$0xff]
      %v495 = vld [vmem:[%s431 + $0x1f8] sm:$0xff]
      %v496 = vld [vmem:[%s431 + $0x200] sm:$0xff]
      %v497 = vld [vmem:[%s431 + $0x208] sm:$0xff]
      %v498 = vld [vmem:[%s431 + $0x210] sm:$0xff]
      %v499 = vld [vmem:[%s431 + $0x218] sm:$0xff]
      %v500 = vld [vmem:[%s431 + $0x220] sm:$0xff]
      %v501 = vld [vmem:[%s431 + $0x228] sm:$0xff]
      %v502 = vld [vmem:[%s431 + $0x230] sm:$0xff]
      %v503 = vld [vmem:[%s431 + $0x238] sm:$0xff]
      %v504 = vld [vmem:[%s431 + $0x240] sm:$0xff]
      %v505 = vld [vmem:[%s431 + $0x248] sm:$0xff]
      %v506 = vld [vmem:[%s431 + $0x250] sm:$0xff]
      %v507 = vld [vmem:[%s431 + $0x258] sm:$0xff]
      %v508 = vld [vmem:[%s431 + $0x260] sm:$0xff]
      %v509 = vld [vmem:[%s431 + $0x268] sm:$0xff]
      %v510 = vld [vmem:[%s431 + $0x270] sm:$0xff]
      %v511 = vld [vmem:[%s431 + $0x278] sm:$0xff]
      %v512 = vld [vmem:[%s431 + $0x280] sm:$0xff]
      %v513 = vld [vmem:[%s431 + $0x288] sm:$0xff]
      %v514 = vld [vmem:[%s431 + $0x290] sm:$0xff]
      %v515 = vld [vmem:[%s431 + $0x298] sm:$0xff]
      %v516 = vld [vmem:[%s431 + $0x2a0] sm:$0xff]
      %v517 = vld [vmem:[%s431 + $0x2a8] sm:$0xff]
      %v518 = vld [vmem:[%s431 + $0x2b0] sm:$0xff]
      %v519 = vld [vmem:[%s431 + $0x2b8] sm:$0xff]
      %v520 = vld [vmem:[%s431 + $0x2c0] sm:$0xff]
      %v521 = vld [vmem:[%s431 + $0x2c8] sm:$0xff]
      %v522 = vld [vmem:[%s431 + $0x2d0] sm:$0xff]
      %v523 = vld [vmem:[%s431 + $0x2d8] sm:$0xff]
      %v524 = vld [vmem:[%s431 + $0x2e0] sm:$0xff]
      %v525 = vld [vmem:[%s431 + $0x2e8] sm:$0xff]
      %v526 = vld [vmem:[%s431 + $0x2f0] sm:$0xff]
      %v527 = vld [vmem:[%s431 + $0x2f8] sm:$0xff]
      %v528 = vld [vmem:[%s431 + $0x300] sm:$0xff]
      %v529 = vld [vmem:[%s431 + $0x308] sm:$0xff]
      %v530 = vld [vmem:[%s431 + $0x310] sm:$0xff]
      %v531 = vld [vmem:[%s431 + $0x318] sm:$0xff]
      %v532 = vld [vmem:[%s431 + $0x320] sm:$0xff]
      %v533 = vld [vmem:[%s431 + $0x328] sm:$0xff]
      %v534 = vld [vmem:[%s431 + $0x330] sm:$0xff]
      %v535 = vld [vmem:[%s431 + $0x338] sm:$0xff]
      %v536 = vld [vmem:[%s431 + $0x340] sm:$0xff]
      %v537 = vld [vmem:[%s431 + $0x348] sm:$0xff]
      %v538 = vld [vmem:[%s431 + $0x350] sm:$0xff]
      %v539 = vld [vmem:[%s431 + $0x358] sm:$0xff]
      %v540 = vld [vmem:[%s431 + $0x360] sm:$0xff]
      %v541 = vld [vmem:[%s431 + $0x368] sm:$0xff]
      %v542 = vld [vmem:[%s431 + $0x370] sm:$0xff]
      %v543 = vld [vmem:[%s431 + $0x378] sm:$0xff]
      %v544 = vld [vmem:[%s431 + $0x380] sm:$0xff]
      %v545 = vld [vmem:[%s431 + $0x388] sm:$0xff]
      %v546 = vld [vmem:[%s431 + $0x390] sm:$0xff]
      %v547 = vld [vmem:[%s431 + $0x398] sm:$0xff]
      %v548 = vld [vmem:[%s431 + $0x3a0] sm:$0xff]
      %v549 = vld [vmem:[%s431 + $0x3a8] sm:$0xff]
      %v550 = vld [vmem:[%s431 + $0x3b0] sm:$0xff]
      %v551 = vld [vmem:[%s431 + $0x3b8] sm:$0xff]
      %v552 = vld [vmem:[%s431 + $0x3c0] sm:$0xff]
      %v553 = vld [vmem:[%s431 + $0x3c8] sm:$0xff]
      %v554 = vld [vmem:[%s431 + $0x3d0] sm:$0xff]
      %v555 = vld [vmem:[%s431 + $0x3d8] sm:$0xff]
      %v556 = vld [vmem:[%s431 + $0x3e0] sm:$0xff]
      %v557 = vld [vmem:[%s431 + $0x3e8] sm:$0xff]
      %v558 = vld [vmem:[%s431 + $0x3f0] sm:$0xff]
      %v559 = vld [vmem:[%s431 + $0x3f8] sm:$0xff]
      %v560 = vld [vmem:[%s431 + $0x400] sm:$0xff]
      %v561 = vld [vmem:[%s431 + $0x408] sm:$0xff]
      %v562 = vld [vmem:[%s431 + $0x410] sm:$0xff]
      %v563 = vld [vmem:[%s431 + $0x418] sm:$0xff]
      %v564 = vld [vmem:[%s431 + $0x420] sm:$0xff]
      %v565 = vld [vmem:[%s431 + $0x428] sm:$0xff]
      %v566 = vld [vmem:[%s431 + $0x430] sm:$0xff]
      %v567 = vld [vmem:[%s431 + $0x438] sm:$0xff]
      %v568 = vld [vmem:[%s431 + $0x440] sm:$0xff]
      %v569 = vld [vmem:[%s431 + $0x448] sm:$0xff]
      %v570 = vld [vmem:[%s431 + $0x450] sm:$0xff]
      %v571 = vld [vmem:[%s431 + $0x458] sm:$0xff]
      %v572 = vld [vmem:[%s431 + $0x460] sm:$0xff]
      %v573 = vld [vmem:[%s431 + $0x468] sm:$0xff]
      %v574 = vld [vmem:[%s431 + $0x470] sm:$0xff]
      %v575 = vld [vmem:[%s431 + $0x478] sm:$0xff]
      %v576 = vpack.c.b16 %v281, %v279
      %v577 = vpack.c.b16 %v395, %v393
      %v578 = vpack.c.b16 %v396, %v394
      %v579 = vpack.c.b16 %v283, %v281
      %v580 = vpack.c.b16 %v397, %v395
      %v581 = vpack.c.b16 %v398, %v396
      %v582 = vpack.c.b16 %v285, %v283
      %v583 = vpack.c.b16 %v399, %v397
      %v584 = vpack.c.b16 %v400, %v398
      %v585 = vpack.c.b16 %v287, %v285
      %v586 = vpack.c.b16 %v401, %v399
      %v587 = vpack.c.b16 %v402, %v400
      %v588 = vpack.c.b16 %v289, %v287
      %v589 = vpack.c.b16 %v403, %v401
      %v590 = vpack.c.b16 %v404, %v402
      %v591 = vpack.c.b16 %v291, %v289
      %v592 = vpack.c.b16 %v405, %v403
      %v593 = vpack.c.b16 %v406, %v404
      %v594 = vpack.c.b16 %v293, %v291
      %v595 = vpack.c.b16 %v407, %v405
      %v596 = vpack.c.b16 %v408, %v406
      %v597 = vpack.c.b16 %v369, %v293
      %v598 = vpack.c.b16 %v409, %v407
      %v599 = vpack.c.b16 %v410, %v408
      %v600 = vpack.c.b16 %v382, %v369
      %v601 = vpack.c.b16 %v411, %v409
      %v602 = vpack.c.b16 %v412, %v410
      %v774 = vunpack.c.l.b16 %v432
      %v775 = vunpack.c.h.b16 %v432
      %v776 = vunpack.c.l.b16 %v433
      %v777 = vunpack.c.h.b16 %v433
      %v778 = vunpack.c.l.b16 %v434
      %v779 = vunpack.c.h.b16 %v434
      %v780 = vunpack.c.l.b16 %v435
      %v781 = vunpack.c.h.b16 %v435
      %v782 = vunpack.c.l.b16 %v436
      %v783 = vunpack.c.h.b16 %v436
      %v784 = vunpack.c.l.b16 %v437
      %v785 = vunpack.c.h.b16 %v437
      %v786 = vunpack.c.l.b16 %v438
      %v787 = vunpack.c.h.b16 %v438
      %v788 = vunpack.c.l.b16 %v439
      %v789 = vunpack.c.h.b16 %v439
      %v790 = vunpack.c.l.b16 %v440
      %v791 = vunpack.c.h.b16 %v440
      %v792 = vunpack.c.l.b16 %v441
      %v793 = vunpack.c.h.b16 %v441
      %v794 = vunpack.c.l.b16 %v442
      %v795 = vunpack.c.h.b16 %v442
      %v796 = vunpack.c.l.b16 %v443
      %v797 = vunpack.c.h.b16 %v443
      %v798 = vunpack.c.l.b16 %v444
      %v799 = vunpack.c.h.b16 %v444
      %v800 = vunpack.c.l.b16 %v445
      %v801 = vunpack.c.h.b16 %v445
      %v802 = vunpack.c.l.b16 %v446
      %v803 = vunpack.c.h.b16 %v446
      %v804 = vunpack.c.l.b16 %v447
      %v805 = vunpack.c.h.b16 %v447
      %v806 = vunpack.c.l.b16 %v448
      %v807 = vunpack.c.h.b16 %v448
      %v808 = vunpack.c.l.b16 %v449
      %v809 = vunpack.c.h.b16 %v449
      %v810 = vunpack.c.l.b16 %v450
      %v811 = vunpack.c.h.b16 %v450
      %v812 = vunpack.c.l.b16 %v451
      %v813 = vunpack.c.h.b16 %v451
      %v814 = vunpack.c.l.b16 %v452
      %v815 = vunpack.c.h.b16 %v452
      %v816 = vunpack.c.l.b16 %v453
      %v817 = vunpack.c.h.b16 %v453
      %v818 = vunpack.c.l.b16 %v454
      %v819 = vunpack.c.h.b16 %v454
      %v820 = vunpack.c.l.b16 %v455
      %v821 = vunpack.c.h.b16 %v455
      %v822 = vunpack.c.l.b16 %v456
      %v823 = vunpack.c.h.b16 %v456
      %v824 = vunpack.c.l.b16 %v457
      %v825 = vunpack.c.h.b16 %v457
      %v826 = vunpack.c.l.b16 %v458
      %v827 = vunpack.c.h.b16 %v458
      %v828 = vunpack.c.l.b16 %v459
      %v829 = vunpack.c.h.b16 %v459
      %v830 = vunpack.c.l.b16 %v460
      %v831 = vunpack.c.h.b16 %v460
      %v832 = vunpack.c.l.b16 %v461
      %v833 = vunpack.c.h.b16 %v461
      %v834 = vunpack.c.l.b16 %v462
      %v835 = vunpack.c.h.b16 %v462
      %v836 = vunpack.c.l.b16 %v463
      %v837 = vunpack.c.h.b16 %v463
      %v838 = vunpack.c.l.b16 %v464
      %v839 = vunpack.c.h.b16 %v464
      %v840 = vunpack.c.l.b16 %v465
      %v841 = vunpack.c.h.b16 %v465
      %v842 = vunpack.c.l.b16 %v466
      %v843 = vunpack.c.h.b16 %v466
      %v844 = vunpack.c.l.b16 %v467
      %v845 = vunpack.c.h.b16 %v467
      %v846 = vunpack.c.l.b16 %v468
      %v847 = vunpack.c.h.b16 %v468
      %v848 = vunpack.c.l.b16 %v469
      %v849 = vunpack.c.h.b16 %v469
      %v850 = vunpack.c.l.b16 %v470
      %v851 = vunpack.c.h.b16 %v470
      %v852 = vunpack.c.l.b16 %v471
      %v853 = vunpack.c.h.b16 %v471
      %v854 = vunpack.c.l.b16 %v472
      %v855 = vunpack.c.h.b16 %v472
      %v856 = vunpack.c.l.b16 %v473
      %v857 = vunpack.c.h.b16 %v473
      %v858 = vunpack.c.l.b16 %v474
      %v859 = vunpack.c.h.b16 %v474
      %v860 = vunpack.c.l.b16 %v475
      %v861 = vunpack.c.h.b16 %v475
      %v862 = vunpack.c.l.b16 %v476
      %v863 = vunpack.c.h.b16 %v476
      %v864 = vunpack.c.l.b16 %v477
      %v865 = vunpack.c.h.b16 %v477
      %v866 = vunpack.c.l.b16 %v478
      %v867 = vunpack.c.h.b16 %v478
      %v868 = vunpack.c.l.b16 %v479
      %v869 = vunpack.c.h.b16 %v479
      %v870 = vunpack.c.l.b16 %v480
      %v871 = vunpack.c.h.b16 %v480
      %v872 = vunpack.c.l.b16 %v481
      %v873 = vunpack.c.h.b16 %v481
      %v874 = vunpack.c.l.b16 %v482
      %v875 = vunpack.c.h.b16 %v482
      %v876 = vunpack.c.l.b16 %v483
      %v877 = vunpack.c.h.b16 %v483
      %v878 = vunpack.c.l.b16 %v484
      %v879 = vunpack.c.h.b16 %v484
      %v880 = vunpack.c.l.b16 %v485
      %v881 = vunpack.c.h.b16 %v485
      %v882 = vunpack.c.l.b16 %v486
      %v883 = vunpack.c.h.b16 %v486
      %v884 = vunpack.c.l.b16 %v487
      %v885 = vunpack.c.h.b16 %v487
      %v886 = vunpack.c.l.b16 %v488
      %v887 = vunpack.c.h.b16 %v488
      %v888 = vunpack.c.l.b16 %v489
      %v889 = vunpack.c.h.b16 %v489
      %v890 = vunpack.c.l.b16 %v490
      %v891 = vunpack.c.h.b16 %v490
      %v892 = vunpack.c.l.b16 %v491
      %v893 = vunpack.c.h.b16 %v491
      %v894 = vunpack.c.l.b16 %v492
      %v895 = vunpack.c.h.b16 %v492
      %v896 = vunpack.c.l.b16 %v493
      %v897 = vunpack.c.h.b16 %v493
      %v898 = vunpack.c.l.b16 %v494
      %v899 = vunpack.c.h.b16 %v494
      %v900 = vunpack.c.l.b16 %v495
      %v901 = vunpack.c.h.b16 %v495
      %v902 = vunpack.c.l.b16 %v496
      %v903 = vunpack.c.h.b16 %v496
      %v904 = vunpack.c.l.b16 %v497
      %v905 = vunpack.c.h.b16 %v497
      %v906 = vunpack.c.l.b16 %v498
      %v907 = vunpack.c.h.b16 %v498
      %v908 = vunpack.c.l.b16 %v499
      %v909 = vunpack.c.h.b16 %v499
      %v910 = vunpack.c.l.b16 %v500
      %v911 = vunpack.c.h.b16 %v500
      %v912 = vunpack.c.l.b16 %v501
      %v913 = vunpack.c.h.b16 %v501
      %v914 = vunpack.c.l.b16 %v502
      %v915 = vunpack.c.h.b16 %v502
      %v916 = vunpack.c.l.b16 %v503
      %v917 = vunpack.c.h.b16 %v503
      %v918 = vunpack.c.l.b16 %v504
      %v919 = vunpack.c.h.b16 %v504
      %v920 = vunpack.c.l.b16 %v505
      %v921 = vunpack.c.h.b16 %v505
      %v922 = vunpack.c.l.b16 %v506
      %v923 = vunpack.c.h.b16 %v506
      %v924 = vunpack.c.l.b16 %v507
      %v925 = vunpack.c.h.b16 %v507
      %v926 = vunpack.c.l.b16 %v508
      %v927 = vunpack.c.h.b16 %v508
      %v928 = vunpack.c.l.b16 %v509
      %v929 = vunpack.c.h.b16 %v509
      %v930 = vunpack.c.l.b16 %v510
      %v931 = vunpack.c.h.b16 %v510
      %v932 = vunpack.c.l.b16 %v511
      %v933 = vunpack.c.h.b16 %v511
      %v934 = vunpack.c.l.b16 %v512
      %v935 = vunpack.c.h.b16 %v512
      %v936 = vunpack.c.l.b16 %v513
      %v937 = vunpack.c.h.b16 %v513
      %v938 = vunpack.c.l.b16 %v514
      %v939 = vunpack.c.h.b16 %v514
      %v940 = vunpack.c.l.b16 %v515
      %v941 = vunpack.c.h.b16 %v515
      %v942 = vunpack.c.l.b16 %v516
      %v943 = vunpack.c.h.b16 %v516
      %v944 = vunpack.c.l.b16 %v517
      %v945 = vunpack.c.h.b16 %v517
      %v946 = vunpack.c.l.b16 %v518
      %v947 = vunpack.c.h.b16 %v518
      %v948 = vunpack.c.l.b16 %v519
      %v949 = vunpack.c.h.b16 %v519
      %v950 = vunpack.c.l.b16 %v520
      %v951 = vunpack.c.h.b16 %v520
      %v952 = vunpack.c.l.b16 %v521
      %v953 = vunpack.c.h.b16 %v521
      %v954 = vunpack.c.l.b16 %v522
      %v955 = vunpack.c.h.b16 %v522
      %v956 = vunpack.c.l.b16 %v523
      %v957 = vunpack.c.h.b16 %v523
      %v958 = vunpack.c.l.b16 %v524
      %v959 = vunpack.c.h.b16 %v524
      %v960 = vunpack.c.l.b16 %v525
      %v961 = vunpack.c.h.b16 %v525
      %v962 = vunpack.c.l.b16 %v526
      %v963 = vunpack.c.h.b16 %v526
      %v964 = vunpack.c.l.b16 %v527
      %v965 = vunpack.c.h.b16 %v527
      %v966 = vunpack.c.l.b16 %v528
      %v967 = vunpack.c.h.b16 %v528
      %v968 = vunpack.c.l.b16 %v529
      %v969 = vunpack.c.h.b16 %v529
      %v970 = vunpack.c.l.b16 %v530
      %v971 = vunpack.c.h.b16 %v530
      %v972 = vunpack.c.l.b16 %v531
      %v973 = vunpack.c.h.b16 %v531
      %v974 = vunpack.c.l.b16 %v532
      %v975 = vunpack.c.h.b16 %v532
      %v976 = vunpack.c.l.b16 %v533
      %v977 = vunpack.c.h.b16 %v533
      %v978 = vunpack.c.l.b16 %v534
      %v979 = vunpack.c.h.b16 %v534
      %v980 = vunpack.c.l.b16 %v535
      %v981 = vunpack.c.h.b16 %v535
      %v982 = vunpack.c.l.b16 %v536
      %v983 = vunpack.c.h.b16 %v536
      %v984 = vunpack.c.l.b16 %v537
      %v985 = vunpack.c.h.b16 %v537
      %v986 = vunpack.c.l.b16 %v538
      %v987 = vunpack.c.h.b16 %v538
      %v988 = vunpack.c.l.b16 %v539
      %v989 = vunpack.c.h.b16 %v539
      %v990 = vunpack.c.l.b16 %v540
      %v991 = vunpack.c.h.b16 %v540
      %v992 = vunpack.c.l.b16 %v541
      %v993 = vunpack.c.h.b16 %v541
      %v994 = vunpack.c.l.b16 %v542
      %v995 = vunpack.c.h.b16 %v542
      %v996 = vunpack.c.l.b16 %v543
      %v997 = vunpack.c.h.b16 %v543
      %v998 = vunpack.c.l.b16 %v544
      %v999 = vunpack.c.h.b16 %v544
      %v1000 = vunpack.c.l.b16 %v545
      %v1001 = vunpack.c.h.b16 %v545
      %v1002 = vunpack.c.l.b16 %v546
      %v1003 = vunpack.c.h.b16 %v546
      %v1004 = vunpack.c.l.b16 %v547
      %v1005 = vunpack.c.h.b16 %v547
      %v1006 = vunpack.c.l.b16 %v548
      %v1007 = vunpack.c.h.b16 %v548
      %v1008 = vunpack.c.l.b16 %v549
      %v1009 = vunpack.c.h.b16 %v549
      %v1010 = vunpack.c.l.b16 %v550
      %v1011 = vunpack.c.h.b16 %v550
      %v1012 = vunpack.c.l.b16 %v551
      %v1013 = vunpack.c.h.b16 %v551
      %v1014 = vunpack.c.l.b16 %v552
      %v1015 = vunpack.c.h.b16 %v552
      %v1016 = vunpack.c.l.b16 %v553
      %v1017 = vunpack.c.h.b16 %v553
      %v1018 = vunpack.c.l.b16 %v554
      %v1019 = vunpack.c.h.b16 %v554
      %v1020 = vunpack.c.l.b16 %v555
      %v1021 = vunpack.c.h.b16 %v555
      %v1022 = vunpack.c.l.b16 %v556
      %v1023 = vunpack.c.h.b16 %v556
      %v1024 = vunpack.c.l.b16 %v557
      %v1025 = vunpack.c.h.b16 %v557
      %v1026 = vunpack.c.l.b16 %v558
      %v1027 = vunpack.c.h.b16 %v558
      %v1028 = vunpack.c.l.b16 %v559
      %v1029 = vunpack.c.h.b16 %v559
      %v1030 = vunpack.c.l.b16 %v560
      %v1031 = vunpack.c.h.b16 %v560
      %v1032 = vunpack.c.l.b16 %v561
      %v1033 = vunpack.c.h.b16 %v561
      %v1034 = vunpack.c.l.b16 %v562
      %v1035 = vunpack.c.h.b16 %v562
      %v1036 = vunpack.c.l.b16 %v563
      %v1037 = vunpack.c.h.b16 %v563
      %v1038 = vunpack.c.l.b16 %v564
      %v1039 = vunpack.c.h.b16 %v564
      %v1040 = vunpack.c.l.b16 %v565
      %v1041 = vunpack.c.h.b16 %v565
      %v1042 = vunpack.c.l.b16 %v566
      %v1043 = vunpack.c.h.b16 %v566
      %v1044 = vunpack.c.l.b16 %v567
      %v1045 = vunpack.c.h.b16 %v567
      %v1046 = vunpack.c.l.b16 %v568
      %v1047 = vunpack.c.h.b16 %v568
      %v1048 = vunpack.c.l.b16 %v569
      %v1049 = vunpack.c.h.b16 %v569
      %v1050 = vunpack.c.l.b16 %v570
      %v1051 = vunpack.c.h.b16 %v570
      %v1052 = vunpack.c.l.b16 %v571
      %v1053 = vunpack.c.h.b16 %v571
      %v1054 = vunpack.c.l.b16 %v572
      %v1055 = vunpack.c.h.b16 %v572
      %v1056 = vunpack.c.l.b16 %v573
      %v1057 = vunpack.c.h.b16 %v573
      %v1058 = vunpack.c.l.b16 %v574
      %v1059 = vunpack.c.h.b16 %v574
      %v1060 = vunpack.c.l.b16 %v575
      %v1061 = vunpack.c.h.b16 %v575
      %v1062 = vpack.c.b16 %v776, %v774
      %v1063 = vpack.c.b16 %v777, %v775
      %v1064 = vpack.c.b16 %v780, %v778
      %v1065 = vpack.c.b16 %v781, %v779
      %v1066 = vpack.c.b16 %v784, %v782
      %v1067 = vpack.c.b16 %v785, %v783
      %v1068 = vpack.c.b16 %v788, %v786
      %v1069 = vpack.c.b16 %v789, %v787
      %v1070 = vpack.c.b16 %v792, %v790
      %v1071 = vpack.c.b16 %v793, %v791
      %v1072 = vpack.c.b16 %v796, %v794
      %v1073 = vpack.c.b16 %v797, %v795
      %v1074 = vpack.c.b16 %v800, %v798
      %v1075 = vpack.c.b16 %v801, %v799
      %v1076 = vpack.c.b16 %v804, %v802
      %v1077 = vpack.c.b16 %v805, %v803
      %v1078 = vpack.c.b16 %v808, %v806
      %v1079 = vpack.c.b16 %v809, %v807
      %v1080 = vpack.c.b16 %v812, %v810
      %v1081 = vpack.c.b16 %v813, %v811
      %v1082 = vpack.c.b16 %v816, %v814
      %v1083 = vpack.c.b16 %v817, %v815
      %v1084 = vpack.c.b16 %v820, %v818
      %v1085 = vpack.c.b16 %v821, %v819
      %v1086 = vpack.c.b16 %v824, %v822
      %v1087 = vpack.c.b16 %v825, %v823
      %v1088 = vpack.c.b16 %v828, %v826
      %v1089 = vpack.c.b16 %v829, %v827
      %v1090 = vpack.c.b16 %v832, %v830
      %v1091 = vpack.c.b16 %v833, %v831
      %v1092 = vpack.c.b16 %v836, %v834
      %v1093 = vpack.c.b16 %v837, %v835
      %v1094 = vpack.c.b16 %v840, %v838
      %v1095 = vpack.c.b16 %v841, %v839
      %v1096 = vpack.c.b16 %v844, %v842
      %v1097 = vpack.c.b16 %v845, %v843
      %v1098 = vpack.c.b16 %v848, %v846
      %v1099 = vpack.c.b16 %v849, %v847
      %v1100 = vpack.c.b16 %v852, %v850
      %v1101 = vpack.c.b16 %v853, %v851
      %v1102 = vpack.c.b16 %v856, %v854
      %v1103 = vpack.c.b16 %v857, %v855
      %v1104 = vpack.c.b16 %v860, %v858
      %v1105 = vpack.c.b16 %v861, %v859
      %v1106 = vpack.c.b16 %v864, %v862
      %v1107 = vpack.c.b16 %v865, %v863
      %v1108 = vpack.c.b16 %v868, %v866
      %v1109 = vpack.c.b16 %v869, %v867
      %v1110 = vpack.c.b16 %v872, %v870
      %v1111 = vpack.c.b16 %v873, %v871
      %v1112 = vpack.c.b16 %v876, %v874
      %v1113 = vpack.c.b16 %v877, %v875
      %v1114 = vpack.c.b16 %v880, %v878
      %v1115 = vpack.c.b16 %v881, %v879
      %v1116 = vpack.c.b16 %v884, %v882
      %v1117 = vpack.c.b16 %v885, %v883
      %v1118 = vpack.c.b16 %v888, %v886
      %v1119 = vpack.c.b16 %v889, %v887
      %v1120 = vpack.c.b16 %v892, %v890
      %v1121 = vpack.c.b16 %v893, %v891
      %v1122 = vpack.c.b16 %v896, %v894
      %v1123 = vpack.c.b16 %v897, %v895
      %v1124 = vpack.c.b16 %v900, %v898
      %v1125 = vpack.c.b16 %v901, %v899
      %v1126 = vpack.c.b16 %v904, %v902
      %v1127 = vpack.c.b16 %v905, %v903
      %v1128 = vpack.c.b16 %v908, %v906
      %v1129 = vpack.c.b16 %v909, %v907
      %v1130 = vpack.c.b16 %v912, %v910
      %v1131 = vpack.c.b16 %v913, %v911
      %v1132 = vpack.c.b16 %v916, %v914
      %v1133 = vpack.c.b16 %v917, %v915
      %v1134 = vpack.c.b16 %v920, %v918
      %v1135 = vpack.c.b16 %v921, %v919
      %v1136 = vpack.c.b16 %v924, %v922
      %v1137 = vpack.c.b16 %v925, %v923
      %v1138 = vpack.c.b16 %v928, %v926
      %v1139 = vpack.c.b16 %v929, %v927
      %v1140 = vpack.c.b16 %v932, %v930
      %v1141 = vpack.c.b16 %v933, %v931
      %v1142 = vpack.c.b16 %v936, %v934
      %v1143 = vpack.c.b16 %v937, %v935
      %v1144 = vpack.c.b16 %v940, %v938
      %v1145 = vpack.c.b16 %v941, %v939
      %v1146 = vpack.c.b16 %v944, %v942
      %v1147 = vpack.c.b16 %v945, %v943
      %v1148 = vpack.c.b16 %v948, %v946
      %v1149 = vpack.c.b16 %v949, %v947
      %v1150 = vpack.c.b16 %v952, %v950
      %v1151 = vpack.c.b16 %v953, %v951
      %v1152 = vpack.c.b16 %v956, %v954
      %v1153 = vpack.c.b16 %v957, %v955
      %v1154 = vpack.c.b16 %v960, %v958
      %v1155 = vpack.c.b16 %v961, %v959
      %v1156 = vpack.c.b16 %v964, %v962
      %v1157 = vpack.c.b16 %v965, %v963
      %v1158 = vpack.c.b16 %v968, %v966
      %v1159 = vpack.c.b16 %v969, %v967
      %v1160 = vpack.c.b16 %v972, %v970
      %v1161 = vpack.c.b16 %v973, %v971
      %v1162 = vpack.c.b16 %v976, %v974
      %v1163 = vpack.c.b16 %v977, %v975
      %v1164 = vpack.c.b16 %v980, %v978
      %v1165 = vpack.c.b16 %v981, %v979
      %v1166 = vpack.c.b16 %v984, %v982
      %v1167 = vpack.c.b16 %v985, %v983
      %v1168 = vpack.c.b16 %v988, %v986
      %v1169 = vpack.c.b16 %v989, %v987
      %v1170 = vpack.c.b16 %v992, %v990
      %v1171 = vpack.c.b16 %v993, %v991
      %v1172 = vpack.c.b16 %v996, %v994
      %v1173 = vpack.c.b16 %v997, %v995
      %v1174 = vpack.c.b16 %v1000, %v998
      %v1175 = vpack.c.b16 %v1001, %v999
      %v1176 = vpack.c.b16 %v1004, %v1002
      %v1177 = vpack.c.b16 %v1005, %v1003
      %v1178 = vpack.c.b16 %v1008, %v1006
      %v1179 = vpack.c.b16 %v1009, %v1007
      %v1180 = vpack.c.b16 %v1012, %v1010
      %v1181 = vpack.c.b16 %v1013, %v1011
      %v1182 = vpack.c.b16 %v1016, %v1014
      %v1183 = vpack.c.b16 %v1017, %v1015
      %v1184 = vpack.c.b16 %v1020, %v1018
      %v1185 = vpack.c.b16 %v1021, %v1019
      %v1186 = vpack.c.b16 %v1024, %v1022
      %v1187 = vpack.c.b16 %v1025, %v1023
      %v1188 = vpack.c.b16 %v1028, %v1026
      %v1189 = vpack.c.b16 %v1029, %v1027
      %v1190 = vpack.c.b16 %v1032, %v1030
      %v1191 = vpack.c.b16 %v1033, %v1031
      %v1192 = vpack.c.b16 %v1036, %v1034
      %v1193 = vpack.c.b16 %v1037, %v1035
      %v1194 = vpack.c.b16 %v1040, %v1038
      %v1195 = vpack.c.b16 %v1041, %v1039
      %v1196 = vpack.c.b16 %v1044, %v1042
      %v1197 = vpack.c.b16 %v1045, %v1043
      %v1198 = vpack.c.b16 %v1048, %v1046
      %v1199 = vpack.c.b16 %v1049, %v1047
      %v1200 = vpack.c.b16 %v1052, %v1050
      %v1201 = vpack.c.b16 %v1053, %v1051
      %v1202 = vpack.c.b16 %v1056, %v1054
      %v1203 = vpack.c.b16 %v1057, %v1055
      %v1204 = vpack.c.b16 %v1060, %v1058
      %v1205 = vpack.c.b16 %v1061, %v1059
      %1350 = vmatprep.subr.bf16.mxu0 %v1063
      %1351 = vmatpush1.bf16.msra.mxu0 %v1062
      %1352 = vmatprep.subr.bf16.mxu0 %v1065
      %1353 = vmatpush1.bf16.msra.mxu0 %v1064
      %1354 = vmatprep.subr.bf16.mxu0 %v1067
      %1355 = vmatpush1.bf16.msra.mxu0 %v1066
      %1356 = vmatprep.subr.bf16.mxu0 %v1069
      %1357 = vmatpush1.bf16.msra.mxu0 %v1068
      %1358 = vmatprep.subr.bf16.mxu0 %v1071
      %1359 = vmatpush1.bf16.msra.mxu0 %v1070
      %1360 = vmatprep.subr.bf16.mxu0 %v1073
      %1361 = vmatpush1.bf16.msra.mxu0 %v1072
      %1362 = vmatprep.subr.bf16.mxu0 %v1075
      %1363 = vmatpush1.bf16.msra.mxu0 %v1074
      %1364 = vmatprep.subr.bf16.mxu0 %v1077
      %1365 = vmatpush1.bf16.msra.mxu0 %v1076
      %1366 = vmatprep.subr.bf16.mxu0 %v1079
      %1367 = vmatpush1.bf16.msra.mxu0 %v1078
      %1368 = vmatprep.subr.bf16.mxu0 %v1081
      %1369 = vmatpush1.bf16.msra.mxu0 %v1080
      %1370 = vmatprep.subr.bf16.mxu0 %v1083
      %1371 = vmatpush1.bf16.msra.mxu0 %v1082
      %1372 = vmatprep.subr.bf16.mxu0 %v1085
      %1373 = vmatpush1.bf16.msra.mxu0 %v1084
      %1374 = vmatprep.subr.bf16.mxu0 %v1087
      %1375 = vmatpush1.bf16.msra.mxu0 %v1086
      %1376 = vmatprep.subr.bf16.mxu0 %v1089
      %1377 = vmatpush1.bf16.msra.mxu0 %v1088
      %1378 = vmatprep.subr.bf16.mxu0 %v1091
      %1379 = vmatpush1.bf16.msra.mxu0 %v1090
      %1380 = vmatprep.subr.bf16.mxu0 %v1093
      %1381 = vmatpush1.bf16.msra.mxu0 %v1092
      %1382 = vmatprep.mubr.bf16.mxu0 %v577
      %1383 = vmatmul.mubr.bf16.gmra.mrb[0].mxu0 %v576
      %v1384 = vpop.f32.mrb[0].mxu0
      %v1385 = vadd.f32 0.0, %v1384
      %v1386 = vpop.f32.mrb[0].mxu0
      %v1387 = vadd.f32 0.0, %v1386
      %v1388 = vpop.f32.mrb[0].mxu0
      %v1389 = vadd.f32 0.0, %v1388
      %v1390 = vpop.f32.mrb[0].mxu0
      %v1391 = vadd.f32 0.0, %v1390
      %1392 = vmatprep.mubr.bf16.mxu0 %v583
      %1393 = vmatmul.mubr.bf16.gmra.mrb[0].mxu0 %v582
      %v1394 = vpop.f32.mrb[0].mxu0
      %v1395 = vadd.f32 0.0, %v1394
      %v1396 = vpop.f32.mrb[0].mxu0
      %v1397 = vadd.f32 0.0, %v1396
      %v1398 = vpop.f32.mrb[0].mxu0
      %v1399 = vadd.f32 0.0, %v1398
      %v1400 = vpop.f32.mrb[0].mxu0
      %v1401 = vadd.f32 0.0, %v1400
      %1402 = vmatprep.mubr.bf16.mxu0 %v589
      %1403 = vmatmul.mubr.bf16.gmra.mrb[0].mxu0 %v588
      %v1404 = vpop.f32.mrb[0].mxu0
      %v1405 = vadd.f32 0.0, %v1404
      %v1406 = vpop.f32.mrb[0].mxu0
      %v1407 = vadd.f32 0.0, %v1406
      %v1408 = vpop.f32.mrb[0].mxu0
      %v1409 = vadd.f32 0.0, %v1408
      %v1410 = vpop.f32.mrb[0].mxu0
      %v1411 = vadd.f32 0.0, %v1410
      %1412 = vmatprep.mubr.bf16.mxu0 %v595
      %1413 = vmatmul.mubr.bf16.gmra.mrb[0].mxu0 %v594
      %v1414 = vpop.f32.mrb[0].mxu0
      %v1415 = vadd.f32 0.0, %v1414
      %v1416 = vpop.f32.mrb[0].mxu0
      %v1417 = vadd.f32 0.0, %v1416
      %v1418 = vpop.f32.mrb[0].mxu0
      %v1419 = vadd.f32 0.0, %v1418
      %v1420 = vpop.f32.mrb[0].mxu0
      %v1421 = vadd.f32 0.0, %v1420
      %1422 = vdwg.mxu0
      %1423 = vmatprep.subr.bf16.mxu0 %v1095
      %1424 = vmatpush1.bf16.msra.mxu0 %v1094
      %1425 = vmatprep.subr.bf16.mxu0 %v1097
      %1426 = vmatpush1.bf16.msra.mxu0 %v1096
      %1427 = vmatprep.subr.bf16.mxu0 %v1099
      %1428 = vmatpush1.bf16.msra.mxu0 %v1098
      %1429 = vmatprep.subr.bf16.mxu0 %v1101
      %1430 = vmatpush1.bf16.msra.mxu0 %v1100
      %1431 = vmatprep.subr.bf16.mxu0 %v1103
      %1432 = vmatpush1.bf16.msra.mxu0 %v1102
      %1433 = vmatprep.subr.bf16.mxu0 %v1105
      %1434 = vmatpush1.bf16.msra.mxu0 %v1104
      %1435 = vmatprep.subr.bf16.mxu0 %v1107
      %1436 = vmatpush1.bf16.msra.mxu0 %v1106
      %1437 = vmatprep.subr.bf16.mxu0 %v1109
      %1438 = vmatpush1.bf16.msra.mxu0 %v1108
      %1439 = vmatprep.subr.bf16.mxu0 %v1111
      %1440 = vmatpush1.bf16.msra.mxu0 %v1110
      %1441 = vmatprep.subr.bf16.mxu0 %v1113
      %1442 = vmatpush1.bf16.msra.mxu0 %v1112
      %1443 = vmatprep.subr.bf16.mxu0 %v1115
      %1444 = vmatpush1.bf16.msra.mxu0 %v1114
      %1445 = vmatprep.subr.bf16.mxu0 %v1117
      %1446 = vmatpush1.bf16.msra.mxu0 %v1116
      %1447 = vmatprep.subr.bf16.mxu0 %v1119
      %1448 = vmatpush1.bf16.msra.mxu0 %v1118
      %1449 = vmatprep.subr.bf16.mxu0 %v1121
      %1450 = vmatpush1.bf16.msra.mxu0 %v1120
      %1451 = vmatprep.subr.bf16.mxu0 %v1123
      %1452 = vmatpush1.bf16.msra.mxu0 %v1122
      %1453 = vmatprep.subr.bf16.mxu0 %v1125
      %1454 = vmatpush1.bf16.msra.mxu0 %v1124
      %1455 = vmatprep.mubr.bf16.mxu0 %v579
      %1456 = vmatmul.mubr.bf16.gmra.mrb[0].mxu0 %v578
      %v1457 = vpop.f32.mrb[0].mxu0
      %v1458 = vadd.f32 %v1385, %v1457
      %v1459 = vpop.f32.mrb[0].mxu0
      %v1460 = vadd.f32 %v1387, %v1459
      %v1461 = vpop.f32.mrb[0].mxu0
      %v1462 = vadd.f32 %v1389, %v1461
      %v1463 = vpop.f32.mrb[0].mxu0
      %v1464 = vadd.f32 %v1391, %v1463
      %1465 = vmatprep.mubr.bf16.mxu0 %v585
      %1466 = vmatmul.mubr.bf16.gmra.mrb[0].mxu0 %v584
      %v1467 = vpop.f32.mrb[0].mxu0
      %v1468 = vadd.f32 %v1395, %v1467
      %v1469 = vpop.f32.mrb[0].mxu0
      %v1470 = vadd.f32 %v1397, %v1469
      %v1471 = vpop.f32.mrb[0].mxu0
      %v1472 = vadd.f32 %v1399, %v1471
      %v1473 = vpop.f32.mrb[0].mxu0
      %v1474 = vadd.f32 %v1401, %v1473
      %1475 = vmatprep.mubr.bf16.mxu0 %v591
      %1476 = vmatmul.mubr.bf16.gmra.mrb[0].mxu0 %v590
      %v1477 = vpop.f32.mrb[0].mxu0
      %v1478 = vadd.f32 %v1405, %v1477
      %v1479 = vpop.f32.mrb[0].mxu0
      %v1480 = vadd.f32 %v1407, %v1479
      %v1481 = vpop.f32.mrb[0].mxu0
      %v1482 = vadd.f32 %v1409, %v1481
      %v1483 = vpop.f32.mrb[0].mxu0
      %v1484 = vadd.f32 %v1411, %v1483
      %1485 = vmatprep.mubr.bf16.mxu0 %v597
      %1486 = vmatmul.mubr.bf16.gmra.mrb[0].mxu0 %v596
      %v1487 = vpop.f32.mrb[0].mxu0
      %v1488 = vadd.f32 %v1415, %v1487
      %v1489 = vpop.f32.mrb[0].mxu0
      %v1490 = vadd.f32 %v1417, %v1489
      %v1491 = vpop.f32.mrb[0].mxu0
      %v1492 = vadd.f32 %v1419, %v1491
      %v1493 = vpop.f32.mrb[0].mxu0
      %v1494 = vadd.f32 %v1421, %v1493
      %1495 = vdwg.mxu0
      %1496 = vmatprep.subr.bf16.mxu0 %v1127
      %1497 = vmatpush1.bf16.msra.mxu0 %v1126
      %1498 = vmatprep.subr.bf16.mxu0 %v1129
      %1499 = vmatpush1.bf16.msra.mxu0 %v1128
      %1500 = vmatprep.subr.bf16.mxu0 %v1131
      %1501 = vmatpush1.bf16.msra.mxu0 %v1130
      %1502 = vmatprep.subr.bf16.mxu0 %v1133
      %1503 = vmatpush1.bf16.msra.mxu0 %v1132
      %1504 = vmatprep.subr.bf16.mxu0 %v1135
      %1505 = vmatpush1.bf16.msra.mxu0 %v1134
      %1506 = vmatprep.subr.bf16.mxu0 %v1137
      %1507 = vmatpush1.bf16.msra.mxu0 %v1136
      %1508 = vmatprep.subr.bf16.mxu0 %v1139
      %1509 = vmatpush1.bf16.msra.mxu0 %v1138
      %1510 = vmatprep.subr.bf16.mxu0 %v1141
      %1511 = vmatpush1.bf16.msra.mxu0 %v1140
      %1512 = vmatprep.subr.bf16.mxu0 %v1143
      %1513 = vmatpush1.bf16.msra.mxu0 %v1142
      %1514 = vmatprep.subr.bf16.mxu0 %v1145
      %1515 = vmatpush1.bf16.msra.mxu0 %v1144
      %1516 = vmatprep.subr.bf16.mxu0 %v1147
      %1517 = vmatpush1.bf16.msra.mxu0 %v1146
      %1518 = vmatprep.subr.bf16.mxu0 %v1149
      %1519 = vmatpush1.bf16.msra.mxu0 %v1148
      %1520 = vmatprep.subr.bf16.mxu0 %v1151
      %1521 = vmatpush1.bf16.msra.mxu0 %v1150
      %1522 = vmatprep.subr.bf16.mxu0 %v1153
      %1523 = vmatpush1.bf16.msra.mxu0 %v1152
      %1524 = vmatprep.subr.bf16.mxu0 %v1155
      %1525 = vmatpush1.bf16.msra.mxu0 %v1154
      %1526 = vmatprep.subr.bf16.mxu0 %v1157
      %1527 = vmatpush1.bf16.msra.mxu0 %v1156
      %1528 = vmatprep.mubr.bf16.mxu0 %v581
      %1529 = vmatmul.mubr.bf16.gmra.mrb[0].mxu0 %v580
      %v1530 = vpop.f32.mrb[0].mxu0
      %v1531 = vadd.f32 %v1458, %v1530
      %v1532 = vpop.f32.mrb[0].mxu0
      %v1533 = vadd.f32 %v1460, %v1532
      %v1534 = vpop.f32.mrb[0].mxu0
      %v1535 = vadd.f32 %v1462, %v1534
      %v1536 = vpop.f32.mrb[0].mxu0
      %v1537 = vadd.f32 %v1464, %v1536
      %1538 = vmatprep.mubr.bf16.mxu0 %v587
      %1539 = vmatmul.mubr.bf16.gmra.mrb[0].mxu0 %v586
      %v1540 = vpop.f32.mrb[0].mxu0
      %v1541 = vadd.f32 %v1468, %v1540
      %v1542 = vpop.f32.mrb[0].mxu0
      %v1543 = vadd.f32 %v1470, %v1542
      %v1544 = vpop.f32.mrb[0].mxu0
      %v1545 = vadd.f32 %v1472, %v1544
      %v1546 = vpop.f32.mrb[0].mxu0
      %v1547 = vadd.f32 %v1474, %v1546
      %1548 = vmatprep.mubr.bf16.mxu0 %v593
      %1549 = vmatmul.mubr.bf16.gmra.mrb[0].mxu0 %v592
      %v1550 = vpop.f32.mrb[0].mxu0
      %v1551 = vadd.f32 %v1478, %v1550
      %v1552 = vpop.f32.mrb[0].mxu0
      %v1553 = vadd.f32 %v1480, %v1552
      %v1554 = vpop.f32.mrb[0].mxu0
      %v1555 = vadd.f32 %v1482, %v1554
      %v1556 = vpop.f32.mrb[0].mxu0
      %v1557 = vadd.f32 %v1484, %v1556
      %1558 = vmatprep.mubr.bf16.mxu0 %v599
      %1559 = vmatmul.mubr.bf16.gmra.mrb[0].mxu0 %v598
      %v1560 = vpop.f32.mrb[0].mxu0
      %v1561 = vadd.f32 %v1488, %v1560
      %v1562 = vpop.f32.mrb[0].mxu0
      %v1563 = vadd.f32 %v1490, %v1562
      %v1564 = vpop.f32.mrb[0].mxu0
      %v1565 = vadd.f32 %v1492, %v1564
      %v1566 = vpop.f32.mrb[0].mxu0
      %v1567 = vadd.f32 %v1494, %v1566
      %1568 = vdwg.mxu0
      %1569 = vmatprep.subr.bf16.mxu0 %v1159
      %1570 = vmatpush1.bf16.msra.mxu0 %v1158
      %1571 = vmatprep.subr.bf16.mxu0 %v1161
      %1572 = vmatpush1.bf16.msra.mxu0 %v1160
      %1573 = vmatprep.subr.bf16.mxu0 %v1163
      %1574 = vmatpush1.bf16.msra.mxu0 %v1162
      %1575 = vmatprep.subr.bf16.mxu0 %v1165
      %1576 = vmatpush1.bf16.msra.mxu0 %v1164
      %1577 = vmatprep.subr.bf16.mxu0 %v1167
      %1578 = vmatpush1.bf16.msra.mxu0 %v1166
      %1579 = vmatprep.subr.bf16.mxu0 %v1169
      %1580 = vmatpush1.bf16.msra.mxu0 %v1168
      %1581 = vmatprep.subr.bf16.mxu0 %v1171
      %1582 = vmatpush1.bf16.msra.mxu0 %v1170
      %1583 = vmatprep.subr.bf16.mxu0 %v1173
      %1584 = vmatpush1.bf16.msra.mxu0 %v1172
      %1585 = vmatprep.subr.bf16.mxu0 %v1175
      %1586 = vmatpush1.bf16.msra.mxu0 %v1174
      %1587 = vmatprep.subr.bf16.mxu0 %v1177
      %1588 = vmatpush1.bf16.msra.mxu0 %v1176
      %1589 = vmatprep.subr.bf16.mxu0 %v1179
      %1590 = vmatpush1.bf16.msra.mxu0 %v1178
      %1591 = vmatprep.subr.bf16.mxu0 %v1181
      %1592 = vmatpush1.bf16.msra.mxu0 %v1180
      %1593 = vmatprep.subr.bf16.mxu0 %v1183
      %1594 = vmatpush1.bf16.msra.mxu0 %v1182
      %1595 = vmatprep.subr.bf16.mxu0 %v1185
      %1596 = vmatpush1.bf16.msra.mxu0 %v1184
      %1597 = vmatprep.subr.bf16.mxu0 %v1187
      %1598 = vmatpush1.bf16.msra.mxu0 %v1186
      %1599 = vmatprep.subr.bf16.mxu0 %v1189
      %1600 = vmatpush1.bf16.msra.mxu0 %v1188
      %1601 = vmatprep.mubr.bf16.mxu0 %v583
      %1602 = vmatmul.mubr.bf16.gmra.mrb[0].mxu0 %v582
      %v1603 = vpop.f32.mrb[0].mxu0
      %v1604 = vadd.f32 %v1531, %v1603
      %v1605 = vpop.f32.mrb[0].mxu0
      %v1606 = vadd.f32 %v1533, %v1605
      %v1607 = vpop.f32.mrb[0].mxu0
      %v1608 = vadd.f32 %v1535, %v1607
      %v1609 = vpop.f32.mrb[0].mxu0
      %v1610 = vadd.f32 %v1537, %v1609
      %1611 = vmatprep.mubr.bf16.mxu0 %v589
      %1612 = vmatmul.mubr.bf16.gmra.mrb[0].mxu0 %v588
      %v1613 = vpop.f32.mrb[0].mxu0
      %v1614 = vadd.f32 %v1541, %v1613
      %v1615 = vpop.f32.mrb[0].mxu0
      %v1616 = vadd.f32 %v1543, %v1615
      %v1617 = vpop.f32.mrb[0].mxu0
      %v1618 = vadd.f32 %v1545, %v1617
      %v1619 = vpop.f32.mrb[0].mxu0
      %v1620 = vadd.f32 %v1547, %v1619
      %1621 = vmatprep.mubr.bf16.mxu0 %v595
      %1622 = vmatmul.mubr.bf16.gmra.mrb[0].mxu0 %v594
      %v1623 = vpop.f32.mrb[0].mxu0
      %v1624 = vadd.f32 %v1551, %v1623
      %v1625 = vpop.f32.mrb[0].mxu0
      %v1626 = vadd.f32 %v1553, %v1625
      %v1627 = vpop.f32.mrb[0].mxu0
      %v1628 = vadd.f32 %v1555, %v1627
      %v1629 = vpop.f32.mrb[0].mxu0
      %v1630 = vadd.f32 %v1557, %v1629
      %1631 = vmatprep.mubr.bf16.mxu0 %v601
      %1632 = vmatmul.mubr.bf16.gmra.mrb[0].mxu0 %v600
      %v1633 = vpop.f32.mrb[0].mxu0
      %v1634 = vadd.f32 %v1561, %v1633
      %v1635 = vpop.f32.mrb[0].mxu0
      %v1636 = vadd.f32 %v1563, %v1635
      %v1637 = vpop.f32.mrb[0].mxu0
      %v1638 = vadd.f32 %v1565, %v1637
      %v1639 = vpop.f32.mrb[0].mxu0
      %v1640 = vadd.f32 %v1567, %v1639
      %1641 = vdwg.mxu0
      %1642 = vmatprep.subr.bf16.mxu0 %v1191
      %1643 = vmatpush1.bf16.msra.mxu0 %v1190
      %1644 = vmatprep.subr.bf16.mxu0 %v1193
      %1645 = vmatpush1.bf16.msra.mxu0 %v1192
      %1646 = vmatprep.subr.bf16.mxu0 %v1195
      %1647 = vmatpush1.bf16.msra.mxu0 %v1194
      %1648 = vmatprep.subr.bf16.mxu0 %v1197
      %1649 = vmatpush1.bf16.msra.mxu0 %v1196
      %1650 = vmatprep.subr.bf16.mxu0 %v1199
      %1651 = vmatpush1.bf16.msra.mxu0 %v1198
      %1652 = vmatprep.subr.bf16.mxu0 %v1201
      %1653 = vmatpush1.bf16.msra.mxu0 %v1200
      %1654 = vmatprep.subr.bf16.mxu0 %v1203
      %1655 = vmatpush1.bf16.msra.mxu0 %v1202
      %1656 = vmatprep.subr.bf16.mxu0 %v1205
      %1657 = vmatpush1.bf16.msra.mxu0 %v1204
      %1658 = vmatprep.subr.bf16.mxu0 0
      %1659 = vmatpush1.bf16.msra.mxu0 0
      %1660 = vmatprep.subr.bf16.mxu0 0
      %1661 = vmatpush1.bf16.msra.mxu0 0
      %1662 = vmatprep.subr.bf16.mxu0 0
      %1663 = vmatpush1.bf16.msra.mxu0 0
      %1664 = vmatprep.subr.bf16.mxu0 0
      %1665 = vmatpush1.bf16.msra.mxu0 0
      %1666 = vmatprep.subr.bf16.mxu0 0
      %1667 = vmatpush1.bf16.msra.mxu0 0
      %1668 = vmatprep.subr.bf16.mxu0 0
      %1669 = vmatpush1.bf16.msra.mxu0 0
      %1670 = vmatprep.subr.bf16.mxu0 0
      %1671 = vmatpush1.bf16.msra.mxu0 0
      %1672 = vmatprep.subr.bf16.mxu0 0
      %1673 = vmatpush1.bf16.msra.mxu0 0
      %1674 = vmatprep.mubr.bf16.mxu0 0
      %1675 = vmatmul.mubr.bf16.gmra.mrb[0].mxu0 %v584
      %v1676 = vpop.f32.mrb[0].mxu0
      %v1677 = vadd.f32 %v1604, %v1676
      %v1678 = vpop.f32.mrb[0].mxu0
      %v1679 = vadd.f32 %v1606, %v1678
      %v1680 = vpop.f32.mrb[0].mxu0
      %v1681 = vadd.f32 %v1608, %v1680
      %v1682 = vpop.f32.mrb[0].mxu0
      %v1683 = vadd.f32 %v1610, %v1682
      %1684 = vmatprep.mubr.bf16.mxu0 0
      %1685 = vmatmul.mubr.bf16.gmra.mrb[0].mxu0 %v590
      %v1686 = vpop.f32.mrb[0].mxu0
      %v1687 = vadd.f32 %v1614, %v1686
      %v1688 = vpop.f32.mrb[0].mxu0
      %v1689 = vadd.f32 %v1616, %v1688
      %v1690 = vpop.f32.mrb[0].mxu0
      %v1691 = vadd.f32 %v1618, %v1690
      %v1692 = vpop.f32.mrb[0].mxu0
      %v1693 = vadd.f32 %v1620, %v1692
      %1694 = vmatprep.mubr.bf16.mxu0 0
      %1695 = vmatmul.mubr.bf16.gmra.mrb[0].mxu0 %v596
      %v1696 = vpop.f32.mrb[0].mxu0
      %v1697 = vadd.f32 %v1624, %v1696
      %v1698 = vpop.f32.mrb[0].mxu0
      %v1699 = vadd.f32 %v1626, %v1698
      %v1700 = vpop.f32.mrb[0].mxu0
      %v1701 = vadd.f32 %v1628, %v1700
      %v1702 = vpop.f32.mrb[0].mxu0
      %v1703 = vadd.f32 %v1630, %v1702
      %1704 = vmatprep.mubr.bf16.mxu0 0
      %1705 = vmatmul.mubr.bf16.gmra.mrb[0].mxu0 %v602
      %v1706 = vpop.f32.mrb[0].mxu0
      %v1707 = vadd.f32 %v1634, %v1706
      %v1708 = vpop.f32.mrb[0].mxu0
      %v1709 = vadd.f32 %v1636, %v1708
      %v1710 = vpop.f32.mrb[0].mxu0
      %v1711 = vadd.f32 %v1638, %v1710
      %v1712 = vpop.f32.mrb[0].mxu0
      %v1713 = vadd.f32 %v1640, %v1712
      %1714 = vdwg.mxu0
      %v1715 = vadd.f32 %v413, %v1677
      %v1716 = vadd.f32 %v414, %v1679
      %v1717 = vadd.f32 %v415, %v1681
      %v1718 = vadd.f32 %v416, %v1683
      %v1719 = vadd.f32 %v417, %v1687
      %v1720 = vadd.f32 %v418, %v1689
      %v1721 = vadd.f32 %v419, %v1691
      %v1722 = vadd.f32 %v420, %v1693
      %v1723 = vadd.f32 %v421, %v1697
      %v1724 = vadd.f32 %v422, %v1699
      %v1725 = vadd.f32 %v423, %v1701
      %v1726 = vadd.f32 %v424, %v1703
      %v1727 = vadd.f32 %v425, %v1707
      %v1728 = vadd.f32 %v426, %v1709
      %v1729 = vadd.f32 %v427, %v1711
      %v1730 = vadd.f32 %v428, %v1713
      %1731 = vst [vmem:[#allocation2] sm:$0xff] %v1715
      %vm1732 = vcmask 785408
      %1733 = vst.msk [vmem:[#allocation2 + $0x8] sm:$0xff] %vm1732, %v1716
      %1734 = vst [vmem:[#allocation2 + $0x10] sm:$0xff] %v1717
      %1735 = vst.msk [vmem:[#allocation2 + $0x18] sm:$0xff] %vm1732, %v1718
      %1736 = vst [vmem:[#allocation2 + $0x20] sm:$0xff] %v1719
      %1737 = vst.msk [vmem:[#allocation2 + $0x28] sm:$0xff] %vm1732, %v1720
      %1738 = vst [vmem:[#allocation2 + $0x30] sm:$0xff] %v1721
      %1739 = vst.msk [vmem:[#allocation2 + $0x38] sm:$0xff] %vm1732, %v1722
      %1740 = vst [vmem:[#allocation2 + $0x40] sm:$0xff] %v1723
      %1741 = vst.msk [vmem:[#allocation2 + $0x48] sm:$0xff] %vm1732, %v1724
      %1742 = vst [vmem:[#allocation2 + $0x50] sm:$0xff] %v1725
      %1743 = vst.msk [vmem:[#allocation2 + $0x58] sm:$0xff] %vm1732, %v1726
      %1744 = vst [vmem:[#allocation2 + $0x60] sm:$0xff] %v1727
      %1745 = vst.msk [vmem:[#allocation2 + $0x68] sm:$0xff] %vm1732, %v1728
      %1746 = vst [vmem:[#allocation2 + $0x70] sm:$0xff] %v1729
      %1747 = vst.msk [vmem:[#allocation2 + $0x78] sm:$0xff] %vm1732, %v1730
      %p1748 = scmp.eq.s32.totalorder %s21, 2
      // Predicated region
      $region37: #{mixed_4c_forward.5} parent=31 // pred_check
        %p1749 = pneg %p1748
      $region38: #{mixed_4c_forward.5} parent=31 // pred_check_branch
        %1751 = sbr.rel (%p1749) target = $region40
      $region39: #{mixed_4c_forward.5} parent=31 // pred_region
        %v1752 = vld [vmem:[#allocation2] sm:$0xff]
        %v1753 = vld [vmem:[#allocation2 + $0x8] sm:$0xff]
        %v1754 = vld [vmem:[#allocation2 + $0x10] sm:$0xff]
        %v1755 = vld [vmem:[#allocation2 + $0x18] sm:$0xff]
        %v1756 = vld [vmem:[#allocation2 + $0x20] sm:$0xff]
        %v1757 = vld [vmem:[#allocation2 + $0x28] sm:$0xff]
        %v1758 = vld [vmem:[#allocation2 + $0x30] sm:$0xff]
        %v1759 = vld [vmem:[#allocation2 + $0x38] sm:$0xff]
        %v1760 = vld [vmem:[#allocation2 + $0x40] sm:$0xff]
        %v1761 = vld [vmem:[#allocation2 + $0x48] sm:$0xff]
        %v1762 = vld [vmem:[#allocation2 + $0x50] sm:$0xff]
        %v1763 = vld [vmem:[#allocation2 + $0x58] sm:$0xff]
        %v1764 = vld [vmem:[#allocation2 + $0x60] sm:$0xff]
        %v1765 = vld [vmem:[#allocation2 + $0x68] sm:$0xff]
        %v1766 = vld [vmem:[#allocation2 + $0x70] sm:$0xff]
        %v1767 = vld [vmem:[#allocation2 + $0x78] sm:$0xff]
        %v1768 = vld [vmem:[%s2] sm:$0x3]
        %v1770 = vlaneseq
        %v1771 = vshrl.u32 %v1770, 7
        %v1772 = vsub.s32 0, %v1771
        %v1773 = vrot.slane %v1768, %v1772
        %v1774 = vlaneseq
        %v1775 = vshrl.u32 %v1774, 7
        %v1776 = vsub.s32 1, %v1775
        %v1777 = vrot.slane %v1768, %v1776
        %v1780 = vadd.f32 %v1752, %v1773
        %v1781 = vadd.f32 %v1753, %v1777
        %v1782 = vadd.f32 %v1754, %v1773
        %v1783 = vadd.f32 %v1755, %v1777
        %v1784 = vadd.f32 %v1756, %v1773
        %v1785 = vadd.f32 %v1757, %v1777
        %v1786 = vadd.f32 %v1758, %v1773
        %v1787 = vadd.f32 %v1759, %v1777
        %v1788 = vadd.f32 %v1760, %v1773
        %v1789 = vadd.f32 %v1761, %v1777
        %v1790 = vadd.f32 %v1762, %v1773
        %v1791 = vadd.f32 %v1763, %v1777
        %v1792 = vadd.f32 %v1764, %v1773
        %v1793 = vadd.f32 %v1765, %v1777
        %v1794 = vadd.f32 %v1766, %v1773
        %v1795 = vadd.f32 %v1767, %v1777
        %v1796 = vmax.f32 %v1780, 0.0
        %v1797 = vmax.f32 %v1781, 0.0
        %v1798 = vmax.f32 %v1782, 0.0
        %v1799 = vmax.f32 %v1783, 0.0
        %v1800 = vmax.f32 %v1784, 0.0
        %v1801 = vmax.f32 %v1785, 0.0
        %v1802 = vmax.f32 %v1786, 0.0
        %v1803 = vmax.f32 %v1787, 0.0
        %v1804 = vmax.f32 %v1788, 0.0
        %v1805 = vmax.f32 %v1789, 0.0
        %v1806 = vmax.f32 %v1790, 0.0
        %v1807 = vmax.f32 %v1791, 0.0
        %v1808 = vmax.f32 %v1792, 0.0
        %v1809 = vmax.f32 %v1793, 0.0
        %v1810 = vmax.f32 %v1794, 0.0
        %v1811 = vmax.f32 %v1795, 0.0
        %1812 = vst [vmem:[%s220] sm:$0xff] %v1796
        %1813 = vst.msk [vmem:[%s220 + $0x8] sm:$0xff] %vm1732, %v1797
        %1814 = vst [vmem:[%s220 + $0x10] sm:$0xff] %v1798
        %1815 = vst.msk [vmem:[%s220 + $0x18] sm:$0xff] %vm1732, %v1799
        %1816 = vst [vmem:[%s220 + $0x20] sm:$0xff] %v1800
        %1817 = vst.msk [vmem:[%s220 + $0x28] sm:$0xff] %vm1732, %v1801
        %1818 = vst [vmem:[%s220 + $0x30] sm:$0xff] %v1802
        %1819 = vst.msk [vmem:[%s220 + $0x38] sm:$0xff] %vm1732, %v1803
        %1820 = vst [vmem:[%s220 + $0x40] sm:$0xff] %v1804
        %1821 = vst.msk [vmem:[%s220 + $0x48] sm:$0xff] %vm1732, %v1805
        %1822 = vst [vmem:[%s220 + $0x50] sm:$0xff] %v1806
        %1823 = vst.msk [vmem:[%s220 + $0x58] sm:$0xff] %vm1732, %v1807
        %1824 = vst [vmem:[%s220 + $0x60] sm:$0xff] %v1808
        %1825 = vst.msk [vmem:[%s220 + $0x68] sm:$0xff] %vm1732, %v1809
        %1826 = vst [vmem:[%s220 + $0x70] sm:$0xff] %v1810
        %1827 = vst.msk [vmem:[%s220 + $0x78] sm:$0xff] %vm1732, %v1811
      $region40: #{mixed_4c_forward.5} parent=31 // pred_fallthru
        _
      %p1828 = scmp.lt.s32.totalorder %s19, 1
      %s1829 = scalar_select %p1828, %s19, 1
      %p1830 = scmp.lt.s32.totalorder %s20, 3
      %s1831 = scalar_select %p1830, %s20, 3
      %s1832 = smul.addr %s1831, 16
      %s1833 = smul.addr %s1829, 64
      %s1834 = sadd.s32 %s1832, %s1833
      %s1835 = smul.addr %s1834, 8
      %s1836 = scalar_lea.vmem %s3, %s1835
      // Predicated region
      $region41: #{mixed_4c_forward.5} parent=31 // pred_check
        %p1837 = pneg %p125
      $region42: #{mixed_4c_forward.5} parent=31 // pred_check_branch
        %1839 = sbr.rel (%p1837) target = $region44
      $region43: #{mixed_4c_forward.5} parent=31 // pred_region
        _
      $region44: #{mixed_4c_forward.5} parent=31 // pred_fallthru
        _
    $region32: #{mixed_4c_forward.5} parent=5 // pred_fallthru
      _
    %p1840 = scmp.le.s32.totalorder 2, %s9
    // Predicated region
    $region45: #{mixed_4c_forward.5} parent=5 // pred_check
      %p1841 = pneg %p1840
    $region46: #{mixed_4c_forward.5} parent=5 // pred_check_branch
      %1843 = sbr.rel (%p1841) target = $region48
    $region47: #{mixed_4c_forward.5} parent=5 // pred_region
      %s1844 = ssub.s32 %s9, 2
      // Predicated region
      $region49: #{mixed_4c_forward.5} parent=47 // pred_check
        %p1845 = pneg %p131
      $region50: #{mixed_4c_forward.5} parent=47 // pred_check_branch
        %1847 = sbr.rel (%p1845) target = $region52
      $region51: #{mixed_4c_forward.5} parent=47 // pred_region
        %p1848 = scmp.lt.s32.totalorder %s22, 1
        %s1849 = scalar_select %p1848, %s22, 1
        %p1850 = scmp.lt.s32.totalorder %s23, 3
        %s1851 = scalar_select %p1850, %s23, 3
        %s1852 = smul.addr %s1851, 16
        %s1853 = smul.addr %s1849, 64
        %s1854 = sadd.s32 %s1852, %s1853
        %s1855 = smul.addr %s1854, 8
        %s1856 = scalar_lea.vmem %s3, %s1855
      $region52: #{mixed_4c_forward.5} parent=47 // pred_fallthru
        _
    $region48: #{mixed_4c_forward.5} parent=5 // pred_fallthru
      _
  $region6: #{mixed_4c_forward.5} parent=0 // loop_footer
    %s13 = sadd.s32 1, %s9
  $region7: #{mixed_4c_forward.5} parent=0 // loop_footer_branch
    %8 = sbr.rel target = $region3
  $region8: #{mixed_4c_forward.5} parent=0 // loop_exit
    _

// kernel: mixed_4c_forward.6
$region0: #{mixed_4c_forward.6}
  #allocation0 [shape = 'u32[]', space=smem, size = 0x4, offset = 0x4, fixed_abs, tag = 'smem constant byte address 0x4 - core index']
  #allocation1 [shape = 'u32[144,128]{1,0:T(1,128)}', space=vmem, size = 0x12000, scoped, tag = 'internal scratch']
  #allocation2 [shape = 'f32[64,64]{1,0:T(8,128)}', space=vmem, size = 0x8000, scoped, tag = 'scratch operand']
  %s0 = inlined_call_operand.vmem [shape: bf16[2,6,10,10,128], index: 0, kind: input, shape index: {}]
  %s1 = inlined_call_operand.vmem [shape: bf16[3,1152,64], index: 1, kind: input, shape index: {}]
  %s2 = inlined_call_operand.vmem [shape: f32[1,64], index: 2, kind: input, shape index: {}]
  %s3 = inlined_call_operand.vmem [shape: f32[2,4,8,8,64], index: 3, kind: output, shape index: {}]
  %s4 = sld [smem:[#allocation0]]
  $region53: #{mixed_4c_forward.6} parent=0
    _
  %s6 = ssub.s32 1, %s4
  %s7 = scalar_select 0, %s6, %s4
  loop: start=0, step=1, limit=26
  $region2: #{mixed_4c_forward.6} parent=0 // loop_pre_header
    _
  $region3: #{mixed_4c_forward.6} parent=0 // loop_header
    %s9 = sphi 0, %s13
    %p10 = scmp.ge.s32.totalorder %s9, 26
    %s16 = sphi 0, %s35
    %s17 = sphi 0, %s31
    %s18 = sphi 0, %s27
    %s19 = sphi 0, %s16
    %s20 = sphi 0, %s17
    %s21 = sphi 0, %s18
    %s22 = sphi 0, %s19
    %s23 = sphi 0, %s20
    %s24 = sphi 0, %s21
    %s42 = sphi 0, %s44
    %s45 = sphi 0, %s42
    %s46 = sphi 0, %s45
    %s62 = sphi 0, %s46
    %s66 = sphi 0, %s66
    %s68 = sphi 0, %s66
    %s69 = sphi 0, %s68
    %s83 = sphi 0, %s69
    %s87 = sphi 0, %s87
    %s89 = sphi 0, %s87
    %s90 = sphi 0, %s89
    %s104 = sphi 0, %s90
    %s112 = sphi 0, %s114
    %s115 = sphi 0, %s112
    %s116 = sphi 0, %s115
    %s132 = sphi 0, %s116
  $region4: #{mixed_4c_forward.6} parent=0 // loop_header_branch
    %12 = sbr.rel (%p10) target = $region8
  $region5: #{mixed_4c_forward.6} parent=0 // loop_body
    %s14 = ssub.s32 %s9, 1
    %s15 = ssub.s32 %s9, 2
    %s25 = sadd.s32 1, %s18
    %p26 = scmp.ge.s32.totalorder %s25, 3
    %s27 = scalar_select %p26, 0, %s25
    %s28 = sadd.s32 1, %s17
    %s29 = scalar_select %p26, %s28, %s17
    %p30 = scmp.ge.s32.totalorder %s29, 4
    %s31 = scalar_select %p30, 0, %s29
    %s32 = sadd.s32 1, %s16
    %s33 = scalar_select %p30, %s32, %s16
    %p34 = scmp.ge.s32.totalorder %s33, 2
    %s35 = scalar_select %p34, 0, %s33
    %s36 = sadd.s32 %s17, %s18
    %s37 = sadd.s32 %s31, %s27
    %s38 = ssub.s32 %s16, %s35
    %s39 = ssub.s32 %s36, %s37
    %s40 = sor.u32 %s38, %s39
    %p41 = scmp.eq.s32.totalorder %s40, 0
    %s43 = sadd.s32 %s42, 1
    %s44 = scalar_select %p41, %s42, %s43
    %p47 = pneg %p41
    %p48 = scmp.eq.s32.totalorder %s9, 23
    %p49 = por %p47, %p48
    %p50 = scmp.ne.s32.totalorder %s42, %s45
    %p51 = scmp.eq.s32.totalorder %s9, 0
    %p52 = por %p50, %p51
    %p53 = scmp.ne.s32.totalorder %s42, %s45
    %p54 = scmp.eq.s32.totalorder %s14, 23
    %p55 = por %p53, %p54
    %p56 = scmp.ne.s32.totalorder %s45, %s46
    %p57 = scmp.eq.s32.totalorder %s14, 0
    %p58 = por %p56, %p57
    %p59 = scmp.ne.s32.totalorder %s45, %s46
    %p60 = scmp.eq.s32.totalorder %s15, 23
    %p61 = por %p59, %p60
    %p63 = scmp.ne.s32.totalorder %s46, %s62
    %p64 = scmp.eq.s32.totalorder %s15, 0
    %p65 = por %p63, %p64
    %s67 = sadd.s32 %s66, 1
    %p70 = scmp.eq.s32.totalorder %s9, 23
    %p71 = scmp.ne.s32.totalorder %s66, %s68
    %p72 = scmp.eq.s32.totalorder %s9, 0
    %p73 = por %p71, %p72
    %p74 = scmp.ne.s32.totalorder %s66, %s68
    %p75 = scmp.eq.s32.totalorder %s14, 23
    %p76 = por %p74, %p75
    %p77 = scmp.ne.s32.totalorder %s68, %s69
    %p78 = scmp.eq.s32.totalorder %s14, 0
    %p79 = por %p77, %p78
    %p80 = scmp.ne.s32.totalorder %s68, %s69
    %p81 = scmp.eq.s32.totalorder %s15, 23
    %p82 = por %p80, %p81
    %p84 = scmp.ne.s32.totalorder %s69, %s83
    %p85 = scmp.eq.s32.totalorder %s15, 0
    %p86 = por %p84, %p85
    %s88 = sadd.s32 %s87, 1
    %p91 = scmp.eq.s32.totalorder %s9, 23
    %p92 = scmp.ne.s32.totalorder %s87, %s89
    %p93 = scmp.eq.s32.totalorder %s9, 0
    %p94 = por %p92, %p93
    %p95 = scmp.ne.s32.totalorder %s87, %s89
    %p96 = scmp.eq.s32.totalorder %s14, 23
    %p97 = por %p95, %p96
    %p98 = scmp.ne.s32.totalorder %s89, %s90
    %p99 = scmp.eq.s32.totalorder %s14, 0
    %p100 = por %p98, %p99
    %p101 = scmp.ne.s32.totalorder %s89, %s90
    %p102 = scmp.eq.s32.totalorder %s15, 23
    %p103 = por %p101, %p102
    %p105 = scmp.ne.s32.totalorder %s90, %s104
    %p106 = scmp.eq.s32.totalorder %s15, 0
    %p107 = por %p105, %p106
    %s108 = ssub.s32 %s16, %s35
    %s109 = ssub.s32 %s17, %s31
    %s110 = sor.u32 %s108, %s109
    %p111 = scmp.eq.s32.totalorder %s110, 0
    %s113 = sadd.s32 %s112, 1
    %s114 = scalar_select %p111, %s112, %s113
    %p117 = pneg %p111
    %p118 = scmp.eq.s32.totalorder %s9, 23
    %p119 = por %p117, %p118
    %p120 = scmp.ne.s32.totalorder %s112, %s115
    %p121 = scmp.eq.s32.totalorder %s9, 0
    %p122 = por %p120, %p121
    %p123 = scmp.ne.s32.totalorder %s112, %s115
    %p124 = scmp.eq.s32.totalorder %s14, 23
    %p125 = por %p123, %p124
    %p126 = scmp.ne.s32.totalorder %s115, %s116
    %p127 = scmp.eq.s32.totalorder %s14, 0
    %p128 = por %p126, %p127
    %p129 = scmp.ne.s32.totalorder %s115, %s116
    %p130 = scmp.eq.s32.totalorder %s15, 23
    %p131 = por %p129, %p130
    %p133 = scmp.ne.s32.totalorder %s116, %s132
    %p134 = scmp.eq.s32.totalorder %s15, 0
    %p135 = por %p133, %p134
    %p136 = scmp.le.s32.totalorder 1, %s9
    %p137 = scmp.lt.s32.totalorder %s9, 25
    %p138 = pnand %p136, %p137
    %p139 = pneg %p138
    // Predicated region
    $region9: #{mixed_4c_forward.6} parent=5 // pred_check
      _
    $region10: #{mixed_4c_forward.6} parent=5 // pred_check_branch
      %141 = sbr.rel (%p138) target = $region12
    $region11: #{mixed_4c_forward.6} parent=5 // pred_region
      %s142 = ssub.s32 %s9, 1
      // Predicated region
      $region13: #{mixed_4c_forward.6} parent=11 // pred_check
        %p143 = pneg %p79
      $region14: #{mixed_4c_forward.6} parent=11 // pred_check_branch
        %145 = sbr.rel (%p143) target = $region16
      $region15: #{mixed_4c_forward.6} parent=11 // pred_region
        _
      $region16: #{mixed_4c_forward.6} parent=11 // pred_fallthru
        _
      // Predicated region
      $region17: #{mixed_4c_forward.6} parent=11 // pred_check
        %p146 = pneg %p100
      $region18: #{mixed_4c_forward.6} parent=11 // pred_check_branch
        %148 = sbr.rel (%p146) target = $region20
      $region19: #{mixed_4c_forward.6} parent=11 // pred_region
        _
      $region20: #{mixed_4c_forward.6} parent=11 // pred_fallthru
        _
    $region12: #{mixed_4c_forward.6} parent=5 // pred_fallthru
      _
    %p149 = scmp.lt.s32.totalorder %s9, 24
    // Predicated region
    $region21: #{mixed_4c_forward.6} parent=5 // pred_check
      %p150 = pneg %p149
    $region22: #{mixed_4c_forward.6} parent=5 // pred_check_branch
      %152 = sbr.rel (%p150) target = $region24
    $region23: #{mixed_4c_forward.6} parent=5 // pred_region
      // Predicated region
      $region25: #{mixed_4c_forward.6} parent=23 // pred_check
        %p153 = pneg %p52
      $region26: #{mixed_4c_forward.6} parent=23 // pred_check_branch
        %155 = sbr.rel (%p153) target = $region28
      $region27: #{mixed_4c_forward.6} parent=23 // pred_region
        %s156 = sadd.s32 %s17, %s18
        %p157 = scmp.lt.s32.totalorder %s16, 1
        %s158 = scalar_select %p157, %s16, 1
        %p159 = scmp.lt.s32.totalorder %s156, 5
        %s160 = scalar_select %p159, %s156, 5
        %s161 = smul.addr %s160, 20
        %s162 = smul.addr %s158, 120
        %s163 = sadd.s32 %s161, %s162
        %s164 = smul.addr %s163, 4
        %s165 = scalar_lea.vmem %s0, %s164
        %s166 = sadd.s32 %s17, %s18
      $region28: #{mixed_4c_forward.6} parent=23 // pred_fallthru
        _
    $region24: #{mixed_4c_forward.6} parent=5 // pred_fallthru
      _
    %p167 = scmp.le.s32.totalorder 1, %s9
    %p168 = scmp.lt.s32.totalorder %s9, 25
    %p169 = pnand %p167, %p168
    %p170 = pneg %p169
    // Predicated region
    $region29: #{mixed_4c_forward.6} parent=5 // pred_check
      _
    $region30: #{mixed_4c_forward.6} parent=5 // pred_check_branch
      %172 = sbr.rel (%p169) target = $region32
    $region31: #{mixed_4c_forward.6} parent=5 // pred_region
      %s173 = ssub.s32 %s9, 1
      %s174 = sadd.s32 %s20, %s21
      %p175 = scmp.lt.s32.totalorder %s19, 1
      %s176 = scalar_select %p175, %s19, 1
      %p177 = scmp.lt.s32.totalorder %s174, 5
      %s178 = scalar_select %p177, %s174, 5
      %s179 = smul.addr %s178, 20
      %s180 = smul.addr %s176, 120
      %s181 = sadd.s32 %s179, %s180
      %s182 = smul.addr %s181, 4
      %s183 = scalar_lea.vmem %s0, %s182
      %p184 = pneg %p58
      %p185 = pneg %p55
      %p186 = pneg %p79
      %p187 = pneg %p76
      %p188 = pneg %p100
      %p189 = pneg %p97
      %p190 = pneg %p128
      %p191 = pneg %p125
      %p192 = scmp.lt.s32.totalorder %s19, 1
      %s193 = scalar_select %p192, %s19, 1
      %p194 = scmp.lt.s32.totalorder %s20, 3
      %s195 = scalar_select %p194, %s20, 3
      %s196 = smul.addr %s195, 8
      %s197 = smul.addr %s193, 32
      %s198 = sadd.s32 %s196, %s197
      %s199 = smul.addr %s198, 8
      %s200 = scalar_lea.vmem %s3, %s199
      %s201 = sadd.s32 %s20, %s21
      %p202 = scmp.lt.s32.totalorder %s19, 1
      %s203 = scalar_select %p202, %s19, 1
      %p204 = scmp.lt.s32.totalorder %s201, 5
      %s205 = scalar_select %p204, %s201, 5
      %s206 = smul.addr %s205, 20
      %s207 = smul.addr %s203, 120
      %s208 = sadd.s32 %s206, %s207
      %s209 = smul.addr %s208, 4
      %s210 = scalar_lea.vmem %s0, %s209
      %s211 = sadd.s32 %s20, %s21
      %p212 = scmp.lt.s32.totalorder %s19, 1
      %s213 = scalar_select %p212, %s19, 1
      %p214 = scmp.lt.s32.totalorder %s20, 3
      %s215 = scalar_select %p214, %s20, 3
      %s216 = smul.addr %s215, 8
      %s217 = smul.addr %s213, 32
      %s218 = sadd.s32 %s216, %s217
      %s219 = smul.addr %s218, 8
      %s220 = scalar_lea.vmem %s3, %s219
      %p222 = scmp.eq.s32.totalorder %s21, 0
      // Predicated region
      $region33: #{mixed_4c_forward.6} parent=31 // pred_check
        %p223 = pneg %p222
      $region34: #{mixed_4c_forward.6} parent=31 // pred_check_branch
        %225 = sbr.rel (%p223) target = $region36
      $region35: #{mixed_4c_forward.6} parent=31 // pred_region
        %vm226 = vcmask 523264
        %227 = vst.msk [vmem:[#allocation2] sm:$0xff] %vm226, 0.0
        %228 = vst.msk [vmem:[#allocation2 + $0x8] sm:$0xff] %vm226, 0.0
        %229 = vst.msk [vmem:[#allocation2 + $0x10] sm:$0xff] %vm226, 0.0
        %230 = vst.msk [vmem:[#allocation2 + $0x18] sm:$0xff] %vm226, 0.0
        %231 = vst.msk [vmem:[#allocation2 + $0x20] sm:$0xff] %vm226, 0.0
        %232 = vst.msk [vmem:[#allocation2 + $0x28] sm:$0xff] %vm226, 0.0
        %233 = vst.msk [vmem:[#allocation2 + $0x30] sm:$0xff] %vm226, 0.0
        %234 = vst.msk [vmem:[#allocation2 + $0x38] sm:$0xff] %vm226, 0.0
      $region36: #{mixed_4c_forward.6} parent=31 // pred_fallthru
        _
      %v235 = vld [vmem:[%s210] sm:$0xf]
      %v236 = vld [vmem:[%s210 + $0x4] sm:$0x1]
      %v237 = vld [vmem:[%s210 + $0x8] sm:$0xf]
      %v238 = vld [vmem:[%s210 + $0xc] sm:$0x1]
      %v239 = vld [vmem:[%s210 + $0x10] sm:$0xf]
      %v240 = vld [vmem:[%s210 + $0x14] sm:$0x1]
      %v241 = vld [vmem:[%s210 + $0x18] sm:$0xf]
      %v242 = vld [vmem:[%s210 + $0x1c] sm:$0x1]
      %v243 = vld [vmem:[%s210 + $0x20] sm:$0xf]
      %v244 = vld [vmem:[%s210 + $0x24] sm:$0x1]
      %v245 = vld [vmem:[%s210 + $0x28] sm:$0xf]
      %v246 = vld [vmem:[%s210 + $0x2c] sm:$0x1]
      %v247 = vld [vmem:[%s210 + $0x30] sm:$0xf]
      %v248 = vld [vmem:[%s210 + $0x34] sm:$0x1]
      %v249 = vld [vmem:[%s210 + $0x38] sm:$0xf]
      %v250 = vld [vmem:[%s210 + $0x3c] sm:$0x1]
      %v251 = vld [vmem:[%s210 + $0x40] sm:$0xf]
      %v252 = vld [vmem:[%s210 + $0x44] sm:$0x1]
      %v253 = vld [vmem:[%s210 + $0x48] sm:$0xf]
      %v254 = vld [vmem:[%s210 + $0x4c] sm:$0x1]
      %v271 = vunpack.c.l.b16 %v235
      %v272 = vunpack.c.l.b16 %v236
      %v273 = vunpack.c.l.b16 %v237
      %v274 = vunpack.c.l.b16 %v238
      %v275 = vunpack.c.l.b16 %v239
      %v276 = vunpack.c.l.b16 %v240
      %v277 = vunpack.c.l.b16 %v241
      %v278 = vunpack.c.l.b16 %v242
      %v279 = vunpack.c.l.b16 %v243
      %v280 = vunpack.c.l.b16 %v244
      %v281 = vunpack.c.l.b16 %v245
      %v282 = vunpack.c.l.b16 %v246
      %v283 = vunpack.c.l.b16 %v247
      %v284 = vunpack.c.l.b16 %v248
      %v285 = vunpack.c.l.b16 %v249
      %v286 = vunpack.c.l.b16 %v250
      %v287 = vpack.c.b16 %v272, %v271
      %v288 = vpack.c.b16 %v274, %v273
      %v289 = vpack.c.b16 %v276, %v275
      %v290 = vpack.c.b16 %v278, %v277
      %v291 = vpack.c.b16 %v280, %v279
      %v292 = vpack.c.b16 %v282, %v281
      %v293 = vpack.c.b16 %v284, %v283
      %v294 = vpack.c.b16 %v286, %v285
      %v296 = vshrl.u32 %v287, 16
      %v298 = vshll.u32 %v287, 16
      %v300 = vrot.slane %v298, 1
      %v301 = vor.u32 %v296, %v300
      %v303 = vshrl.u32 %v288, 16
      %v305 = vshll.u32 %v288, 16
      %v307 = vrot.slane %v305, 1
      %v308 = vor.u32 %v303, %v307
      %v310 = vshrl.u32 %v289, 16
      %v312 = vshll.u32 %v289, 16
      %v314 = vrot.slane %v312, 1
      %v315 = vor.u32 %v310, %v314
      %v317 = vshrl.u32 %v290, 16
      %v319 = vshll.u32 %v290, 16
      %v321 = vrot.slane %v319, 1
      %v322 = vor.u32 %v317, %v321
      %v324 = vshrl.u32 %v291, 16
      %v326 = vshll.u32 %v291, 16
      %v328 = vrot.slane %v326, 1
      %v329 = vor.u32 %v324, %v328
      %v331 = vshrl.u32 %v292, 16
      %v333 = vshll.u32 %v292, 16
      %v335 = vrot.slane %v333, 1
      %v336 = vor.u32 %v331, %v335
      %v338 = vshrl.u32 %v293, 16
      %v340 = vshll.u32 %v293, 16
      %v342 = vrot.slane %v340, 1
      %v343 = vor.u32 %v338, %v342
      %v345 = vshrl.u32 %v294, 16
      %v347 = vshll.u32 %v294, 16
      %v349 = vrot.slane %v347, 1
      %v350 = vor.u32 %v345, %v349
      %v351 = vrot.slane %v287, 1
      %v352 = vrot.slane %v288, 1
      %v353 = vrot.slane %v289, 1
      %v354 = vrot.slane %v290, 1
      %v355 = vrot.slane %v291, 1
      %v356 = vrot.slane %v292, 1
      %v357 = vrot.slane %v293, 1
      %v358 = vrot.slane %v294, 1
      %v361 = vunpack.c.l.b16 %v251
      %v362 = vunpack.c.l.b16 %v252
      %v363 = vpack.c.b16 %v362, %v361
      %v365 = vshrl.u32 %v363, 16
      %v367 = vshll.u32 %v363, 16
      %v369 = vrot.slane %v367, 1
      %v370 = vor.u32 %v365, %v369
      %v371 = vrot.slane %v363, 1
      %v374 = vunpack.c.l.b16 %v253
      %v375 = vunpack.c.l.b16 %v254
      %v376 = vpack.c.b16 %v375, %v374
      %v378 = vshrl.u32 %v376, 16
      %v380 = vshll.u32 %v376, 16
      %v382 = vrot.slane %v380, 1
      %v383 = vor.u32 %v378, %v382
      %v384 = vrot.slane %v376, 1
      %v385 = vunpack.c.l.b16 %v301
      %v386 = vunpack.c.l.b16 %v351
      %v387 = vunpack.c.l.b16 %v308
      %v388 = vunpack.c.l.b16 %v352
      %v389 = vunpack.c.l.b16 %v315
      %v390 = vunpack.c.l.b16 %v353
      %v391 = vunpack.c.l.b16 %v322
      %v392 = vunpack.c.l.b16 %v354
      %v393 = vunpack.c.l.b16 %v329
      %v394 = vunpack.c.l.b16 %v355
      %v395 = vunpack.c.l.b16 %v336
      %v396 = vunpack.c.l.b16 %v356
      %v397 = vunpack.c.l.b16 %v343
      %v398 = vunpack.c.l.b16 %v357
      %v399 = vunpack.c.l.b16 %v350
      %v400 = vunpack.c.l.b16 %v358
      %v401 = vunpack.c.l.b16 %v370
      %v402 = vunpack.c.l.b16 %v371
      %v403 = vunpack.c.l.b16 %v383
      %v404 = vunpack.c.l.b16 %v384
      %v405 = vld [vmem:[#allocation2] sm:$0xff]
      %v406 = vld [vmem:[#allocation2 + $0x8] sm:$0xff]
      %v407 = vld [vmem:[#allocation2 + $0x10] sm:$0xff]
      %v408 = vld [vmem:[#allocation2 + $0x18] sm:$0xff]
      %v409 = vld [vmem:[#allocation2 + $0x20] sm:$0xff]
      %v410 = vld [vmem:[#allocation2 + $0x28] sm:$0xff]
      %v411 = vld [vmem:[#allocation2 + $0x30] sm:$0xff]
      %v412 = vld [vmem:[#allocation2 + $0x38] sm:$0xff]
      %s413 = smul.u32 %s21, 144
      %s414 = smul.addr %s413, 4
      %s415 = scalar_lea.vmem %s1, %s414
      %v416 = vld [vmem:[%s415] sm:$0xf]
      %v417 = vld [vmem:[%s415 + $0x4] sm:$0xf]
      %v418 = vld [vmem:[%s415 + $0x8] sm:$0xf]
      %v419 = vld [vmem:[%s415 + $0xc] sm:$0xf]
      %v420 = vld [vmem:[%s415 + $0x10] sm:$0xf]
      %v421 = vld [vmem:[%s415 + $0x14] sm:$0xf]
      %v422 = vld [vmem:[%s415 + $0x18] sm:$0xf]
      %v423 = vld [vmem:[%s415 + $0x1c] sm:$0xf]
      %v424 = vld [vmem:[%s415 + $0x20] sm:$0xf]
      %v425 = vld [vmem:[%s415 + $0x24] sm:$0xf]
      %v426 = vld [vmem:[%s415 + $0x28] sm:$0xf]
      %v427 = vld [vmem:[%s415 + $0x2c] sm:$0xf]
      %v428 = vld [vmem:[%s415 + $0x30] sm:$0xf]
      %v429 = vld [vmem:[%s415 + $0x34] sm:$0xf]
      %v430 = vld [vmem:[%s415 + $0x38] sm:$0xf]
      %v431 = vld [vmem:[%s415 + $0x3c] sm:$0xf]
      %v432 = vld [vmem:[%s415 + $0x40] sm:$0xf]
      %v433 = vld [vmem:[%s415 + $0x44] sm:$0xf]
      %v434 = vld [vmem:[%s415 + $0x48] sm:$0xf]
      %v435 = vld [vmem:[%s415 + $0x4c] sm:$0xf]
      %v436 = vld [vmem:[%s415 + $0x50] sm:$0xf]
      %v437 = vld [vmem:[%s415 + $0x54] sm:$0xf]
      %v438 = vld [vmem:[%s415 + $0x58] sm:$0xf]
      %v439 = vld [vmem:[%s415 + $0x5c] sm:$0xf]
      %v440 = vld [vmem:[%s415 + $0x60] sm:$0xf]
      %v441 = vld [vmem:[%s415 + $0x64] sm:$0xf]
      %v442 = vld [vmem:[%s415 + $0x68] sm:$0xf]
      %v443 = vld [vmem:[%s415 + $0x6c] sm:$0xf]
      %v444 = vld [vmem:[%s415 + $0x70] sm:$0xf]
      %v445 = vld [vmem:[%s415 + $0x74] sm:$0xf]
      %v446 = vld [vmem:[%s415 + $0x78] sm:$0xf]
      %v447 = vld [vmem:[%s415 + $0x7c] sm:$0xf]
      %v448 = vld [vmem:[%s415 + $0x80] sm:$0xf]
      %v449 = vld [vmem:[%s415 + $0x84] sm:$0xf]
      %v450 = vld [vmem:[%s415 + $0x88] sm:$0xf]
      %v451 = vld [vmem:[%s415 + $0x8c] sm:$0xf]
      %v452 = vld [vmem:[%s415 + $0x90] sm:$0xf]
      %v453 = vld [vmem:[%s415 + $0x94] sm:$0xf]
      %v454 = vld [vmem:[%s415 + $0x98] sm:$0xf]
      %v455 = vld [vmem:[%s415 + $0x9c] sm:$0xf]
      %v456 = vld [vmem:[%s415 + $0xa0] sm:$0xf]
      %v457 = vld [vmem:[%s415 + $0xa4] sm:$0xf]
      %v458 = vld [vmem:[%s415 + $0xa8] sm:$0xf]
      %v459 = vld [vmem:[%s415 + $0xac] sm:$0xf]
      %v460 = vld [vmem:[%s415 + $0xb0] sm:$0xf]
      %v461 = vld [vmem:[%s415 + $0xb4] sm:$0xf]
      %v462 = vld [vmem:[%s415 + $0xb8] sm:$0xf]
      %v463 = vld [vmem:[%s415 + $0xbc] sm:$0xf]
      %v464 = vld [vmem:[%s415 + $0xc0] sm:$0xf]
      %v465 = vld [vmem:[%s415 + $0xc4] sm:$0xf]
      %v466 = vld [vmem:[%s415 + $0xc8] sm:$0xf]
      %v467 = vld [vmem:[%s415 + $0xcc] sm:$0xf]
      %v468 = vld [vmem:[%s415 + $0xd0] sm:$0xf]
      %v469 = vld [vmem:[%s415 + $0xd4] sm:$0xf]
      %v470 = vld [vmem:[%s415 + $0xd8] sm:$0xf]
      %v471 = vld [vmem:[%s415 + $0xdc] sm:$0xf]
      %v472 = vld [vmem:[%s415 + $0xe0] sm:$0xf]
      %v473 = vld [vmem:[%s415 + $0xe4] sm:$0xf]
      %v474 = vld [vmem:[%s415 + $0xe8] sm:$0xf]
      %v475 = vld [vmem:[%s415 + $0xec] sm:$0xf]
      %v476 = vld [vmem:[%s415 + $0xf0] sm:$0xf]
      %v477 = vld [vmem:[%s415 + $0xf4] sm:$0xf]
      %v478 = vld [vmem:[%s415 + $0xf8] sm:$0xf]
      %v479 = vld [vmem:[%s415 + $0xfc] sm:$0xf]
      %v480 = vld [vmem:[%s415 + $0x100] sm:$0xf]
      %v481 = vld [vmem:[%s415 + $0x104] sm:$0xf]
      %v482 = vld [vmem:[%s415 + $0x108] sm:$0xf]
      %v483 = vld [vmem:[%s415 + $0x10c] sm:$0xf]
      %v484 = vld [vmem:[%s415 + $0x110] sm:$0xf]
      %v485 = vld [vmem:[%s415 + $0x114] sm:$0xf]
      %v486 = vld [vmem:[%s415 + $0x118] sm:$0xf]
      %v487 = vld [vmem:[%s415 + $0x11c] sm:$0xf]
      %v488 = vld [vmem:[%s415 + $0x120] sm:$0xf]
      %v489 = vld [vmem:[%s415 + $0x124] sm:$0xf]
      %v490 = vld [vmem:[%s415 + $0x128] sm:$0xf]
      %v491 = vld [vmem:[%s415 + $0x12c] sm:$0xf]
      %v492 = vld [vmem:[%s415 + $0x130] sm:$0xf]
      %v493 = vld [vmem:[%s415 + $0x134] sm:$0xf]
      %v494 = vld [vmem:[%s415 + $0x138] sm:$0xf]
      %v495 = vld [vmem:[%s415 + $0x13c] sm:$0xf]
      %v496 = vld [vmem:[%s415 + $0x140] sm:$0xf]
      %v497 = vld [vmem:[%s415 + $0x144] sm:$0xf]
      %v498 = vld [vmem:[%s415 + $0x148] sm:$0xf]
      %v499 = vld [vmem:[%s415 + $0x14c] sm:$0xf]
      %v500 = vld [vmem:[%s415 + $0x150] sm:$0xf]
      %v501 = vld [vmem:[%s415 + $0x154] sm:$0xf]
      %v502 = vld [vmem:[%s415 + $0x158] sm:$0xf]
      %v503 = vld [vmem:[%s415 + $0x15c] sm:$0xf]
      %v504 = vld [vmem:[%s415 + $0x160] sm:$0xf]
      %v505 = vld [vmem:[%s415 + $0x164] sm:$0xf]
      %v506 = vld [vmem:[%s415 + $0x168] sm:$0xf]
      %v507 = vld [vmem:[%s415 + $0x16c] sm:$0xf]
      %v508 = vld [vmem:[%s415 + $0x170] sm:$0xf]
      %v509 = vld [vmem:[%s415 + $0x174] sm:$0xf]
      %v510 = vld [vmem:[%s415 + $0x178] sm:$0xf]
      %v511 = vld [vmem:[%s415 + $0x17c] sm:$0xf]
      %v512 = vld [vmem:[%s415 + $0x180] sm:$0xf]
      %v513 = vld [vmem:[%s415 + $0x184] sm:$0xf]
      %v514 = vld [vmem:[%s415 + $0x188] sm:$0xf]
      %v515 = vld [vmem:[%s415 + $0x18c] sm:$0xf]
      %v516 = vld [vmem:[%s415 + $0x190] sm:$0xf]
      %v517 = vld [vmem:[%s415 + $0x194] sm:$0xf]
      %v518 = vld [vmem:[%s415 + $0x198] sm:$0xf]
      %v519 = vld [vmem:[%s415 + $0x19c] sm:$0xf]
      %v520 = vld [vmem:[%s415 + $0x1a0] sm:$0xf]
      %v521 = vld [vmem:[%s415 + $0x1a4] sm:$0xf]
      %v522 = vld [vmem:[%s415 + $0x1a8] sm:$0xf]
      %v523 = vld [vmem:[%s415 + $0x1ac] sm:$0xf]
      %v524 = vld [vmem:[%s415 + $0x1b0] sm:$0xf]
      %v525 = vld [vmem:[%s415 + $0x1b4] sm:$0xf]
      %v526 = vld [vmem:[%s415 + $0x1b8] sm:$0xf]
      %v527 = vld [vmem:[%s415 + $0x1bc] sm:$0xf]
      %v528 = vld [vmem:[%s415 + $0x1c0] sm:$0xf]
      %v529 = vld [vmem:[%s415 + $0x1c4] sm:$0xf]
      %v530 = vld [vmem:[%s415 + $0x1c8] sm:$0xf]
      %v531 = vld [vmem:[%s415 + $0x1cc] sm:$0xf]
      %v532 = vld [vmem:[%s415 + $0x1d0] sm:$0xf]
      %v533 = vld [vmem:[%s415 + $0x1d4] sm:$0xf]
      %v534 = vld [vmem:[%s415 + $0x1d8] sm:$0xf]
      %v535 = vld [vmem:[%s415 + $0x1dc] sm:$0xf]
      %v536 = vld [vmem:[%s415 + $0x1e0] sm:$0xf]
      %v537 = vld [vmem:[%s415 + $0x1e4] sm:$0xf]
      %v538 = vld [vmem:[%s415 + $0x1e8] sm:$0xf]
      %v539 = vld [vmem:[%s415 + $0x1ec] sm:$0xf]
      %v540 = vld [vmem:[%s415 + $0x1f0] sm:$0xf]
      %v541 = vld [vmem:[%s415 + $0x1f4] sm:$0xf]
      %v542 = vld [vmem:[%s415 + $0x1f8] sm:$0xf]
      %v543 = vld [vmem:[%s415 + $0x1fc] sm:$0xf]
      %v544 = vld [vmem:[%s415 + $0x200] sm:$0xf]
      %v545 = vld [vmem:[%s415 + $0x204] sm:$0xf]
      %v546 = vld [vmem:[%s415 + $0x208] sm:$0xf]
      %v547 = vld [vmem:[%s415 + $0x20c] sm:$0xf]
      %v548 = vld [vmem:[%s415 + $0x210] sm:$0xf]
      %v549 = vld [vmem:[%s415 + $0x214] sm:$0xf]
      %v550 = vld [vmem:[%s415 + $0x218] sm:$0xf]
      %v551 = vld [vmem:[%s415 + $0x21c] sm:$0xf]
      %v552 = vld [vmem:[%s415 + $0x220] sm:$0xf]
      %v553 = vld [vmem:[%s415 + $0x224] sm:$0xf]
      %v554 = vld [vmem:[%s415 + $0x228] sm:$0xf]
      %v555 = vld [vmem:[%s415 + $0x22c] sm:$0xf]
      %v556 = vld [vmem:[%s415 + $0x230] sm:$0xf]
      %v557 = vld [vmem:[%s415 + $0x234] sm:$0xf]
      %v558 = vld [vmem:[%s415 + $0x238] sm:$0xf]
      %v559 = vld [vmem:[%s415 + $0x23c] sm:$0xf]
      %v560 = vpack.c.b16 %v273, %v271
      %v561 = vpack.c.b16 %v387, %v385
      %v562 = vpack.c.b16 %v388, %v386
      %v563 = vpack.c.b16 %v275, %v273
      %v564 = vpack.c.b16 %v389, %v387
      %v565 = vpack.c.b16 %v390, %v388
      %v566 = vpack.c.b16 %v277, %v275
      %v567 = vpack.c.b16 %v391, %v389
      %v568 = vpack.c.b16 %v392, %v390
      %v569 = vpack.c.b16 %v279, %v277
      %v570 = vpack.c.b16 %v393, %v391
      %v571 = vpack.c.b16 %v394, %v392
      %v572 = vpack.c.b16 %v281, %v279
      %v573 = vpack.c.b16 %v395, %v393
      %v574 = vpack.c.b16 %v396, %v394
      %v575 = vpack.c.b16 %v283, %v281
      %v576 = vpack.c.b16 %v397, %v395
      %v577 = vpack.c.b16 %v398, %v396
      %v578 = vpack.c.b16 %v285, %v283
      %v579 = vpack.c.b16 %v399, %v397
      %v580 = vpack.c.b16 %v400, %v398
      %v581 = vpack.c.b16 %v361, %v285
      %v582 = vpack.c.b16 %v401, %v399
      %v583 = vpack.c.b16 %v402, %v400
      %v584 = vpack.c.b16 %v374, %v361
      %v585 = vpack.c.b16 %v403, %v401
      %v586 = vpack.c.b16 %v404, %v402
      %v758 = vunpack.c.l.b16 %v416
      %v759 = vunpack.c.l.b16 %v417
      %v760 = vunpack.c.l.b16 %v418
      %v761 = vunpack.c.l.b16 %v419
      %v762 = vunpack.c.l.b16 %v420
      %v763 = vunpack.c.l.b16 %v421
      %v764 = vunpack.c.l.b16 %v422
      %v765 = vunpack.c.l.b16 %v423
      %v766 = vunpack.c.l.b16 %v424
      %v767 = vunpack.c.l.b16 %v425
      %v768 = vunpack.c.l.b16 %v426
      %v769 = vunpack.c.l.b16 %v427
      %v770 = vunpack.c.l.b16 %v428
      %v771 = vunpack.c.l.b16 %v429
      %v772 = vunpack.c.l.b16 %v430
      %v773 = vunpack.c.l.b16 %v431
      %v774 = vunpack.c.l.b16 %v432
      %v775 = vunpack.c.l.b16 %v433
      %v776 = vunpack.c.l.b16 %v434
      %v777 = vunpack.c.l.b16 %v435
      %v778 = vunpack.c.l.b16 %v436
      %v779 = vunpack.c.l.b16 %v437
      %v780 = vunpack.c.l.b16 %v438
      %v781 = vunpack.c.l.b16 %v439
      %v782 = vunpack.c.l.b16 %v440
      %v783 = vunpack.c.l.b16 %v441
      %v784 = vunpack.c.l.b16 %v442
      %v785 = vunpack.c.l.b16 %v443
      %v786 = vunpack.c.l.b16 %v444
      %v787 = vunpack.c.l.b16 %v445
      %v788 = vunpack.c.l.b16 %v446
      %v789 = vunpack.c.l.b16 %v447
      %v790 = vunpack.c.l.b16 %v448
      %v791 = vunpack.c.l.b16 %v449
      %v792 = vunpack.c.l.b16 %v450
      %v793 = vunpack.c.l.b16 %v451
      %v794 = vunpack.c.l.b16 %v452
      %v795 = vunpack.c.l.b16 %v453
      %v796 = vunpack.c.l.b16 %v454
      %v797 = vunpack.c.l.b16 %v455
      %v798 = vunpack.c.l.b16 %v456
      %v799 = vunpack.c.l.b16 %v457
      %v800 = vunpack.c.l.b16 %v458
      %v801 = vunpack.c.l.b16 %v459
      %v802 = vunpack.c.l.b16 %v460
      %v803 = vunpack.c.l.b16 %v461
      %v804 = vunpack.c.l.b16 %v462
      %v805 = vunpack.c.l.b16 %v463
      %v806 = vunpack.c.l.b16 %v464
      %v807 = vunpack.c.l.b16 %v465
      %v808 = vunpack.c.l.b16 %v466
      %v809 = vunpack.c.l.b16 %v467
      %v810 = vunpack.c.l.b16 %v468
      %v811 = vunpack.c.l.b16 %v469
      %v812 = vunpack.c.l.b16 %v470
      %v813 = vunpack.c.l.b16 %v471
      %v814 = vunpack.c.l.b16 %v472
      %v815 = vunpack.c.l.b16 %v473
      %v816 = vunpack.c.l.b16 %v474
      %v817 = vunpack.c.l.b16 %v475
      %v818 = vunpack.c.l.b16 %v476
      %v819 = vunpack.c.l.b16 %v477
      %v820 = vunpack.c.l.b16 %v478
      %v821 = vunpack.c.l.b16 %v479
      %v822 = vunpack.c.l.b16 %v480
      %v823 = vunpack.c.l.b16 %v481
      %v824 = vunpack.c.l.b16 %v482
      %v825 = vunpack.c.l.b16 %v483
      %v826 = vunpack.c.l.b16 %v484
      %v827 = vunpack.c.l.b16 %v485
      %v828 = vunpack.c.l.b16 %v486
      %v829 = vunpack.c.l.b16 %v487
      %v830 = vunpack.c.l.b16 %v488
      %v831 = vunpack.c.l.b16 %v489
      %v832 = vunpack.c.l.b16 %v490
      %v833 = vunpack.c.l.b16 %v491
      %v834 = vunpack.c.l.b16 %v492
      %v835 = vunpack.c.l.b16 %v493
      %v836 = vunpack.c.l.b16 %v494
      %v837 = vunpack.c.l.b16 %v495
      %v838 = vunpack.c.l.b16 %v496
      %v839 = vunpack.c.l.b16 %v497
      %v840 = vunpack.c.l.b16 %v498
      %v841 = vunpack.c.l.b16 %v499
      %v842 = vunpack.c.l.b16 %v500
      %v843 = vunpack.c.l.b16 %v501
      %v844 = vunpack.c.l.b16 %v502
      %v845 = vunpack.c.l.b16 %v503
      %v846 = vunpack.c.l.b16 %v504
      %v847 = vunpack.c.l.b16 %v505
      %v848 = vunpack.c.l.b16 %v506
      %v849 = vunpack.c.l.b16 %v507
      %v850 = vunpack.c.l.b16 %v508
      %v851 = vunpack.c.l.b16 %v509
      %v852 = vunpack.c.l.b16 %v510
      %v853 = vunpack.c.l.b16 %v511
      %v854 = vunpack.c.l.b16 %v512
      %v855 = vunpack.c.l.b16 %v513
      %v856 = vunpack.c.l.b16 %v514
      %v857 = vunpack.c.l.b16 %v515
      %v858 = vunpack.c.l.b16 %v516
      %v859 = vunpack.c.l.b16 %v517
      %v860 = vunpack.c.l.b16 %v518
      %v861 = vunpack.c.l.b16 %v519
      %v862 = vunpack.c.l.b16 %v520
      %v863 = vunpack.c.l.b16 %v521
      %v864 = vunpack.c.l.b16 %v522
      %v865 = vunpack.c.l.b16 %v523
      %v866 = vunpack.c.l.b16 %v524
      %v867 = vunpack.c.l.b16 %v525
      %v868 = vunpack.c.l.b16 %v526
      %v869 = vunpack.c.l.b16 %v527
      %v870 = vunpack.c.l.b16 %v528
      %v871 = vunpack.c.l.b16 %v529
      %v872 = vunpack.c.l.b16 %v530
      %v873 = vunpack.c.l.b16 %v531
      %v874 = vunpack.c.l.b16 %v532
      %v875 = vunpack.c.l.b16 %v533
      %v876 = vunpack.c.l.b16 %v534
      %v877 = vunpack.c.l.b16 %v535
      %v878 = vunpack.c.l.b16 %v536
      %v879 = vunpack.c.l.b16 %v537
      %v880 = vunpack.c.l.b16 %v538
      %v881 = vunpack.c.l.b16 %v539
      %v882 = vunpack.c.l.b16 %v540
      %v883 = vunpack.c.l.b16 %v541
      %v884 = vunpack.c.l.b16 %v542
      %v885 = vunpack.c.l.b16 %v543
      %v886 = vunpack.c.l.b16 %v544
      %v887 = vunpack.c.l.b16 %v545
      %v888 = vunpack.c.l.b16 %v546
      %v889 = vunpack.c.l.b16 %v547
      %v890 = vunpack.c.l.b16 %v548
      %v891 = vunpack.c.l.b16 %v549
      %v892 = vunpack.c.l.b16 %v550
      %v893 = vunpack.c.l.b16 %v551
      %v894 = vunpack.c.l.b16 %v552
      %v895 = vunpack.c.l.b16 %v553
      %v896 = vunpack.c.l.b16 %v554
      %v897 = vunpack.c.l.b16 %v555
      %v898 = vunpack.c.l.b16 %v556
      %v899 = vunpack.c.l.b16 %v557
      %v900 = vunpack.c.l.b16 %v558
      %v901 = vunpack.c.l.b16 %v559
      %v902 = vpack.c.b16 %v759, %v758
      %v903 = vpack.c.b16 %v761, %v760
      %v904 = vpack.c.b16 %v763, %v762
      %v905 = vpack.c.b16 %v765, %v764
      %v906 = vpack.c.b16 %v767, %v766
      %v907 = vpack.c.b16 %v769, %v768
      %v908 = vpack.c.b16 %v771, %v770
      %v909 = vpack.c.b16 %v773, %v772
      %v910 = vpack.c.b16 %v775, %v774
      %v911 = vpack.c.b16 %v777, %v776
      %v912 = vpack.c.b16 %v779, %v778
      %v913 = vpack.c.b16 %v781, %v780
      %v914 = vpack.c.b16 %v783, %v782
      %v915 = vpack.c.b16 %v785, %v784
      %v916 = vpack.c.b16 %v787, %v786
      %v917 = vpack.c.b16 %v789, %v788
      %v918 = vpack.c.b16 %v791, %v790
      %v919 = vpack.c.b16 %v793, %v792
      %v920 = vpack.c.b16 %v795, %v794
      %v921 = vpack.c.b16 %v797, %v796
      %v922 = vpack.c.b16 %v799, %v798
      %v923 = vpack.c.b16 %v801, %v800
      %v924 = vpack.c.b16 %v803, %v802
      %v925 = vpack.c.b16 %v805, %v804
      %v926 = vpack.c.b16 %v807, %v806
      %v927 = vpack.c.b16 %v809, %v808
      %v928 = vpack.c.b16 %v811, %v810
      %v929 = vpack.c.b16 %v813, %v812
      %v930 = vpack.c.b16 %v815, %v814
      %v931 = vpack.c.b16 %v817, %v816
      %v932 = vpack.c.b16 %v819, %v818
      %v933 = vpack.c.b16 %v821, %v820
      %v934 = vpack.c.b16 %v823, %v822
      %v935 = vpack.c.b16 %v825, %v824
      %v936 = vpack.c.b16 %v827, %v826
      %v937 = vpack.c.b16 %v829, %v828
      %v938 = vpack.c.b16 %v831, %v830
      %v939 = vpack.c.b16 %v833, %v832
      %v940 = vpack.c.b16 %v835, %v834
      %v941 = vpack.c.b16 %v837, %v836
      %v942 = vpack.c.b16 %v839, %v838
      %v943 = vpack.c.b16 %v841, %v840
      %v944 = vpack.c.b16 %v843, %v842
      %v945 = vpack.c.b16 %v845, %v844
      %v946 = vpack.c.b16 %v847, %v846
      %v947 = vpack.c.b16 %v849, %v848
      %v948 = vpack.c.b16 %v851, %v850
      %v949 = vpack.c.b16 %v853, %v852
      %v950 = vpack.c.b16 %v855, %v854
      %v951 = vpack.c.b16 %v857, %v856
      %v952 = vpack.c.b16 %v859, %v858
      %v953 = vpack.c.b16 %v861, %v860
      %v954 = vpack.c.b16 %v863, %v862
      %v955 = vpack.c.b16 %v865, %v864
      %v956 = vpack.c.b16 %v867, %v866
      %v957 = vpack.c.b16 %v869, %v868
      %v958 = vpack.c.b16 %v871, %v870
      %v959 = vpack.c.b16 %v873, %v872
      %v960 = vpack.c.b16 %v875, %v874
      %v961 = vpack.c.b16 %v877, %v876
      %v962 = vpack.c.b16 %v879, %v878
      %v963 = vpack.c.b16 %v881, %v880
      %v964 = vpack.c.b16 %v883, %v882
      %v965 = vpack.c.b16 %v885, %v884
      %v966 = vpack.c.b16 %v887, %v886
      %v967 = vpack.c.b16 %v889, %v888
      %v968 = vpack.c.b16 %v891, %v890
      %v969 = vpack.c.b16 %v893, %v892
      %v970 = vpack.c.b16 %v895, %v894
      %v971 = vpack.c.b16 %v897, %v896
      %v972 = vpack.c.b16 %v899, %v898
      %v973 = vpack.c.b16 %v901, %v900
      %1046 = vmatprep.subr.bf16.mxu0 0
      %1047 = vmatpush1.bf16.msra.mxu0 %v902
      %1048 = vmatprep.subr.bf16.mxu0 0
      %1049 = vmatpush1.bf16.msra.mxu0 %v903
      %1050 = vmatprep.subr.bf16.mxu0 0
      %1051 = vmatpush1.bf16.msra.mxu0 %v904
      %1052 = vmatprep.subr.bf16.mxu0 0
      %1053 = vmatpush1.bf16.msra.mxu0 %v905
      %1054 = vmatprep.subr.bf16.mxu0 0
      %1055 = vmatpush1.bf16.msra.mxu0 %v906
      %1056 = vmatprep.subr.bf16.mxu0 0
      %1057 = vmatpush1.bf16.msra.mxu0 %v907
      %1058 = vmatprep.subr.bf16.mxu0 0
      %1059 = vmatpush1.bf16.msra.mxu0 %v908
      %1060 = vmatprep.subr.bf16.mxu0 0
      %1061 = vmatpush1.bf16.msra.mxu0 %v909
      %1062 = vmatprep.subr.bf16.mxu0 0
      %1063 = vmatpush1.bf16.msra.mxu0 %v910
      %1064 = vmatprep.subr.bf16.mxu0 0
      %1065 = vmatpush1.bf16.msra.mxu0 %v911
      %1066 = vmatprep.subr.bf16.mxu0 0
      %1067 = vmatpush1.bf16.msra.mxu0 %v912
      %1068 = vmatprep.subr.bf16.mxu0 0
      %1069 = vmatpush1.bf16.msra.mxu0 %v913
      %1070 = vmatprep.subr.bf16.mxu0 0
      %1071 = vmatpush1.bf16.msra.mxu0 %v914
      %1072 = vmatprep.subr.bf16.mxu0 0
      %1073 = vmatpush1.bf16.msra.mxu0 %v915
      %1074 = vmatprep.subr.bf16.mxu0 0
      %1075 = vmatpush1.bf16.msra.mxu0 %v916
      %1076 = vmatprep.subr.bf16.mxu0 0
      %1077 = vmatpush1.bf16.msra.mxu0 %v917
      %1078 = vmatprep.mubr.bf16.mxu0 %v561
      %1079 = vmatmul.mubr.bf16.gmra.mrb[0].mxu0 %v560
      %v1080 = vpop.f32.mrb[0].mxu0
      %v1081 = vadd.f32 0.0, %v1080
      %v1082 = vpop.f32.mrb[0].mxu0
      %v1083 = vpop.f32.mrb[0].mxu0
      %v1084 = vadd.f32 0.0, %v1083
      %v1085 = vpop.f32.mrb[0].mxu0
      %1086 = vmatprep.mubr.bf16.mxu0 %v567
      %1087 = vmatmul.mubr.bf16.gmra.mrb[0].mxu0 %v566
      %v1088 = vpop.f32.mrb[0].mxu0
      %v1089 = vadd.f32 0.0, %v1088
      %v1090 = vpop.f32.mrb[0].mxu0
      %v1091 = vpop.f32.mrb[0].mxu0
      %v1092 = vadd.f32 0.0, %v1091
      %v1093 = vpop.f32.mrb[0].mxu0
      %1094 = vmatprep.mubr.bf16.mxu0 %v573
      %1095 = vmatmul.mubr.bf16.gmra.mrb[0].mxu0 %v572
      %v1096 = vpop.f32.mrb[0].mxu0
      %v1097 = vadd.f32 0.0, %v1096
      %v1098 = vpop.f32.mrb[0].mxu0
      %v1099 = vpop.f32.mrb[0].mxu0
      %v1100 = vadd.f32 0.0, %v1099
      %v1101 = vpop.f32.mrb[0].mxu0
      %1102 = vmatprep.mubr.bf16.mxu0 %v579
      %1103 = vmatmul.mubr.bf16.gmra.mrb[0].mxu0 %v578
      %v1104 = vpop.f32.mrb[0].mxu0
      %v1105 = vadd.f32 0.0, %v1104
      %v1106 = vpop.f32.mrb[0].mxu0
      %v1107 = vpop.f32.mrb[0].mxu0
      %v1108 = vadd.f32 0.0, %v1107
      %v1109 = vpop.f32.mrb[0].mxu0
      %1110 = vdwg.mxu0
      %1111 = vmatprep.subr.bf16.mxu0 0
      %1112 = vmatpush1.bf16.msra.mxu0 %v918
      %1113 = vmatprep.subr.bf16.mxu0 0
      %1114 = vmatpush1.bf16.msra.mxu0 %v919
      %1115 = vmatprep.subr.bf16.mxu0 0
      %1116 = vmatpush1.bf16.msra.mxu0 %v920
      %1117 = vmatprep.subr.bf16.mxu0 0
      %1118 = vmatpush1.bf16.msra.mxu0 %v921
      %1119 = vmatprep.subr.bf16.mxu0 0
      %1120 = vmatpush1.bf16.msra.mxu0 %v922
      %1121 = vmatprep.subr.bf16.mxu0 0
      %1122 = vmatpush1.bf16.msra.mxu0 %v923
      %1123 = vmatprep.subr.bf16.mxu0 0
      %1124 = vmatpush1.bf16.msra.mxu0 %v924
      %1125 = vmatprep.subr.bf16.mxu0 0
      %1126 = vmatpush1.bf16.msra.mxu0 %v925
      %1127 = vmatprep.subr.bf16.mxu0 0
      %1128 = vmatpush1.bf16.msra.mxu0 %v926
      %1129 = vmatprep.subr.bf16.mxu0 0
      %1130 = vmatpush1.bf16.msra.mxu0 %v927
      %1131 = vmatprep.subr.bf16.mxu0 0
      %1132 = vmatpush1.bf16.msra.mxu0 %v928
      %1133 = vmatprep.subr.bf16.mxu0 0
      %1134 = vmatpush1.bf16.msra.mxu0 %v929
      %1135 = vmatprep.subr.bf16.mxu0 0
      %1136 = vmatpush1.bf16.msra.mxu0 %v930
      %1137 = vmatprep.subr.bf16.mxu0 0
      %1138 = vmatpush1.bf16.msra.mxu0 %v931
      %1139 = vmatprep.subr.bf16.mxu0 0
      %1140 = vmatpush1.bf16.msra.mxu0 %v932
      %1141 = vmatprep.subr.bf16.mxu0 0
      %1142 = vmatpush1.bf16.msra.mxu0 %v933
      %1143 = vmatprep.mubr.bf16.mxu0 %v563
      %1144 = vmatmul.mubr.bf16.gmra.mrb[0].mxu0 %v562
      %v1145 = vpop.f32.mrb[0].mxu0
      %v1146 = vadd.f32 %v1081, %v1145
      %v1147 = vpop.f32.mrb[0].mxu0
      %v1148 = vpop.f32.mrb[0].mxu0
      %v1149 = vadd.f32 %v1084, %v1148
      %v1150 = vpop.f32.mrb[0].mxu0
      %1151 = vmatprep.mubr.bf16.mxu0 %v569
      %1152 = vmatmul.mubr.bf16.gmra.mrb[0].mxu0 %v568
      %v1153 = vpop.f32.mrb[0].mxu0
      %v1154 = vadd.f32 %v1089, %v1153
      %v1155 = vpop.f32.mrb[0].mxu0
      %v1156 = vpop.f32.mrb[0].mxu0
      %v1157 = vadd.f32 %v1092, %v1156
      %v1158 = vpop.f32.mrb[0].mxu0
      %1159 = vmatprep.mubr.bf16.mxu0 %v575
      %1160 = vmatmul.mubr.bf16.gmra.mrb[0].mxu0 %v574
      %v1161 = vpop.f32.mrb[0].mxu0
      %v1162 = vadd.f32 %v1097, %v1161
      %v1163 = vpop.f32.mrb[0].mxu0
      %v1164 = vpop.f32.mrb[0].mxu0
      %v1165 = vadd.f32 %v1100, %v1164
      %v1166 = vpop.f32.mrb[0].mxu0
      %1167 = vmatprep.mubr.bf16.mxu0 %v581
      %1168 = vmatmul.mubr.bf16.gmra.mrb[0].mxu0 %v580
      %v1169 = vpop.f32.mrb[0].mxu0
      %v1170 = vadd.f32 %v1105, %v1169
      %v1171 = vpop.f32.mrb[0].mxu0
      %v1172 = vpop.f32.mrb[0].mxu0
      %v1173 = vadd.f32 %v1108, %v1172
      %v1174 = vpop.f32.mrb[0].mxu0
      %1175 = vdwg.mxu0
      %1176 = vmatprep.subr.bf16.mxu0 0
      %1177 = vmatpush1.bf16.msra.mxu0 %v934
      %1178 = vmatprep.subr.bf16.mxu0 0
      %1179 = vmatpush1.bf16.msra.mxu0 %v935
      %1180 = vmatprep.subr.bf16.mxu0 0
      %1181 = vmatpush1.bf16.msra.mxu0 %v936
      %1182 = vmatprep.subr.bf16.mxu0 0
      %1183 = vmatpush1.bf16.msra.mxu0 %v937
      %1184 = vmatprep.subr.bf16.mxu0 0
      %1185 = vmatpush1.bf16.msra.mxu0 %v938
      %1186 = vmatprep.subr.bf16.mxu0 0
      %1187 = vmatpush1.bf16.msra.mxu0 %v939
      %1188 = vmatprep.subr.bf16.mxu0 0
      %1189 = vmatpush1.bf16.msra.mxu0 %v940
      %1190 = vmatprep.subr.bf16.mxu0 0
      %1191 = vmatpush1.bf16.msra.mxu0 %v941
      %1192 = vmatprep.subr.bf16.mxu0 0
      %1193 = vmatpush1.bf16.msra.mxu0 %v942
      %1194 = vmatprep.subr.bf16.mxu0 0
      %1195 = vmatpush1.bf16.msra.mxu0 %v943
      %1196 = vmatprep.subr.bf16.mxu0 0
      %1197 = vmatpush1.bf16.msra.mxu0 %v944
      %1198 = vmatprep.subr.bf16.mxu0 0
      %1199 = vmatpush1.bf16.msra.mxu0 %v945
      %1200 = vmatprep.subr.bf16.mxu0 0
      %1201 = vmatpush1.bf16.msra.mxu0 %v946
      %1202 = vmatprep.subr.bf16.mxu0 0
      %1203 = vmatpush1.bf16.msra.mxu0 %v947
      %1204 = vmatprep.subr.bf16.mxu0 0
      %1205 = vmatpush1.bf16.msra.mxu0 %v948
      %1206 = vmatprep.subr.bf16.mxu0 0
      %1207 = vmatpush1.bf16.msra.mxu0 %v949
      %1208 = vmatprep.mubr.bf16.mxu0 %v565
      %1209 = vmatmul.mubr.bf16.gmra.mrb[0].mxu0 %v564
      %v1210 = vpop.f32.mrb[0].mxu0
      %v1211 = vadd.f32 %v1146, %v1210
      %v1212 = vpop.f32.mrb[0].mxu0
      %v1213 = vpop.f32.mrb[0].mxu0
      %v1214 = vadd.f32 %v1149, %v1213
      %v1215 = vpop.f32.mrb[0].mxu0
      %1216 = vmatprep.mubr.bf16.mxu0 %v571
      %1217 = vmatmul.mubr.bf16.gmra.mrb[0].mxu0 %v570
      %v1218 = vpop.f32.mrb[0].mxu0
      %v1219 = vadd.f32 %v1154, %v1218
      %v1220 = vpop.f32.mrb[0].mxu0
      %v1221 = vpop.f32.mrb[0].mxu0
      %v1222 = vadd.f32 %v1157, %v1221
      %v1223 = vpop.f32.mrb[0].mxu0
      %1224 = vmatprep.mubr.bf16.mxu0 %v577
      %1225 = vmatmul.mubr.bf16.gmra.mrb[0].mxu0 %v576
      %v1226 = vpop.f32.mrb[0].mxu0
      %v1227 = vadd.f32 %v1162, %v1226
      %v1228 = vpop.f32.mrb[0].mxu0
      %v1229 = vpop.f32.mrb[0].mxu0
      %v1230 = vadd.f32 %v1165, %v1229
      %v1231 = vpop.f32.mrb[0].mxu0
      %1232 = vmatprep.mubr.bf16.mxu0 %v583
      %1233 = vmatmul.mubr.bf16.gmra.mrb[0].mxu0 %v582
      %v1234 = vpop.f32.mrb[0].mxu0
      %v1235 = vadd.f32 %v1170, %v1234
      %v1236 = vpop.f32.mrb[0].mxu0
      %v1237 = vpop.f32.mrb[0].mxu0
      %v1238 = vadd.f32 %v1173, %v1237
      %v1239 = vpop.f32.mrb[0].mxu0
      %1240 = vdwg.mxu0
      %1241 = vmatprep.subr.bf16.mxu0 0
      %1242 = vmatpush1.bf16.msra.mxu0 %v950
      %1243 = vmatprep.subr.bf16.mxu0 0
      %1244 = vmatpush1.bf16.msra.mxu0 %v951
      %1245 = vmatprep.subr.bf16.mxu0 0
      %1246 = vmatpush1.bf16.msra.mxu0 %v952
      %1247 = vmatprep.subr.bf16.mxu0 0
      %1248 = vmatpush1.bf16.msra.mxu0 %v953
      %1249 = vmatprep.subr.bf16.mxu0 0
      %1250 = vmatpush1.bf16.msra.mxu0 %v954
      %1251 = vmatprep.subr.bf16.mxu0 0
      %1252 = vmatpush1.bf16.msra.mxu0 %v955
      %1253 = vmatprep.subr.bf16.mxu0 0
      %1254 = vmatpush1.bf16.msra.mxu0 %v956
      %1255 = vmatprep.subr.bf16.mxu0 0
      %1256 = vmatpush1.bf16.msra.mxu0 %v957
      %1257 = vmatprep.subr.bf16.mxu0 0
      %1258 = vmatpush1.bf16.msra.mxu0 %v958
      %1259 = vmatprep.subr.bf16.mxu0 0
      %1260 = vmatpush1.bf16.msra.mxu0 %v959
      %1261 = vmatprep.subr.bf16.mxu0 0
      %1262 = vmatpush1.bf16.msra.mxu0 %v960
      %1263 = vmatprep.subr.bf16.mxu0 0
      %1264 = vmatpush1.bf16.msra.mxu0 %v961
      %1265 = vmatprep.subr.bf16.mxu0 0
      %1266 = vmatpush1.bf16.msra.mxu0 %v962
      %1267 = vmatprep.subr.bf16.mxu0 0
      %1268 = vmatpush1.bf16.msra.mxu0 %v963
      %1269 = vmatprep.subr.bf16.mxu0 0
      %1270 = vmatpush1.bf16.msra.mxu0 %v964
      %1271 = vmatprep.subr.bf16.mxu0 0
      %1272 = vmatpush1.bf16.msra.mxu0 %v965
      %1273 = vmatprep.mubr.bf16.mxu0 %v567
      %1274 = vmatmul.mubr.bf16.gmra.mrb[0].mxu0 %v566
      %v1275 = vpop.f32.mrb[0].mxu0
      %v1276 = vadd.f32 %v1211, %v1275
      %v1277 = vpop.f32.mrb[0].mxu0
      %v1278 = vpop.f32.mrb[0].mxu0
      %v1279 = vadd.f32 %v1214, %v1278
      %v1280 = vpop.f32.mrb[0].mxu0
      %1281 = vmatprep.mubr.bf16.mxu0 %v573
      %1282 = vmatmul.mubr.bf16.gmra.mrb[0].mxu0 %v572
      %v1283 = vpop.f32.mrb[0].mxu0
      %v1284 = vadd.f32 %v1219, %v1283
      %v1285 = vpop.f32.mrb[0].mxu0
      %v1286 = vpop.f32.mrb[0].mxu0
      %v1287 = vadd.f32 %v1222, %v1286
      %v1288 = vpop.f32.mrb[0].mxu0
      %1289 = vmatprep.mubr.bf16.mxu0 %v579
      %1290 = vmatmul.mubr.bf16.gmra.mrb[0].mxu0 %v578
      %v1291 = vpop.f32.mrb[0].mxu0
      %v1292 = vadd.f32 %v1227, %v1291
      %v1293 = vpop.f32.mrb[0].mxu0
      %v1294 = vpop.f32.mrb[0].mxu0
      %v1295 = vadd.f32 %v1230, %v1294
      %v1296 = vpop.f32.mrb[0].mxu0
      %1297 = vmatprep.mubr.bf16.mxu0 %v585
      %1298 = vmatmul.mubr.bf16.gmra.mrb[0].mxu0 %v584
      %v1299 = vpop.f32.mrb[0].mxu0
      %v1300 = vadd.f32 %v1235, %v1299
      %v1301 = vpop.f32.mrb[0].mxu0
      %v1302 = vpop.f32.mrb[0].mxu0
      %v1303 = vadd.f32 %v1238, %v1302
      %v1304 = vpop.f32.mrb[0].mxu0
      %1305 = vdwg.mxu0
      %1306 = vmatprep.subr.bf16.mxu0 0
      %1307 = vmatpush1.bf16.msra.mxu0 %v966
      %1308 = vmatprep.subr.bf16.mxu0 0
      %1309 = vmatpush1.bf16.msra.mxu0 %v967
      %1310 = vmatprep.subr.bf16.mxu0 0
      %1311 = vmatpush1.bf16.msra.mxu0 %v968
      %1312 = vmatprep.subr.bf16.mxu0 0
      %1313 = vmatpush1.bf16.msra.mxu0 %v969
      %1314 = vmatprep.subr.bf16.mxu0 0
      %1315 = vmatpush1.bf16.msra.mxu0 %v970
      %1316 = vmatprep.subr.bf16.mxu0 0
      %1317 = vmatpush1.bf16.msra.mxu0 %v971
      %1318 = vmatprep.subr.bf16.mxu0 0
      %1319 = vmatpush1.bf16.msra.mxu0 %v972
      %1320 = vmatprep.subr.bf16.mxu0 0
      %1321 = vmatpush1.bf16.msra.mxu0 %v973
      %1322 = vmatprep.subr.bf16.mxu0 0
      %1323 = vmatpush1.bf16.msra.mxu0 0
      %1324 = vmatprep.subr.bf16.mxu0 0
      %1325 = vmatpush1.bf16.msra.mxu0 0
      %1326 = vmatprep.subr.bf16.mxu0 0
      %1327 = vmatpush1.bf16.msra.mxu0 0
      %1328 = vmatprep.subr.bf16.mxu0 0
      %1329 = vmatpush1.bf16.msra.mxu0 0
      %1330 = vmatprep.subr.bf16.mxu0 0
      %1331 = vmatpush1.bf16.msra.mxu0 0
      %1332 = vmatprep.subr.bf16.mxu0 0
      %1333 = vmatpush1.bf16.msra.mxu0 0
      %1334 = vmatprep.subr.bf16.mxu0 0
      %1335 = vmatpush1.bf16.msra.mxu0 0
      %1336 = vmatprep.subr.bf16.mxu0 0
      %1337 = vmatpush1.bf16.msra.mxu0 0
      %1338 = vmatprep.mubr.bf16.mxu0 0
      %1339 = vmatmul.mubr.bf16.gmra.mrb[0].mxu0 %v568
      %v1340 = vpop.f32.mrb[0].mxu0
      %v1341 = vadd.f32 %v1276, %v1340
      %v1342 = vpop.f32.mrb[0].mxu0
      %v1343 = vpop.f32.mrb[0].mxu0
      %v1344 = vadd.f32 %v1279, %v1343
      %v1345 = vpop.f32.mrb[0].mxu0
      %1346 = vmatprep.mubr.bf16.mxu0 0
      %1347 = vmatmul.mubr.bf16.gmra.mrb[0].mxu0 %v574
      %v1348 = vpop.f32.mrb[0].mxu0
      %v1349 = vadd.f32 %v1284, %v1348
      %v1350 = vpop.f32.mrb[0].mxu0
      %v1351 = vpop.f32.mrb[0].mxu0
      %v1352 = vadd.f32 %v1287, %v1351
      %v1353 = vpop.f32.mrb[0].mxu0
      %1354 = vmatprep.mubr.bf16.mxu0 0
      %1355 = vmatmul.mubr.bf16.gmra.mrb[0].mxu0 %v580
      %v1356 = vpop.f32.mrb[0].mxu0
      %v1357 = vadd.f32 %v1292, %v1356
      %v1358 = vpop.f32.mrb[0].mxu0
      %v1359 = vpop.f32.mrb[0].mxu0
      %v1360 = vadd.f32 %v1295, %v1359
      %v1361 = vpop.f32.mrb[0].mxu0
      %1362 = vmatprep.mubr.bf16.mxu0 0
      %1363 = vmatmul.mubr.bf16.gmra.mrb[0].mxu0 %v586
      %v1364 = vpop.f32.mrb[0].mxu0
      %v1365 = vadd.f32 %v1300, %v1364
      %v1366 = vpop.f32.mrb[0].mxu0
      %v1367 = vpop.f32.mrb[0].mxu0
      %v1368 = vadd.f32 %v1303, %v1367
      %v1369 = vpop.f32.mrb[0].mxu0
      %1370 = vdwg.mxu0
      %v1371 = vadd.f32 %v405, %v1341
      %v1372 = vadd.f32 %v406, %v1344
      %v1373 = vadd.f32 %v407, %v1349
      %v1374 = vadd.f32 %v408, %v1352
      %v1375 = vadd.f32 %v409, %v1357
      %v1376 = vadd.f32 %v410, %v1360
      %v1377 = vadd.f32 %v411, %v1365
      %v1378 = vadd.f32 %v412, %v1368
      %vm1379 = vcmask 523264
      %1380 = vst.msk [vmem:[#allocation2] sm:$0xff] %vm1379, %v1371
      %1381 = vst.msk [vmem:[#allocation2 + $0x8] sm:$0xff] %vm1379, %v1372
      %1382 = vst.msk [vmem:[#allocation2 + $0x10] sm:$0xff] %vm1379, %v1373
      %1383 = vst.msk [vmem:[#allocation2 + $0x18] sm:$0xff] %vm1379, %v1374
      %1384 = vst.msk [vmem:[#allocation2 + $0x20] sm:$0xff] %vm1379, %v1375
      %1385 = vst.msk [vmem:[#allocation2 + $0x28] sm:$0xff] %vm1379, %v1376
      %1386 = vst.msk [vmem:[#allocation2 + $0x30] sm:$0xff] %vm1379, %v1377
      %1387 = vst.msk [vmem:[#allocation2 + $0x38] sm:$0xff] %vm1379, %v1378
      %p1388 = scmp.eq.s32.totalorder %s21, 2
      // Predicated region
      $region37: #{mixed_4c_forward.6} parent=31 // pred_check
        %p1389 = pneg %p1388
      $region38: #{mixed_4c_forward.6} parent=31 // pred_check_branch
        %1391 = sbr.rel (%p1389) target = $region40
      $region39: #{mixed_4c_forward.6} parent=31 // pred_region
        %v1392 = vld [vmem:[#allocation2] sm:$0xff]
        %v1393 = vld [vmem:[#allocation2 + $0x8] sm:$0xff]
        %v1394 = vld [vmem:[#allocation2 + $0x10] sm:$0xff]
        %v1395 = vld [vmem:[#allocation2 + $0x18] sm:$0xff]
        %v1396 = vld [vmem:[#allocation2 + $0x20] sm:$0xff]
        %v1397 = vld [vmem:[#allocation2 + $0x28] sm:$0xff]
        %v1398 = vld [vmem:[#allocation2 + $0x30] sm:$0xff]
        %v1399 = vld [vmem:[#allocation2 + $0x38] sm:$0xff]
        %v1400 = vld [vmem:[%s2] sm:$0x1]
        %v1402 = vlaneseq
        %v1403 = vshrl.u32 %v1402, 7
        %v1404 = vsub.s32 0, %v1403
        %v1405 = vrot.slane %v1400, %v1404
        %v1407 = vadd.f32 %v1392, %v1405
        %v1408 = vadd.f32 %v1393, %v1405
        %v1409 = vadd.f32 %v1394, %v1405
        %v1410 = vadd.f32 %v1395, %v1405
        %v1411 = vadd.f32 %v1396, %v1405
        %v1412 = vadd.f32 %v1397, %v1405
        %v1413 = vadd.f32 %v1398, %v1405
        %v1414 = vadd.f32 %v1399, %v1405
        %v1415 = vmax.f32 %v1407, 0.0
        %v1416 = vmax.f32 %v1408, 0.0
        %v1417 = vmax.f32 %v1409, 0.0
        %v1418 = vmax.f32 %v1410, 0.0
        %v1419 = vmax.f32 %v1411, 0.0
        %v1420 = vmax.f32 %v1412, 0.0
        %v1421 = vmax.f32 %v1413, 0.0
        %v1422 = vmax.f32 %v1414, 0.0
        %1423 = vst.msk [vmem:[%s220] sm:$0xff] %vm1379, %v1415
        %1424 = vst.msk [vmem:[%s220 + $0x8] sm:$0xff] %vm1379, %v1416
        %1425 = vst.msk [vmem:[%s220 + $0x10] sm:$0xff] %vm1379, %v1417
        %1426 = vst.msk [vmem:[%s220 + $0x18] sm:$0xff] %vm1379, %v1418
        %1427 = vst.msk [vmem:[%s220 + $0x20] sm:$0xff] %vm1379, %v1419
        %1428 = vst.msk [vmem:[%s220 + $0x28] sm:$0xff] %vm1379, %v1420
        %1429 = vst.msk [vmem:[%s220 + $0x30] sm:$0xff] %vm1379, %v1421
        %1430 = vst.msk [vmem:[%s220 + $0x38] sm:$0xff] %vm1379, %v1422
      $region40: #{mixed_4c_forward.6} parent=31 // pred_fallthru
        _
      %p1431 = scmp.lt.s32.totalorder %s19, 1
      %s1432 = scalar_select %p1431, %s19, 1
      %p1433 = scmp.lt.s32.totalorder %s20, 3
      %s1434 = scalar_select %p1433, %s20, 3
      %s1435 = smul.addr %s1434, 8
      %s1436 = smul.addr %s1432, 32
      %s1437 = sadd.s32 %s1435, %s1436
      %s1438 = smul.addr %s1437, 8
      %s1439 = scalar_lea.vmem %s3, %s1438
      // Predicated region
      $region41: #{mixed_4c_forward.6} parent=31 // pred_check
        %p1440 = pneg %p125
      $region42: #{mixed_4c_forward.6} parent=31 // pred_check_branch
        %1442 = sbr.rel (%p1440) target = $region44
      $region43: #{mixed_4c_forward.6} parent=31 // pred_region
        _
      $region44: #{mixed_4c_forward.6} parent=31 // pred_fallthru
        _
    $region32: #{mixed_4c_forward.6} parent=5 // pred_fallthru
      _
    %p1443 = scmp.le.s32.totalorder 2, %s9
    // Predicated region
    $region45: #{mixed_4c_forward.6} parent=5 // pred_check
      %p1444 = pneg %p1443
    $region46: #{mixed_4c_forward.6} parent=5 // pred_check_branch
      %1446 = sbr.rel (%p1444) target = $region48
    $region47: #{mixed_4c_forward.6} parent=5 // pred_region
      %s1447 = ssub.s32 %s9, 2
      // Predicated region
      $region49: #{mixed_4c_forward.6} parent=47 // pred_check
        %p1448 = pneg %p131
      $region50: #{mixed_4c_forward.6} parent=47 // pred_check_branch
        %1450 = sbr.rel (%p1448) target = $region52
      $region51: #{mixed_4c_forward.6} parent=47 // pred_region
        %p1451 = scmp.lt.s32.totalorder %s22, 1
        %s1452 = scalar_select %p1451, %s22, 1
        %p1453 = scmp.lt.s32.totalorder %s23, 3
        %s1454 = scalar_select %p1453, %s23, 3
        %s1455 = smul.addr %s1454, 8
        %s1456 = smul.addr %s1452, 32
        %s1457 = sadd.s32 %s1455, %s1456
        %s1458 = smul.addr %s1457, 8
        %s1459 = scalar_lea.vmem %s3, %s1458
      $region52: #{mixed_4c_forward.6} parent=47 // pred_fallthru
        _
    $region48: #{mixed_4c_forward.6} parent=5 // pred_fallthru
      _
  $region6: #{mixed_4c_forward.6} parent=0 // loop_footer
    %s13 = sadd.s32 1, %s9
  $region7: #{mixed_4c_forward.6} parent=0 // loop_footer_branch
    %8 = sbr.rel target = $region3
  $region8: #{mixed_4c_forward.6} parent=0 // loop_exit
    _

// kernel: mixed_4c_forward.7
$region0: #{mixed_4c_forward.7}
  #allocation0 [shape = 'u32[]', space=smem, size = 0x4, offset = 0x4, fixed_abs, tag = 'smem constant byte address 0x4 - core index']
  #allocation1 [shape = 'u32[144,128]{1,0:T(1,128)}', space=vmem, size = 0x12000, scoped, tag = 'internal scratch']
  #allocation2 [shape = 'bf16[8,8,512]{2,1,0:T(8,128)(2,1)}', space=vmem, size = 0x10000, scoped, tag = 'scratch operand']
  %s0 = inlined_call_operand.vmem [shape: bf16[2,4,8,8,512], index: 0, kind: input, shape index: {}]
  %s1 = inlined_call_operand.vmem [shape: bf16[512,64], index: 1, kind: input, shape index: {}]
  %s2 = inlined_call_operand.vmem [shape: f32[1,64], index: 2, kind: input, shape index: {}]
  %s3 = inlined_call_operand.vmem [shape: f32[2,4,8,8,64], index: 3, kind: output, shape index: {}]
  %s4 = sld [smem:[#allocation0]]
  $region57: #{mixed_4c_forward.7} parent=0
    _
  %s6 = ssub.s32 1, %s4
  %s7 = scalar_select 0, %s6, %s4
  loop: start=0, step=1, limit=26
  $region2: #{mixed_4c_forward.7} parent=0 // loop_pre_header
    _
  $region3: #{mixed_4c_forward.7} parent=0 // loop_header
    %s9 = sphi 0, %s13
    %p10 = scmp.ge.s32.totalorder %s9, 26
    %s16 = sphi 0, %s35
    %s17 = sphi 0, %s31
    %s18 = sphi 0, %s27
    %s19 = sphi 0, %s16
    %s20 = sphi 0, %s17
    %s21 = sphi 0, %s18
    %s22 = sphi 0, %s19
    %s23 = sphi 0, %s20
    %s24 = sphi 0, %s21
    %s52 = sphi 0, %s54
    %s55 = sphi 0, %s52
    %s56 = sphi 0, %s55
    %s72 = sphi 0, %s56
    %s76 = sphi 0, %s76
    %s78 = sphi 0, %s76
    %s79 = sphi 0, %s78
    %s93 = sphi 0, %s79
    %s97 = sphi 0, %s97
    %s99 = sphi 0, %s97
    %s100 = sphi 0, %s99
    %s114 = sphi 0, %s100
    %s122 = sphi 0, %s124
    %s125 = sphi 0, %s122
    %s126 = sphi 0, %s125
    %s142 = sphi 0, %s126
  $region4: #{mixed_4c_forward.7} parent=0 // loop_header_branch
    %12 = sbr.rel (%p10) target = $region8
  $region5: #{mixed_4c_forward.7} parent=0 // loop_body
    %s14 = ssub.s32 %s9, 1
    %s15 = ssub.s32 %s9, 2
    %s25 = sadd.s32 1, %s18
    %p26 = scmp.ge.s32.totalorder %s25, 3
    %s27 = scalar_select %p26, 0, %s25
    %s28 = sadd.s32 1, %s17
    %s29 = scalar_select %p26, %s28, %s17
    %p30 = scmp.ge.s32.totalorder %s29, 4
    %s31 = scalar_select %p30, 0, %s29
    %s32 = sadd.s32 1, %s16
    %s33 = scalar_select %p30, %s32, %s16
    %p34 = scmp.ge.s32.totalorder %s33, 2
    %s35 = scalar_select %p34, 0, %s33
    %s36 = sadd.s32 %s17, %s18
    %s37 = ssub.s32 %s36, 1
    %p38 = scmp.gt.s32.totalorder %s37, 0
    %s39 = scalar_select %p38, %s37, 0
    %p40 = scmp.lt.s32.totalorder %s39, 3
    %s41 = scalar_select %p40, %s39, 3
    %s42 = sadd.s32 %s31, %s27
    %s43 = ssub.s32 %s42, 1
    %p44 = scmp.gt.s32.totalorder %s43, 0
    %s45 = scalar_select %p44, %s43, 0
    %p46 = scmp.lt.s32.totalorder %s45, 3
    %s47 = scalar_select %p46, %s45, 3
    %s48 = ssub.s32 %s16, %s35
    %s49 = ssub.s32 %s41, %s47
    %s50 = sor.u32 %s48, %s49
    %p51 = scmp.eq.s32.totalorder %s50, 0
    %s53 = sadd.s32 %s52, 1
    %s54 = scalar_select %p51, %s52, %s53
    %p57 = pneg %p51
    %p58 = scmp.eq.s32.totalorder %s9, 23
    %p59 = por %p57, %p58
    %p60 = scmp.ne.s32.totalorder %s52, %s55
    %p61 = scmp.eq.s32.totalorder %s9, 0
    %p62 = por %p60, %p61
    %p63 = scmp.ne.s32.totalorder %s52, %s55
    %p64 = scmp.eq.s32.totalorder %s14, 23
    %p65 = por %p63, %p64
    %p66 = scmp.ne.s32.totalorder %s55, %s56
    %p67 = scmp.eq.s32.totalorder %s14, 0
    %p68 = por %p66, %p67
    %p69 = scmp.ne.s32.totalorder %s55, %s56
    %p70 = scmp.eq.s32.totalorder %s15, 23
    %p71 = por %p69, %p70
    %p73 = scmp.ne.s32.totalorder %s56, %s72
    %p74 = scmp.eq.s32.totalorder %s15, 0
    %p75 = por %p73, %p74
    %s77 = sadd.s32 %s76, 1
    %p80 = scmp.eq.s32.totalorder %s9, 23
    %p81 = scmp.ne.s32.totalorder %s76, %s78
    %p82 = scmp.eq.s32.totalorder %s9, 0
    %p83 = por %p81, %p82
    %p84 = scmp.ne.s32.totalorder %s76, %s78
    %p85 = scmp.eq.s32.totalorder %s14, 23
    %p86 = por %p84, %p85
    %p87 = scmp.ne.s32.totalorder %s78, %s79
    %p88 = scmp.eq.s32.totalorder %s14, 0
    %p89 = por %p87, %p88
    %p90 = scmp.ne.s32.totalorder %s78, %s79
    %p91 = scmp.eq.s32.totalorder %s15, 23
    %p92 = por %p90, %p91
    %p94 = scmp.ne.s32.totalorder %s79, %s93
    %p95 = scmp.eq.s32.totalorder %s15, 0
    %p96 = por %p94, %p95
    %s98 = sadd.s32 %s97, 1
    %p101 = scmp.eq.s32.totalorder %s9, 23
    %p102 = scmp.ne.s32.totalorder %s97, %s99
    %p103 = scmp.eq.s32.totalorder %s9, 0
    %p104 = por %p102, %p103
    %p105 = scmp.ne.s32.totalorder %s97, %s99
    %p106 = scmp.eq.s32.totalorder %s14, 23
    %p107 = por %p105, %p106
    %p108 = scmp.ne.s32.totalorder %s99, %s100
    %p109 = scmp.eq.s32.totalorder %s14, 0
    %p110 = por %p108, %p109
    %p111 = scmp.ne.s32.totalorder %s99, %s100
    %p112 = scmp.eq.s32.totalorder %s15, 23
    %p113 = por %p111, %p112
    %p115 = scmp.ne.s32.totalorder %s100, %s114
    %p116 = scmp.eq.s32.totalorder %s15, 0
    %p117 = por %p115, %p116
    %s118 = ssub.s32 %s16, %s35
    %s119 = ssub.s32 %s17, %s31
    %s120 = sor.u32 %s118, %s119
    %p121 = scmp.eq.s32.totalorder %s120, 0
    %s123 = sadd.s32 %s122, 1
    %s124 = scalar_select %p121, %s122, %s123
    %p127 = pneg %p121
    %p128 = scmp.eq.s32.totalorder %s9, 23
    %p129 = por %p127, %p128
    %p130 = scmp.ne.s32.totalorder %s122, %s125
    %p131 = scmp.eq.s32.totalorder %s9, 0
    %p132 = por %p130, %p131
    %p133 = scmp.ne.s32.totalorder %s122, %s125
    %p134 = scmp.eq.s32.totalorder %s14, 23
    %p135 = por %p133, %p134
    %p136 = scmp.ne.s32.totalorder %s125, %s126
    %p137 = scmp.eq.s32.totalorder %s14, 0
    %p138 = por %p136, %p137
    %p139 = scmp.ne.s32.totalorder %s125, %s126
    %p140 = scmp.eq.s32.totalorder %s15, 23
    %p141 = por %p139, %p140
    %p143 = scmp.ne.s32.totalorder %s126, %s142
    %p144 = scmp.eq.s32.totalorder %s15, 0
    %p145 = por %p143, %p144
    %p146 = scmp.le.s32.totalorder 1, %s9
    %p147 = scmp.lt.s32.totalorder %s9, 25
    %p148 = pnand %p146, %p147
    %p149 = pneg %p148
    // Predicated region
    $region9: #{mixed_4c_forward.7} parent=5 // pred_check
      _
    $region10: #{mixed_4c_forward.7} parent=5 // pred_check_branch
      %151 = sbr.rel (%p148) target = $region12
    $region11: #{mixed_4c_forward.7} parent=5 // pred_region
      %s152 = ssub.s32 %s9, 1
      // Predicated region
      $region13: #{mixed_4c_forward.7} parent=11 // pred_check
        %p153 = pneg %p89
      $region14: #{mixed_4c_forward.7} parent=11 // pred_check_branch
        %155 = sbr.rel (%p153) target = $region16
      $region15: #{mixed_4c_forward.7} parent=11 // pred_region
        _
      $region16: #{mixed_4c_forward.7} parent=11 // pred_fallthru
        _
      // Predicated region
      $region17: #{mixed_4c_forward.7} parent=11 // pred_check
        %p156 = pneg %p110
      $region18: #{mixed_4c_forward.7} parent=11 // pred_check_branch
        %158 = sbr.rel (%p156) target = $region20
      $region19: #{mixed_4c_forward.7} parent=11 // pred_region
        _
      $region20: #{mixed_4c_forward.7} parent=11 // pred_fallthru
        _
    $region12: #{mixed_4c_forward.7} parent=5 // pred_fallthru
      _
    %p159 = scmp.lt.s32.totalorder %s9, 24
    // Predicated region
    $region21: #{mixed_4c_forward.7} parent=5 // pred_check
      %p160 = pneg %p159
    $region22: #{mixed_4c_forward.7} parent=5 // pred_check_branch
      %162 = sbr.rel (%p160) target = $region24
    $region23: #{mixed_4c_forward.7} parent=5 // pred_region
      // Predicated region
      $region25: #{mixed_4c_forward.7} parent=23 // pred_check
        %p163 = pneg %p62
      $region26: #{mixed_4c_forward.7} parent=23 // pred_check_branch
        %165 = sbr.rel (%p163) target = $region28
      $region27: #{mixed_4c_forward.7} parent=23 // pred_region
        %s166 = sadd.s32 %s17, %s18
        %s167 = ssub.s32 %s166, 1
        %p168 = scmp.gt.s32.totalorder %s167, 0
        %s169 = scalar_select %p168, %s167, 0
        %p170 = scmp.lt.s32.totalorder %s169, 3
        %s171 = scalar_select %p170, %s169, 3
        %p172 = scmp.lt.s32.totalorder %s16, 1
        %s173 = scalar_select %p172, %s16, 1
        %p174 = scmp.lt.s32.totalorder %s171, 3
        %s175 = scalar_select %p174, %s171, 3
        %s176 = smul.addr %s175, 32
        %s177 = smul.addr %s173, 128
        %s178 = sadd.s32 %s176, %s177
        %s179 = smul.addr %s178, 4
        %s180 = scalar_lea.vmem %s0, %s179
        %s181 = sadd.s32 %s17, %s18
        %s182 = ssub.s32 %s181, 1
        %p183 = scmp.gt.s32.totalorder %s182, 0
        %s184 = scalar_select %p183, %s182, 0
        %p185 = scmp.lt.s32.totalorder %s184, 3
        %s186 = scalar_select %p185, %s184, 3
      $region28: #{mixed_4c_forward.7} parent=23 // pred_fallthru
        _
    $region24: #{mixed_4c_forward.7} parent=5 // pred_fallthru
      _
    %p187 = scmp.le.s32.totalorder 1, %s9
    %p188 = scmp.lt.s32.totalorder %s9, 25
    %p189 = pnand %p187, %p188
    %p190 = pneg %p189
    // Predicated region
    $region29: #{mixed_4c_forward.7} parent=5 // pred_check
      _
    $region30: #{mixed_4c_forward.7} parent=5 // pred_check_branch
      %192 = sbr.rel (%p189) target = $region32
    $region31: #{mixed_4c_forward.7} parent=5 // pred_region
      %s193 = ssub.s32 %s9, 1
      %s194 = sadd.s32 %s20, %s21
      %s195 = ssub.s32 %s194, 1
      %p196 = scmp.gt.s32.totalorder %s195, 0
      %s197 = scalar_select %p196, %s195, 0
      %p198 = scmp.lt.s32.totalorder %s197, 3
      %s199 = scalar_select %p198, %s197, 3
      %p200 = scmp.lt.s32.totalorder %s19, 1
      %s201 = scalar_select %p200, %s19, 1
      %p202 = scmp.lt.s32.totalorder %s199, 3
      %s203 = scalar_select %p202, %s199, 3
      %s204 = smul.addr %s203, 32
      %s205 = smul.addr %s201, 128
      %s206 = sadd.s32 %s204, %s205
      %s207 = smul.addr %s206, 4
      %s208 = scalar_lea.vmem %s0, %s207
      %p209 = pneg %p68
      %p210 = pneg %p65
      %p211 = pneg %p89
      %p212 = pneg %p86
      %p213 = pneg %p110
      %p214 = pneg %p107
      %p215 = pneg %p138
      %p216 = pneg %p135
      %p217 = scmp.lt.s32.totalorder %s19, 1
      %s218 = scalar_select %p217, %s19, 1
      %p219 = scmp.lt.s32.totalorder %s20, 3
      %s220 = scalar_select %p219, %s20, 3
      %s221 = smul.addr %s220, 8
      %s222 = smul.addr %s218, 32
      %s223 = sadd.s32 %s221, %s222
      %s224 = smul.addr %s223, 8
      %s225 = scalar_lea.vmem %s3, %s224
      %s226 = sadd.s32 %s20, %s21
      %s227 = ssub.s32 %s226, 1
      %p228 = scmp.gt.s32.totalorder %s227, 0
      %s229 = scalar_select %p228, %s227, 0
      %p230 = scmp.lt.s32.totalorder %s229, 3
      %s231 = scalar_select %p230, %s229, 3
      %p232 = scmp.lt.s32.totalorder %s19, 1
      %s233 = scalar_select %p232, %s19, 1
      %p234 = scmp.lt.s32.totalorder %s231, 3
      %s235 = scalar_select %p234, %s231, 3
      %s236 = smul.addr %s235, 32
      %s237 = smul.addr %s233, 128
      %s238 = sadd.s32 %s236, %s237
      %s239 = smul.addr %s238, 4
      %s240 = scalar_lea.vmem %s0, %s239
      %s241 = sadd.s32 %s20, %s21
      %s242 = ssub.s32 %s241, 1
      %p243 = scmp.gt.s32.totalorder %s242, 0
      %s244 = scalar_select %p243, %s242, 0
      %p245 = scmp.lt.s32.totalorder %s244, 3
      %s246 = scalar_select %p245, %s244, 3
      %p247 = scmp.lt.s32.totalorder %s19, 1
      %s248 = scalar_select %p247, %s19, 1
      %p249 = scmp.lt.s32.totalorder %s20, 3
      %s250 = scalar_select %p249, %s20, 3
      %s251 = smul.addr %s250, 8
      %s252 = smul.addr %s248, 32
      %s253 = sadd.s32 %s251, %s252
      %s254 = smul.addr %s253, 8
      %s255 = scalar_lea.vmem %s3, %s254
      %v257 = vld [vmem:[%s240] sm:$0xff]
      %v258 = vld [vmem:[%s240 + $0x8] sm:$0xff]
      %v259 = vld [vmem:[%s240 + $0x10] sm:$0xff]
      %v260 = vld [vmem:[%s240 + $0x18] sm:$0xff]
      %v261 = vld [vmem:[%s240 + $0x20] sm:$0xff]
      %v262 = vld [vmem:[%s240 + $0x28] sm:$0xff]
      %v263 = vld [vmem:[%s240 + $0x30] sm:$0xff]
      %v264 = vld [vmem:[%s240 + $0x38] sm:$0xff]
      %v265 = vld [vmem:[%s240 + $0x40] sm:$0xff]
      %v266 = vld [vmem:[%s240 + $0x48] sm:$0xff]
      %v267 = vld [vmem:[%s240 + $0x50] sm:$0xff]
      %v268 = vld [vmem:[%s240 + $0x58] sm:$0xff]
      %v269 = vld [vmem:[%s240 + $0x60] sm:$0xff]
      %v270 = vld [vmem:[%s240 + $0x68] sm:$0xff]
      %v271 = vld [vmem:[%s240 + $0x70] sm:$0xff]
      %v272 = vld [vmem:[%s240 + $0x78] sm:$0xff]
      %p273 = scmp.eq.s32.totalorder %s21, 0
      // Predicated region
      $region33: #{mixed_4c_forward.7} parent=31 // pred_check
        %p274 = pneg %p273
      $region34: #{mixed_4c_forward.7} parent=31 // pred_check_branch
        %276 = sbr.rel (%p274) target = $region36
      $region35: #{mixed_4c_forward.7} parent=31 // pred_region
        %277 = vst [vmem:[#allocation2] sm:$0xff] %v257
        %278 = vst [vmem:[#allocation2 + $0x8] sm:$0xff] %v258
        %279 = vst [vmem:[#allocation2 + $0x10] sm:$0xff] %v259
        %280 = vst [vmem:[#allocation2 + $0x18] sm:$0xff] %v260
        %281 = vst [vmem:[#allocation2 + $0x20] sm:$0xff] %v261
        %282 = vst [vmem:[#allocation2 + $0x28] sm:$0xff] %v262
        %283 = vst [vmem:[#allocation2 + $0x30] sm:$0xff] %v263
        %284 = vst [vmem:[#allocation2 + $0x38] sm:$0xff] %v264
        %285 = vst [vmem:[#allocation2 + $0x40] sm:$0xff] %v265
        %286 = vst [vmem:[#allocation2 + $0x48] sm:$0xff] %v266
        %287 = vst [vmem:[#allocation2 + $0x50] sm:$0xff] %v267
        %288 = vst [vmem:[#allocation2 + $0x58] sm:$0xff] %v268
        %289 = vst [vmem:[#allocation2 + $0x60] sm:$0xff] %v269
        %290 = vst [vmem:[#allocation2 + $0x68] sm:$0xff] %v270
        %291 = vst [vmem:[#allocation2 + $0x70] sm:$0xff] %v271
        %292 = vst [vmem:[#allocation2 + $0x78] sm:$0xff] %v272
      $region36: #{mixed_4c_forward.7} parent=31 // pred_fallthru
        _
      %p293 = scmp.gt.s32.totalorder %s21, 0
      // Predicated region
      $region37: #{mixed_4c_forward.7} parent=31 // pred_check
        %p294 = pneg %p293
      $region38: #{mixed_4c_forward.7} parent=31 // pred_check_branch
        %296 = sbr.rel (%p294) target = $region40
      $region39: #{mixed_4c_forward.7} parent=31 // pred_region
        %v297 = vld [vmem:[#allocation2] sm:$0xff]
        %v298 = vld [vmem:[#allocation2 + $0x8] sm:$0xff]
        %v299 = vld [vmem:[#allocation2 + $0x10] sm:$0xff]
        %v300 = vld [vmem:[#allocation2 + $0x18] sm:$0xff]
        %v301 = vld [vmem:[#allocation2 + $0x20] sm:$0xff]
        %v302 = vld [vmem:[#allocation2 + $0x28] sm:$0xff]
        %v303 = vld [vmem:[#allocation2 + $0x30] sm:$0xff]
        %v304 = vld [vmem:[#allocation2 + $0x38] sm:$0xff]
        %v305 = vld [vmem:[#allocation2 + $0x40] sm:$0xff]
        %v306 = vld [vmem:[#allocation2 + $0x48] sm:$0xff]
        %v307 = vld [vmem:[#allocation2 + $0x50] sm:$0xff]
        %v308 = vld [vmem:[#allocation2 + $0x58] sm:$0xff]
        %v309 = vld [vmem:[#allocation2 + $0x60] sm:$0xff]
        %v310 = vld [vmem:[#allocation2 + $0x68] sm:$0xff]
        %v311 = vld [vmem:[#allocation2 + $0x70] sm:$0xff]
        %v312 = vld [vmem:[#allocation2 + $0x78] sm:$0xff]
        %v313 = vmax.bf16 %v297, %v257
        %v314 = vmax.bf16 %v298, %v258
        %v315 = vmax.bf16 %v299, %v259
        %v316 = vmax.bf16 %v300, %v260
        %v317 = vmax.bf16 %v301, %v261
        %v318 = vmax.bf16 %v302, %v262
        %v319 = vmax.bf16 %v303, %v263
        %v320 = vmax.bf16 %v304, %v264
        %v321 = vmax.bf16 %v305, %v265
        %v322 = vmax.bf16 %v306, %v266
        %v323 = vmax.bf16 %v307, %v267
        %v324 = vmax.bf16 %v308, %v268
        %v325 = vmax.bf16 %v309, %v269
        %v326 = vmax.bf16 %v310, %v270
        %v327 = vmax.bf16 %v311, %v271
        %v328 = vmax.bf16 %v312, %v272
        %329 = vst [vmem:[#allocation2] sm:$0xff] %v313
        %330 = vst [vmem:[#allocation2 + $0x8] sm:$0xff] %v314
        %331 = vst [vmem:[#allocation2 + $0x10] sm:$0xff] %v315
        %332 = vst [vmem:[#allocation2 + $0x18] sm:$0xff] %v316
        %333 = vst [vmem:[#allocation2 + $0x20] sm:$0xff] %v317
        %334 = vst [vmem:[#allocation2 + $0x28] sm:$0xff] %v318
        %335 = vst [vmem:[#allocation2 + $0x30] sm:$0xff] %v319
        %336 = vst [vmem:[#allocation2 + $0x38] sm:$0xff] %v320
        %337 = vst [vmem:[#allocation2 + $0x40] sm:$0xff] %v321
        %338 = vst [vmem:[#allocation2 + $0x48] sm:$0xff] %v322
        %339 = vst [vmem:[#allocation2 + $0x50] sm:$0xff] %v323
        %340 = vst [vmem:[#allocation2 + $0x58] sm:$0xff] %v324
        %341 = vst [vmem:[#allocation2 + $0x60] sm:$0xff] %v325
        %342 = vst [vmem:[#allocation2 + $0x68] sm:$0xff] %v326
        %343 = vst [vmem:[#allocation2 + $0x70] sm:$0xff] %v327
        %344 = vst [vmem:[#allocation2 + $0x78] sm:$0xff] %v328
      $region40: #{mixed_4c_forward.7} parent=31 // pred_fallthru
        _
      %p345 = scmp.eq.s32.totalorder %s21, 2
      // Predicated region
      $region41: #{mixed_4c_forward.7} parent=31 // pred_check
        %p346 = pneg %p345
      $region42: #{mixed_4c_forward.7} parent=31 // pred_check_branch
        %348 = sbr.rel (%p346) target = $region44
      $region43: #{mixed_4c_forward.7} parent=31 // pred_region
        %v349 = vld [vmem:[#allocation2] sm:$0xff]
        %v350 = vld [vmem:[#allocation2 + $0x8] sm:$0xff]
        %v351 = vld [vmem:[#allocation2 + $0x10] sm:$0xff]
        %v352 = vld [vmem:[#allocation2 + $0x18] sm:$0xff]
        %v353 = vld [vmem:[#allocation2 + $0x20] sm:$0xff]
        %v354 = vld [vmem:[#allocation2 + $0x28] sm:$0xff]
        %v355 = vld [vmem:[#allocation2 + $0x30] sm:$0xff]
        %v356 = vld [vmem:[#allocation2 + $0x38] sm:$0xff]
        %v357 = vld [vmem:[#allocation2 + $0x40] sm:$0xff]
        %v358 = vld [vmem:[#allocation2 + $0x48] sm:$0xff]
        %v359 = vld [vmem:[#allocation2 + $0x50] sm:$0xff]
        %v360 = vld [vmem:[#allocation2 + $0x58] sm:$0xff]
        %v361 = vld [vmem:[#allocation2 + $0x60] sm:$0xff]
        %v362 = vld [vmem:[#allocation2 + $0x68] sm:$0xff]
        %v363 = vld [vmem:[#allocation2 + $0x70] sm:$0xff]
        %v364 = vld [vmem:[#allocation2 + $0x78] sm:$0xff]
        %v381 = vunpack.c.l.b16 %v349
        %v382 = vunpack.c.h.b16 %v349
        %v383 = vunpack.c.l.b16 %v350
        %v384 = vunpack.c.h.b16 %v350
        %v385 = vunpack.c.l.b16 %v351
        %v386 = vunpack.c.h.b16 %v351
        %v387 = vunpack.c.l.b16 %v352
        %v388 = vunpack.c.h.b16 %v352
        %v389 = vunpack.c.l.b16 %v353
        %v390 = vunpack.c.h.b16 %v353
        %v391 = vunpack.c.l.b16 %v354
        %v392 = vunpack.c.h.b16 %v354
        %v393 = vunpack.c.l.b16 %v355
        %v394 = vunpack.c.h.b16 %v355
        %v395 = vunpack.c.l.b16 %v356
        %v396 = vunpack.c.h.b16 %v356
        %v397 = vunpack.c.l.b16 %v357
        %v398 = vunpack.c.h.b16 %v357
        %v399 = vunpack.c.l.b16 %v358
        %v400 = vunpack.c.h.b16 %v358
        %v401 = vunpack.c.l.b16 %v359
        %v402 = vunpack.c.h.b16 %v359
        %v403 = vunpack.c.l.b16 %v360
        %v404 = vunpack.c.h.b16 %v360
        %v405 = vunpack.c.l.b16 %v361
        %v406 = vunpack.c.h.b16 %v361
        %v407 = vunpack.c.l.b16 %v362
        %v408 = vunpack.c.h.b16 %v362
        %v409 = vunpack.c.l.b16 %v363
        %v410 = vunpack.c.h.b16 %v363
        %v411 = vunpack.c.l.b16 %v364
        %v412 = vunpack.c.h.b16 %v364
        %v413 = vpack.c.b16 %v381, %v381
        %v414 = vpack.c.b16 %v382, %v382
        %v415 = vpack.c.b16 %v383, %v383
        %v416 = vpack.c.b16 %v384, %v384
        %v417 = vpack.c.b16 %v385, %v385
        %v418 = vpack.c.b16 %v386, %v386
        %v419 = vpack.c.b16 %v387, %v387
        %v420 = vpack.c.b16 %v388, %v388
        %v421 = vpack.c.b16 %v389, %v389
        %v422 = vpack.c.b16 %v390, %v390
        %v423 = vpack.c.b16 %v391, %v391
        %v424 = vpack.c.b16 %v392, %v392
        %v425 = vpack.c.b16 %v393, %v393
        %v426 = vpack.c.b16 %v394, %v394
        %v427 = vpack.c.b16 %v395, %v395
        %v428 = vpack.c.b16 %v396, %v396
        %v429 = vpack.c.b16 %v397, %v397
        %v430 = vpack.c.b16 %v398, %v398
        %v431 = vpack.c.b16 %v399, %v399
        %v432 = vpack.c.b16 %v400, %v400
        %v433 = vpack.c.b16 %v401, %v401
        %v434 = vpack.c.b16 %v402, %v402
        %v435 = vpack.c.b16 %v403, %v403
        %v436 = vpack.c.b16 %v404, %v404
        %v437 = vpack.c.b16 %v405, %v405
        %v438 = vpack.c.b16 %v406, %v406
        %v439 = vpack.c.b16 %v407, %v407
        %v440 = vpack.c.b16 %v408, %v408
        %v441 = vpack.c.b16 %v409, %v409
        %v442 = vpack.c.b16 %v410, %v410
        %v443 = vpack.c.b16 %v411, %v411
        %v444 = vpack.c.b16 %v412, %v412
        %v478 = vshrl.u32 %v413, 16
        %v480 = vrot.slane %v478, 7
        %v481 = vshll.u32 %v413, 16
        %v483 = vor.u32 %v480, %v481
        %v485 = vshrl.u32 %v414, 16
        %v487 = vrot.slane %v485, 7
        %v488 = vshll.u32 %v414, 16
        %v490 = vor.u32 %v487, %v488
        %v492 = vshrl.u32 %v415, 16
        %v494 = vrot.slane %v492, 7
        %v495 = vshll.u32 %v415, 16
        %v497 = vor.u32 %v494, %v495
        %v499 = vshrl.u32 %v416, 16
        %v501 = vrot.slane %v499, 7
        %v502 = vshll.u32 %v416, 16
        %v504 = vor.u32 %v501, %v502
        %v506 = vshrl.u32 %v417, 16
        %v508 = vrot.slane %v506, 7
        %v509 = vshll.u32 %v417, 16
        %v511 = vor.u32 %v508, %v509
        %v513 = vshrl.u32 %v418, 16
        %v515 = vrot.slane %v513, 7
        %v516 = vshll.u32 %v418, 16
        %v518 = vor.u32 %v515, %v516
        %v520 = vshrl.u32 %v419, 16
        %v522 = vrot.slane %v520, 7
        %v523 = vshll.u32 %v419, 16
        %v525 = vor.u32 %v522, %v523
        %v527 = vshrl.u32 %v420, 16
        %v529 = vrot.slane %v527, 7
        %v530 = vshll.u32 %v420, 16
        %v532 = vor.u32 %v529, %v530
        %v534 = vshrl.u32 %v421, 16
        %v536 = vrot.slane %v534, 7
        %v537 = vshll.u32 %v421, 16
        %v539 = vor.u32 %v536, %v537
        %v541 = vshrl.u32 %v422, 16
        %v543 = vrot.slane %v541, 7
        %v544 = vshll.u32 %v422, 16
        %v546 = vor.u32 %v543, %v544
        %v548 = vshrl.u32 %v423, 16
        %v550 = vrot.slane %v548, 7
        %v551 = vshll.u32 %v423, 16
        %v553 = vor.u32 %v550, %v551
        %v555 = vshrl.u32 %v424, 16
        %v557 = vrot.slane %v555, 7
        %v558 = vshll.u32 %v424, 16
        %v560 = vor.u32 %v557, %v558
        %v562 = vshrl.u32 %v425, 16
        %v564 = vrot.slane %v562, 7
        %v565 = vshll.u32 %v425, 16
        %v567 = vor.u32 %v564, %v565
        %v569 = vshrl.u32 %v426, 16
        %v571 = vrot.slane %v569, 7
        %v572 = vshll.u32 %v426, 16
        %v574 = vor.u32 %v571, %v572
        %v576 = vshrl.u32 %v427, 16
        %v578 = vrot.slane %v576, 7
        %v579 = vshll.u32 %v427, 16
        %v581 = vor.u32 %v578, %v579
        %v583 = vshrl.u32 %v428, 16
        %v585 = vrot.slane %v583, 7
        %v586 = vshll.u32 %v428, 16
        %v588 = vor.u32 %v585, %v586
        %v590 = vshrl.u32 %v429, 16
        %v592 = vrot.slane %v590, 7
        %v593 = vshll.u32 %v429, 16
        %v595 = vor.u32 %v592, %v593
        %v597 = vshrl.u32 %v430, 16
        %v599 = vrot.slane %v597, 7
        %v600 = vshll.u32 %v430, 16
        %v602 = vor.u32 %v599, %v600
        %v604 = vshrl.u32 %v431, 16
        %v606 = vrot.slane %v604, 7
        %v607 = vshll.u32 %v431, 16
        %v609 = vor.u32 %v606, %v607
        %v611 = vshrl.u32 %v432, 16
        %v613 = vrot.slane %v611, 7
        %v614 = vshll.u32 %v432, 16
        %v616 = vor.u32 %v613, %v614
        %v618 = vshrl.u32 %v433, 16
        %v620 = vrot.slane %v618, 7
        %v621 = vshll.u32 %v433, 16
        %v623 = vor.u32 %v620, %v621
        %v625 = vshrl.u32 %v434, 16
        %v627 = vrot.slane %v625, 7
        %v628 = vshll.u32 %v434, 16
        %v630 = vor.u32 %v627, %v628
        %v632 = vshrl.u32 %v435, 16
        %v634 = vrot.slane %v632, 7
        %v635 = vshll.u32 %v435, 16
        %v637 = vor.u32 %v634, %v635
        %v639 = vshrl.u32 %v436, 16
        %v641 = vrot.slane %v639, 7
        %v642 = vshll.u32 %v436, 16
        %v644 = vor.u32 %v641, %v642
        %v646 = vshrl.u32 %v437, 16
        %v648 = vrot.slane %v646, 7
        %v649 = vshll.u32 %v437, 16
        %v651 = vor.u32 %v648, %v649
        %v653 = vshrl.u32 %v438, 16
        %v655 = vrot.slane %v653, 7
        %v656 = vshll.u32 %v438, 16
        %v658 = vor.u32 %v655, %v656
        %v660 = vshrl.u32 %v439, 16
        %v662 = vrot.slane %v660, 7
        %v663 = vshll.u32 %v439, 16
        %v665 = vor.u32 %v662, %v663
        %v667 = vshrl.u32 %v440, 16
        %v669 = vrot.slane %v667, 7
        %v670 = vshll.u32 %v440, 16
        %v672 = vor.u32 %v669, %v670
        %v674 = vshrl.u32 %v441, 16
        %v676 = vrot.slane %v674, 7
        %v677 = vshll.u32 %v441, 16
        %v679 = vor.u32 %v676, %v677
        %v681 = vshrl.u32 %v442, 16
        %v683 = vrot.slane %v681, 7
        %v684 = vshll.u32 %v442, 16
        %v686 = vor.u32 %v683, %v684
        %v688 = vshrl.u32 %v443, 16
        %v690 = vrot.slane %v688, 7
        %v691 = vshll.u32 %v443, 16
        %v693 = vor.u32 %v690, %v691
        %v695 = vshrl.u32 %v444, 16
        %v697 = vrot.slane %v695, 7
        %v698 = vshll.u32 %v444, 16
        %v700 = vor.u32 %v697, %v698
        %vm733 = vcmask 1040384
        %vm734 = vsmask.f32 256
        %vm735 = vmand %vm733, %vm734
        %v736 = vsel %vm735, %v413, %v483
        %v737 = vsel %vm735, %v414, %v490
        %v738 = vsel %vm735, %v415, %v497
        %v739 = vsel %vm735, %v416, %v504
        %v740 = vsel %vm735, %v417, %v511
        %v741 = vsel %vm735, %v418, %v518
        %v742 = vsel %vm735, %v419, %v525
        %v743 = vsel %vm735, %v420, %v532
        %v744 = vsel %vm735, %v421, %v539
        %v745 = vsel %vm735, %v422, %v546
        %v746 = vsel %vm735, %v423, %v553
        %v747 = vsel %vm735, %v424, %v560
        %v748 = vsel %vm735, %v425, %v567
        %v749 = vsel %vm735, %v426, %v574
        %v750 = vsel %vm735, %v427, %v581
        %v751 = vsel %vm735, %v428, %v588
        %v752 = vsel %vm735, %v429, %v595
        %v753 = vsel %vm735, %v430, %v602
        %v754 = vsel %vm735, %v431, %v609
        %v755 = vsel %vm735, %v432, %v616
        %v756 = vsel %vm735, %v433, %v623
        %v757 = vsel %vm735, %v434, %v630
        %v758 = vsel %vm735, %v435, %v637
        %v759 = vsel %vm735, %v436, %v644
        %v760 = vsel %vm735, %v437, %v651
        %v761 = vsel %vm735, %v438, %v658
        %v762 = vsel %vm735, %v439, %v665
        %v763 = vsel %vm735, %v440, %v672
        %v764 = vsel %vm735, %v441, %v679
        %v765 = vsel %vm735, %v442, %v686
        %v766 = vsel %vm735, %v443, %v693
        %v767 = vsel %vm735, %v444, %v700
        %v768 = vrot.slane %v481, 1
        %v769 = vor.u32 %v478, %v768
        %v770 = vrot.slane %v488, 1
        %v771 = vor.u32 %v485, %v770
        %v772 = vrot.slane %v495, 1
        %v773 = vor.u32 %v492, %v772
        %v774 = vrot.slane %v502, 1
        %v775 = vor.u32 %v499, %v774
        %v776 = vrot.slane %v509, 1
        %v777 = vor.u32 %v506, %v776
        %v778 = vrot.slane %v516, 1
        %v779 = vor.u32 %v513, %v778
        %v780 = vrot.slane %v523, 1
        %v781 = vor.u32 %v520, %v780
        %v782 = vrot.slane %v530, 1
        %v783 = vor.u32 %v527, %v782
        %v784 = vrot.slane %v537, 1
        %v785 = vor.u32 %v534, %v784
        %v786 = vrot.slane %v544, 1
        %v787 = vor.u32 %v541, %v786
        %v788 = vrot.slane %v551, 1
        %v789 = vor.u32 %v548, %v788
        %v790 = vrot.slane %v558, 1
        %v791 = vor.u32 %v555, %v790
        %v792 = vrot.slane %v565, 1
        %v793 = vor.u32 %v562, %v792
        %v794 = vrot.slane %v572, 1
        %v795 = vor.u32 %v569, %v794
        %v796 = vrot.slane %v579, 1
        %v797 = vor.u32 %v576, %v796
        %v798 = vrot.slane %v586, 1
        %v799 = vor.u32 %v583, %v798
        %v800 = vrot.slane %v593, 1
        %v801 = vor.u32 %v590, %v800
        %v802 = vrot.slane %v600, 1
        %v803 = vor.u32 %v597, %v802
        %v804 = vrot.slane %v607, 1
        %v805 = vor.u32 %v604, %v804
        %v806 = vrot.slane %v614, 1
        %v807 = vor.u32 %v611, %v806
        %v808 = vrot.slane %v621, 1
        %v809 = vor.u32 %v618, %v808
        %v810 = vrot.slane %v628, 1
        %v811 = vor.u32 %v625, %v810
        %v812 = vrot.slane %v635, 1
        %v813 = vor.u32 %v632, %v812
        %v814 = vrot.slane %v642, 1
        %v815 = vor.u32 %v639, %v814
        %v816 = vrot.slane %v649, 1
        %v817 = vor.u32 %v646, %v816
        %v818 = vrot.slane %v656, 1
        %v819 = vor.u32 %v653, %v818
        %v820 = vrot.slane %v663, 1
        %v821 = vor.u32 %v660, %v820
        %v822 = vrot.slane %v670, 1
        %v823 = vor.u32 %v667, %v822
        %v824 = vrot.slane %v677, 1
        %v825 = vor.u32 %v674, %v824
        %v826 = vrot.slane %v684, 1
        %v827 = vor.u32 %v681, %v826
        %v828 = vrot.slane %v691, 1
        %v829 = vor.u32 %v688, %v828
        %v830 = vrot.slane %v698, 1
        %v831 = vor.u32 %v695, %v830
        %vm864 = vcmask 1043456
        %vm865 = vsmask.f32 3328
        %vm866 = vmand %vm864, %vm865
        %v867 = vsel %vm866, %v769, %v413
        %v868 = vsel %vm866, %v771, %v414
        %v869 = vsel %vm866, %v773, %v415
        %v870 = vsel %vm866, %v775, %v416
        %v871 = vsel %vm866, %v777, %v417
        %v872 = vsel %vm866, %v779, %v418
        %v873 = vsel %vm866, %v781, %v419
        %v874 = vsel %vm866, %v783, %v420
        %v875 = vsel %vm866, %v785, %v421
        %v876 = vsel %vm866, %v787, %v422
        %v877 = vsel %vm866, %v789, %v423
        %v878 = vsel %vm866, %v791, %v424
        %v879 = vsel %vm866, %v793, %v425
        %v880 = vsel %vm866, %v795, %v426
        %v881 = vsel %vm866, %v797, %v427
        %v882 = vsel %vm866, %v799, %v428
        %v883 = vsel %vm866, %v801, %v429
        %v884 = vsel %vm866, %v803, %v430
        %v885 = vsel %vm866, %v805, %v431
        %v886 = vsel %vm866, %v807, %v432
        %v887 = vsel %vm866, %v809, %v433
        %v888 = vsel %vm866, %v811, %v434
        %v889 = vsel %vm866, %v813, %v435
        %v890 = vsel %vm866, %v815, %v436
        %v891 = vsel %vm866, %v817, %v437
        %v892 = vsel %vm866, %v819, %v438
        %v893 = vsel %vm866, %v821, %v439
        %v894 = vsel %vm866, %v823, %v440
        %v895 = vsel %vm866, %v825, %v441
        %v896 = vsel %vm866, %v827, %v442
        %v897 = vsel %vm866, %v829, %v443
        %v898 = vsel %vm866, %v831, %v444
        %v899 = vmax.bf16 %v736, %v413
        %v900 = vmax.bf16 %v737, %v414
        %v901 = vmax.bf16 %v738, %v415
        %v902 = vmax.bf16 %v739, %v416
        %v903 = vmax.bf16 %v740, %v417
        %v904 = vmax.bf16 %v741, %v418
        %v905 = vmax.bf16 %v742, %v419
        %v906 = vmax.bf16 %v743, %v420
        %v907 = vmax.bf16 %v744, %v421
        %v908 = vmax.bf16 %v745, %v422
        %v909 = vmax.bf16 %v746, %v423
        %v910 = vmax.bf16 %v747, %v424
        %v911 = vmax.bf16 %v748, %v425
        %v912 = vmax.bf16 %v749, %v426
        %v913 = vmax.bf16 %v750, %v427
        %v914 = vmax.bf16 %v751, %v428
        %v915 = vmax.bf16 %v752, %v429
        %v916 = vmax.bf16 %v753, %v430
        %v917 = vmax.bf16 %v754, %v431
        %v918 = vmax.bf16 %v755, %v432
        %v919 = vmax.bf16 %v756, %v433
        %v920 = vmax.bf16 %v757, %v434
        %v921 = vmax.bf16 %v758, %v435
        %v922 = vmax.bf16 %v759, %v436
        %v923 = vmax.bf16 %v760, %v437
        %v924 = vmax.bf16 %v761, %v438
        %v925 = vmax.bf16 %v762, %v439
        %v926 = vmax.bf16 %v763, %v440
        %v927 = vmax.bf16 %v764, %v441
        %v928 = vmax.bf16 %v765, %v442
        %v929 = vmax.bf16 %v766, %v443
        %v930 = vmax.bf16 %v767, %v444
        %v931 = vmax.bf16 %v899, %v867
        %v932 = vmax.bf16 %v900, %v868
        %v933 = vmax.bf16 %v901, %v869
        %v934 = vmax.bf16 %v902, %v870
        %v935 = vmax.bf16 %v903, %v871
        %v936 = vmax.bf16 %v904, %v872
        %v937 = vmax.bf16 %v905, %v873
        %v938 = vmax.bf16 %v906, %v874
        %v939 = vmax.bf16 %v907, %v875
        %v940 = vmax.bf16 %v908, %v876
        %v941 = vmax.bf16 %v909, %v877
        %v942 = vmax.bf16 %v910, %v878
        %v943 = vmax.bf16 %v911, %v879
        %v944 = vmax.bf16 %v912, %v880
        %v945 = vmax.bf16 %v913, %v881
        %v946 = vmax.bf16 %v914, %v882
        %v947 = vmax.bf16 %v915, %v883
        %v948 = vmax.bf16 %v916, %v884
        %v949 = vmax.bf16 %v917, %v885
        %v950 = vmax.bf16 %v918, %v886
        %v951 = vmax.bf16 %v919, %v887
        %v952 = vmax.bf16 %v920, %v888
        %v953 = vmax.bf16 %v921, %v889
        %v954 = vmax.bf16 %v922, %v890
        %v955 = vmax.bf16 %v923, %v891
        %v956 = vmax.bf16 %v924, %v892
        %v957 = vmax.bf16 %v925, %v893
        %v958 = vmax.bf16 %v926, %v894
        %v959 = vmax.bf16 %v927, %v895
        %v960 = vmax.bf16 %v928, %v896
        %v961 = vmax.bf16 %v929, %v897
        %v962 = vmax.bf16 %v930, %v898
        %v963 = vmax.bf16 %v931, %v935
        %v964 = vmax.bf16 %v932, %v936
        %v965 = vmax.bf16 %v933, %v937
        %v966 = vmax.bf16 %v934, %v938
        %v967 = vmax.bf16 %v935, %v939
        %v968 = vmax.bf16 %v936, %v940
        %v969 = vmax.bf16 %v937, %v941
        %v970 = vmax.bf16 %v938, %v942
        %v971 = vmax.bf16 %v939, %v943
        %v972 = vmax.bf16 %v940, %v944
        %v973 = vmax.bf16 %v941, %v945
        %v974 = vmax.bf16 %v942, %v946
        %v975 = vmax.bf16 %v943, %v947
        %v976 = vmax.bf16 %v944, %v948
        %v977 = vmax.bf16 %v945, %v949
        %v978 = vmax.bf16 %v946, %v950
        %v979 = vmax.bf16 %v947, %v951
        %v980 = vmax.bf16 %v948, %v952
        %v981 = vmax.bf16 %v949, %v953
        %v982 = vmax.bf16 %v950, %v954
        %v983 = vmax.bf16 %v951, %v955
        %v984 = vmax.bf16 %v952, %v956
        %v985 = vmax.bf16 %v953, %v957
        %v986 = vmax.bf16 %v954, %v958
        %v987 = vmax.bf16 %v955, %v959
        %v988 = vmax.bf16 %v956, %v960
        %v989 = vmax.bf16 %v957, %v961
        %v990 = vmax.bf16 %v958, %v962
        %v991 = vmax.bf16 %v963, %v939
        %v992 = vmax.bf16 %v964, %v940
        %v993 = vmax.bf16 %v965, %v941
        %v994 = vmax.bf16 %v966, %v942
        %v995 = vmax.bf16 %v967, %v943
        %v996 = vmax.bf16 %v968, %v944
        %v997 = vmax.bf16 %v969, %v945
        %v998 = vmax.bf16 %v970, %v946
        %v999 = vmax.bf16 %v971, %v947
        %v1000 = vmax.bf16 %v972, %v948
        %v1001 = vmax.bf16 %v973, %v949
        %v1002 = vmax.bf16 %v974, %v950
        %v1003 = vmax.bf16 %v975, %v951
        %v1004 = vmax.bf16 %v976, %v952
        %v1005 = vmax.bf16 %v977, %v953
        %v1006 = vmax.bf16 %v978, %v954
        %v1007 = vmax.bf16 %v979, %v955
        %v1008 = vmax.bf16 %v980, %v956
        %v1009 = vmax.bf16 %v981, %v957
        %v1010 = vmax.bf16 %v982, %v958
        %v1011 = vmax.bf16 %v983, %v959
        %v1012 = vmax.bf16 %v984, %v960
        %v1013 = vmax.bf16 %v985, %v961
        %v1014 = vmax.bf16 %v986, %v962
        %v1015 = vmax.bf16 %v987, %v959
        %v1016 = vmax.bf16 %v988, %v960
        %v1017 = vmax.bf16 %v989, %v961
        %v1018 = vmax.bf16 %v990, %v962
        %v1051 = vunpack.c.l.b16 %v963
        %v1052 = vunpack.c.l.b16 %v964
        %v1053 = vunpack.c.l.b16 %v965
        %v1054 = vunpack.c.l.b16 %v966
        %v1055 = vunpack.c.l.b16 %v991
        %v1056 = vunpack.c.l.b16 %v992
        %v1057 = vunpack.c.l.b16 %v993
        %v1058 = vunpack.c.l.b16 %v994
        %v1059 = vunpack.c.l.b16 %v995
        %v1060 = vunpack.c.l.b16 %v996
        %v1061 = vunpack.c.l.b16 %v997
        %v1062 = vunpack.c.l.b16 %v998
        %v1063 = vunpack.c.l.b16 %v999
        %v1064 = vunpack.c.l.b16 %v1000
        %v1065 = vunpack.c.l.b16 %v1001
        %v1066 = vunpack.c.l.b16 %v1002
        %v1067 = vunpack.c.l.b16 %v1003
        %v1068 = vunpack.c.l.b16 %v1004
        %v1069 = vunpack.c.l.b16 %v1005
        %v1070 = vunpack.c.l.b16 %v1006
        %v1071 = vunpack.c.l.b16 %v1007
        %v1072 = vunpack.c.l.b16 %v1008
        %v1073 = vunpack.c.l.b16 %v1009
        %v1074 = vunpack.c.l.b16 %v1010
        %v1075 = vunpack.c.l.b16 %v1011
        %v1076 = vunpack.c.l.b16 %v1012
        %v1077 = vunpack.c.l.b16 %v1013
        %v1078 = vunpack.c.l.b16 %v1014
        %v1079 = vunpack.c.l.b16 %v1015
        %v1080 = vunpack.c.l.b16 %v1016
        %v1081 = vunpack.c.l.b16 %v1017
        %v1082 = vunpack.c.l.b16 %v1018
        %v1083 = vld [vmem:[%s1] sm:$0xf]
        %v1084 = vld [vmem:[%s1 + $0x4] sm:$0xf]
        %v1085 = vld [vmem:[%s1 + $0x8] sm:$0xf]
        %v1086 = vld [vmem:[%s1 + $0xc] sm:$0xf]
        %v1087 = vld [vmem:[%s1 + $0x10] sm:$0xf]
        %v1088 = vld [vmem:[%s1 + $0x14] sm:$0xf]
        %v1089 = vld [vmem:[%s1 + $0x18] sm:$0xf]
        %v1090 = vld [vmem:[%s1 + $0x1c] sm:$0xf]
        %v1091 = vld [vmem:[%s1 + $0x20] sm:$0xf]
        %v1092 = vld [vmem:[%s1 + $0x24] sm:$0xf]
        %v1093 = vld [vmem:[%s1 + $0x28] sm:$0xf]
        %v1094 = vld [vmem:[%s1 + $0x2c] sm:$0xf]
        %v1095 = vld [vmem:[%s1 + $0x30] sm:$0xf]
        %v1096 = vld [vmem:[%s1 + $0x34] sm:$0xf]
        %v1097 = vld [vmem:[%s1 + $0x38] sm:$0xf]
        %v1098 = vld [vmem:[%s1 + $0x3c] sm:$0xf]
        %v1099 = vld [vmem:[%s1 + $0x40] sm:$0xf]
        %v1100 = vld [vmem:[%s1 + $0x44] sm:$0xf]
        %v1101 = vld [vmem:[%s1 + $0x48] sm:$0xf]
        %v1102 = vld [vmem:[%s1 + $0x4c] sm:$0xf]
        %v1103 = vld [vmem:[%s1 + $0x50] sm:$0xf]
        %v1104 = vld [vmem:[%s1 + $0x54] sm:$0xf]
        %v1105 = vld [vmem:[%s1 + $0x58] sm:$0xf]
        %v1106 = vld [vmem:[%s1 + $0x5c] sm:$0xf]
        %v1107 = vld [vmem:[%s1 + $0x60] sm:$0xf]
        %v1108 = vld [vmem:[%s1 + $0x64] sm:$0xf]
        %v1109 = vld [vmem:[%s1 + $0x68] sm:$0xf]
        %v1110 = vld [vmem:[%s1 + $0x6c] sm:$0xf]
        %v1111 = vld [vmem:[%s1 + $0x70] sm:$0xf]
        %v1112 = vld [vmem:[%s1 + $0x74] sm:$0xf]
        %v1113 = vld [vmem:[%s1 + $0x78] sm:$0xf]
        %v1114 = vld [vmem:[%s1 + $0x7c] sm:$0xf]
        %v1115 = vld [vmem:[%s1 + $0x80] sm:$0xf]
        %v1116 = vld [vmem:[%s1 + $0x84] sm:$0xf]
        %v1117 = vld [vmem:[%s1 + $0x88] sm:$0xf]
        %v1118 = vld [vmem:[%s1 + $0x8c] sm:$0xf]
        %v1119 = vld [vmem:[%s1 + $0x90] sm:$0xf]
        %v1120 = vld [vmem:[%s1 + $0x94] sm:$0xf]
        %v1121 = vld [vmem:[%s1 + $0x98] sm:$0xf]
        %v1122 = vld [vmem:[%s1 + $0x9c] sm:$0xf]
        %v1123 = vld [vmem:[%s1 + $0xa0] sm:$0xf]
        %v1124 = vld [vmem:[%s1 + $0xa4] sm:$0xf]
        %v1125 = vld [vmem:[%s1 + $0xa8] sm:$0xf]
        %v1126 = vld [vmem:[%s1 + $0xac] sm:$0xf]
        %v1127 = vld [vmem:[%s1 + $0xb0] sm:$0xf]
        %v1128 = vld [vmem:[%s1 + $0xb4] sm:$0xf]
        %v1129 = vld [vmem:[%s1 + $0xb8] sm:$0xf]
        %v1130 = vld [vmem:[%s1 + $0xbc] sm:$0xf]
        %v1131 = vld [vmem:[%s1 + $0xc0] sm:$0xf]
        %v1132 = vld [vmem:[%s1 + $0xc4] sm:$0xf]
        %v1133 = vld [vmem:[%s1 + $0xc8] sm:$0xf]
        %v1134 = vld [vmem:[%s1 + $0xcc] sm:$0xf]
        %v1135 = vld [vmem:[%s1 + $0xd0] sm:$0xf]
        %v1136 = vld [vmem:[%s1 + $0xd4] sm:$0xf]
        %v1137 = vld [vmem:[%s1 + $0xd8] sm:$0xf]
        %v1138 = vld [vmem:[%s1 + $0xdc] sm:$0xf]
        %v1139 = vld [vmem:[%s1 + $0xe0] sm:$0xf]
        %v1140 = vld [vmem:[%s1 + $0xe4] sm:$0xf]
        %v1141 = vld [vmem:[%s1 + $0xe8] sm:$0xf]
        %v1142 = vld [vmem:[%s1 + $0xec] sm:$0xf]
        %v1143 = vld [vmem:[%s1 + $0xf0] sm:$0xf]
        %v1144 = vld [vmem:[%s1 + $0xf4] sm:$0xf]
        %v1145 = vld [vmem:[%s1 + $0xf8] sm:$0xf]
        %v1146 = vld [vmem:[%s1 + $0xfc] sm:$0xf]
        %v1147 = vld [vmem:[%s2] sm:$0x1]
        %v1149 = vlaneseq
        %v1150 = vshrl.u32 %v1149, 7
        %v1151 = vsub.s32 0, %v1150
        %v1152 = vrot.slane %v1147, %v1151
        %v1154 = vpack.c.b16 %v1055, %v1051
        %v1155 = vpack.c.b16 %v1056, %v1052
        %v1156 = vpack.c.b16 %v1057, %v1053
        %v1157 = vpack.c.b16 %v1058, %v1054
        %v1158 = vpack.c.b16 %v1063, %v1059
        %v1159 = vpack.c.b16 %v1064, %v1060
        %v1160 = vpack.c.b16 %v1065, %v1061
        %v1161 = vpack.c.b16 %v1066, %v1062
        %v1162 = vpack.c.b16 %v1071, %v1067
        %v1163 = vpack.c.b16 %v1072, %v1068
        %v1164 = vpack.c.b16 %v1073, %v1069
        %v1165 = vpack.c.b16 %v1074, %v1070
        %v1166 = vpack.c.b16 %v1079, %v1075
        %v1167 = vpack.c.b16 %v1080, %v1076
        %v1168 = vpack.c.b16 %v1081, %v1077
        %v1169 = vpack.c.b16 %v1082, %v1078
        %v1250 = vunpack.c.l.b16 %v1083
        %v1251 = vunpack.c.l.b16 %v1084
        %v1252 = vunpack.c.l.b16 %v1085
        %v1253 = vunpack.c.l.b16 %v1086
        %v1254 = vunpack.c.l.b16 %v1087
        %v1255 = vunpack.c.l.b16 %v1088
        %v1256 = vunpack.c.l.b16 %v1089
        %v1257 = vunpack.c.l.b16 %v1090
        %v1258 = vunpack.c.l.b16 %v1091
        %v1259 = vunpack.c.l.b16 %v1092
        %v1260 = vunpack.c.l.b16 %v1093
        %v1261 = vunpack.c.l.b16 %v1094
        %v1262 = vunpack.c.l.b16 %v1095
        %v1263 = vunpack.c.l.b16 %v1096
        %v1264 = vunpack.c.l.b16 %v1097
        %v1265 = vunpack.c.l.b16 %v1098
        %v1266 = vunpack.c.l.b16 %v1099
        %v1267 = vunpack.c.l.b16 %v1100
        %v1268 = vunpack.c.l.b16 %v1101
        %v1269 = vunpack.c.l.b16 %v1102
        %v1270 = vunpack.c.l.b16 %v1103
        %v1271 = vunpack.c.l.b16 %v1104
        %v1272 = vunpack.c.l.b16 %v1105
        %v1273 = vunpack.c.l.b16 %v1106
        %v1274 = vunpack.c.l.b16 %v1107
        %v1275 = vunpack.c.l.b16 %v1108
        %v1276 = vunpack.c.l.b16 %v1109
        %v1277 = vunpack.c.l.b16 %v1110
        %v1278 = vunpack.c.l.b16 %v1111
        %v1279 = vunpack.c.l.b16 %v1112
        %v1280 = vunpack.c.l.b16 %v1113
        %v1281 = vunpack.c.l.b16 %v1114
        %v1282 = vunpack.c.l.b16 %v1115
        %v1283 = vunpack.c.l.b16 %v1116
        %v1284 = vunpack.c.l.b16 %v1117
        %v1285 = vunpack.c.l.b16 %v1118
        %v1286 = vunpack.c.l.b16 %v1119
        %v1287 = vunpack.c.l.b16 %v1120
        %v1288 = vunpack.c.l.b16 %v1121
        %v1289 = vunpack.c.l.b16 %v1122
        %v1290 = vunpack.c.l.b16 %v1123
        %v1291 = vunpack.c.l.b16 %v1124
        %v1292 = vunpack.c.l.b16 %v1125
        %v1293 = vunpack.c.l.b16 %v1126
        %v1294 = vunpack.c.l.b16 %v1127
        %v1295 = vunpack.c.l.b16 %v1128
        %v1296 = vunpack.c.l.b16 %v1129
        %v1297 = vunpack.c.l.b16 %v1130
        %v1298 = vunpack.c.l.b16 %v1131
        %v1299 = vunpack.c.l.b16 %v1132
        %v1300 = vunpack.c.l.b16 %v1133
        %v1301 = vunpack.c.l.b16 %v1134
        %v1302 = vunpack.c.l.b16 %v1135
        %v1303 = vunpack.c.l.b16 %v1136
        %v1304 = vunpack.c.l.b16 %v1137
        %v1305 = vunpack.c.l.b16 %v1138
        %v1306 = vunpack.c.l.b16 %v1139
        %v1307 = vunpack.c.l.b16 %v1140
        %v1308 = vunpack.c.l.b16 %v1141
        %v1309 = vunpack.c.l.b16 %v1142
        %v1310 = vunpack.c.l.b16 %v1143
        %v1311 = vunpack.c.l.b16 %v1144
        %v1312 = vunpack.c.l.b16 %v1145
        %v1313 = vunpack.c.l.b16 %v1146
        %v1314 = vpack.c.b16 %v1251, %v1250
        %v1315 = vpack.c.b16 %v1253, %v1252
        %v1316 = vpack.c.b16 %v1255, %v1254
        %v1317 = vpack.c.b16 %v1257, %v1256
        %v1318 = vpack.c.b16 %v1259, %v1258
        %v1319 = vpack.c.b16 %v1261, %v1260
        %v1320 = vpack.c.b16 %v1263, %v1262
        %v1321 = vpack.c.b16 %v1265, %v1264
        %v1322 = vpack.c.b16 %v1267, %v1266
        %v1323 = vpack.c.b16 %v1269, %v1268
        %v1324 = vpack.c.b16 %v1271, %v1270
        %v1325 = vpack.c.b16 %v1273, %v1272
        %v1326 = vpack.c.b16 %v1275, %v1274
        %v1327 = vpack.c.b16 %v1277, %v1276
        %v1328 = vpack.c.b16 %v1279, %v1278
        %v1329 = vpack.c.b16 %v1281, %v1280
        %v1330 = vpack.c.b16 %v1283, %v1282
        %v1331 = vpack.c.b16 %v1285, %v1284
        %v1332 = vpack.c.b16 %v1287, %v1286
        %v1333 = vpack.c.b16 %v1289, %v1288
        %v1334 = vpack.c.b16 %v1291, %v1290
        %v1335 = vpack.c.b16 %v1293, %v1292
        %v1336 = vpack.c.b16 %v1295, %v1294
        %v1337 = vpack.c.b16 %v1297, %v1296
        %v1338 = vpack.c.b16 %v1299, %v1298
        %v1339 = vpack.c.b16 %v1301, %v1300
        %v1340 = vpack.c.b16 %v1303, %v1302
        %v1341 = vpack.c.b16 %v1305, %v1304
        %v1342 = vpack.c.b16 %v1307, %v1306
        %v1343 = vpack.c.b16 %v1309, %v1308
        %v1344 = vpack.c.b16 %v1311, %v1310
        %v1345 = vpack.c.b16 %v1313, %v1312
        %1378 = vmatprep.subr.bf16.mxu0 0
        %1379 = vmatpush1.bf16.msra.mxu0 %v1314
        %1380 = vmatprep.subr.bf16.mxu0 0
        %1381 = vmatpush1.bf16.msra.mxu0 %v1315
        %1382 = vmatprep.subr.bf16.mxu0 0
        %1383 = vmatpush1.bf16.msra.mxu0 %v1316
        %1384 = vmatprep.subr.bf16.mxu0 0
        %1385 = vmatpush1.bf16.msra.mxu0 %v1317
        %1386 = vmatprep.subr.bf16.mxu0 0
        %1387 = vmatpush1.bf16.msra.mxu0 %v1318
        %1388 = vmatprep.subr.bf16.mxu0 0
        %1389 = vmatpush1.bf16.msra.mxu0 %v1319
        %1390 = vmatprep.subr.bf16.mxu0 0
        %1391 = vmatpush1.bf16.msra.mxu0 %v1320
        %1392 = vmatprep.subr.bf16.mxu0 0
        %1393 = vmatpush1.bf16.msra.mxu0 %v1321
        %1394 = vmatprep.subr.bf16.mxu0 0
        %1395 = vmatpush1.bf16.msra.mxu0 %v1322
        %1396 = vmatprep.subr.bf16.mxu0 0
        %1397 = vmatpush1.bf16.msra.mxu0 %v1323
        %1398 = vmatprep.subr.bf16.mxu0 0
        %1399 = vmatpush1.bf16.msra.mxu0 %v1324
        %1400 = vmatprep.subr.bf16.mxu0 0
        %1401 = vmatpush1.bf16.msra.mxu0 %v1325
        %1402 = vmatprep.subr.bf16.mxu0 0
        %1403 = vmatpush1.bf16.msra.mxu0 %v1326
        %1404 = vmatprep.subr.bf16.mxu0 0
        %1405 = vmatpush1.bf16.msra.mxu0 %v1327
        %1406 = vmatprep.subr.bf16.mxu0 0
        %1407 = vmatpush1.bf16.msra.mxu0 %v1328
        %1408 = vmatprep.subr.bf16.mxu0 0
        %1409 = vmatpush1.bf16.msra.mxu0 %v1329
        %1410 = vmatprep.mubr.bf16.mxu0 %v1155
        %1411 = vmatmul.mubr.bf16.gmra.mrb[0].mxu0 %v1154
        %v1412 = vpop.f32.mrb[0].mxu0
        %v1413 = vadd.f32 %v1152, %v1412
        %v1414 = vpop.f32.mrb[0].mxu0
        %v1415 = vpop.f32.mrb[0].mxu0
        %v1416 = vadd.f32 %v1152, %v1415
        %v1417 = vpop.f32.mrb[0].mxu0
        %1418 = vmatprep.mubr.bf16.mxu0 %v1159
        %1419 = vmatmul.mubr.bf16.gmra.mrb[0].mxu0 %v1158
        %v1420 = vpop.f32.mrb[0].mxu0
        %v1421 = vadd.f32 %v1152, %v1420
        %v1422 = vpop.f32.mrb[0].mxu0
        %v1423 = vpop.f32.mrb[0].mxu0
        %v1424 = vadd.f32 %v1152, %v1423
        %v1425 = vpop.f32.mrb[0].mxu0
        %1426 = vmatprep.mubr.bf16.mxu0 %v1163
        %1427 = vmatmul.mubr.bf16.gmra.mrb[0].mxu0 %v1162
        %v1428 = vpop.f32.mrb[0].mxu0
        %v1429 = vadd.f32 %v1152, %v1428
        %v1430 = vpop.f32.mrb[0].mxu0
        %v1431 = vpop.f32.mrb[0].mxu0
        %v1432 = vadd.f32 %v1152, %v1431
        %v1433 = vpop.f32.mrb[0].mxu0
        %1434 = vmatprep.mubr.bf16.mxu0 %v1167
        %1435 = vmatmul.mubr.bf16.gmra.mrb[0].mxu0 %v1166
        %v1436 = vpop.f32.mrb[0].mxu0
        %v1437 = vadd.f32 %v1152, %v1436
        %v1438 = vpop.f32.mrb[0].mxu0
        %v1439 = vpop.f32.mrb[0].mxu0
        %v1440 = vadd.f32 %v1152, %v1439
        %v1441 = vpop.f32.mrb[0].mxu0
        %1442 = vdwg.mxu0
        %1443 = vmatprep.subr.bf16.mxu0 0
        %1444 = vmatpush1.bf16.msra.mxu0 %v1330
        %1445 = vmatprep.subr.bf16.mxu0 0
        %1446 = vmatpush1.bf16.msra.mxu0 %v1331
        %1447 = vmatprep.subr.bf16.mxu0 0
        %1448 = vmatpush1.bf16.msra.mxu0 %v1332
        %1449 = vmatprep.subr.bf16.mxu0 0
        %1450 = vmatpush1.bf16.msra.mxu0 %v1333
        %1451 = vmatprep.subr.bf16.mxu0 0
        %1452 = vmatpush1.bf16.msra.mxu0 %v1334
        %1453 = vmatprep.subr.bf16.mxu0 0
        %1454 = vmatpush1.bf16.msra.mxu0 %v1335
        %1455 = vmatprep.subr.bf16.mxu0 0
        %1456 = vmatpush1.bf16.msra.mxu0 %v1336
        %1457 = vmatprep.subr.bf16.mxu0 0
        %1458 = vmatpush1.bf16.msra.mxu0 %v1337
        %1459 = vmatprep.subr.bf16.mxu0 0
        %1460 = vmatpush1.bf16.msra.mxu0 %v1338
        %1461 = vmatprep.subr.bf16.mxu0 0
        %1462 = vmatpush1.bf16.msra.mxu0 %v1339
        %1463 = vmatprep.subr.bf16.mxu0 0
        %1464 = vmatpush1.bf16.msra.mxu0 %v1340
        %1465 = vmatprep.subr.bf16.mxu0 0
        %1466 = vmatpush1.bf16.msra.mxu0 %v1341
        %1467 = vmatprep.subr.bf16.mxu0 0
        %1468 = vmatpush1.bf16.msra.mxu0 %v1342
        %1469 = vmatprep.subr.bf16.mxu0 0
        %1470 = vmatpush1.bf16.msra.mxu0 %v1343
        %1471 = vmatprep.subr.bf16.mxu0 0
        %1472 = vmatpush1.bf16.msra.mxu0 %v1344
        %1473 = vmatprep.subr.bf16.mxu0 0
        %1474 = vmatpush1.bf16.msra.mxu0 %v1345
        %1475 = vmatprep.mubr.bf16.mxu0 %v1157
        %1476 = vmatmul.mubr.bf16.gmra.mrb[0].mxu0 %v1156
        %v1477 = vpop.f32.mrb[0].mxu0
        %v1478 = vadd.f32 %v1413, %v1477
        %v1479 = vpop.f32.mrb[0].mxu0
        %v1480 = vpop.f32.mrb[0].mxu0
        %v1481 = vadd.f32 %v1416, %v1480
        %v1482 = vpop.f32.mrb[0].mxu0
        %1483 = vmatprep.mubr.bf16.mxu0 %v1161
        %1484 = vmatmul.mubr.bf16.gmra.mrb[0].mxu0 %v1160
        %v1485 = vpop.f32.mrb[0].mxu0
        %v1486 = vadd.f32 %v1421, %v1485
        %v1487 = vpop.f32.mrb[0].mxu0
        %v1488 = vpop.f32.mrb[0].mxu0
        %v1489 = vadd.f32 %v1424, %v1488
        %v1490 = vpop.f32.mrb[0].mxu0
        %1491 = vmatprep.mubr.bf16.mxu0 %v1165
        %1492 = vmatmul.mubr.bf16.gmra.mrb[0].mxu0 %v1164
        %v1493 = vpop.f32.mrb[0].mxu0
        %v1494 = vadd.f32 %v1429, %v1493
        %v1495 = vpop.f32.mrb[0].mxu0
        %v1496 = vpop.f32.mrb[0].mxu0
        %v1497 = vadd.f32 %v1432, %v1496
        %v1498 = vpop.f32.mrb[0].mxu0
        %1499 = vmatprep.mubr.bf16.mxu0 %v1169
        %1500 = vmatmul.mubr.bf16.gmra.mrb[0].mxu0 %v1168
        %v1501 = vpop.f32.mrb[0].mxu0
        %v1502 = vadd.f32 %v1437, %v1501
        %v1503 = vpop.f32.mrb[0].mxu0
        %v1504 = vpop.f32.mrb[0].mxu0
        %v1505 = vadd.f32 %v1440, %v1504
        %v1506 = vpop.f32.mrb[0].mxu0
        %1507 = vdwg.mxu0
        %v1508 = vmax.f32 %v1478, 0.0
        %v1509 = vmax.f32 %v1481, 0.0
        %v1510 = vmax.f32 %v1486, 0.0
        %v1511 = vmax.f32 %v1489, 0.0
        %v1512 = vmax.f32 %v1494, 0.0
        %v1513 = vmax.f32 %v1497, 0.0
        %v1514 = vmax.f32 %v1502, 0.0
        %v1515 = vmax.f32 %v1505, 0.0
        %vm1516 = vcmask 523264
        %1517 = vst.msk [vmem:[%s255] sm:$0xff] %vm1516, %v1508
        %1518 = vst.msk [vmem:[%s255 + $0x8] sm:$0xff] %vm1516, %v1509
        %1519 = vst.msk [vmem:[%s255 + $0x10] sm:$0xff] %vm1516, %v1510
        %1520 = vst.msk [vmem:[%s255 + $0x18] sm:$0xff] %vm1516, %v1511
        %1521 = vst.msk [vmem:[%s255 + $0x20] sm:$0xff] %vm1516, %v1512
        %1522 = vst.msk [vmem:[%s255 + $0x28] sm:$0xff] %vm1516, %v1513
        %1523 = vst.msk [vmem:[%s255 + $0x30] sm:$0xff] %vm1516, %v1514
        %1524 = vst.msk [vmem:[%s255 + $0x38] sm:$0xff] %vm1516, %v1515
      $region44: #{mixed_4c_forward.7} parent=31 // pred_fallthru
        _
      %p1525 = scmp.lt.s32.totalorder %s19, 1
      %s1526 = scalar_select %p1525, %s19, 1
      %p1527 = scmp.lt.s32.totalorder %s20, 3
      %s1528 = scalar_select %p1527, %s20, 3
      %s1529 = smul.addr %s1528, 8
      %s1530 = smul.addr %s1526, 32
      %s1531 = sadd.s32 %s1529, %s1530
      %s1532 = smul.addr %s1531, 8
      %s1533 = scalar_lea.vmem %s3, %s1532
      // Predicated region
      $region45: #{mixed_4c_forward.7} parent=31 // pred_check
        %p1534 = pneg %p135
      $region46: #{mixed_4c_forward.7} parent=31 // pred_check_branch
        %1536 = sbr.rel (%p1534) target = $region48
      $region47: #{mixed_4c_forward.7} parent=31 // pred_region
        _
      $region48: #{mixed_4c_forward.7} parent=31 // pred_fallthru
        _
    $region32: #{mixed_4c_forward.7} parent=5 // pred_fallthru
      _
    %p1537 = scmp.le.s32.totalorder 2, %s9
    // Predicated region
    $region49: #{mixed_4c_forward.7} parent=5 // pred_check
      %p1538 = pneg %p1537
    $region50: #{mixed_4c_forward.7} parent=5 // pred_check_branch
      %1540 = sbr.rel (%p1538) target = $region52
    $region51: #{mixed_4c_forward.7} parent=5 // pred_region
      %s1541 = ssub.s32 %s9, 2
      // Predicated region
      $region53: #{mixed_4c_forward.7} parent=51 // pred_check
        %p1542 = pneg %p141
      $region54: #{mixed_4c_forward.7} parent=51 // pred_check_branch
        %1544 = sbr.rel (%p1542) target = $region56
      $region55: #{mixed_4c_forward.7} parent=51 // pred_region
        %p1545 = scmp.lt.s32.totalorder %s22, 1
        %s1546 = scalar_select %p1545, %s22, 1
        %p1547 = scmp.lt.s32.totalorder %s23, 3
        %s1548 = scalar_select %p1547, %s23, 3
        %s1549 = smul.addr %s1548, 8
        %s1550 = smul.addr %s1546, 32
        %s1551 = sadd.s32 %s1549, %s1550
        %s1552 = smul.addr %s1551, 8
        %s1553 = scalar_lea.vmem %s3, %s1552
      $region56: #{mixed_4c_forward.7} parent=51 // pred_fallthru
        _
    $region52: #{mixed_4c_forward.7} parent=5 // pred_fallthru
      _
  $region6: #{mixed_4c_forward.7} parent=0 // loop_footer
    %s13 = sadd.s32 1, %s9
  $region7: #{mixed_4c_forward.7} parent=0 // loop_footer_branch
    %8 = sbr.rel target = $region3
  $region8: #{mixed_4c_forward.7} parent=0 // loop_exit
    _

</llo_original>
